<compile_context>
chip_gen: v6e
topology: v6e:2x2x1
jax: 0.10.0
libtpu: 0.0.40
codegen_flags: <defaults>
</compile_context>

<pallas_src>
import functools
import math

import jax
import jax.numpy as jnp
from jax.experimental import pallas as pl
from jax.experimental.pallas import tpu as pltpu

# ---------------- small synthetic config ----------------
EMBED_DIMS  = 128    # transformer.embed_dims
NUM_CLASSES = 10
CODE_SIZE   = 10
PTS_CHANNEL = 64     # view_cfg.pts_channel
NUM_QUERY   = 128
NUM_DEC     = 3      # transformer.decoder.num_layers
BATCH       = 2
BEV_H = BEV_W = 16
UCONV_NUM   = 1      # unified_conv['num_conv']
UCONV_K     = 3      # unified_conv kernel_size (default 3)
PC_RANGE    = (-51.2, -51.2, -5.0, 51.2, 51.2, 3.0)

# bf16 on MXU inputs (accumulation stays f32 via preferred_element_type);
# element-wise / LayerNorm / BN / decode math stays in f32 on the VPU/EUP.
MXU_DTYPE = jnp.bfloat16

# lane-packed head output: one 128-lane row per query, single unmasked store
PACK_WIDTH = 128
CLS_OFF    = 0       # [0,  0+NUM_CLASSES)
BOX_OFF    = 16      # [16, 16+CODE_SIZE)
REF_OFF    = 32      # [32, 32+3)


# ============================================================================
# Kernel 1: fused trans_conv_pts (1x1) + unified_conv (3x3 + BN + ReLU) stack.
# Grid = (B,), one batch element per step, everything resident in VMEM.
# Layout trick: activations live in a width-padded flat layout [H*(W+2), D]
# (halo columns interleaved), so every 3x3 tap is a contiguous sublane slice.
# ============================================================================
def _fused_bev_kernel(pts_ref, keep_ref, pts_w_ref, pts_b_ref, *rest,
                      num_conv, h, w):
    """pts_ref: [1, H*(W+2), Cpts] bf16 (channels-last, width-padded);
    keep_ref: [H*(W+2), 1] f32 (0 on halo columns, 1 elsewhere);
    pts_w_ref: [Cpts, D] bf16; pts_b_ref: [1, D] f32;
    per unified_conv layer: uw [9*D, D] bf16 (row = tap*D + cin), bn scale/shift [1, D];
    outputs: bev [1, H*W, D] f32 (channels-last), raw [1, D, H*W] f32 (NCHW);
    scratch: pad_ref [(H+2)*(W+2)+2, D] f32."""
    layer_refs = rest[:3 * num_conv]
    bev_ref = rest[3 * num_conv]
    raw_ref = rest[3 * num_conv + 1]
    pad_ref = rest[3 * num_conv + 2]

    d = bev_ref.shape[2]
    wp = w + 2
    np_rows = h * wp                      # rows of the (width-padded) activation
    woff = 1 + wp                         # activation slab offset inside pad_ref
    total = (h + 2) * wp + 2              # pad_ref rows (incl. 1-row guards)
    keep = keep_ref[...]                  # [np_rows, 1] f32

    # Zero only the top/bottom halo rows (+ guard rows) once per step;
    # the interior slab is always overwritten, halo columns handled by `keep`.
    pad_ref[0:woff, :] = jnp.zeros((woff, d), jnp.float32)
    pad_ref[woff + np_rows:total, :] = jnp.zeros((total - woff - np_rows, d),
                                                 jnp.float32)

    # 1x1 trans_conv_pts: bf16 MXU, f32 accumulate, then halo-column mask.
    a = jnp.dot(pts_ref[0], pts_w_ref[...],
                preferred_element_type=jnp.float32)            # [np_rows, D]
    a = (a + pts_b_ref[...]) * keep
    pad_ref[woff:woff + np_rows, :] = a

    # unified_conv stack: 3x3 (pad=1, bias=False) + folded BatchNorm + ReLU.
    # All 9 taps are contiguous slices of pad_ref; one K = 9*D matmul per layer.
    for l in range(num_conv):
        uw_ref, sc_ref, sh_ref = layer_refs[3 * l:3 * l + 3]
        taps = []
        for ki in range(3):
            for kj in range(3):
                st = ki * wp + kj
                taps.append(pad_ref[st:st + np_rows, :].astype(MXU_DTYPE))
        x9 = jnp.concatenate(taps, axis=1)                     # [np_rows, 9*D] bf16
        acc = jnp.dot(x9, uw_ref[...],
                      preferred_element_type=jnp.float32)      # [np_rows, D] f32
        a = jnp.maximum(acc * sc_ref[...] + sh_ref[...], 0.0) * keep
        if l + 1 < num_conv:
            pad_ref[woff:woff + np_rows, :] = a

    # Strip the interleaved halo columns -> [H*W, D] and emit both layouts.
    valid = jnp.concatenate(
        [a[i * wp + 1:i * wp + 1 + w, :] for i in range(h)], axis=0)
    bev_ref[0] = valid.astype(bev_ref.dtype)                   # channels-last
    raw_ref[0] = jnp.transpose(valid, (1, 0)).astype(raw_ref.dtype)  # NCHW (in-kernel XLU)


def fused_bev_pallas(pts_cat, params):
    """pts_cat: [B, Cpts, H, W] (NCHW). Returns (bev [B, H*W, D], raw [B, D, H*W])."""
    b, cpts, h, w = pts_cat.shape
    d = EMBED_DIMS
    wp = w + 2
    np_rows = h * wp
    uconv = params["uconv"]
    num_conv = len(uconv)

    # channels-last, width-padded, bf16 MXU input (tiny one-time XLA transform)
    x = jnp.transpose(pts_cat, (0, 2, 3, 1))                   # [B, H, W, Cpts]
    x = jnp.pad(x, ((0, 0), (0, 0), (1, 1), (0, 0)))           # [B, H, W+2, Cpts]
    x = x.reshape(b, np_rows, cpts).astype(MXU_DTYPE)

    keep = jnp.ones((h, wp, 1), jnp.float32)
    keep = keep.at[:, 0, :].set(0.0).at[:, wp - 1, :].set(0.0)
    keep = keep.reshape(np_rows, 1)

    inputs = [x, keep, params["pts_w"], params["pts_b"]]
    in_specs = [
        pl.BlockSpec((1, np_rows, cpts), lambda i: (i, 0, 0)),
        pl.BlockSpec((np_rows, 1), lambda i: (0, 0)),
        pl.BlockSpec((cpts, d), lambda i: (0, 0)),
        pl.BlockSpec((1, d), lambda i: (0, 0)),
    ]
    for (uw, sc, sh) in uconv:
        inputs += [uw, sc, sh]
        in_specs += [
            pl.BlockSpec(uw.shape, lambda i: (0, 0)),
            pl.BlockSpec((1, d), lambda i: (0, 0)),
            pl.BlockSpec((1, d), lambda i: (0, 0)),
        ]

    kern = functools.partial(_fused_bev_kernel, num_conv=num_conv, h=h, w=w)
    bev, raw = pl.pallas_call(
        kern,
        out_shape=(jax.ShapeDtypeStruct((b, h * w, d), jnp.float32),
                   jax.ShapeDtypeStruct((b, d, h * w), jnp.float32)),
        grid_spec=pltpu.PrefetchScalarGridSpec(
            num_scalar_prefetch=0,
            grid=(b,),
            in_specs=in_specs,
            out_specs=(pl.BlockSpec((1, h * w, d), lambda i: (i, 0, 0)),
                       pl.BlockSpec((1, d, h * w), lambda i: (i, 0, 0))),
            scratch_shapes=[pltpu.VMEM(((h + 2) * wp + 2, d), jnp.float32)],
        ),
        compiler_params=pltpu.CompilerParams(dimension_semantics=("parallel",)),
    )(*inputs)
    return bev, raw


# ============================================================================
# Kernel 2: all decoder levels of the cls / reg branches + box decoding.
#   cls: (Linear -> LayerNorm -> ReLU) x2 -> Linear
#   reg: (Linear -> ReLU) x2 -> Linear
# The final projections of both branches (plus duplicated ref-point columns)
# are one lane-packed block-diagonal matmul, so the output row is stored with
# a single unmasked 128-lane store.
# ============================================================================
def _head_kernel(hs_ref, ref_ref,
                 w1, b1, cg1, cbe1, cw2, cb2, cg2, cbe2,
                 rw2, rb2, w3p, b3p, out_ref, *, pc_range):
    d = cw2.shape[0]
    x = hs_ref[...]                                   # [n, D] bf16 (pre-cast)

    def mm(a, w_ref):
        return jnp.dot(a.astype(MXU_DTYPE), w_ref[...],
                       preferred_element_type=jnp.float32)

    def layernorm(hh, g_ref, be_ref):
        mu = jnp.mean(hh, axis=-1, keepdims=True)
        var = jnp.mean((hh - mu) ** 2, axis=-1, keepdims=True)
        return (hh - mu) * jax.lax.rsqrt(var + 1e-5) * g_ref[...] + be_ref[...]

    def sigmoid(v):
        return pl.reciprocal(1.0 + jnp.exp(-v), approx=True)   # EUP slot

    # fused first Linear of both branches: x @ [cls_w1 | reg_w1]
    h1 = jnp.dot(x, w1[...], preferred_element_type=jnp.float32) + b1[...]
    hc, hr = h1[:, :d], h1[:, d:]

    # classification branch
    hc = jnp.maximum(layernorm(hc, cg1, cbe1), 0.0)
    hc = mm(hc, cw2) + cb2[...]
    hc = jnp.maximum(layernorm(hc, cg2, cbe2), 0.0)

    # regression branch
    hr = jnp.maximum(hr, 0.0)
    hr = jnp.maximum(mm(hr, rw2) + rb2[...], 0.0)

    # fused, lane-packed final projection straight off the MXU (K = 2D):
    #   lanes [CLS_OFF, CLS_OFF+10): cls logits
    #   lanes [BOX_OFF, BOX_OFF+10): raw box regression
    #   lanes [REF_OFF, REF_OFF+3) : raw box logits at (x, y, z)
    #   all other lanes: 0
    hcr = jnp.concatenate([hc.astype(MXU_DTYPE), hr.astype(MXU_DTYPE)], axis=1)
    raw = jnp.dot(hcr, w3p[...], preferred_element_type=jnp.float32) + b3p[...]

    # inverse_sigmoid(reference) added to the (x, y) / z lanes of both the box
    # and the ref-point slots.
    ref = jnp.clip(ref_ref[...].astype(jnp.float32), 0.0, 1.0)
    ref_is = jnp.log(jnp.maximum(ref, 1e-5) / jnp.maximum(1.0 - ref, 1e-5))
    rx, ry, rz = ref_is[:, 0:1], ref_is[:, 1:2], ref_is[:, 2:3]
    col = jax.lax.broadcasted_iota(jnp.int32, raw.shape, 1)
    bx, by, bz = BOX_OFF + 0, BOX_OFF + 1, BOX_OFF + 4
    fx, fy, fz = REF_OFF + 0, REF_OFF + 1, REF_OFF + 2
    add = jnp.where((col == bx) | (col == fx), rx,
          jnp.where((col == by) | (col == fy), ry,
          jnp.where((col == bz) | (col == fz), rz, 0.0)))
    logits = raw + add    # ref-point lanes are exactly last_ref_points (pre-sigmoid logits)

    # sigmoid + pc_range denormalization on the (x, y, z) box lanes only
    pc0, pc1, pc2, pc3, pc4, pc5 = pc_range
    sig_mask = (col == bx) | (col == by) | (col == bz)
    scale = jnp.where(col == bx, pc3 - pc0,
            jnp.where(col == by, pc4 - pc1, pc5 - pc2))
    offs = jnp.where(col == bx, pc0, jnp.where(col == by, pc1, pc2))
    out = jnp.where(sig_mask, sigmoid(logits) * scale + offs, logits)

    out_ref[...] = out.astype(out_ref.dtype)          # one unmasked 128-lane store


def head_pallas(hs_flat, refs_flat, p):
    """hs_flat: [L*B*Q, D] bf16; refs_flat: [L*B*Q, 3] f32. Returns packed [L*B*Q, 128]."""
    n, d = hs_flat.shape
    # largest row tile that still gives a >=2-step "parallel" grid (v7x 2-TC split);
    # on v5e/v6e it is just sequential steps with constant-index weights resident.
    row_tile = n
    for parts in (2, 4, 8, 3, 6):
        if n % parts == 0 and (n // parts) % 8 == 0:
            row_tile = n // parts
            break
    weights = [p["w1"], p["b1"], p["cls_g1"], p["cls_be1"],
               p["cls_w2"], p["cls_b2"], p["cls_g2"], p["cls_be2"],
               p["reg_w2"], p["reg_b2"], p["w3p"], p["b3p"]]
    w_specs = [pl.BlockSpec(w.shape, lambda i: (0, 0)) for w in weights]
    kern = functools.partial(_head_kernel, pc_range=PC_RANGE)
    return pl.pallas_call(
        kern,
        out_shape=jax.ShapeDtypeStruct((n, PACK_WIDTH), jnp.float32),
        grid_spec=pltpu.PrefetchScalarGridSpec(
            num_scalar_prefetch=0,
            grid=(n // row_tile,),
            in_specs=[pl.BlockSpec((row_tile, d), lambda i: (i, 0)),
                      pl.BlockSpec((row_tile, 3), lambda i: (i, 0))] + w_specs,
            out_specs=pl.BlockSpec((row_tile, PACK_WIDTH), lambda i: (i, 0)),
        ),
        compiler_params=pltpu.CompilerParams(dimension_semantics=("parallel",)),
    )(hs_flat, refs_flat, *weights)


# ============================================================================
# Stand-in transformer (external config-built module).
# ============================================================================
def standin_transformer(bev_flat, query_embeds, ref_points, num_layers):
    # TODO(synk): build_transformer(...) decoder (deformable attention over BEV) is an
    # external config-built submodule; replaced by a deterministic, shape-faithful stand-in.
    bev_pool = jnp.mean(bev_flat, axis=1)                                        # [B, D]
    layer_ids = jnp.arange(1, num_layers + 1, dtype=jnp.float32)[:, None, None, None]
    hs = jnp.tanh(0.1 * layer_ids * query_embeds[None, None, :, :]
                  + 0.05 * bev_pool[None, :, None, :])                           # [L, B, Q, D]
    init_reference = ref_points                                                  # [B, Q, 3]
    deltas = 0.02 * jnp.arange(1, num_layers + 1, dtype=jnp.float32)[:, None, None, None]
    inter_references = jnp.clip(ref_points[None] + deltas, 1e-4, 1.0 - 1e-4)     # [L, B, Q, 3]
    return hs, init_reference, inter_references


# ============================================================================
# Parameters (deterministic synthetic init; matmul weights pre-cast to bf16).
# ============================================================================
def init_params(key):
    keys = jax.random.split(key, 16)
    d, c = EMBED_DIMS, NUM_CLASSES

    def nrm(k, shape, s=0.02):
        return jax.random.normal(k, shape, jnp.float32) * s

    p = {}
    # trans_conv_pts: Conv2d(pts_channel, embed_dims, 1) with bias.
    # pts_w[cin, cout] == torch weight[cout, cin, 0, 0] transposed.
    p["pts_w"] = nrm(keys[0], (PTS_CHANNEL, d)).astype(MXU_DTYPE)
    p["pts_b"] = nrm(keys[1], (1, d))
    # unified_conv layers: Conv3x3(bias=False) + BatchNorm(folded) + ReLU.
    # uw[tap*cin + ci, cout] == torch weight.permute(2, 3, 1, 0).reshape(9*Cin, Cout)
    p["uconv"] = []
    kc = jax.random.split(keys[2], UCONV_NUM * 4)
    cin = d
    for i in range(UCONV_NUM):
        w = nrm(kc[4 * i], (UCONV_K * UCONV_K, cin, d), 0.05)
        gamma = 1.0 + nrm(kc[4 * i + 1], (1, d), 0.1)
        beta = nrm(kc[4 * i + 2], (1, d), 0.1)
        mean = nrm(kc[4 * i + 3], (1, d), 0.1)
        var = jnp.ones((1, d), jnp.float32)
        scale = gamma / jnp.sqrt(var + 1e-5)
        shift = beta - mean * scale
        p["uconv"].append((w.reshape(UCONV_K * UCONV_K * cin, d).astype(MXU_DTYPE),
                           scale, shift))
        cin = d
    # cls / reg branches (shared across levels: with_box_refine=False)
    cls_w1, cls_b1 = nrm(keys[3], (d, d)), nrm(keys[4], (1, d))
    reg_w1, reg_b1 = nrm(keys[8], (d, d)), nrm(keys[9], (1, d))
    # fused first Linear of both branches: one [D, 2D] matmul on the shared input
    p["w1"] = jnp.concatenate([cls_w1, reg_w1], axis=1).astype(MXU_DTYPE)
    p["b1"] = jnp.concatenate([cls_b1, reg_b1], axis=1)
    p["cls_g1"], p["cls_be1"] = jnp.ones((1, d), jnp.float32), jnp.zeros((1, d), jnp.float32)
    p["cls_w2"], p["cls_b2"] = nrm(keys[5], (d, d)).astype(MXU_DTYPE), nrm(keys[6], (1, d))
    p["cls_g2"], p["cls_be2"] = jnp.ones((1, d), jnp.float32), jnp.zeros((1, d), jnp.float32)
    cls_w3 = nrm(keys[7], (d, c))
    bias_init = -math.log((1.0 - 0.01) / 0.01)   # bias_init_with_prob(0.01), as in init_weights()
    cls_b3 = jnp.full((1, c), bias_init, jnp.float32)
    p["reg_w2"], p["reg_b2"] = nrm(keys[10], (d, d)).astype(MXU_DTYPE), nrm(keys[11], (1, d))
    reg_w3, reg_b3 = nrm(keys[12], (d, CODE_SIZE)), nrm(keys[13], (1, CODE_SIZE))
    # fused, lane-packed final projection: blockdiag(cls_w3, reg_w3) plus duplicated
    # reg columns (0, 1, 4) in the ref-point slot; zero elsewhere -> the packed
    # [n, 128] row comes straight off the MXU.
    w3p = jnp.zeros((2 * d, PACK_WIDTH), jnp.float32)
    w3p = w3p.at[:d, CLS_OFF:CLS_OFF + c].set(cls_w3)
    w3p = w3p.at[d:, BOX_OFF:BOX_OFF + CODE_SIZE].set(reg_w3)
    w3p = w3p.at[d:, REF_OFF + 0].set(reg_w3[:, 0])
    w3p = w3p.at[d:, REF_OFF + 1].set(reg_w3[:, 1])
    w3p = w3p.at[d:, REF_OFF + 2].set(reg_w3[:, 4])
    p["w3p"] = w3p.astype(MXU_DTYPE)
    b3p = jnp.zeros((1, PACK_WIDTH), jnp.float32)
    b3p = b3p.at[:, CLS_OFF:CLS_OFF + c].set(cls_b3)
    b3p = b3p.at[:, BOX_OFF:BOX_OFF + CODE_SIZE].set(reg_b3)
    b3p = b3p.at[:, REF_OFF + 0].set(reg_b3[0, 0])
    b3p = b3p.at[:, REF_OFF + 1].set(reg_b3[0, 1])
    b3p = b3p.at[:, REF_OFF + 2].set(reg_b3[0, 4])
    p["b3p"] = b3p
    return p


# ============================================================================
# Forward pass (mirrors StereoTrackHead.forward with the stated config).
# ============================================================================
def stereo_track_head_forward(params, query_embeds, ref_points, ref_size, pts_feats,
                              img_feats=None, img_metas=None, img_depth=None):
    # with_image=False (view_cfg.use_image=False); with_point=True
    # TODO(synk): stereo_trans (StereoViewTrans / Uni3DViewTrans image branch) not reimplemented.
    del img_feats, img_metas, img_depth, ref_size   # ref_size unused: with_size_refine=False
    batch_num = len(pts_feats)
    pts_cat = jnp.concatenate(pts_feats, axis=0)                 # [B, Cpts, H, W]  (NCHW)
    b, cpts, h, w = pts_cat.shape
    assert batch_num == b

    # Fused trans_conv_pts + unified_conv stack (one Pallas kernel, VMEM-resident).
    # bev is channels-last [B, H*W, D]; raw is the NCHW raw_feat, emitted in-kernel.
    bev, raw = fused_bev_pallas(pts_cat, params)
    # bev_backbone / bev_neck are None; multi_frame={} -> frame_update is identity
    # (the batch_num>1 reshape/concat round-trip in the reference is a no-op here).
    raw_feat = raw.reshape(b, EMBED_DIMS, h, w)                  # NCHW output

    hs, init_reference, inter_references = standin_transformer(
        bev, query_embeds, ref_points, NUM_DEC)                  # hs: [L, B, Q, D]
    # level 0 uses init_reference; level l>0 uses inter_references[l-1]
    refs = jnp.concatenate([init_reference[None], inter_references[:NUM_DEC - 1]], axis=0)

    l_levels, bb, q, d = hs.shape
    packed = head_pallas(hs.reshape(l_levels * bb * q, d).astype(MXU_DTYPE),
                         refs.reshape(l_levels * bb * q, 3), params)
    packed = packed.reshape(l_levels, bb, q, PACK_WIDTH)

    return {
        "raw_feat": raw_feat,
        "all_cls_scores": packed[..., CLS_OFF:CLS_OFF + NUM_CLASSES],
        "all_bbox_preds": packed[..., BOX_OFF:BOX_OFF + CODE_SIZE],
        "last_query_feat": hs[-1],
        "last_ref_points": packed[-1, :, :, REF_OFF:REF_OFF + 3],
        "pred_depth": None,   # with_image=False
    }


if __name__ == "__main__":
    key = jax.random.PRNGKey(0)
    kp, kq, kr, ks, kf = jax.random.split(key, 5)
    params = init_params(kp)
    query_embeds = jax.random.normal(kq, (NUM_QUERY, EMBED_DIMS), jnp.float32)
    ref_points = jax.nn.sigmoid(jax.random.normal(kr, (BATCH, NUM_QUERY, 3), jnp.float32))
    ref_size = jax.random.normal(ks, (BATCH, NUM_QUERY, 3), jnp.float32)
    pts_feats = [jax.random.normal(jax.random.fold_in(kf, i),
                                   (1, PTS_CHANNEL, BEV_H, BEV_W), jnp.float32)
                 for i in range(BATCH)]

    fwd = jax.jit(stereo_track_head_forward)
    outs = fwd(params, query_embeds, ref_points, ref_size, pts_feats)
    jax.block_until_ready(outs["all_cls_scores"])
    jax.block_until_ready(outs["all_bbox_preds"])
    jax.block_until_ready(outs["last_ref_points"])
    jax.block_until_ready(outs["raw_feat"])
    print("KERNEL_OK")
</pallas_src>

<mosaic_0001>
module attributes {stable_mosaic.version = 11 : i64} {
  func.func @_head_kernel(%arg0: i32, %arg1: memref<384x128xbf16, #tpu.memory_space<vmem>>, %arg2: memref<384x3xf32, #tpu.memory_space<vmem>>, %arg3: memref<128x256xbf16, #tpu.memory_space<vmem>>, %arg4: memref<1x256xf32, #tpu.memory_space<vmem>>, %arg5: memref<1x128xf32, #tpu.memory_space<vmem>>, %arg6: memref<1x128xf32, #tpu.memory_space<vmem>>, %arg7: memref<128x128xbf16, #tpu.memory_space<vmem>>, %arg8: memref<1x128xf32, #tpu.memory_space<vmem>>, %arg9: memref<1x128xf32, #tpu.memory_space<vmem>>, %arg10: memref<1x128xf32, #tpu.memory_space<vmem>>, %arg11: memref<128x128xbf16, #tpu.memory_space<vmem>>, %arg12: memref<1x128xf32, #tpu.memory_space<vmem>>, %arg13: memref<256x128xbf16, #tpu.memory_space<vmem>>, %arg14: memref<1x128xf32, #tpu.memory_space<vmem>>, %arg15: memref<384x128xf32, #tpu.memory_space<vmem>>) attributes {dimension_semantics = [#tpu.dimension_semantics<parallel>], iteration_bounds = array<i64: 2>, scalar_prefetch = 0 : i64, scratch_operands = 0 : i64, tpu.core_type = #tpu.core_type<tc>, window_params = [{transform_indices = @transform_0, window_bounds = array<i64: 384, 128>}, {transform_indices = @transform_1, window_bounds = array<i64: 384, 3>}, {pipeline_mode = #tpu.pipeline_mode<synchronous>, transform_indices = @transform_2, window_bounds = array<i64: 128, 256>}, {pipeline_mode = #tpu.pipeline_mode<synchronous>, transform_indices = @transform_3, window_bounds = array<i64: 1, 256>}, {pipeline_mode = #tpu.pipeline_mode<synchronous>, transform_indices = @transform_4, window_bounds = array<i64: 1, 128>}, {pipeline_mode = #tpu.pipeline_mode<synchronous>, transform_indices = @transform_5, window_bounds = array<i64: 1, 128>}, {pipeline_mode = #tpu.pipeline_mode<synchronous>, transform_indices = @transform_6, window_bounds = array<i64: 128, 128>}, {pipeline_mode = #tpu.pipeline_mode<synchronous>, transform_indices = @transform_7, window_bounds = array<i64: 1, 128>}, {pipeline_mode = #tpu.pipeline_mode<synchronous>, transform_indices = @transform_8, window_bounds = array<i64: 1, 128>}, {pipeline_mode = #tpu.pipeline_mode<synchronous>, transform_indices = @transform_9, window_bounds = array<i64: 1, 128>}, {pipeline_mode = #tpu.pipeline_mode<synchronous>, transform_indices = @transform_10, window_bounds = array<i64: 128, 128>}, {pipeline_mode = #tpu.pipeline_mode<synchronous>, transform_indices = @transform_11, window_bounds = array<i64: 1, 128>}, {pipeline_mode = #tpu.pipeline_mode<synchronous>, transform_indices = @transform_12, window_bounds = array<i64: 256, 128>}, {pipeline_mode = #tpu.pipeline_mode<synchronous>, transform_indices = @transform_13, window_bounds = array<i64: 1, 128>}, {transform_indices = @transform_14, window_bounds = array<i64: 384, 128>}]} {
    %c0 = arith.constant 0 : index
    %c0_0 = arith.constant 0 : index
    %0 = vector.load %arg1[%c0, %c0_0] : memref<384x128xbf16, #tpu.memory_space<vmem>>, vector<384x128xbf16>
    %c0_1 = arith.constant 0 : index
    %c0_2 = arith.constant 0 : index
    %1 = vector.load %arg3[%c0_1, %c0_2] : memref<128x256xbf16, #tpu.memory_space<vmem>>, vector<128x256xbf16>
    %cst = arith.constant dense<0.000000e+00> : vector<384x256xf32>
    %2 = tpu.matmul %0, %1, %cst {dimension_numbers = #tpu.dot_dimension_numbers<[1], [0], [0], [1], [0, 0, 1, 1], [], []>} : vector<384x128xbf16>, vector<128x256xbf16>, vector<384x256xf32> -> vector<384x256xf32>
    %c0_3 = arith.constant 0 : index
    %c0_4 = arith.constant 0 : index
    %3 = vector.load %arg4[%c0_3, %c0_4] : memref<1x256xf32, #tpu.memory_space<vmem>>, vector<1x256xf32>
    %4 = vector.broadcast %3 : vector<1x256xf32> to vector<384x256xf32>
    %5 = arith.addf %2, %4 : vector<384x256xf32>
    %6 = vector.extract_strided_slice %5 {offsets = [0, 0], sizes = [384, 128], strides = [1, 1]} : vector<384x256xf32> to vector<384x128xf32>
    %7 = vector.extract_strided_slice %5 {offsets = [0, 128], sizes = [384, 128], strides = [1, 1]} : vector<384x256xf32> to vector<384x128xf32>
    %cst_5 = arith.constant dense<0.000000e+00> : vector<384xf32>
    %8 = vector.multi_reduction <add>, %6, %cst_5 [1] : vector<384x128xf32> to vector<384xf32>
    %9 = vector.shape_cast %8 : vector<384xf32> to vector<384x1xf32>
    %cst_6 = arith.constant 1.280000e+02 : f32
    %10 = vector.broadcast %cst_6 : f32 to vector<384x1xf32>
    %11 = arith.divf %9, %10 : vector<384x1xf32>
    %12 = vector.broadcast %11 : vector<384x1xf32> to vector<384x128xf32>
    %13 = arith.subf %6, %12 : vector<384x128xf32>
    %14 = arith.mulf %13, %13 : vector<384x128xf32>
    %cst_7 = arith.constant dense<0.000000e+00> : vector<384xf32>
    %15 = vector.multi_reduction <add>, %14, %cst_7 [1] : vector<384x128xf32> to vector<384xf32>
    %16 = vector.shape_cast %15 : vector<384xf32> to vector<384x1xf32>
    %cst_8 = arith.constant 1.280000e+02 : f32
    %17 = vector.broadcast %cst_8 : f32 to vector<384x1xf32>
    %18 = arith.divf %16, %17 : vector<384x1xf32>
    %19 = vector.broadcast %11 : vector<384x1xf32> to vector<384x128xf32>
    %20 = arith.subf %6, %19 : vector<384x128xf32>
    %cst_9 = arith.constant 9.99999974E-6 : f32
    %21 = vector.broadcast %cst_9 : f32 to vector<384x1xf32>
    %22 = arith.addf %18, %21 : vector<384x1xf32>
    %23 = math.rsqrt %22 : vector<384x1xf32>
    %24 = vector.broadcast %23 : vector<384x1xf32> to vector<384x128xf32>
    %25 = arith.mulf %20, %24 : vector<384x128xf32>
    %c0_10 = arith.constant 0 : index
    %c0_11 = arith.constant 0 : index
    %26 = vector.load %arg5[%c0_10, %c0_11] : memref<1x128xf32, #tpu.memory_space<vmem>>, vector<1x128xf32>
    %27 = vector.broadcast %26 : vector<1x128xf32> to vector<384x128xf32>
    %28 = arith.mulf %25, %27 : vector<384x128xf32>
    %c0_12 = arith.constant 0 : index
    %c0_13 = arith.constant 0 : index
    %29 = vector.load %arg6[%c0_12, %c0_13] : memref<1x128xf32, #tpu.memory_space<vmem>>, vector<1x128xf32>
    %30 = vector.broadcast %29 : vector<1x128xf32> to vector<384x128xf32>
    %31 = arith.addf %28, %30 : vector<384x128xf32>
    %cst_14 = arith.constant 0.000000e+00 : f32
    %32 = vector.broadcast %cst_14 : f32 to vector<384x128xf32>
    %33 = arith.maximumf %31, %32 : vector<384x128xf32>
    %34 = arith.truncf %33 : vector<384x128xf32> to vector<384x128xbf16>
    %c0_15 = arith.constant 0 : index
    %c0_16 = arith.constant 0 : index
    %35 = vector.load %arg7[%c0_15, %c0_16] : memref<128x128xbf16, #tpu.memory_space<vmem>>, vector<128x128xbf16>
    %cst_17 = arith.constant dense<0.000000e+00> : vector<384x128xf32>
    %36 = tpu.matmul %34, %35, %cst_17 {dimension_numbers = #tpu.dot_dimension_numbers<[1], [0], [0], [1], [0, 0, 1, 1], [], []>} : vector<384x128xbf16>, vector<128x128xbf16>, vector<384x128xf32> -> vector<384x128xf32>
    %c0_18 = arith.constant 0 : index
    %c0_19 = arith.constant 0 : index
    %37 = vector.load %arg8[%c0_18, %c0_19] : memref<1x128xf32, #tpu.memory_space<vmem>>, vector<1x128xf32>
    %38 = vector.broadcast %37 : vector<1x128xf32> to vector<384x128xf32>
    %39 = arith.addf %36, %38 : vector<384x128xf32>
    %cst_20 = arith.constant dense<0.000000e+00> : vector<384xf32>
    %40 = vector.multi_reduction <add>, %39, %cst_20 [1] : vector<384x128xf32> to vector<384xf32>
    %41 = vector.shape_cast %40 : vector<384xf32> to vector<384x1xf32>
    %cst_21 = arith.constant 1.280000e+02 : f32
    %42 = vector.broadcast %cst_21 : f32 to vector<384x1xf32>
    %43 = arith.divf %41, %42 : vector<384x1xf32>
    %44 = vector.broadcast %43 : vector<384x1xf32> to vector<384x128xf32>
    %45 = arith.subf %39, %44 : vector<384x128xf32>
    %46 = arith.mulf %45, %45 : vector<384x128xf32>
    %cst_22 = arith.constant dense<0.000000e+00> : vector<384xf32>
    %47 = vector.multi_reduction <add>, %46, %cst_22 [1] : vector<384x128xf32> to vector<384xf32>
    %48 = vector.shape_cast %47 : vector<384xf32> to vector<384x1xf32>
    %cst_23 = arith.constant 1.280000e+02 : f32
    %49 = vector.broadcast %cst_23 : f32 to vector<384x1xf32>
    %50 = arith.divf %48, %49 : vector<384x1xf32>
    %51 = vector.broadcast %43 : vector<384x1xf32> to vector<384x128xf32>
    %52 = arith.subf %39, %51 : vector<384x128xf32>
    %cst_24 = arith.constant 9.99999974E-6 : f32
    %53 = vector.broadcast %cst_24 : f32 to vector<384x1xf32>
    %54 = arith.addf %50, %53 : vector<384x1xf32>
    %55 = math.rsqrt %54 : vector<384x1xf32>
    %56 = vector.broadcast %55 : vector<384x1xf32> to vector<384x128xf32>
    %57 = arith.mulf %52, %56 : vector<384x128xf32>
    %c0_25 = arith.constant 0 : index
    %c0_26 = arith.constant 0 : index
    %58 = vector.load %arg9[%c0_25, %c0_26] : memref<1x128xf32, #tpu.memory_space<vmem>>, vector<1x128xf32>
    %59 = vector.broadcast %58 : vector<1x128xf32> to vector<384x128xf32>
    %60 = arith.mulf %57, %59 : vector<384x128xf32>
    %c0_27 = arith.constant 0 : index
    %c0_28 = arith.constant 0 : index
    %61 = vector.load %arg10[%c0_27, %c0_28] : memref<1x128xf32, #tpu.memory_space<vmem>>, vector<1x128xf32>
    %62 = vector.broadcast %61 : vector<1x128xf32> to vector<384x128xf32>
    %63 = arith.addf %60, %62 : vector<384x128xf32>
    %cst_29 = arith.constant 0.000000e+00 : f32
    %64 = vector.broadcast %cst_29 : f32 to vector<384x128xf32>
    %65 = arith.maximumf %63, %64 : vector<384x128xf32>
    %cst_30 = arith.constant 0.000000e+00 : f32
    %66 = vector.broadcast %cst_30 : f32 to vector<384x128xf32>
    %67 = arith.maximumf %7, %66 : vector<384x128xf32>
    %68 = arith.truncf %67 : vector<384x128xf32> to vector<384x128xbf16>
    %c0_31 = arith.constant 0 : index
    %c0_32 = arith.constant 0 : index
    %69 = vector.load %arg11[%c0_31, %c0_32] : memref<128x128xbf16, #tpu.memory_space<vmem>>, vector<128x128xbf16>
    %cst_33 = arith.constant dense<0.000000e+00> : vector<384x128xf32>
    %70 = tpu.matmul %68, %69, %cst_33 {dimension_numbers = #tpu.dot_dimension_numbers<[1], [0], [0], [1], [0, 0, 1, 1], [], []>} : vector<384x128xbf16>, vector<128x128xbf16>, vector<384x128xf32> -> vector<384x128xf32>
    %c0_34 = arith.constant 0 : index
    %c0_35 = arith.constant 0 : index
    %71 = vector.load %arg12[%c0_34, %c0_35] : memref<1x128xf32, #tpu.memory_space<vmem>>, vector<1x128xf32>
    %72 = vector.broadcast %71 : vector<1x128xf32> to vector<384x128xf32>
    %73 = arith.addf %70, %72 : vector<384x128xf32>
    %cst_36 = arith.constant 0.000000e+00 : f32
    %74 = vector.broadcast %cst_36 : f32 to vector<384x128xf32>
    %75 = arith.maximumf %73, %74 : vector<384x128xf32>
    %76 = arith.truncf %65 : vector<384x128xf32> to vector<384x128xbf16>
    %77 = arith.truncf %75 : vector<384x128xf32> to vector<384x128xbf16>
    %78 = tpu.concatenate %76, %77 in 1 : vector<384x128xbf16>, vector<384x128xbf16> -> vector<384x256xbf16>
    %c0_37 = arith.constant 0 : index
    %c0_38 = arith.constant 0 : index
    %79 = vector.load %arg13[%c0_37, %c0_38] : memref<256x128xbf16, #tpu.memory_space<vmem>>, vector<256x128xbf16>
    %cst_39 = arith.constant dense<0.000000e+00> : vector<384x128xf32>
    %80 = tpu.matmul %78, %79, %cst_39 {dimension_numbers = #tpu.dot_dimension_numbers<[1], [0], [0], [1], [0, 0, 1, 1], [], []>} : vector<384x256xbf16>, vector<256x128xbf16>, vector<384x128xf32> -> vector<384x128xf32>
    %c0_40 = arith.constant 0 : index
    %c0_41 = arith.constant 0 : index
    %81 = vector.load %arg14[%c0_40, %c0_41] : memref<1x128xf32, #tpu.memory_space<vmem>>, vector<1x128xf32>
    %82 = vector.broadcast %81 : vector<1x128xf32> to vector<384x128xf32>
    %83 = arith.addf %80, %82 : vector<384x128xf32>
    %c0_42 = arith.constant 0 : index
    %c0_43 = arith.constant 0 : index
    %84 = vector.load %arg2[%c0_42, %c0_43] : memref<384x3xf32, #tpu.memory_space<vmem>>, vector<384x3xf32>
    %cst_44 = arith.constant 0.000000e+00 : f32
    %cst_45 = arith.constant 1.000000e+00 : f32
    %85 = vector.broadcast %cst_44 : f32 to vector<384x3xf32>
    %86 = arith.maximumf %85, %84 : vector<384x3xf32>
    %87 = vector.broadcast %cst_45 : f32 to vector<384x3xf32>
    %88 = arith.minimumf %87, %86 : vector<384x3xf32>
    %cst_46 = arith.constant 9.99999974E-6 : f32
    %89 = vector.broadcast %cst_46 : f32 to vector<384x3xf32>
    %90 = arith.maximumf %88, %89 : vector<384x3xf32>
    %cst_47 = arith.constant 1.000000e+00 : f32
    %91 = vector.broadcast %cst_47 : f32 to vector<384x3xf32>
    %92 = arith.subf %91, %88 : vector<384x3xf32>
    %cst_48 = arith.constant 9.99999974E-6 : f32
    %93 = vector.broadcast %cst_48 : f32 to vector<384x3xf32>
    %94 = arith.maximumf %92, %93 : vector<384x3xf32>
    %95 = arith.divf %90, %94 : vector<384x3xf32>
    %96 = math.log %95 : vector<384x3xf32>
    %97 = vector.extract_strided_slice %96 {offsets = [0, 0], sizes = [384, 1], strides = [1, 1]} : vector<384x3xf32> to vector<384x1xf32>
    %98 = vector.extract_strided_slice %96 {offsets = [0, 1], sizes = [384, 1], strides = [1, 1]} : vector<384x3xf32> to vector<384x1xf32>
    %99 = vector.extract_strided_slice %96 {offsets = [0, 2], sizes = [384, 1], strides = [1, 1]} : vector<384x3xf32> to vector<384x1xf32>
    %100 = tpu.iota {dimensions = array<i32: 1>} : vector<384x128xi32>
    %c16_i32 = arith.constant 16 : i32
    %101 = vector.broadcast %c16_i32 : i32 to vector<384x128xi32>
    %102 = arith.cmpi eq, %100, %101 : vector<384x128xi32>
    %c32_i32 = arith.constant 32 : i32
    %103 = vector.broadcast %c32_i32 : i32 to vector<384x128xi32>
    %104 = arith.cmpi eq, %100, %103 : vector<384x128xi32>
    %105 = arith.ori %102, %104 : vector<384x128xi1>
    %c17_i32 = arith.constant 17 : i32
    %106 = vector.broadcast %c17_i32 : i32 to vector<384x128xi32>
    %107 = arith.cmpi eq, %100, %106 : vector<384x128xi32>
    %c33_i32 = arith.constant 33 : i32
    %108 = vector.broadcast %c33_i32 : i32 to vector<384x128xi32>
    %109 = arith.cmpi eq, %100, %108 : vector<384x128xi32>
    %110 = arith.ori %107, %109 : vector<384x128xi1>
    %c20_i32 = arith.constant 20 : i32
    %111 = vector.broadcast %c20_i32 : i32 to vector<384x128xi32>
    %112 = arith.cmpi eq, %100, %111 : vector<384x128xi32>
    %c34_i32 = arith.constant 34 : i32
    %113 = vector.broadcast %c34_i32 : i32 to vector<384x128xi32>
    %114 = arith.cmpi eq, %100, %113 : vector<384x128xi32>
    %115 = arith.ori %112, %114 : vector<384x128xi1>
    %cst_49 = arith.constant 0.000000e+00 : f32
    %116 = vector.shape_cast %99 : vector<384x1xf32> to vector<384x1xf32>
    %117 = vector.broadcast %116 : vector<384x1xf32> to vector<384x128xf32>
    %118 = vector.broadcast %cst_49 : f32 to vector<384x128xf32>
    %119 = arith.select %115, %117, %118 : vector<384x128xi1>, vector<384x128xf32>
    %120 = vector.shape_cast %98 : vector<384x1xf32> to vector<384x1xf32>
    %121 = vector.broadcast %120 : vector<384x1xf32> to vector<384x128xf32>
    %122 = arith.select %110, %121, %119 : vector<384x128xi1>, vector<384x128xf32>
    %123 = vector.shape_cast %97 : vector<384x1xf32> to vector<384x1xf32>
    %124 = vector.broadcast %123 : vector<384x1xf32> to vector<384x128xf32>
    %125 = arith.select %105, %124, %122 : vector<384x128xi1>, vector<384x128xf32>
    %126 = arith.addf %83, %125 : vector<384x128xf32>
    %c16_i32_50 = arith.constant 16 : i32
    %127 = vector.broadcast %c16_i32_50 : i32 to vector<384x128xi32>
    %128 = arith.cmpi eq, %100, %127 : vector<384x128xi32>
    %c17_i32_51 = arith.constant 17 : i32
    %129 = vector.broadcast %c17_i32_51 : i32 to vector<384x128xi32>
    %130 = arith.cmpi eq, %100, %129 : vector<384x128xi32>
    %131 = arith.ori %128, %130 : vector<384x128xi1>
    %c20_i32_52 = arith.constant 20 : i32
    %132 = vector.broadcast %c20_i32_52 : i32 to vector<384x128xi32>
    %133 = arith.cmpi eq, %100, %132 : vector<384x128xi32>
    %134 = arith.ori %131, %133 : vector<384x128xi1>
    %c16_i32_53 = arith.constant 16 : i32
    %135 = vector.broadcast %c16_i32_53 : i32 to vector<384x128xi32>
    %136 = arith.cmpi eq, %100, %135 : vector<384x128xi32>
    %c17_i32_54 = arith.constant 17 : i32
    %137 = vector.broadcast %c17_i32_54 : i32 to vector<384x128xi32>
    %138 = arith.cmpi eq, %100, %137 : vector<384x128xi32>
    %cst_55 = arith.constant 1.024000e+02 : f32
    %cst_56 = arith.constant 8.000000e+00 : f32
    %139 = vector.broadcast %cst_55 : f32 to vector<384x128xf32>
    %140 = vector.broadcast %cst_56 : f32 to vector<384x128xf32>
    %141 = arith.select %138, %139, %140 : vector<384x128xi1>, vector<384x128xf32>
    %cst_57 = arith.constant 1.024000e+02 : f32
    %142 = vector.broadcast %cst_57 : f32 to vector<384x128xf32>
    %143 = arith.select %136, %142, %141 : vector<384x128xi1>, vector<384x128xf32>
    %c16_i32_58 = arith.constant 16 : i32
    %144 = vector.broadcast %c16_i32_58 : i32 to vector<384x128xi32>
    %145 = arith.cmpi eq, %100, %144 : vector<384x128xi32>
    %c17_i32_59 = arith.constant 17 : i32
    %146 = vector.broadcast %c17_i32_59 : i32 to vector<384x128xi32>
    %147 = arith.cmpi eq, %100, %146 : vector<384x128xi32>
    %cst_60 = arith.constant -5.120000e+01 : f32
    %cst_61 = arith.constant -5.000000e+00 : f32
    %148 = vector.broadcast %cst_60 : f32 to vector<384x128xf32>
    %149 = vector.broadcast %cst_61 : f32 to vector<384x128xf32>
    %150 = arith.select %147, %148, %149 : vector<384x128xi1>, vector<384x128xf32>
    %cst_62 = arith.constant -5.120000e+01 : f32
    %151 = vector.broadcast %cst_62 : f32 to vector<384x128xf32>
    %152 = arith.select %145, %151, %150 : vector<384x128xi1>, vector<384x128xf32>
    %cst_63 = arith.constant 0.000000e+00 : f32
    %153 = vector.broadcast %cst_63 : f32 to vector<384x128xf32>
    %154 = arith.subf %153, %126 : vector<384x128xf32>
    %155 = math.exp %154 : vector<384x128xf32>
    %cst_64 = arith.constant 1.000000e+00 : f32
    %156 = vector.broadcast %cst_64 : f32 to vector<384x128xf32>
    %157 = arith.addf %156, %155 : vector<384x128xf32>
    %158 = tpu.reciprocal %157 {approx = true} : vector<384x128xf32> -> vector<384x128xf32>
    %159 = arith.mulf %158, %143 : vector<384x128xf32>
    %160 = arith.addf %159, %152 : vector<384x128xf32>
    %161 = arith.select %134, %160, %126 : vector<384x128xi1>, vector<384x128xf32>
    %c0_65 = arith.constant 0 : index
    %c0_66 = arith.constant 0 : index
    %162 = vector.load %arg15[%c0_65, %c0_66] : memref<384x128xf32, #tpu.memory_space<vmem>>, vector<384x128xf32>
    tpu.vector_store %arg15[%c0_65, %c0_66], %161 {strides = array<i32>} : memref<384x128xf32, #tpu.memory_space<vmem>>, vector<384x128xf32>,
    return
  }
  func.func @transform_0(%arg0: i32) -> (i32, i32) {
    %c0_i32 = arith.constant 0 : i32
    %c0_i32_0 = arith.constant 0 : i32
    return %arg0, %c0_i32 : i32, i32
  }
  func.func @transform_1(%arg0: i32) -> (i32, i32) {
    %c0_i32 = arith.constant 0 : i32
    %c0_i32_0 = arith.constant 0 : i32
    return %arg0, %c0_i32 : i32, i32
  }
  func.func @transform_2(%arg0: i32) -> (i32, i32) {
    %c0_i32 = arith.constant 0 : i32
    %c0_i32_0 = arith.constant 0 : i32
    %c0_i32_1 = arith.constant 0 : i32
    return %c0_i32, %c0_i32_0 : i32, i32
  }
  func.func @transform_3(%arg0: i32) -> (i32, i32) {
    %c0_i32 = arith.constant 0 : i32
    %c0_i32_0 = arith.constant 0 : i32
    %c0_i32_1 = arith.constant 0 : i32
    return %c0_i32, %c0_i32_0 : i32, i32
  }
  func.func @transform_4(%arg0: i32) -> (i32, i32) {
    %c0_i32 = arith.constant 0 : i32
    %c0_i32_0 = arith.constant 0 : i32
    %c0_i32_1 = arith.constant 0 : i32
    return %c0_i32, %c0_i32_0 : i32, i32
  }
  func.func @transform_5(%arg0: i32) -> (i32, i32) {
    %c0_i32 = arith.constant 0 : i32
    %c0_i32_0 = arith.constant 0 : i32
    %c0_i32_1 = arith.constant 0 : i32
    return %c0_i32, %c0_i32_0 : i32, i32
  }
  func.func @transform_6(%arg0: i32) -> (i32, i32) {
    %c0_i32 = arith.constant 0 : i32
    %c0_i32_0 = arith.constant 0 : i32
    %c0_i32_1 = arith.constant 0 : i32
    return %c0_i32, %c0_i32_0 : i32, i32
  }
  func.func @transform_7(%arg0: i32) -> (i32, i32) {
    %c0_i32 = arith.constant 0 : i32
    %c0_i32_0 = arith.constant 0 : i32
    %c0_i32_1 = arith.constant 0 : i32
    return %c0_i32, %c0_i32_0 : i32, i32
  }
  func.func @transform_8(%arg0: i32) -> (i32, i32) {
    %c0_i32 = arith.constant 0 : i32
    %c0_i32_0 = arith.constant 0 : i32
    %c0_i32_1 = arith.constant 0 : i32
    return %c0_i32, %c0_i32_0 : i32, i32
  }
  func.func @transform_9(%arg0: i32) -> (i32, i32) {
    %c0_i32 = arith.constant 0 : i32
    %c0_i32_0 = arith.constant 0 : i32
    %c0_i32_1 = arith.constant 0 : i32
    return %c0_i32, %c0_i32_0 : i32, i32
  }
  func.func @transform_10(%arg0: i32) -> (i32, i32) {
    %c0_i32 = arith.constant 0 : i32
    %c0_i32_0 = arith.constant 0 : i32
    %c0_i32_1 = arith.constant 0 : i32
    return %c0_i32, %c0_i32_0 : i32, i32
  }
  func.func @transform_11(%arg0: i32) -> (i32, i32) {
    %c0_i32 = arith.constant 0 : i32
    %c0_i32_0 = arith.constant 0 : i32
    %c0_i32_1 = arith.constant 0 : i32
    return %c0_i32, %c0_i32_0 : i32, i32
  }
  func.func @transform_12(%arg0: i32) -> (i32, i32) {
    %c0_i32 = arith.constant 0 : i32
    %c0_i32_0 = arith.constant 0 : i32
    %c0_i32_1 = arith.constant 0 : i32
    return %c0_i32, %c0_i32_0 : i32, i32
  }
  func.func @transform_13(%arg0: i32) -> (i32, i32) {
    %c0_i32 = arith.constant 0 : i32
    %c0_i32_0 = arith.constant 0 : i32
    %c0_i32_1 = arith.constant 0 : i32
    return %c0_i32, %c0_i32_0 : i32, i32
  }
  func.func @transform_14(%arg0: i32) -> (i32, i32) {
    %c0_i32 = arith.constant 0 : i32
    %c0_i32_0 = arith.constant 0 : i32
    return %arg0, %c0_i32 : i32, i32
  }
}

module attributes {stable_mosaic.version = 11 : i64} {
  func.func @_fused_bev_kernel(%arg0: i32, %arg1: memref<1x288x64xbf16, #tpu.memory_space<vmem>>, %arg2: memref<288x1xf32, #tpu.memory_space<vmem>>, %arg3: memref<64x128xbf16, #tpu.memory_space<vmem>>, %arg4: memref<1x128xf32, #tpu.memory_space<vmem>>, %arg5: memref<1152x128xbf16, #tpu.memory_space<vmem>>, %arg6: memref<1x128xf32, #tpu.memory_space<vmem>>, %arg7: memref<1x128xf32, #tpu.memory_space<vmem>>, %arg8: memref<1x256x128xf32, #tpu.memory_space<vmem>>, %arg9: memref<1x128x256xf32, #tpu.memory_space<vmem>>, %arg10: memref<326x128xf32, #tpu.memory_space<vmem>>) attributes {dimension_semantics = [#tpu.dimension_semantics<parallel>], iteration_bounds = array<i64: 2>, scalar_prefetch = 0 : i64, scratch_operands = 1 : i64, tpu.core_type = #tpu.core_type<tc>, window_params = [{transform_indices = @transform_0, window_bounds = array<i64: 1, 288, 64>}, {pipeline_mode = #tpu.pipeline_mode<synchronous>, transform_indices = @transform_1, window_bounds = array<i64: 288, 1>}, {pipeline_mode = #tpu.pipeline_mode<synchronous>, transform_indices = @transform_2, window_bounds = array<i64: 64, 128>}, {pipeline_mode = #tpu.pipeline_mode<synchronous>, transform_indices = @transform_3, window_bounds = array<i64: 1, 128>}, {pipeline_mode = #tpu.pipeline_mode<synchronous>, transform_indices = @transform_4, window_bounds = array<i64: 1152, 128>}, {pipeline_mode = #tpu.pipeline_mode<synchronous>, transform_indices = @transform_5, window_bounds = array<i64: 1, 128>}, {pipeline_mode = #tpu.pipeline_mode<synchronous>, transform_indices = @transform_6, window_bounds = array<i64: 1, 128>}, {transform_indices = @transform_7, window_bounds = array<i64: 1, 256, 128>}, {transform_indices = @transform_8, window_bounds = array<i64: 1, 128, 256>}]} {
    %c0 = arith.constant 0 : index
    %c0_0 = arith.constant 0 : index
    %0 = vector.load %arg2[%c0, %c0_0] : memref<288x1xf32, #tpu.memory_space<vmem>>, vector<288x1xf32>
    %cst = arith.constant 0.000000e+00 : f32
    %1 = vector.broadcast %cst : f32 to vector<19x128xf32>
    %c0_1 = arith.constant 0 : index
    %c0_2 = arith.constant 0 : index
    %2 = vector.load %arg10[%c0_1, %c0_2] : memref<326x128xf32, #tpu.memory_space<vmem>>, vector<19x128xf32>
    tpu.vector_store %arg10[%c0_1, %c0_2], %1 {strides = array<i32>} : memref<326x128xf32, #tpu.memory_space<vmem>>, vector<19x128xf32>,
    %cst_3 = arith.constant 0.000000e+00 : f32
    %3 = vector.broadcast %cst_3 : f32 to vector<19x128xf32>
    %c307 = arith.constant 307 : index
    %c0_4 = arith.constant 0 : index
    %4 = vector.load %arg10[%c307, %c0_4] : memref<326x128xf32, #tpu.memory_space<vmem>>, vector<19x128xf32>
    tpu.vector_store %arg10[%c307, %c0_4], %3 {strides = array<i32>} : memref<326x128xf32, #tpu.memory_space<vmem>>, vector<19x128xf32>,
    %c0_5 = arith.constant 0 : index
    %c0_6 = arith.constant 0 : index
    %c0_7 = arith.constant 0 : index
    %5 = vector.load %arg1[%c0_5, %c0_6, %c0_7] : memref<1x288x64xbf16, #tpu.memory_space<vmem>>, vector<1x288x64xbf16>
    %6 = vector.shape_cast %5 : vector<1x288x64xbf16> to vector<288x64xbf16>
    %c0_8 = arith.constant 0 : index
    %c0_9 = arith.constant 0 : index
    %7 = vector.load %arg3[%c0_8, %c0_9] : memref<64x128xbf16, #tpu.memory_space<vmem>>, vector<64x128xbf16>
    %cst_10 = arith.constant dense<0.000000e+00> : vector<288x128xf32>
    %8 = tpu.matmul %6, %7, %cst_10 {dimension_numbers = #tpu.dot_dimension_numbers<[1], [0], [0], [1], [0, 0, 1, 1], [], []>} : vector<288x64xbf16>, vector<64x128xbf16>, vector<288x128xf32> -> vector<288x128xf32>
    %c0_11 = arith.constant 0 : index
    %c0_12 = arith.constant 0 : index
    %9 = vector.load %arg4[%c0_11, %c0_12] : memref<1x128xf32, #tpu.memory_space<vmem>>, vector<1x128xf32>
    %10 = vector.broadcast %9 : vector<1x128xf32> to vector<288x128xf32>
    %11 = arith.addf %8, %10 : vector<288x128xf32>
    %12 = vector.broadcast %0 : vector<288x1xf32> to vector<288x128xf32>
    %13 = arith.mulf %11, %12 : vector<288x128xf32>
    %c19 = arith.constant 19 : index
    %c0_13 = arith.constant 0 : index
    %14 = vector.load %arg10[%c19, %c0_13] : memref<326x128xf32, #tpu.memory_space<vmem>>, vector<288x128xf32>
    tpu.vector_store %arg10[%c19, %c0_13], %13 {strides = array<i32>} : memref<326x128xf32, #tpu.memory_space<vmem>>, vector<288x128xf32>,
    %c0_14 = arith.constant 0 : index
    %c0_15 = arith.constant 0 : index
    %15 = vector.load %arg10[%c0_14, %c0_15] : memref<326x128xf32, #tpu.memory_space<vmem>>, vector<288x128xf32>
    %16 = arith.truncf %15 : vector<288x128xf32> to vector<288x128xbf16>
    %c1 = arith.constant 1 : index
    %c0_16 = arith.constant 0 : index
    %17 = vector.load %arg10[%c1, %c0_16] : memref<326x128xf32, #tpu.memory_space<vmem>>, vector<288x128xf32>
    %18 = arith.truncf %17 : vector<288x128xf32> to vector<288x128xbf16>
    %c2 = arith.constant 2 : index
    %c0_17 = arith.constant 0 : index
    %19 = vector.load %arg10[%c2, %c0_17] : memref<326x128xf32, #tpu.memory_space<vmem>>, vector<288x128xf32>
    %20 = arith.truncf %19 : vector<288x128xf32> to vector<288x128xbf16>
    %c18 = arith.constant 18 : index
    %c0_18 = arith.constant 0 : index
    %21 = vector.load %arg10[%c18, %c0_18] : memref<326x128xf32, #tpu.memory_space<vmem>>, vector<288x128xf32>
    %22 = arith.truncf %21 : vector<288x128xf32> to vector<288x128xbf16>
    %c19_19 = arith.constant 19 : index
    %c0_20 = arith.constant 0 : index
    %23 = vector.load %arg10[%c19_19, %c0_20] : memref<326x128xf32, #tpu.memory_space<vmem>>, vector<288x128xf32>
    %24 = arith.truncf %23 : vector<288x128xf32> to vector<288x128xbf16>
    %c20 = arith.constant 20 : index
    %c0_21 = arith.constant 0 : index
    %25 = vector.load %arg10[%c20, %c0_21] : memref<326x128xf32, #tpu.memory_space<vmem>>, vector<288x128xf32>
    %26 = arith.truncf %25 : vector<288x128xf32> to vector<288x128xbf16>
    %c36 = arith.constant 36 : index
    %c0_22 = arith.constant 0 : index
    %27 = vector.load %arg10[%c36, %c0_22] : memref<326x128xf32, #tpu.memory_space<vmem>>, vector<288x128xf32>
    %28 = arith.truncf %27 : vector<288x128xf32> to vector<288x128xbf16>
    %c37 = arith.constant 37 : index
    %c0_23 = arith.constant 0 : index
    %29 = vector.load %arg10[%c37, %c0_23] : memref<326x128xf32, #tpu.memory_space<vmem>>, vector<288x128xf32>
    %30 = arith.truncf %29 : vector<288x128xf32> to vector<288x128xbf16>
    %c38 = arith.constant 38 : index
    %c0_24 = arith.constant 0 : index
    %31 = vector.load %arg10[%c38, %c0_24] : memref<326x128xf32, #tpu.memory_space<vmem>>, vector<288x128xf32>
    %32 = arith.truncf %31 : vector<288x128xf32> to vector<288x128xbf16>
    %33 = tpu.concatenate %16, %18, %20, %22, %24, %26, %28, %30, %32 in 1 : vector<288x128xbf16>, vector<288x128xbf16>, vector<288x128xbf16>, vector<288x128xbf16>, vector<288x128xbf16>, vector<288x128xbf16>, vector<288x128xbf16>, vector<288x128xbf16>, vector<288x128xbf16> -> vector<288x1152xbf16>
    %c0_25 = arith.constant 0 : index
    %c0_26 = arith.constant 0 : index
    %34 = vector.load %arg5[%c0_25, %c0_26] : memref<1152x128xbf16, #tpu.memory_space<vmem>>, vector<1152x128xbf16>
    %cst_27 = arith.constant dense<0.000000e+00> : vector<288x128xf32>
    %35 = tpu.matmul %33, %34, %cst_27 {dimension_numbers = #tpu.dot_dimension_numbers<[1], [0], [0], [1], [0, 0, 1, 1], [], []>} : vector<288x1152xbf16>, vector<1152x128xbf16>, vector<288x128xf32> -> vector<288x128xf32>
    %c0_28 = arith.constant 0 : index
    %c0_29 = arith.constant 0 : index
    %36 = vector.load %arg6[%c0_28, %c0_29] : memref<1x128xf32, #tpu.memory_space<vmem>>, vector<1x128xf32>
    %37 = vector.broadcast %36 : vector<1x128xf32> to vector<288x128xf32>
    %38 = arith.mulf %35, %37 : vector<288x128xf32>
    %c0_30 = arith.constant 0 : index
    %c0_31 = arith.constant 0 : index
    %39 = vector.load %arg7[%c0_30, %c0_31] : memref<1x128xf32, #tpu.memory_space<vmem>>, vector<1x128xf32>
    %40 = vector.broadcast %39 : vector<1x128xf32> to vector<288x128xf32>
    %41 = arith.addf %38, %40 : vector<288x128xf32>
    %cst_32 = arith.constant 0.000000e+00 : f32
    %42 = vector.broadcast %cst_32 : f32 to vector<288x128xf32>
    %43 = arith.maximumf %41, %42 : vector<288x128xf32>
    %44 = vector.broadcast %0 : vector<288x1xf32> to vector<288x128xf32>
    %45 = arith.mulf %43, %44 : vector<288x128xf32>
    %46 = vector.extract_strided_slice %45 {offsets = [1, 0], sizes = [16, 128], strides = [1, 1]} : vector<288x128xf32> to vector<16x128xf32>
    %47 = vector.extract_strided_slice %45 {offsets = [19, 0], sizes = [16, 128], strides = [1, 1]} : vector<288x128xf32> to vector<16x128xf32>
    %48 = vector.extract_strided_slice %45 {offsets = [37, 0], sizes = [16, 128], strides = [1, 1]} : vector<288x128xf32> to vector<16x128xf32>
    %49 = vector.extract_strided_slice %45 {offsets = [55, 0], sizes = [16, 128], strides = [1, 1]} : vector<288x128xf32> to vector<16x128xf32>
    %50 = vector.extract_strided_slice %45 {offsets = [73, 0], sizes = [16, 128], strides = [1, 1]} : vector<288x128xf32> to vector<16x128xf32>
    %51 = vector.extract_strided_slice %45 {offsets = [91, 0], sizes = [16, 128], strides = [1, 1]} : vector<288x128xf32> to vector<16x128xf32>
    %52 = vector.extract_strided_slice %45 {offsets = [109, 0], sizes = [16, 128], strides = [1, 1]} : vector<288x128xf32> to vector<16x128xf32>
    %53 = vector.extract_strided_slice %45 {offsets = [127, 0], sizes = [16, 128], strides = [1, 1]} : vector<288x128xf32> to vector<16x128xf32>
    %54 = vector.extract_strided_slice %45 {offsets = [145, 0], sizes = [16, 128], strides = [1, 1]} : vector<288x128xf32> to vector<16x128xf32>
    %55 = vector.extract_strided_slice %45 {offsets = [163, 0], sizes = [16, 128], strides = [1, 1]} : vector<288x128xf32> to vector<16x128xf32>
    %56 = vector.extract_strided_slice %45 {offsets = [181, 0], sizes = [16, 128], strides = [1, 1]} : vector<288x128xf32> to vector<16x128xf32>
    %57 = vector.extract_strided_slice %45 {offsets = [199, 0], sizes = [16, 128], strides = [1, 1]} : vector<288x128xf32> to vector<16x128xf32>
    %58 = vector.extract_strided_slice %45 {offsets = [217, 0], sizes = [16, 128], strides = [1, 1]} : vector<288x128xf32> to vector<16x128xf32>
    %59 = vector.extract_strided_slice %45 {offsets = [235, 0], sizes = [16, 128], strides = [1, 1]} : vector<288x128xf32> to vector<16x128xf32>
    %60 = vector.extract_strided_slice %45 {offsets = [253, 0], sizes = [16, 128], strides = [1, 1]} : vector<288x128xf32> to vector<16x128xf32>
    %61 = vector.extract_strided_slice %45 {offsets = [271, 0], sizes = [16, 128], strides = [1, 1]} : vector<288x128xf32> to vector<16x128xf32>
    %62 = tpu.concatenate %46, %47, %48, %49, %50, %51, %52, %53, %54, %55, %56, %57, %58, %59, %60, %61 in 0 : vector<16x128xf32>, vector<16x128xf32>, vector<16x128xf32>, vector<16x128xf32>, vector<16x128xf32>, vector<16x128xf32>, vector<16x128xf32>, vector<16x128xf32>, vector<16x128xf32>, vector<16x128xf32>, vector<16x128xf32>, vector<16x128xf32>, vector<16x128xf32>, vector<16x128xf32>, vector<16x128xf32>, vector<16x128xf32> -> vector<256x128xf32>
    %c0_33 = arith.constant 0 : index
    %c0_34 = arith.constant 0 : index
    %c0_35 = arith.constant 0 : index
    %63 = vector.load %arg8[%c0_33, %c0_34, %c0_35] : memref<1x256x128xf32, #tpu.memory_space<vmem>>, vector<1x256x128xf32>
    %64 = vector.shape_cast %63 : vector<1x256x128xf32> to vector<256x128xf32>
    %65 = vector.shape_cast %62 : vector<256x128xf32> to vector<1x256x128xf32>
    tpu.vector_store %arg8[%c0_33, %c0_34, %c0_35], %65 {strides = array<i32>} : memref<1x256x128xf32, #tpu.memory_space<vmem>>, vector<1x256x128xf32>,
    %66 = tpu.transpose %62, [1, 0] : vector<256x128xf32> -> vector<128x256xf32>
    %c0_36 = arith.constant 0 : index
    %c0_37 = arith.constant 0 : index
    %c0_38 = arith.constant 0 : index
    %67 = vector.load %arg9[%c0_36, %c0_37, %c0_38] : memref<1x128x256xf32, #tpu.memory_space<vmem>>, vector<1x128x256xf32>
    %68 = vector.shape_cast %67 : vector<1x128x256xf32> to vector<128x256xf32>
    %69 = vector.shape_cast %66 : vector<128x256xf32> to vector<1x128x256xf32>
    tpu.vector_store %arg9[%c0_36, %c0_37, %c0_38], %69 {strides = array<i32>} : memref<1x128x256xf32, #tpu.memory_space<vmem>>, vector<1x128x256xf32>,
    return
  }
  func.func @transform_0(%arg0: i32) -> (i32, i32, i32) {
    %c0_i32 = arith.constant 0 : i32
    %c0_i32_0 = arith.constant 0 : i32
    %c0_i32_1 = arith.constant 0 : i32
    return %arg0, %c0_i32, %c0_i32_0 : i32, i32, i32
  }
  func.func @transform_1(%arg0: i32) -> (i32, i32) {
    %c0_i32 = arith.constant 0 : i32
    %c0_i32_0 = arith.constant 0 : i32
    %c0_i32_1 = arith.constant 0 : i32
    return %c0_i32, %c0_i32_0 : i32, i32
  }
  func.func @transform_2(%arg0: i32) -> (i32, i32) {
    %c0_i32 = arith.constant 0 : i32
    %c0_i32_0 = arith.constant 0 : i32
    %c0_i32_1 = arith.constant 0 : i32
    return %c0_i32, %c0_i32_0 : i32, i32
  }
  func.func @transform_3(%arg0: i32) -> (i32, i32) {
    %c0_i32 = arith.constant 0 : i32
    %c0_i32_0 = arith.constant 0 : i32
    %c0_i32_1 = arith.constant 0 : i32
    return %c0_i32, %c0_i32_0 : i32, i32
  }
  func.func @transform_4(%arg0: i32) -> (i32, i32) {
    %c0_i32 = arith.constant 0 : i32
    %c0_i32_0 = arith.constant 0 : i32
    %c0_i32_1 = arith.constant 0 : i32
    return %c0_i32, %c0_i32_0 : i32, i32
  }
  func.func @transform_5(%arg0: i32) -> (i32, i32) {
    %c0_i32 = arith.constant 0 : i32
    %c0_i32_0 = arith.constant 0 : i32
    %c0_i32_1 = arith.constant 0 : i32
    return %c0_i32, %c0_i32_0 : i32, i32
  }
  func.func @transform_6(%arg0: i32) -> (i32, i32) {
    %c0_i32 = arith.constant 0 : i32
    %c0_i32_0 = arith.constant 0 : i32
    %c0_i32_1 = arith.constant 0 : i32
    return %c0_i32, %c0_i32_0 : i32, i32
  }
  func.func @transform_7(%arg0: i32) -> (i32, i32, i32) {
    %c0_i32 = arith.constant 0 : i32
    %c0_i32_0 = arith.constant 0 : i32
    %c0_i32_1 = arith.constant 0 : i32
    return %arg0, %c0_i32, %c0_i32_0 : i32, i32, i32
  }
  func.func @transform_8(%arg0: i32) -> (i32, i32, i32) {
    %c0_i32 = arith.constant 0 : i32
    %c0_i32_0 = arith.constant 0 : i32
    %c0_i32_1 = arith.constant 0 : i32
    return %arg0, %c0_i32, %c0_i32_0 : i32, i32, i32
  }
}

</mosaic_0001>

<llo_original>
// kernel: stereo_track_head_forward.3
$region0: #{stereo_track_head_forward.3}
  #allocation0 [shape = 'u32[]', space=smem, size = 0x4, offset = 0x4, fixed_abs, tag = 'smem constant byte address 0x4 - core index']
  #allocation1 [shape = 'u32[144,128]{1,0:T(1,128)}', space=vmem, size = 0x12000, scoped, tag = 'internal scratch']
  %s0 = inlined_call_operand.vmem [shape: bf16[768,128], index: 0, kind: input, shape index: {}]
  %s1 = inlined_call_operand.vmem [shape: f32[768,3], index: 1, kind: input, shape index: {}]
  %s2 = inlined_call_operand.vmem [shape: bf16[128,256], index: 2, kind: input, shape index: {}]
  %s3 = inlined_call_operand.vmem [shape: f32[1,256], index: 3, kind: input, shape index: {}]
  %s4 = inlined_call_operand.vmem [shape: f32[1,128], index: 4, kind: input, shape index: {}]
  %s5 = inlined_call_operand.vmem [shape: f32[1,128], index: 5, kind: input, shape index: {}]
  %s6 = inlined_call_operand.vmem [shape: bf16[128,128], index: 6, kind: input, shape index: {}]
  %s7 = inlined_call_operand.vmem [shape: f32[1,128], index: 7, kind: input, shape index: {}]
  %s8 = inlined_call_operand.vmem [shape: f32[1,128], index: 8, kind: input, shape index: {}]
  %s9 = inlined_call_operand.vmem [shape: f32[1,128], index: 9, kind: input, shape index: {}]
  %s10 = inlined_call_operand.vmem [shape: bf16[128,128], index: 10, kind: input, shape index: {}]
  %s11 = inlined_call_operand.vmem [shape: f32[1,128], index: 11, kind: input, shape index: {}]
  %s12 = inlined_call_operand.vmem [shape: bf16[256,128], index: 12, kind: input, shape index: {}]
  %s13 = inlined_call_operand.vmem [shape: f32[1,128], index: 13, kind: input, shape index: {}]
  %s14 = inlined_call_operand.vmem [shape: f32[768,128], index: 14, kind: output, shape index: {}]
  %s15 = sld [smem:[#allocation0]]
  $region89: #{stereo_track_head_forward.3} parent=0
    _
  %s17 = ssub.s32 1, %s15
  %s18 = scalar_select 0, %s17, %s15
  loop: start=0, step=1, limit=4
  $region2: #{stereo_track_head_forward.3} parent=0 // loop_pre_header
    _
  $region3: #{stereo_track_head_forward.3} parent=0 // loop_header
    %s20 = sphi 0, %s24
    %p21 = scmp.ge.s32.totalorder %s20, 4
    %s30 = sphi 0, %s32
    %s33 = sphi 0, %s30
    %s34 = sphi 0, %s33
    %s50 = sphi 0, %s34
    %s56 = sphi 0, %s58
    %s59 = sphi 0, %s56
    %s60 = sphi 0, %s59
    %s76 = sphi 0, %s60
    %s80 = sphi 0, %s80
    %s82 = sphi 0, %s80
    %s83 = sphi 0, %s82
    %s97 = sphi 0, %s83
    %s101 = sphi 0, %s101
    %s103 = sphi 0, %s101
    %s104 = sphi 0, %s103
    %s118 = sphi 0, %s104
    %s122 = sphi 0, %s122
    %s124 = sphi 0, %s122
    %s125 = sphi 0, %s124
    %s139 = sphi 0, %s125
    %s143 = sphi 0, %s143
    %s145 = sphi 0, %s143
    %s146 = sphi 0, %s145
    %s160 = sphi 0, %s146
    %s164 = sphi 0, %s164
    %s166 = sphi 0, %s164
    %s167 = sphi 0, %s166
    %s181 = sphi 0, %s167
    %s185 = sphi 0, %s185
    %s187 = sphi 0, %s185
    %s188 = sphi 0, %s187
    %s202 = sphi 0, %s188
    %s206 = sphi 0, %s206
    %s208 = sphi 0, %s206
    %s209 = sphi 0, %s208
    %s223 = sphi 0, %s209
    %s227 = sphi 0, %s227
    %s229 = sphi 0, %s227
    %s230 = sphi 0, %s229
    %s244 = sphi 0, %s230
    %s248 = sphi 0, %s248
    %s250 = sphi 0, %s248
    %s251 = sphi 0, %s250
    %s265 = sphi 0, %s251
    %s269 = sphi 0, %s269
    %s271 = sphi 0, %s269
    %s272 = sphi 0, %s271
    %s286 = sphi 0, %s272
    %s290 = sphi 0, %s290
    %s292 = sphi 0, %s290
    %s293 = sphi 0, %s292
    %s307 = sphi 0, %s293
    %s311 = sphi 0, %s311
    %s313 = sphi 0, %s311
    %s314 = sphi 0, %s313
    %s328 = sphi 0, %s314
    %s334 = sphi 0, %s336
    %s337 = sphi 0, %s334
    %s338 = sphi 0, %s337
    %s354 = sphi 0, %s338
  $region4: #{stereo_track_head_forward.3} parent=0 // loop_header_branch
    %23 = sbr.rel (%p21) target = $region8
  $region5: #{stereo_track_head_forward.3} parent=0 // loop_body
    %s25 = ssub.s32 %s20, 1
    %s26 = ssub.s32 %s20, 2
    %s27 = sadd.s32 %s20, 1
    %s28 = ssub.s32 %s20, %s27
    %p29 = scmp.eq.s32.totalorder %s28, 0
    %s31 = sadd.s32 %s30, 1
    %s32 = scalar_select %p29, %s30, %s31
    %p35 = pneg %p29
    %p36 = scmp.eq.s32.totalorder %s20, 1
    %p37 = por %p35, %p36
    %p38 = scmp.ne.s32.totalorder %s30, %s33
    %p39 = scmp.eq.s32.totalorder %s20, 0
    %p40 = por %p38, %p39
    %p41 = scmp.ne.s32.totalorder %s30, %s33
    %p42 = scmp.eq.s32.totalorder %s25, 1
    %p43 = por %p41, %p42
    %p44 = scmp.ne.s32.totalorder %s33, %s34
    %p45 = scmp.eq.s32.totalorder %s25, 0
    %p46 = por %p44, %p45
    %p47 = scmp.ne.s32.totalorder %s33, %s34
    %p48 = scmp.eq.s32.totalorder %s26, 1
    %p49 = por %p47, %p48
    %p51 = scmp.ne.s32.totalorder %s34, %s50
    %p52 = scmp.eq.s32.totalorder %s26, 0
    %p53 = por %p51, %p52
    %s54 = ssub.s32 %s20, %s27
    %p55 = scmp.eq.s32.totalorder %s54, 0
    %s57 = sadd.s32 %s56, 1
    %s58 = scalar_select %p55, %s56, %s57
    %p61 = pneg %p55
    %p62 = scmp.eq.s32.totalorder %s20, 1
    %p63 = por %p61, %p62
    %p64 = scmp.ne.s32.totalorder %s56, %s59
    %p65 = scmp.eq.s32.totalorder %s20, 0
    %p66 = por %p64, %p65
    %p67 = scmp.ne.s32.totalorder %s56, %s59
    %p68 = scmp.eq.s32.totalorder %s25, 1
    %p69 = por %p67, %p68
    %p70 = scmp.ne.s32.totalorder %s59, %s60
    %p71 = scmp.eq.s32.totalorder %s25, 0
    %p72 = por %p70, %p71
    %p73 = scmp.ne.s32.totalorder %s59, %s60
    %p74 = scmp.eq.s32.totalorder %s26, 1
    %p75 = por %p73, %p74
    %p77 = scmp.ne.s32.totalorder %s60, %s76
    %p78 = scmp.eq.s32.totalorder %s26, 0
    %p79 = por %p77, %p78
    %s81 = sadd.s32 %s80, 1
    %p84 = scmp.eq.s32.totalorder %s20, 1
    %p85 = scmp.ne.s32.totalorder %s80, %s82
    %p86 = scmp.eq.s32.totalorder %s20, 0
    %p87 = por %p85, %p86
    %p88 = scmp.ne.s32.totalorder %s80, %s82
    %p89 = scmp.eq.s32.totalorder %s25, 1
    %p90 = por %p88, %p89
    %p91 = scmp.ne.s32.totalorder %s82, %s83
    %p92 = scmp.eq.s32.totalorder %s25, 0
    %p93 = por %p91, %p92
    %p94 = scmp.ne.s32.totalorder %s82, %s83
    %p95 = scmp.eq.s32.totalorder %s26, 1
    %p96 = por %p94, %p95
    %p98 = scmp.ne.s32.totalorder %s83, %s97
    %p99 = scmp.eq.s32.totalorder %s26, 0
    %p100 = por %p98, %p99
    %s102 = sadd.s32 %s101, 1
    %p105 = scmp.eq.s32.totalorder %s20, 1
    %p106 = scmp.ne.s32.totalorder %s101, %s103
    %p107 = scmp.eq.s32.totalorder %s20, 0
    %p108 = por %p106, %p107
    %p109 = scmp.ne.s32.totalorder %s101, %s103
    %p110 = scmp.eq.s32.totalorder %s25, 1
    %p111 = por %p109, %p110
    %p112 = scmp.ne.s32.totalorder %s103, %s104
    %p113 = scmp.eq.s32.totalorder %s25, 0
    %p114 = por %p112, %p113
    %p115 = scmp.ne.s32.totalorder %s103, %s104
    %p116 = scmp.eq.s32.totalorder %s26, 1
    %p117 = por %p115, %p116
    %p119 = scmp.ne.s32.totalorder %s104, %s118
    %p120 = scmp.eq.s32.totalorder %s26, 0
    %p121 = por %p119, %p120
    %s123 = sadd.s32 %s122, 1
    %p126 = scmp.eq.s32.totalorder %s20, 1
    %p127 = scmp.ne.s32.totalorder %s122, %s124
    %p128 = scmp.eq.s32.totalorder %s20, 0
    %p129 = por %p127, %p128
    %p130 = scmp.ne.s32.totalorder %s122, %s124
    %p131 = scmp.eq.s32.totalorder %s25, 1
    %p132 = por %p130, %p131
    %p133 = scmp.ne.s32.totalorder %s124, %s125
    %p134 = scmp.eq.s32.totalorder %s25, 0
    %p135 = por %p133, %p134
    %p136 = scmp.ne.s32.totalorder %s124, %s125
    %p137 = scmp.eq.s32.totalorder %s26, 1
    %p138 = por %p136, %p137
    %p140 = scmp.ne.s32.totalorder %s125, %s139
    %p141 = scmp.eq.s32.totalorder %s26, 0
    %p142 = por %p140, %p141
    %s144 = sadd.s32 %s143, 1
    %p147 = scmp.eq.s32.totalorder %s20, 1
    %p148 = scmp.ne.s32.totalorder %s143, %s145
    %p149 = scmp.eq.s32.totalorder %s20, 0
    %p150 = por %p148, %p149
    %p151 = scmp.ne.s32.totalorder %s143, %s145
    %p152 = scmp.eq.s32.totalorder %s25, 1
    %p153 = por %p151, %p152
    %p154 = scmp.ne.s32.totalorder %s145, %s146
    %p155 = scmp.eq.s32.totalorder %s25, 0
    %p156 = por %p154, %p155
    %p157 = scmp.ne.s32.totalorder %s145, %s146
    %p158 = scmp.eq.s32.totalorder %s26, 1
    %p159 = por %p157, %p158
    %p161 = scmp.ne.s32.totalorder %s146, %s160
    %p162 = scmp.eq.s32.totalorder %s26, 0
    %p163 = por %p161, %p162
    %s165 = sadd.s32 %s164, 1
    %p168 = scmp.eq.s32.totalorder %s20, 1
    %p169 = scmp.ne.s32.totalorder %s164, %s166
    %p170 = scmp.eq.s32.totalorder %s20, 0
    %p171 = por %p169, %p170
    %p172 = scmp.ne.s32.totalorder %s164, %s166
    %p173 = scmp.eq.s32.totalorder %s25, 1
    %p174 = por %p172, %p173
    %p175 = scmp.ne.s32.totalorder %s166, %s167
    %p176 = scmp.eq.s32.totalorder %s25, 0
    %p177 = por %p175, %p176
    %p178 = scmp.ne.s32.totalorder %s166, %s167
    %p179 = scmp.eq.s32.totalorder %s26, 1
    %p180 = por %p178, %p179
    %p182 = scmp.ne.s32.totalorder %s167, %s181
    %p183 = scmp.eq.s32.totalorder %s26, 0
    %p184 = por %p182, %p183
    %s186 = sadd.s32 %s185, 1
    %p189 = scmp.eq.s32.totalorder %s20, 1
    %p190 = scmp.ne.s32.totalorder %s185, %s187
    %p191 = scmp.eq.s32.totalorder %s20, 0
    %p192 = por %p190, %p191
    %p193 = scmp.ne.s32.totalorder %s185, %s187
    %p194 = scmp.eq.s32.totalorder %s25, 1
    %p195 = por %p193, %p194
    %p196 = scmp.ne.s32.totalorder %s187, %s188
    %p197 = scmp.eq.s32.totalorder %s25, 0
    %p198 = por %p196, %p197
    %p199 = scmp.ne.s32.totalorder %s187, %s188
    %p200 = scmp.eq.s32.totalorder %s26, 1
    %p201 = por %p199, %p200
    %p203 = scmp.ne.s32.totalorder %s188, %s202
    %p204 = scmp.eq.s32.totalorder %s26, 0
    %p205 = por %p203, %p204
    %s207 = sadd.s32 %s206, 1
    %p210 = scmp.eq.s32.totalorder %s20, 1
    %p211 = scmp.ne.s32.totalorder %s206, %s208
    %p212 = scmp.eq.s32.totalorder %s20, 0
    %p213 = por %p211, %p212
    %p214 = scmp.ne.s32.totalorder %s206, %s208
    %p215 = scmp.eq.s32.totalorder %s25, 1
    %p216 = por %p214, %p215
    %p217 = scmp.ne.s32.totalorder %s208, %s209
    %p218 = scmp.eq.s32.totalorder %s25, 0
    %p219 = por %p217, %p218
    %p220 = scmp.ne.s32.totalorder %s208, %s209
    %p221 = scmp.eq.s32.totalorder %s26, 1
    %p222 = por %p220, %p221
    %p224 = scmp.ne.s32.totalorder %s209, %s223
    %p225 = scmp.eq.s32.totalorder %s26, 0
    %p226 = por %p224, %p225
    %s228 = sadd.s32 %s227, 1
    %p231 = scmp.eq.s32.totalorder %s20, 1
    %p232 = scmp.ne.s32.totalorder %s227, %s229
    %p233 = scmp.eq.s32.totalorder %s20, 0
    %p234 = por %p232, %p233
    %p235 = scmp.ne.s32.totalorder %s227, %s229
    %p236 = scmp.eq.s32.totalorder %s25, 1
    %p237 = por %p235, %p236
    %p238 = scmp.ne.s32.totalorder %s229, %s230
    %p239 = scmp.eq.s32.totalorder %s25, 0
    %p240 = por %p238, %p239
    %p241 = scmp.ne.s32.totalorder %s229, %s230
    %p242 = scmp.eq.s32.totalorder %s26, 1
    %p243 = por %p241, %p242
    %p245 = scmp.ne.s32.totalorder %s230, %s244
    %p246 = scmp.eq.s32.totalorder %s26, 0
    %p247 = por %p245, %p246
    %s249 = sadd.s32 %s248, 1
    %p252 = scmp.eq.s32.totalorder %s20, 1
    %p253 = scmp.ne.s32.totalorder %s248, %s250
    %p254 = scmp.eq.s32.totalorder %s20, 0
    %p255 = por %p253, %p254
    %p256 = scmp.ne.s32.totalorder %s248, %s250
    %p257 = scmp.eq.s32.totalorder %s25, 1
    %p258 = por %p256, %p257
    %p259 = scmp.ne.s32.totalorder %s250, %s251
    %p260 = scmp.eq.s32.totalorder %s25, 0
    %p261 = por %p259, %p260
    %p262 = scmp.ne.s32.totalorder %s250, %s251
    %p263 = scmp.eq.s32.totalorder %s26, 1
    %p264 = por %p262, %p263
    %p266 = scmp.ne.s32.totalorder %s251, %s265
    %p267 = scmp.eq.s32.totalorder %s26, 0
    %p268 = por %p266, %p267
    %s270 = sadd.s32 %s269, 1
    %p273 = scmp.eq.s32.totalorder %s20, 1
    %p274 = scmp.ne.s32.totalorder %s269, %s271
    %p275 = scmp.eq.s32.totalorder %s20, 0
    %p276 = por %p274, %p275
    %p277 = scmp.ne.s32.totalorder %s269, %s271
    %p278 = scmp.eq.s32.totalorder %s25, 1
    %p279 = por %p277, %p278
    %p280 = scmp.ne.s32.totalorder %s271, %s272
    %p281 = scmp.eq.s32.totalorder %s25, 0
    %p282 = por %p280, %p281
    %p283 = scmp.ne.s32.totalorder %s271, %s272
    %p284 = scmp.eq.s32.totalorder %s26, 1
    %p285 = por %p283, %p284
    %p287 = scmp.ne.s32.totalorder %s272, %s286
    %p288 = scmp.eq.s32.totalorder %s26, 0
    %p289 = por %p287, %p288
    %s291 = sadd.s32 %s290, 1
    %p294 = scmp.eq.s32.totalorder %s20, 1
    %p295 = scmp.ne.s32.totalorder %s290, %s292
    %p296 = scmp.eq.s32.totalorder %s20, 0
    %p297 = por %p295, %p296
    %p298 = scmp.ne.s32.totalorder %s290, %s292
    %p299 = scmp.eq.s32.totalorder %s25, 1
    %p300 = por %p298, %p299
    %p301 = scmp.ne.s32.totalorder %s292, %s293
    %p302 = scmp.eq.s32.totalorder %s25, 0
    %p303 = por %p301, %p302
    %p304 = scmp.ne.s32.totalorder %s292, %s293
    %p305 = scmp.eq.s32.totalorder %s26, 1
    %p306 = por %p304, %p305
    %p308 = scmp.ne.s32.totalorder %s293, %s307
    %p309 = scmp.eq.s32.totalorder %s26, 0
    %p310 = por %p308, %p309
    %s312 = sadd.s32 %s311, 1
    %p315 = scmp.eq.s32.totalorder %s20, 1
    %p316 = scmp.ne.s32.totalorder %s311, %s313
    %p317 = scmp.eq.s32.totalorder %s20, 0
    %p318 = por %p316, %p317
    %p319 = scmp.ne.s32.totalorder %s311, %s313
    %p320 = scmp.eq.s32.totalorder %s25, 1
    %p321 = por %p319, %p320
    %p322 = scmp.ne.s32.totalorder %s313, %s314
    %p323 = scmp.eq.s32.totalorder %s25, 0
    %p324 = por %p322, %p323
    %p325 = scmp.ne.s32.totalorder %s313, %s314
    %p326 = scmp.eq.s32.totalorder %s26, 1
    %p327 = por %p325, %p326
    %p329 = scmp.ne.s32.totalorder %s314, %s328
    %p330 = scmp.eq.s32.totalorder %s26, 0
    %p331 = por %p329, %p330
    %s332 = ssub.s32 %s20, %s27
    %p333 = scmp.eq.s32.totalorder %s332, 0
    %s335 = sadd.s32 %s334, 1
    %s336 = scalar_select %p333, %s334, %s335
    %p339 = pneg %p333
    %p340 = scmp.eq.s32.totalorder %s20, 1
    %p341 = por %p339, %p340
    %p342 = scmp.ne.s32.totalorder %s334, %s337
    %p343 = scmp.eq.s32.totalorder %s20, 0
    %p344 = por %p342, %p343
    %p345 = scmp.ne.s32.totalorder %s334, %s337
    %p346 = scmp.eq.s32.totalorder %s25, 1
    %p347 = por %p345, %p346
    %p348 = scmp.ne.s32.totalorder %s337, %s338
    %p349 = scmp.eq.s32.totalorder %s25, 0
    %p350 = por %p348, %p349
    %p351 = scmp.ne.s32.totalorder %s337, %s338
    %p352 = scmp.eq.s32.totalorder %s26, 1
    %p353 = por %p351, %p352
    %p355 = scmp.ne.s32.totalorder %s338, %s354
    %p356 = scmp.eq.s32.totalorder %s26, 0
    %p357 = por %p355, %p356
    %p358 = scmp.le.s32.totalorder 1, %s20
    %p359 = scmp.lt.s32.totalorder %s20, 3
    %p360 = pnand %p358, %p359
    %p361 = pneg %p360
    // Predicated region
    $region9: #{stereo_track_head_forward.3} parent=5 // pred_check
      _
    $region10: #{stereo_track_head_forward.3} parent=5 // pred_check_branch
      %363 = sbr.rel (%p360) target = $region12
    $region11: #{stereo_track_head_forward.3} parent=5 // pred_region
      %s364 = ssub.s32 %s20, 1
      // Predicated region
      $region13: #{stereo_track_head_forward.3} parent=11 // pred_check
        %p365 = pneg %p93
      $region14: #{stereo_track_head_forward.3} parent=11 // pred_check_branch
        %367 = sbr.rel (%p365) target = $region16
      $region15: #{stereo_track_head_forward.3} parent=11 // pred_region
        _
      $region16: #{stereo_track_head_forward.3} parent=11 // pred_fallthru
        _
      // Predicated region
      $region17: #{stereo_track_head_forward.3} parent=11 // pred_check
        %p368 = pneg %p114
      $region18: #{stereo_track_head_forward.3} parent=11 // pred_check_branch
        %370 = sbr.rel (%p368) target = $region20
      $region19: #{stereo_track_head_forward.3} parent=11 // pred_region
        _
      $region20: #{stereo_track_head_forward.3} parent=11 // pred_fallthru
        _
      // Predicated region
      $region21: #{stereo_track_head_forward.3} parent=11 // pred_check
        %p371 = pneg %p135
      $region22: #{stereo_track_head_forward.3} parent=11 // pred_check_branch
        %373 = sbr.rel (%p371) target = $region24
      $region23: #{stereo_track_head_forward.3} parent=11 // pred_region
        _
      $region24: #{stereo_track_head_forward.3} parent=11 // pred_fallthru
        _
      // Predicated region
      $region25: #{stereo_track_head_forward.3} parent=11 // pred_check
        %p374 = pneg %p156
      $region26: #{stereo_track_head_forward.3} parent=11 // pred_check_branch
        %376 = sbr.rel (%p374) target = $region28
      $region27: #{stereo_track_head_forward.3} parent=11 // pred_region
        _
      $region28: #{stereo_track_head_forward.3} parent=11 // pred_fallthru
        _
      // Predicated region
      $region29: #{stereo_track_head_forward.3} parent=11 // pred_check
        %p377 = pneg %p177
      $region30: #{stereo_track_head_forward.3} parent=11 // pred_check_branch
        %379 = sbr.rel (%p377) target = $region32
      $region31: #{stereo_track_head_forward.3} parent=11 // pred_region
        _
      $region32: #{stereo_track_head_forward.3} parent=11 // pred_fallthru
        _
      // Predicated region
      $region33: #{stereo_track_head_forward.3} parent=11 // pred_check
        %p380 = pneg %p198
      $region34: #{stereo_track_head_forward.3} parent=11 // pred_check_branch
        %382 = sbr.rel (%p380) target = $region36
      $region35: #{stereo_track_head_forward.3} parent=11 // pred_region
        _
      $region36: #{stereo_track_head_forward.3} parent=11 // pred_fallthru
        _
      // Predicated region
      $region37: #{stereo_track_head_forward.3} parent=11 // pred_check
        %p383 = pneg %p219
      $region38: #{stereo_track_head_forward.3} parent=11 // pred_check_branch
        %385 = sbr.rel (%p383) target = $region40
      $region39: #{stereo_track_head_forward.3} parent=11 // pred_region
        _
      $region40: #{stereo_track_head_forward.3} parent=11 // pred_fallthru
        _
      // Predicated region
      $region41: #{stereo_track_head_forward.3} parent=11 // pred_check
        %p386 = pneg %p240
      $region42: #{stereo_track_head_forward.3} parent=11 // pred_check_branch
        %388 = sbr.rel (%p386) target = $region44
      $region43: #{stereo_track_head_forward.3} parent=11 // pred_region
        _
      $region44: #{stereo_track_head_forward.3} parent=11 // pred_fallthru
        _
      // Predicated region
      $region45: #{stereo_track_head_forward.3} parent=11 // pred_check
        %p389 = pneg %p261
      $region46: #{stereo_track_head_forward.3} parent=11 // pred_check_branch
        %391 = sbr.rel (%p389) target = $region48
      $region47: #{stereo_track_head_forward.3} parent=11 // pred_region
        _
      $region48: #{stereo_track_head_forward.3} parent=11 // pred_fallthru
        _
      // Predicated region
      $region49: #{stereo_track_head_forward.3} parent=11 // pred_check
        %p392 = pneg %p282
      $region50: #{stereo_track_head_forward.3} parent=11 // pred_check_branch
        %394 = sbr.rel (%p392) target = $region52
      $region51: #{stereo_track_head_forward.3} parent=11 // pred_region
        _
      $region52: #{stereo_track_head_forward.3} parent=11 // pred_fallthru
        _
      // Predicated region
      $region53: #{stereo_track_head_forward.3} parent=11 // pred_check
        %p395 = pneg %p303
      $region54: #{stereo_track_head_forward.3} parent=11 // pred_check_branch
        %397 = sbr.rel (%p395) target = $region56
      $region55: #{stereo_track_head_forward.3} parent=11 // pred_region
        _
      $region56: #{stereo_track_head_forward.3} parent=11 // pred_fallthru
        _
      // Predicated region
      $region57: #{stereo_track_head_forward.3} parent=11 // pred_check
        %p398 = pneg %p324
      $region58: #{stereo_track_head_forward.3} parent=11 // pred_check_branch
        %400 = sbr.rel (%p398) target = $region60
      $region59: #{stereo_track_head_forward.3} parent=11 // pred_region
        _
      $region60: #{stereo_track_head_forward.3} parent=11 // pred_fallthru
        _
    $region12: #{stereo_track_head_forward.3} parent=5 // pred_fallthru
      _
    %p401 = scmp.lt.s32.totalorder %s20, 2
    // Predicated region
    $region61: #{stereo_track_head_forward.3} parent=5 // pred_check
      %p402 = pneg %p401
    $region62: #{stereo_track_head_forward.3} parent=5 // pred_check_branch
      %404 = sbr.rel (%p402) target = $region64
    $region63: #{stereo_track_head_forward.3} parent=5 // pred_region
      // Predicated region
      $region65: #{stereo_track_head_forward.3} parent=63 // pred_check
        %p405 = pneg %p40
      $region66: #{stereo_track_head_forward.3} parent=63 // pred_check_branch
        %407 = sbr.rel (%p405) target = $region68
      $region67: #{stereo_track_head_forward.3} parent=63 // pred_region
        %s408 = smul.u32 48, %s20
        %p409 = scmp.lt.s32.totalorder %s408, 95
        %s410 = scalar_select %p409, %s408, 95
        %s411 = smul.addr %s410, 4
        %s412 = scalar_lea.vmem %s0, %s411
        %s413 = smul.u32 48, %s20
      $region68: #{stereo_track_head_forward.3} parent=63 // pred_fallthru
        _
      // Predicated region
      $region69: #{stereo_track_head_forward.3} parent=63 // pred_check
        %p414 = pneg %p66
      $region70: #{stereo_track_head_forward.3} parent=63 // pred_check_branch
        %416 = sbr.rel (%p414) target = $region72
      $region71: #{stereo_track_head_forward.3} parent=63 // pred_region
        %s417 = smul.u32 48, %s20
        %p418 = scmp.lt.s32.totalorder %s417, 95
        %s419 = scalar_select %p418, %s417, 95
        %s420 = smul.addr %s419, 8
        %s421 = scalar_lea.vmem %s1, %s420
        %s422 = smul.u32 48, %s20
      $region72: #{stereo_track_head_forward.3} parent=63 // pred_fallthru
        _
    $region64: #{stereo_track_head_forward.3} parent=5 // pred_fallthru
      _
    %p423 = scmp.le.s32.totalorder 1, %s20
    %p424 = scmp.lt.s32.totalorder %s20, 3
    %p425 = pnand %p423, %p424
    %p426 = pneg %p425
    // Predicated region
    $region73: #{stereo_track_head_forward.3} parent=5 // pred_check
      _
    $region74: #{stereo_track_head_forward.3} parent=5 // pred_check_branch
      %428 = sbr.rel (%p425) target = $region76
    $region75: #{stereo_track_head_forward.3} parent=5 // pred_region
      %s429 = ssub.s32 %s20, 1
      %s430 = smul.u32 48, %s25
      %p431 = scmp.lt.s32.totalorder %s430, 95
      %s432 = scalar_select %p431, %s430, 95
      %s433 = smul.addr %s432, 4
      %s434 = scalar_lea.vmem %s0, %s433
      %p435 = pneg %p46
      %p436 = pneg %p43
      %s437 = smul.u32 48, %s25
      %p438 = scmp.lt.s32.totalorder %s437, 95
      %s439 = scalar_select %p438, %s437, 95
      %s440 = smul.addr %s439, 8
      %s441 = scalar_lea.vmem %s1, %s440
      %p442 = pneg %p72
      %p443 = pneg %p69
      %p444 = pneg %p93
      %p445 = pneg %p90
      %p446 = pneg %p114
      %p447 = pneg %p111
      %p448 = pneg %p135
      %p449 = pneg %p132
      %p450 = pneg %p156
      %p451 = pneg %p153
      %p452 = pneg %p177
      %p453 = pneg %p174
      %p454 = pneg %p198
      %p455 = pneg %p195
      %p456 = pneg %p219
      %p457 = pneg %p216
      %p458 = pneg %p240
      %p459 = pneg %p237
      %p460 = pneg %p261
      %p461 = pneg %p258
      %p462 = pneg %p282
      %p463 = pneg %p279
      %p464 = pneg %p303
      %p465 = pneg %p300
      %p466 = pneg %p324
      %p467 = pneg %p321
      %p468 = pneg %p350
      %p469 = pneg %p347
      %s470 = smul.u32 48, %s25
      %p471 = scmp.lt.s32.totalorder %s470, 95
      %s472 = scalar_select %p471, %s470, 95
      %s473 = smul.addr %s472, 8
      %s474 = scalar_lea.vmem %s14, %s473
      %s475 = smul.u32 48, %s25
      %p476 = scmp.lt.s32.totalorder %s475, 95
      %s477 = scalar_select %p476, %s475, 95
      %s478 = smul.addr %s477, 4
      %s479 = scalar_lea.vmem %s0, %s478
      %s480 = smul.u32 48, %s25
      %s481 = smul.u32 48, %s25
      %p482 = scmp.lt.s32.totalorder %s481, 95
      %s483 = scalar_select %p482, %s481, 95
      %s484 = smul.addr %s483, 8
      %s485 = scalar_lea.vmem %s1, %s484
      %s486 = smul.u32 48, %s25
      %s487 = smul.u32 48, %s25
      %p488 = scmp.lt.s32.totalorder %s487, 95
      %s489 = scalar_select %p488, %s487, 95
      %s490 = smul.addr %s489, 8
      %s491 = scalar_lea.vmem %s14, %s490
      %s492 = smul.u32 48, %s25
      %v494 = vld [vmem:[%s479] sm:$0xf]
      %v495 = vld [vmem:[%s479 + $0x4] sm:$0xf]
      %v496 = vld [vmem:[%s479 + $0x8] sm:$0xf]
      %v497 = vld [vmem:[%s479 + $0xc] sm:$0xf]
      %v498 = vld [vmem:[%s479 + $0x10] sm:$0xf]
      %v499 = vld [vmem:[%s479 + $0x14] sm:$0xf]
      %v500 = vld [vmem:[%s479 + $0x18] sm:$0xf]
      %v501 = vld [vmem:[%s479 + $0x1c] sm:$0xf]
      %v502 = vld [vmem:[%s479 + $0x20] sm:$0xf]
      %v503 = vld [vmem:[%s479 + $0x24] sm:$0xf]
      %v504 = vld [vmem:[%s479 + $0x28] sm:$0xf]
      %v505 = vld [vmem:[%s479 + $0x2c] sm:$0xf]
      %v506 = vld [vmem:[%s479 + $0x30] sm:$0xf]
      %v507 = vld [vmem:[%s479 + $0x34] sm:$0xf]
      %v508 = vld [vmem:[%s479 + $0x38] sm:$0xf]
      %v509 = vld [vmem:[%s479 + $0x3c] sm:$0xf]
      %v510 = vld [vmem:[%s479 + $0x40] sm:$0xf]
      %v511 = vld [vmem:[%s479 + $0x44] sm:$0xf]
      %v512 = vld [vmem:[%s479 + $0x48] sm:$0xf]
      %v513 = vld [vmem:[%s479 + $0x4c] sm:$0xf]
      %v514 = vld [vmem:[%s479 + $0x50] sm:$0xf]
      %v515 = vld [vmem:[%s479 + $0x54] sm:$0xf]
      %v516 = vld [vmem:[%s479 + $0x58] sm:$0xf]
      %v517 = vld [vmem:[%s479 + $0x5c] sm:$0xf]
      %v518 = vld [vmem:[%s479 + $0x60] sm:$0xf]
      %v519 = vld [vmem:[%s479 + $0x64] sm:$0xf]
      %v520 = vld [vmem:[%s479 + $0x68] sm:$0xf]
      %v521 = vld [vmem:[%s479 + $0x6c] sm:$0xf]
      %v522 = vld [vmem:[%s479 + $0x70] sm:$0xf]
      %v523 = vld [vmem:[%s479 + $0x74] sm:$0xf]
      %v524 = vld [vmem:[%s479 + $0x78] sm:$0xf]
      %v525 = vld [vmem:[%s479 + $0x7c] sm:$0xf]
      %v526 = vld [vmem:[%s479 + $0x80] sm:$0xf]
      %v527 = vld [vmem:[%s479 + $0x84] sm:$0xf]
      %v528 = vld [vmem:[%s479 + $0x88] sm:$0xf]
      %v529 = vld [vmem:[%s479 + $0x8c] sm:$0xf]
      %v530 = vld [vmem:[%s479 + $0x90] sm:$0xf]
      %v531 = vld [vmem:[%s479 + $0x94] sm:$0xf]
      %v532 = vld [vmem:[%s479 + $0x98] sm:$0xf]
      %v533 = vld [vmem:[%s479 + $0x9c] sm:$0xf]
      %v534 = vld [vmem:[%s479 + $0xa0] sm:$0xf]
      %v535 = vld [vmem:[%s479 + $0xa4] sm:$0xf]
      %v536 = vld [vmem:[%s479 + $0xa8] sm:$0xf]
      %v537 = vld [vmem:[%s479 + $0xac] sm:$0xf]
      %v538 = vld [vmem:[%s479 + $0xb0] sm:$0xf]
      %v539 = vld [vmem:[%s479 + $0xb4] sm:$0xf]
      %v540 = vld [vmem:[%s479 + $0xb8] sm:$0xf]
      %v541 = vld [vmem:[%s479 + $0xbc] sm:$0xf]
      %v542 = vld [vmem:[%s2] sm:$0xff]
      %v543 = vld [vmem:[%s2 + $0x8] sm:$0xff]
      %v544 = vld [vmem:[%s2 + $0x10] sm:$0xff]
      %v545 = vld [vmem:[%s2 + $0x18] sm:$0xff]
      %v546 = vld [vmem:[%s2 + $0x20] sm:$0xff]
      %v547 = vld [vmem:[%s2 + $0x28] sm:$0xff]
      %v548 = vld [vmem:[%s2 + $0x30] sm:$0xff]
      %v549 = vld [vmem:[%s2 + $0x38] sm:$0xff]
      %v550 = vld [vmem:[%s2 + $0x40] sm:$0xff]
      %v551 = vld [vmem:[%s2 + $0x48] sm:$0xff]
      %v552 = vld [vmem:[%s2 + $0x50] sm:$0xff]
      %v553 = vld [vmem:[%s2 + $0x58] sm:$0xff]
      %v554 = vld [vmem:[%s2 + $0x60] sm:$0xff]
      %v555 = vld [vmem:[%s2 + $0x68] sm:$0xff]
      %v556 = vld [vmem:[%s2 + $0x70] sm:$0xff]
      %v557 = vld [vmem:[%s2 + $0x78] sm:$0xff]
      %v558 = vld [vmem:[%s3] sm:$0x3]
      %v560 = vlaneseq
      %v561 = vshrl.u32 %v560, 7
      %v562 = vsub.s32 0, %v561
      %v563 = vrot.slane %v558, %v562
      %v564 = vlaneseq
      %v565 = vshrl.u32 %v564, 7
      %v566 = vsub.s32 1, %v565
      %v567 = vrot.slane %v558, %v566
      %v618 = vunpack.c.l.b16 %v494
      %v619 = vunpack.c.l.b16 %v495
      %v620 = vunpack.c.l.b16 %v496
      %v621 = vunpack.c.l.b16 %v497
      %v622 = vunpack.c.l.b16 %v498
      %v623 = vunpack.c.l.b16 %v499
      %v624 = vunpack.c.l.b16 %v500
      %v625 = vunpack.c.l.b16 %v501
      %v626 = vunpack.c.l.b16 %v502
      %v627 = vunpack.c.l.b16 %v503
      %v628 = vunpack.c.l.b16 %v504
      %v629 = vunpack.c.l.b16 %v505
      %v630 = vunpack.c.l.b16 %v506
      %v631 = vunpack.c.l.b16 %v507
      %v632 = vunpack.c.l.b16 %v508
      %v633 = vunpack.c.l.b16 %v509
      %v634 = vunpack.c.l.b16 %v510
      %v635 = vunpack.c.l.b16 %v511
      %v636 = vunpack.c.l.b16 %v512
      %v637 = vunpack.c.l.b16 %v513
      %v638 = vunpack.c.l.b16 %v514
      %v639 = vunpack.c.l.b16 %v515
      %v640 = vunpack.c.l.b16 %v516
      %v641 = vunpack.c.l.b16 %v517
      %v642 = vunpack.c.l.b16 %v518
      %v643 = vunpack.c.l.b16 %v519
      %v644 = vunpack.c.l.b16 %v520
      %v645 = vunpack.c.l.b16 %v521
      %v646 = vunpack.c.l.b16 %v522
      %v647 = vunpack.c.l.b16 %v523
      %v648 = vunpack.c.l.b16 %v524
      %v649 = vunpack.c.l.b16 %v525
      %v650 = vunpack.c.l.b16 %v526
      %v651 = vunpack.c.l.b16 %v527
      %v652 = vunpack.c.l.b16 %v528
      %v653 = vunpack.c.l.b16 %v529
      %v654 = vunpack.c.l.b16 %v530
      %v655 = vunpack.c.l.b16 %v531
      %v656 = vunpack.c.l.b16 %v532
      %v657 = vunpack.c.l.b16 %v533
      %v658 = vunpack.c.l.b16 %v534
      %v659 = vunpack.c.l.b16 %v535
      %v660 = vunpack.c.l.b16 %v536
      %v661 = vunpack.c.l.b16 %v537
      %v662 = vunpack.c.l.b16 %v538
      %v663 = vunpack.c.l.b16 %v539
      %v664 = vunpack.c.l.b16 %v540
      %v665 = vunpack.c.l.b16 %v541
      %v666 = vpack.c.b16 %v619, %v618
      %v667 = vpack.c.b16 %v621, %v620
      %v668 = vpack.c.b16 %v623, %v622
      %v669 = vpack.c.b16 %v625, %v624
      %v670 = vpack.c.b16 %v627, %v626
      %v671 = vpack.c.b16 %v629, %v628
      %v672 = vpack.c.b16 %v631, %v630
      %v673 = vpack.c.b16 %v633, %v632
      %v674 = vpack.c.b16 %v635, %v634
      %v675 = vpack.c.b16 %v637, %v636
      %v676 = vpack.c.b16 %v639, %v638
      %v677 = vpack.c.b16 %v641, %v640
      %v678 = vpack.c.b16 %v643, %v642
      %v679 = vpack.c.b16 %v645, %v644
      %v680 = vpack.c.b16 %v647, %v646
      %v681 = vpack.c.b16 %v649, %v648
      %v682 = vpack.c.b16 %v651, %v650
      %v683 = vpack.c.b16 %v653, %v652
      %v684 = vpack.c.b16 %v655, %v654
      %v685 = vpack.c.b16 %v657, %v656
      %v686 = vpack.c.b16 %v659, %v658
      %v687 = vpack.c.b16 %v661, %v660
      %v688 = vpack.c.b16 %v663, %v662
      %v689 = vpack.c.b16 %v665, %v664
      %v730 = vunpack.c.l.b16 %v542
      %v731 = vunpack.c.h.b16 %v542
      %v732 = vunpack.c.l.b16 %v543
      %v733 = vunpack.c.h.b16 %v543
      %v734 = vunpack.c.l.b16 %v544
      %v735 = vunpack.c.h.b16 %v544
      %v736 = vunpack.c.l.b16 %v545
      %v737 = vunpack.c.h.b16 %v545
      %v738 = vunpack.c.l.b16 %v546
      %v739 = vunpack.c.h.b16 %v546
      %v740 = vunpack.c.l.b16 %v547
      %v741 = vunpack.c.h.b16 %v547
      %v742 = vunpack.c.l.b16 %v548
      %v743 = vunpack.c.h.b16 %v548
      %v744 = vunpack.c.l.b16 %v549
      %v745 = vunpack.c.h.b16 %v549
      %v746 = vunpack.c.l.b16 %v550
      %v747 = vunpack.c.h.b16 %v550
      %v748 = vunpack.c.l.b16 %v551
      %v749 = vunpack.c.h.b16 %v551
      %v750 = vunpack.c.l.b16 %v552
      %v751 = vunpack.c.h.b16 %v552
      %v752 = vunpack.c.l.b16 %v553
      %v753 = vunpack.c.h.b16 %v553
      %v754 = vunpack.c.l.b16 %v554
      %v755 = vunpack.c.h.b16 %v554
      %v756 = vunpack.c.l.b16 %v555
      %v757 = vunpack.c.h.b16 %v555
      %v758 = vunpack.c.l.b16 %v556
      %v759 = vunpack.c.h.b16 %v556
      %v760 = vunpack.c.l.b16 %v557
      %v761 = vunpack.c.h.b16 %v557
      %v762 = vpack.c.b16 %v732, %v730
      %v763 = vpack.c.b16 %v733, %v731
      %v764 = vpack.c.b16 %v736, %v734
      %v765 = vpack.c.b16 %v737, %v735
      %v766 = vpack.c.b16 %v740, %v738
      %v767 = vpack.c.b16 %v741, %v739
      %v768 = vpack.c.b16 %v744, %v742
      %v769 = vpack.c.b16 %v745, %v743
      %v770 = vpack.c.b16 %v748, %v746
      %v771 = vpack.c.b16 %v749, %v747
      %v772 = vpack.c.b16 %v752, %v750
      %v773 = vpack.c.b16 %v753, %v751
      %v774 = vpack.c.b16 %v756, %v754
      %v775 = vpack.c.b16 %v757, %v755
      %v776 = vpack.c.b16 %v760, %v758
      %v777 = vpack.c.b16 %v761, %v759
      %794 = vmatprep.subr.bf16.mxu0 %v777
      %795 = vmatpush1.bf16.msra.mxu0 %v776
      %796 = vmatprep.subr.bf16.mxu0 %v775
      %797 = vmatpush1.bf16.msra.mxu0 %v774
      %798 = vmatprep.subr.bf16.mxu0 %v773
      %799 = vmatpush1.bf16.msra.mxu0 %v772
      %800 = vmatprep.subr.bf16.mxu0 %v771
      %801 = vmatpush1.bf16.msra.mxu0 %v770
      %802 = vmatprep.subr.bf16.mxu0 %v769
      %803 = vmatpush1.bf16.msra.mxu0 %v768
      %804 = vmatprep.subr.bf16.mxu0 %v767
      %805 = vmatpush1.bf16.msra.mxu0 %v766
      %806 = vmatprep.subr.bf16.mxu0 %v765
      %807 = vmatpush1.bf16.msra.mxu0 %v764
      %808 = vmatprep.subr.bf16.mxu0 %v763
      %809 = vmatpush1.bf16.msra.mxu0 %v762
      %810 = vmatprep.subr.bf16.mxu0 0
      %811 = vmatpush2.bf16.msra.mxu0 0
      %812 = vmatprep.subr.bf16.mxu0 0
      %813 = vmatpush2.bf16.msra.mxu0 0
      %814 = vmatprep.subr.bf16.mxu0 0
      %815 = vmatpush2.bf16.msra.mxu0 0
      %816 = vmatprep.subr.bf16.mxu0 0
      %817 = vmatpush2.bf16.msra.mxu0 0
      %818 = vmatprep.subr.bf16.mxu0 0
      %819 = vmatpush2.bf16.msra.mxu0 0
      %820 = vmatprep.subr.bf16.mxu0 0
      %821 = vmatpush2.bf16.msra.mxu0 0
      %822 = vmatprep.subr.bf16.mxu0 0
      %823 = vmatpush2.bf16.msra.mxu0 0
      %824 = vmatprep.subr.bf16.mxu0 0
      %825 = vmatpush2.bf16.msra.mxu0 0
      %826 = vmatprep.mubr.bf16.mxu0 0
      %827 = vmatmul.mubr.bf16.gmra.mxu0 %v666
      %v828 = vpop.f32.mrf.mxu0
      %v829 = vadd.f32 %v563, %v828
      %v830 = vpop.f32.mrf.mxu0
      %v831 = vadd.f32 %v567, %v830
      %v832 = vpop.f32.mrf.mxu0
      %v833 = vadd.f32 %v563, %v832
      %v834 = vpop.f32.mrf.mxu0
      %v835 = vadd.f32 %v567, %v834
      %836 = vmatprep.mubr.bf16.mxu0 0
      %837 = vmatmul.mubr.bf16.gmra.mxu0 %v667
      %v838 = vpop.f32.mrf.mxu0
      %v839 = vadd.f32 %v563, %v838
      %v840 = vpop.f32.mrf.mxu0
      %v841 = vadd.f32 %v567, %v840
      %v842 = vpop.f32.mrf.mxu0
      %v843 = vadd.f32 %v563, %v842
      %v844 = vpop.f32.mrf.mxu0
      %v845 = vadd.f32 %v567, %v844
      %846 = vmatprep.mubr.bf16.mxu0 0
      %847 = vmatmul.mubr.bf16.gmra.mxu0 %v668
      %v848 = vpop.f32.mrf.mxu0
      %v849 = vadd.f32 %v563, %v848
      %v850 = vpop.f32.mrf.mxu0
      %v851 = vadd.f32 %v567, %v850
      %v852 = vpop.f32.mrf.mxu0
      %v853 = vadd.f32 %v563, %v852
      %v854 = vpop.f32.mrf.mxu0
      %v855 = vadd.f32 %v567, %v854
      %856 = vmatprep.mubr.bf16.mxu0 0
      %857 = vmatmul.mubr.bf16.gmra.mxu0 %v669
      %v858 = vpop.f32.mrf.mxu0
      %v859 = vadd.f32 %v563, %v858
      %v860 = vpop.f32.mrf.mxu0
      %v861 = vadd.f32 %v567, %v860
      %v862 = vpop.f32.mrf.mxu0
      %v863 = vadd.f32 %v563, %v862
      %v864 = vpop.f32.mrf.mxu0
      %v865 = vadd.f32 %v567, %v864
      %866 = vmatprep.mubr.bf16.mxu0 0
      %867 = vmatmul.mubr.bf16.gmra.mxu0 %v670
      %v868 = vpop.f32.mrf.mxu0
      %v869 = vadd.f32 %v563, %v868
      %v870 = vpop.f32.mrf.mxu0
      %v871 = vadd.f32 %v567, %v870
      %v872 = vpop.f32.mrf.mxu0
      %v873 = vadd.f32 %v563, %v872
      %v874 = vpop.f32.mrf.mxu0
      %v875 = vadd.f32 %v567, %v874
      %876 = vmatprep.mubr.bf16.mxu0 0
      %877 = vmatmul.mubr.bf16.gmra.mxu0 %v671
      %v878 = vpop.f32.mrf.mxu0
      %v879 = vadd.f32 %v563, %v878
      %v880 = vpop.f32.mrf.mxu0
      %v881 = vadd.f32 %v567, %v880
      %v882 = vpop.f32.mrf.mxu0
      %v883 = vadd.f32 %v563, %v882
      %v884 = vpop.f32.mrf.mxu0
      %v885 = vadd.f32 %v567, %v884
      %886 = vmatprep.mubr.bf16.mxu0 0
      %887 = vmatmul.mubr.bf16.gmra.mxu0 %v672
      %v888 = vpop.f32.mrf.mxu0
      %v889 = vadd.f32 %v563, %v888
      %v890 = vpop.f32.mrf.mxu0
      %v891 = vadd.f32 %v567, %v890
      %v892 = vpop.f32.mrf.mxu0
      %v893 = vadd.f32 %v563, %v892
      %v894 = vpop.f32.mrf.mxu0
      %v895 = vadd.f32 %v567, %v894
      %896 = vmatprep.mubr.bf16.mxu0 0
      %897 = vmatmul.mubr.bf16.gmra.mxu0 %v673
      %v898 = vpop.f32.mrf.mxu0
      %v899 = vadd.f32 %v563, %v898
      %v900 = vpop.f32.mrf.mxu0
      %v901 = vadd.f32 %v567, %v900
      %v902 = vpop.f32.mrf.mxu0
      %v903 = vadd.f32 %v563, %v902
      %v904 = vpop.f32.mrf.mxu0
      %v905 = vadd.f32 %v567, %v904
      %906 = vmatprep.mubr.bf16.mxu0 0
      %907 = vmatmul.mubr.bf16.gmra.mxu0 %v674
      %v908 = vpop.f32.mrf.mxu0
      %v909 = vadd.f32 %v563, %v908
      %v910 = vpop.f32.mrf.mxu0
      %v911 = vadd.f32 %v567, %v910
      %v912 = vpop.f32.mrf.mxu0
      %v913 = vadd.f32 %v563, %v912
      %v914 = vpop.f32.mrf.mxu0
      %v915 = vadd.f32 %v567, %v914
      %916 = vmatprep.mubr.bf16.mxu0 0
      %917 = vmatmul.mubr.bf16.gmra.mxu0 %v675
      %v918 = vpop.f32.mrf.mxu0
      %v919 = vadd.f32 %v563, %v918
      %v920 = vpop.f32.mrf.mxu0
      %v921 = vadd.f32 %v567, %v920
      %v922 = vpop.f32.mrf.mxu0
      %v923 = vadd.f32 %v563, %v922
      %v924 = vpop.f32.mrf.mxu0
      %v925 = vadd.f32 %v567, %v924
      %926 = vmatprep.mubr.bf16.mxu0 0
      %927 = vmatmul.mubr.bf16.gmra.mxu0 %v676
      %v928 = vpop.f32.mrf.mxu0
      %v929 = vadd.f32 %v563, %v928
      %v930 = vpop.f32.mrf.mxu0
      %v931 = vadd.f32 %v567, %v930
      %v932 = vpop.f32.mrf.mxu0
      %v933 = vadd.f32 %v563, %v932
      %v934 = vpop.f32.mrf.mxu0
      %v935 = vadd.f32 %v567, %v934
      %936 = vmatprep.mubr.bf16.mxu0 0
      %937 = vmatmul.mubr.bf16.gmra.mxu0 %v677
      %v938 = vpop.f32.mrf.mxu0
      %v939 = vadd.f32 %v563, %v938
      %v940 = vpop.f32.mrf.mxu0
      %v941 = vadd.f32 %v567, %v940
      %v942 = vpop.f32.mrf.mxu0
      %v943 = vadd.f32 %v563, %v942
      %v944 = vpop.f32.mrf.mxu0
      %v945 = vadd.f32 %v567, %v944
      %946 = vmatprep.mubr.bf16.mxu0 0
      %947 = vmatmul.mubr.bf16.gmra.mxu0 %v678
      %v948 = vpop.f32.mrf.mxu0
      %v949 = vadd.f32 %v563, %v948
      %v950 = vpop.f32.mrf.mxu0
      %v951 = vadd.f32 %v567, %v950
      %v952 = vpop.f32.mrf.mxu0
      %v953 = vadd.f32 %v563, %v952
      %v954 = vpop.f32.mrf.mxu0
      %v955 = vadd.f32 %v567, %v954
      %956 = vmatprep.mubr.bf16.mxu0 0
      %957 = vmatmul.mubr.bf16.gmra.mxu0 %v679
      %v958 = vpop.f32.mrf.mxu0
      %v959 = vadd.f32 %v563, %v958
      %v960 = vpop.f32.mrf.mxu0
      %v961 = vadd.f32 %v567, %v960
      %v962 = vpop.f32.mrf.mxu0
      %v963 = vadd.f32 %v563, %v962
      %v964 = vpop.f32.mrf.mxu0
      %v965 = vadd.f32 %v567, %v964
      %966 = vmatprep.mubr.bf16.mxu0 0
      %967 = vmatmul.mubr.bf16.gmra.mxu0 %v680
      %v968 = vpop.f32.mrf.mxu0
      %v969 = vadd.f32 %v563, %v968
      %v970 = vpop.f32.mrf.mxu0
      %v971 = vadd.f32 %v567, %v970
      %v972 = vpop.f32.mrf.mxu0
      %v973 = vadd.f32 %v563, %v972
      %v974 = vpop.f32.mrf.mxu0
      %v975 = vadd.f32 %v567, %v974
      %976 = vmatprep.mubr.bf16.mxu0 0
      %977 = vmatmul.mubr.bf16.gmra.mxu0 %v681
      %v978 = vpop.f32.mrf.mxu0
      %v979 = vadd.f32 %v563, %v978
      %v980 = vpop.f32.mrf.mxu0
      %v981 = vadd.f32 %v567, %v980
      %v982 = vpop.f32.mrf.mxu0
      %v983 = vadd.f32 %v563, %v982
      %v984 = vpop.f32.mrf.mxu0
      %v985 = vadd.f32 %v567, %v984
      %986 = vmatprep.mubr.bf16.mxu0 0
      %987 = vmatmul.mubr.bf16.gmra.mxu0 %v682
      %v988 = vpop.f32.mrf.mxu0
      %v989 = vadd.f32 %v563, %v988
      %v990 = vpop.f32.mrf.mxu0
      %v991 = vadd.f32 %v567, %v990
      %v992 = vpop.f32.mrf.mxu0
      %v993 = vadd.f32 %v563, %v992
      %v994 = vpop.f32.mrf.mxu0
      %v995 = vadd.f32 %v567, %v994
      %996 = vmatprep.mubr.bf16.mxu0 0
      %997 = vmatmul.mubr.bf16.gmra.mxu0 %v683
      %v998 = vpop.f32.mrf.mxu0
      %v999 = vadd.f32 %v563, %v998
      %v1000 = vpop.f32.mrf.mxu0
      %v1001 = vadd.f32 %v567, %v1000
      %v1002 = vpop.f32.mrf.mxu0
      %v1003 = vadd.f32 %v563, %v1002
      %v1004 = vpop.f32.mrf.mxu0
      %v1005 = vadd.f32 %v567, %v1004
      %1006 = vmatprep.mubr.bf16.mxu0 0
      %1007 = vmatmul.mubr.bf16.gmra.mxu0 %v684
      %v1008 = vpop.f32.mrf.mxu0
      %v1009 = vadd.f32 %v563, %v1008
      %v1010 = vpop.f32.mrf.mxu0
      %v1011 = vadd.f32 %v567, %v1010
      %v1012 = vpop.f32.mrf.mxu0
      %v1013 = vadd.f32 %v563, %v1012
      %v1014 = vpop.f32.mrf.mxu0
      %v1015 = vadd.f32 %v567, %v1014
      %1016 = vmatprep.mubr.bf16.mxu0 0
      %1017 = vmatmul.mubr.bf16.gmra.mxu0 %v685
      %v1018 = vpop.f32.mrf.mxu0
      %v1019 = vadd.f32 %v563, %v1018
      %v1020 = vpop.f32.mrf.mxu0
      %v1021 = vadd.f32 %v567, %v1020
      %v1022 = vpop.f32.mrf.mxu0
      %v1023 = vadd.f32 %v563, %v1022
      %v1024 = vpop.f32.mrf.mxu0
      %v1025 = vadd.f32 %v567, %v1024
      %1026 = vmatprep.mubr.bf16.mxu0 0
      %1027 = vmatmul.mubr.bf16.gmra.mxu0 %v686
      %v1028 = vpop.f32.mrf.mxu0
      %v1029 = vadd.f32 %v563, %v1028
      %v1030 = vpop.f32.mrf.mxu0
      %v1031 = vadd.f32 %v567, %v1030
      %v1032 = vpop.f32.mrf.mxu0
      %v1033 = vadd.f32 %v563, %v1032
      %v1034 = vpop.f32.mrf.mxu0
      %v1035 = vadd.f32 %v567, %v1034
      %1036 = vmatprep.mubr.bf16.mxu0 0
      %1037 = vmatmul.mubr.bf16.gmra.mxu0 %v687
      %v1038 = vpop.f32.mrf.mxu0
      %v1039 = vadd.f32 %v563, %v1038
      %v1040 = vpop.f32.mrf.mxu0
      %v1041 = vadd.f32 %v567, %v1040
      %v1042 = vpop.f32.mrf.mxu0
      %v1043 = vadd.f32 %v563, %v1042
      %v1044 = vpop.f32.mrf.mxu0
      %v1045 = vadd.f32 %v567, %v1044
      %1046 = vmatprep.mubr.bf16.mxu0 0
      %1047 = vmatmul.mubr.bf16.gmra.mxu0 %v688
      %v1048 = vpop.f32.mrf.mxu0
      %v1049 = vadd.f32 %v563, %v1048
      %v1050 = vpop.f32.mrf.mxu0
      %v1051 = vadd.f32 %v567, %v1050
      %v1052 = vpop.f32.mrf.mxu0
      %v1053 = vadd.f32 %v563, %v1052
      %v1054 = vpop.f32.mrf.mxu0
      %v1055 = vadd.f32 %v567, %v1054
      %1056 = vmatprep.mubr.bf16.mxu0 0
      %1057 = vmatmul.mubr.bf16.gmra.mxu0 %v689
      %v1058 = vpop.f32.mrf.mxu0
      %v1059 = vadd.f32 %v563, %v1058
      %v1060 = vpop.f32.mrf.mxu0
      %v1061 = vadd.f32 %v567, %v1060
      %v1062 = vpop.f32.mrf.mxu0
      %v1063 = vadd.f32 %v563, %v1062
      %v1064 = vpop.f32.mrf.mxu0
      %v1065 = vadd.f32 %v567, %v1064
      %1066 = vdwg.mxu0
      %1067 = vadd.xlane.f32.xlu0 %v829
      %v1068 = vpop.xlane.xlu0 %1067
      %1069 = vadd.xlane.f32.xlu0 %v833
      %v1070 = vpop.xlane.xlu0 %1069
      %1071 = vadd.xlane.f32.xlu0 %v839
      %v1072 = vpop.xlane.xlu0 %1071
      %1073 = vadd.xlane.f32.xlu0 %v843
      %v1074 = vpop.xlane.xlu0 %1073
      %1075 = vadd.xlane.f32.xlu0 %v849
      %v1076 = vpop.xlane.xlu0 %1075
      %1077 = vadd.xlane.f32.xlu0 %v853
      %v1078 = vpop.xlane.xlu0 %1077
      %1079 = vadd.xlane.f32.xlu0 %v859
      %v1080 = vpop.xlane.xlu0 %1079
      %1081 = vadd.xlane.f32.xlu0 %v863
      %v1082 = vpop.xlane.xlu0 %1081
      %1083 = vadd.xlane.f32.xlu0 %v869
      %v1084 = vpop.xlane.xlu0 %1083
      %1085 = vadd.xlane.f32.xlu0 %v873
      %v1086 = vpop.xlane.xlu0 %1085
      %1087 = vadd.xlane.f32.xlu0 %v879
      %v1088 = vpop.xlane.xlu0 %1087
      %1089 = vadd.xlane.f32.xlu0 %v883
      %v1090 = vpop.xlane.xlu0 %1089
      %1091 = vadd.xlane.f32.xlu0 %v889
      %v1092 = vpop.xlane.xlu0 %1091
      %1093 = vadd.xlane.f32.xlu0 %v893
      %v1094 = vpop.xlane.xlu0 %1093
      %1095 = vadd.xlane.f32.xlu0 %v899
      %v1096 = vpop.xlane.xlu0 %1095
      %1097 = vadd.xlane.f32.xlu0 %v903
      %v1098 = vpop.xlane.xlu0 %1097
      %1099 = vadd.xlane.f32.xlu0 %v909
      %v1100 = vpop.xlane.xlu0 %1099
      %1101 = vadd.xlane.f32.xlu0 %v913
      %v1102 = vpop.xlane.xlu0 %1101
      %1103 = vadd.xlane.f32.xlu0 %v919
      %v1104 = vpop.xlane.xlu0 %1103
      %1105 = vadd.xlane.f32.xlu0 %v923
      %v1106 = vpop.xlane.xlu0 %1105
      %1107 = vadd.xlane.f32.xlu0 %v929
      %v1108 = vpop.xlane.xlu0 %1107
      %1109 = vadd.xlane.f32.xlu0 %v933
      %v1110 = vpop.xlane.xlu0 %1109
      %1111 = vadd.xlane.f32.xlu0 %v939
      %v1112 = vpop.xlane.xlu0 %1111
      %1113 = vadd.xlane.f32.xlu0 %v943
      %v1114 = vpop.xlane.xlu0 %1113
      %1115 = vadd.xlane.f32.xlu0 %v949
      %v1116 = vpop.xlane.xlu0 %1115
      %1117 = vadd.xlane.f32.xlu0 %v953
      %v1118 = vpop.xlane.xlu0 %1117
      %1119 = vadd.xlane.f32.xlu0 %v959
      %v1120 = vpop.xlane.xlu0 %1119
      %1121 = vadd.xlane.f32.xlu0 %v963
      %v1122 = vpop.xlane.xlu0 %1121
      %1123 = vadd.xlane.f32.xlu0 %v969
      %v1124 = vpop.xlane.xlu0 %1123
      %1125 = vadd.xlane.f32.xlu0 %v973
      %v1126 = vpop.xlane.xlu0 %1125
      %1127 = vadd.xlane.f32.xlu0 %v979
      %v1128 = vpop.xlane.xlu0 %1127
      %1129 = vadd.xlane.f32.xlu0 %v983
      %v1130 = vpop.xlane.xlu0 %1129
      %1131 = vadd.xlane.f32.xlu0 %v989
      %v1132 = vpop.xlane.xlu0 %1131
      %1133 = vadd.xlane.f32.xlu0 %v993
      %v1134 = vpop.xlane.xlu0 %1133
      %1135 = vadd.xlane.f32.xlu0 %v999
      %v1136 = vpop.xlane.xlu0 %1135
      %1137 = vadd.xlane.f32.xlu0 %v1003
      %v1138 = vpop.xlane.xlu0 %1137
      %1139 = vadd.xlane.f32.xlu0 %v1009
      %v1140 = vpop.xlane.xlu0 %1139
      %1141 = vadd.xlane.f32.xlu0 %v1013
      %v1142 = vpop.xlane.xlu0 %1141
      %1143 = vadd.xlane.f32.xlu0 %v1019
      %v1144 = vpop.xlane.xlu0 %1143
      %1145 = vadd.xlane.f32.xlu0 %v1023
      %v1146 = vpop.xlane.xlu0 %1145
      %1147 = vadd.xlane.f32.xlu0 %v1029
      %v1148 = vpop.xlane.xlu0 %1147
      %1149 = vadd.xlane.f32.xlu0 %v1033
      %v1150 = vpop.xlane.xlu0 %1149
      %1151 = vadd.xlane.f32.xlu0 %v1039
      %v1152 = vpop.xlane.xlu0 %1151
      %1153 = vadd.xlane.f32.xlu0 %v1043
      %v1154 = vpop.xlane.xlu0 %1153
      %1155 = vadd.xlane.f32.xlu0 %v1049
      %v1156 = vpop.xlane.xlu0 %1155
      %1157 = vadd.xlane.f32.xlu0 %v1053
      %v1158 = vpop.xlane.xlu0 %1157
      %1159 = vadd.xlane.f32.xlu0 %v1059
      %v1160 = vpop.xlane.xlu0 %1159
      %1161 = vadd.xlane.f32.xlu0 %v1063
      %v1162 = vpop.xlane.xlu0 %1161
      %v1163 = vrcp.pop 128.0
      %v1164 = vmul.f32 %v1068, %v1163
      %v1165 = vmul.f32 %v1070, %v1163
      %v1166 = vmul.f32 %v1072, %v1163
      %v1167 = vmul.f32 %v1074, %v1163
      %v1168 = vmul.f32 %v1076, %v1163
      %v1169 = vmul.f32 %v1078, %v1163
      %v1170 = vmul.f32 %v1080, %v1163
      %v1171 = vmul.f32 %v1082, %v1163
      %v1172 = vmul.f32 %v1084, %v1163
      %v1173 = vmul.f32 %v1086, %v1163
      %v1174 = vmul.f32 %v1088, %v1163
      %v1175 = vmul.f32 %v1090, %v1163
      %v1176 = vmul.f32 %v1092, %v1163
      %v1177 = vmul.f32 %v1094, %v1163
      %v1178 = vmul.f32 %v1096, %v1163
      %v1179 = vmul.f32 %v1098, %v1163
      %v1180 = vmul.f32 %v1100, %v1163
      %v1181 = vmul.f32 %v1102, %v1163
      %v1182 = vmul.f32 %v1104, %v1163
      %v1183 = vmul.f32 %v1106, %v1163
      %v1184 = vmul.f32 %v1108, %v1163
      %v1185 = vmul.f32 %v1110, %v1163
      %v1186 = vmul.f32 %v1112, %v1163
      %v1187 = vmul.f32 %v1114, %v1163
      %v1188 = vmul.f32 %v1116, %v1163
      %v1189 = vmul.f32 %v1118, %v1163
      %v1190 = vmul.f32 %v1120, %v1163
      %v1191 = vmul.f32 %v1122, %v1163
      %v1192 = vmul.f32 %v1124, %v1163
      %v1193 = vmul.f32 %v1126, %v1163
      %v1194 = vmul.f32 %v1128, %v1163
      %v1195 = vmul.f32 %v1130, %v1163
      %v1196 = vmul.f32 %v1132, %v1163
      %v1197 = vmul.f32 %v1134, %v1163
      %v1198 = vmul.f32 %v1136, %v1163
      %v1199 = vmul.f32 %v1138, %v1163
      %v1200 = vmul.f32 %v1140, %v1163
      %v1201 = vmul.f32 %v1142, %v1163
      %v1202 = vmul.f32 %v1144, %v1163
      %v1203 = vmul.f32 %v1146, %v1163
      %v1204 = vmul.f32 %v1148, %v1163
      %v1205 = vmul.f32 %v1150, %v1163
      %v1206 = vmul.f32 %v1152, %v1163
      %v1207 = vmul.f32 %v1154, %v1163
      %v1208 = vmul.f32 %v1156, %v1163
      %v1209 = vmul.f32 %v1158, %v1163
      %v1210 = vmul.f32 %v1160, %v1163
      %v1211 = vmul.f32 %v1162, %v1163
      %v1212 = vsub.f32 %v829, %v1164
      %v1213 = vsub.f32 %v833, %v1165
      %v1214 = vsub.f32 %v839, %v1166
      %v1215 = vsub.f32 %v843, %v1167
      %v1216 = vsub.f32 %v849, %v1168
      %v1217 = vsub.f32 %v853, %v1169
      %v1218 = vsub.f32 %v859, %v1170
      %v1219 = vsub.f32 %v863, %v1171
      %v1220 = vsub.f32 %v869, %v1172
      %v1221 = vsub.f32 %v873, %v1173
      %v1222 = vsub.f32 %v879, %v1174
      %v1223 = vsub.f32 %v883, %v1175
      %v1224 = vsub.f32 %v889, %v1176
      %v1225 = vsub.f32 %v893, %v1177
      %v1226 = vsub.f32 %v899, %v1178
      %v1227 = vsub.f32 %v903, %v1179
      %v1228 = vsub.f32 %v909, %v1180
      %v1229 = vsub.f32 %v913, %v1181
      %v1230 = vsub.f32 %v919, %v1182
      %v1231 = vsub.f32 %v923, %v1183
      %v1232 = vsub.f32 %v929, %v1184
      %v1233 = vsub.f32 %v933, %v1185
      %v1234 = vsub.f32 %v939, %v1186
      %v1235 = vsub.f32 %v943, %v1187
      %v1236 = vsub.f32 %v949, %v1188
      %v1237 = vsub.f32 %v953, %v1189
      %v1238 = vsub.f32 %v959, %v1190
      %v1239 = vsub.f32 %v963, %v1191
      %v1240 = vsub.f32 %v969, %v1192
      %v1241 = vsub.f32 %v973, %v1193
      %v1242 = vsub.f32 %v979, %v1194
      %v1243 = vsub.f32 %v983, %v1195
      %v1244 = vsub.f32 %v989, %v1196
      %v1245 = vsub.f32 %v993, %v1197
      %v1246 = vsub.f32 %v999, %v1198
      %v1247 = vsub.f32 %v1003, %v1199
      %v1248 = vsub.f32 %v1009, %v1200
      %v1249 = vsub.f32 %v1013, %v1201
      %v1250 = vsub.f32 %v1019, %v1202
      %v1251 = vsub.f32 %v1023, %v1203
      %v1252 = vsub.f32 %v1029, %v1204
      %v1253 = vsub.f32 %v1033, %v1205
      %v1254 = vsub.f32 %v1039, %v1206
      %v1255 = vsub.f32 %v1043, %v1207
      %v1256 = vsub.f32 %v1049, %v1208
      %v1257 = vsub.f32 %v1053, %v1209
      %v1258 = vsub.f32 %v1059, %v1210
      %v1259 = vsub.f32 %v1063, %v1211
      %v1260 = vmul.f32 %v1212, %v1212
      %v1261 = vmul.f32 %v1213, %v1213
      %v1262 = vmul.f32 %v1214, %v1214
      %v1263 = vmul.f32 %v1215, %v1215
      %v1264 = vmul.f32 %v1216, %v1216
      %v1265 = vmul.f32 %v1217, %v1217
      %v1266 = vmul.f32 %v1218, %v1218
      %v1267 = vmul.f32 %v1219, %v1219
      %v1268 = vmul.f32 %v1220, %v1220
      %v1269 = vmul.f32 %v1221, %v1221
      %v1270 = vmul.f32 %v1222, %v1222
      %v1271 = vmul.f32 %v1223, %v1223
      %v1272 = vmul.f32 %v1224, %v1224
      %v1273 = vmul.f32 %v1225, %v1225
      %v1274 = vmul.f32 %v1226, %v1226
      %v1275 = vmul.f32 %v1227, %v1227
      %v1276 = vmul.f32 %v1228, %v1228
      %v1277 = vmul.f32 %v1229, %v1229
      %v1278 = vmul.f32 %v1230, %v1230
      %v1279 = vmul.f32 %v1231, %v1231
      %v1280 = vmul.f32 %v1232, %v1232
      %v1281 = vmul.f32 %v1233, %v1233
      %v1282 = vmul.f32 %v1234, %v1234
      %v1283 = vmul.f32 %v1235, %v1235
      %v1284 = vmul.f32 %v1236, %v1236
      %v1285 = vmul.f32 %v1237, %v1237
      %v1286 = vmul.f32 %v1238, %v1238
      %v1287 = vmul.f32 %v1239, %v1239
      %v1288 = vmul.f32 %v1240, %v1240
      %v1289 = vmul.f32 %v1241, %v1241
      %v1290 = vmul.f32 %v1242, %v1242
      %v1291 = vmul.f32 %v1243, %v1243
      %v1292 = vmul.f32 %v1244, %v1244
      %v1293 = vmul.f32 %v1245, %v1245
      %v1294 = vmul.f32 %v1246, %v1246
      %v1295 = vmul.f32 %v1247, %v1247
      %v1296 = vmul.f32 %v1248, %v1248
      %v1297 = vmul.f32 %v1249, %v1249
      %v1298 = vmul.f32 %v1250, %v1250
      %v1299 = vmul.f32 %v1251, %v1251
      %v1300 = vmul.f32 %v1252, %v1252
      %v1301 = vmul.f32 %v1253, %v1253
      %v1302 = vmul.f32 %v1254, %v1254
      %v1303 = vmul.f32 %v1255, %v1255
      %v1304 = vmul.f32 %v1256, %v1256
      %v1305 = vmul.f32 %v1257, %v1257
      %v1306 = vmul.f32 %v1258, %v1258
      %v1307 = vmul.f32 %v1259, %v1259
      %1308 = vadd.xlane.f32.xlu0 %v1260
      %v1309 = vpop.xlane.xlu0 %1308
      %1310 = vadd.xlane.f32.xlu0 %v1261
      %v1311 = vpop.xlane.xlu0 %1310
      %1312 = vadd.xlane.f32.xlu0 %v1262
      %v1313 = vpop.xlane.xlu0 %1312
      %1314 = vadd.xlane.f32.xlu0 %v1263
      %v1315 = vpop.xlane.xlu0 %1314
      %1316 = vadd.xlane.f32.xlu0 %v1264
      %v1317 = vpop.xlane.xlu0 %1316
      %1318 = vadd.xlane.f32.xlu0 %v1265
      %v1319 = vpop.xlane.xlu0 %1318
      %1320 = vadd.xlane.f32.xlu0 %v1266
      %v1321 = vpop.xlane.xlu0 %1320
      %1322 = vadd.xlane.f32.xlu0 %v1267
      %v1323 = vpop.xlane.xlu0 %1322
      %1324 = vadd.xlane.f32.xlu0 %v1268
      %v1325 = vpop.xlane.xlu0 %1324
      %1326 = vadd.xlane.f32.xlu0 %v1269
      %v1327 = vpop.xlane.xlu0 %1326
      %1328 = vadd.xlane.f32.xlu0 %v1270
      %v1329 = vpop.xlane.xlu0 %1328
      %1330 = vadd.xlane.f32.xlu0 %v1271
      %v1331 = vpop.xlane.xlu0 %1330
      %1332 = vadd.xlane.f32.xlu0 %v1272
      %v1333 = vpop.xlane.xlu0 %1332
      %1334 = vadd.xlane.f32.xlu0 %v1273
      %v1335 = vpop.xlane.xlu0 %1334
      %1336 = vadd.xlane.f32.xlu0 %v1274
      %v1337 = vpop.xlane.xlu0 %1336
      %1338 = vadd.xlane.f32.xlu0 %v1275
      %v1339 = vpop.xlane.xlu0 %1338
      %1340 = vadd.xlane.f32.xlu0 %v1276
      %v1341 = vpop.xlane.xlu0 %1340
      %1342 = vadd.xlane.f32.xlu0 %v1277
      %v1343 = vpop.xlane.xlu0 %1342
      %1344 = vadd.xlane.f32.xlu0 %v1278
      %v1345 = vpop.xlane.xlu0 %1344
      %1346 = vadd.xlane.f32.xlu0 %v1279
      %v1347 = vpop.xlane.xlu0 %1346
      %1348 = vadd.xlane.f32.xlu0 %v1280
      %v1349 = vpop.xlane.xlu0 %1348
      %1350 = vadd.xlane.f32.xlu0 %v1281
      %v1351 = vpop.xlane.xlu0 %1350
      %1352 = vadd.xlane.f32.xlu0 %v1282
      %v1353 = vpop.xlane.xlu0 %1352
      %1354 = vadd.xlane.f32.xlu0 %v1283
      %v1355 = vpop.xlane.xlu0 %1354
      %1356 = vadd.xlane.f32.xlu0 %v1284
      %v1357 = vpop.xlane.xlu0 %1356
      %1358 = vadd.xlane.f32.xlu0 %v1285
      %v1359 = vpop.xlane.xlu0 %1358
      %1360 = vadd.xlane.f32.xlu0 %v1286
      %v1361 = vpop.xlane.xlu0 %1360
      %1362 = vadd.xlane.f32.xlu0 %v1287
      %v1363 = vpop.xlane.xlu0 %1362
      %1364 = vadd.xlane.f32.xlu0 %v1288
      %v1365 = vpop.xlane.xlu0 %1364
      %1366 = vadd.xlane.f32.xlu0 %v1289
      %v1367 = vpop.xlane.xlu0 %1366
      %1368 = vadd.xlane.f32.xlu0 %v1290
      %v1369 = vpop.xlane.xlu0 %1368
      %1370 = vadd.xlane.f32.xlu0 %v1291
      %v1371 = vpop.xlane.xlu0 %1370
      %1372 = vadd.xlane.f32.xlu0 %v1292
      %v1373 = vpop.xlane.xlu0 %1372
      %1374 = vadd.xlane.f32.xlu0 %v1293
      %v1375 = vpop.xlane.xlu0 %1374
      %1376 = vadd.xlane.f32.xlu0 %v1294
      %v1377 = vpop.xlane.xlu0 %1376
      %1378 = vadd.xlane.f32.xlu0 %v1295
      %v1379 = vpop.xlane.xlu0 %1378
      %1380 = vadd.xlane.f32.xlu0 %v1296
      %v1381 = vpop.xlane.xlu0 %1380
      %1382 = vadd.xlane.f32.xlu0 %v1297
      %v1383 = vpop.xlane.xlu0 %1382
      %1384 = vadd.xlane.f32.xlu0 %v1298
      %v1385 = vpop.xlane.xlu0 %1384
      %1386 = vadd.xlane.f32.xlu0 %v1299
      %v1387 = vpop.xlane.xlu0 %1386
      %1388 = vadd.xlane.f32.xlu0 %v1300
      %v1389 = vpop.xlane.xlu0 %1388
      %1390 = vadd.xlane.f32.xlu0 %v1301
      %v1391 = vpop.xlane.xlu0 %1390
      %1392 = vadd.xlane.f32.xlu0 %v1302
      %v1393 = vpop.xlane.xlu0 %1392
      %1394 = vadd.xlane.f32.xlu0 %v1303
      %v1395 = vpop.xlane.xlu0 %1394
      %1396 = vadd.xlane.f32.xlu0 %v1304
      %v1397 = vpop.xlane.xlu0 %1396
      %1398 = vadd.xlane.f32.xlu0 %v1305
      %v1399 = vpop.xlane.xlu0 %1398
      %1400 = vadd.xlane.f32.xlu0 %v1306
      %v1401 = vpop.xlane.xlu0 %1400
      %1402 = vadd.xlane.f32.xlu0 %v1307
      %v1403 = vpop.xlane.xlu0 %1402
      %v1404 = vmul.f32 %v1309, %v1163
      %v1405 = vmul.f32 %v1311, %v1163
      %v1406 = vmul.f32 %v1313, %v1163
      %v1407 = vmul.f32 %v1315, %v1163
      %v1408 = vmul.f32 %v1317, %v1163
      %v1409 = vmul.f32 %v1319, %v1163
      %v1410 = vmul.f32 %v1321, %v1163
      %v1411 = vmul.f32 %v1323, %v1163
      %v1412 = vmul.f32 %v1325, %v1163
      %v1413 = vmul.f32 %v1327, %v1163
      %v1414 = vmul.f32 %v1329, %v1163
      %v1415 = vmul.f32 %v1331, %v1163
      %v1416 = vmul.f32 %v1333, %v1163
      %v1417 = vmul.f32 %v1335, %v1163
      %v1418 = vmul.f32 %v1337, %v1163
      %v1419 = vmul.f32 %v1339, %v1163
      %v1420 = vmul.f32 %v1341, %v1163
      %v1421 = vmul.f32 %v1343, %v1163
      %v1422 = vmul.f32 %v1345, %v1163
      %v1423 = vmul.f32 %v1347, %v1163
      %v1424 = vmul.f32 %v1349, %v1163
      %v1425 = vmul.f32 %v1351, %v1163
      %v1426 = vmul.f32 %v1353, %v1163
      %v1427 = vmul.f32 %v1355, %v1163
      %v1428 = vmul.f32 %v1357, %v1163
      %v1429 = vmul.f32 %v1359, %v1163
      %v1430 = vmul.f32 %v1361, %v1163
      %v1431 = vmul.f32 %v1363, %v1163
      %v1432 = vmul.f32 %v1365, %v1163
      %v1433 = vmul.f32 %v1367, %v1163
      %v1434 = vmul.f32 %v1369, %v1163
      %v1435 = vmul.f32 %v1371, %v1163
      %v1436 = vmul.f32 %v1373, %v1163
      %v1437 = vmul.f32 %v1375, %v1163
      %v1438 = vmul.f32 %v1377, %v1163
      %v1439 = vmul.f32 %v1379, %v1163
      %v1440 = vmul.f32 %v1381, %v1163
      %v1441 = vmul.f32 %v1383, %v1163
      %v1442 = vmul.f32 %v1385, %v1163
      %v1443 = vmul.f32 %v1387, %v1163
      %v1444 = vmul.f32 %v1389, %v1163
      %v1445 = vmul.f32 %v1391, %v1163
      %v1446 = vmul.f32 %v1393, %v1163
      %v1447 = vmul.f32 %v1395, %v1163
      %v1448 = vmul.f32 %v1397, %v1163
      %v1449 = vmul.f32 %v1399, %v1163
      %v1450 = vmul.f32 %v1401, %v1163
      %v1451 = vmul.f32 %v1403, %v1163
      %v1452 = vadd.f32 %v1404, 1e-05
      %v1453 = vadd.f32 %v1405, 1e-05
      %v1454 = vadd.f32 %v1406, 1e-05
      %v1455 = vadd.f32 %v1407, 1e-05
      %v1456 = vadd.f32 %v1408, 1e-05
      %v1457 = vadd.f32 %v1409, 1e-05
      %v1458 = vadd.f32 %v1410, 1e-05
      %v1459 = vadd.f32 %v1411, 1e-05
      %v1460 = vadd.f32 %v1412, 1e-05
      %v1461 = vadd.f32 %v1413, 1e-05
      %v1462 = vadd.f32 %v1414, 1e-05
      %v1463 = vadd.f32 %v1415, 1e-05
      %v1464 = vadd.f32 %v1416, 1e-05
      %v1465 = vadd.f32 %v1417, 1e-05
      %v1466 = vadd.f32 %v1418, 1e-05
      %v1467 = vadd.f32 %v1419, 1e-05
      %v1468 = vadd.f32 %v1420, 1e-05
      %v1469 = vadd.f32 %v1421, 1e-05
      %v1470 = vadd.f32 %v1422, 1e-05
      %v1471 = vadd.f32 %v1423, 1e-05
      %v1472 = vadd.f32 %v1424, 1e-05
      %v1473 = vadd.f32 %v1425, 1e-05
      %v1474 = vadd.f32 %v1426, 1e-05
      %v1475 = vadd.f32 %v1427, 1e-05
      %v1476 = vadd.f32 %v1428, 1e-05
      %v1477 = vadd.f32 %v1429, 1e-05
      %v1478 = vadd.f32 %v1430, 1e-05
      %v1479 = vadd.f32 %v1431, 1e-05
      %v1480 = vadd.f32 %v1432, 1e-05
      %v1481 = vadd.f32 %v1433, 1e-05
      %v1482 = vadd.f32 %v1434, 1e-05
      %v1483 = vadd.f32 %v1435, 1e-05
      %v1484 = vadd.f32 %v1436, 1e-05
      %v1485 = vadd.f32 %v1437, 1e-05
      %v1486 = vadd.f32 %v1438, 1e-05
      %v1487 = vadd.f32 %v1439, 1e-05
      %v1488 = vadd.f32 %v1440, 1e-05
      %v1489 = vadd.f32 %v1441, 1e-05
      %v1490 = vadd.f32 %v1442, 1e-05
      %v1491 = vadd.f32 %v1443, 1e-05
      %v1492 = vadd.f32 %v1444, 1e-05
      %v1493 = vadd.f32 %v1445, 1e-05
      %v1494 = vadd.f32 %v1446, 1e-05
      %v1495 = vadd.f32 %v1447, 1e-05
      %v1496 = vadd.f32 %v1448, 1e-05
      %v1497 = vadd.f32 %v1449, 1e-05
      %v1498 = vadd.f32 %v1450, 1e-05
      %v1499 = vadd.f32 %v1451, 1e-05
      %v1500 = vrsqrt.pop %v1452
      %v1501 = vrsqrt.pop %v1453
      %v1502 = vrsqrt.pop %v1454
      %v1503 = vrsqrt.pop %v1455
      %v1504 = vrsqrt.pop %v1456
      %v1505 = vrsqrt.pop %v1457
      %v1506 = vrsqrt.pop %v1458
      %v1507 = vrsqrt.pop %v1459
      %v1508 = vrsqrt.pop %v1460
      %v1509 = vrsqrt.pop %v1461
      %v1510 = vrsqrt.pop %v1462
      %v1511 = vrsqrt.pop %v1463
      %v1512 = vrsqrt.pop %v1464
      %v1513 = vrsqrt.pop %v1465
      %v1514 = vrsqrt.pop %v1466
      %v1515 = vrsqrt.pop %v1467
      %v1516 = vrsqrt.pop %v1468
      %v1517 = vrsqrt.pop %v1469
      %v1518 = vrsqrt.pop %v1470
      %v1519 = vrsqrt.pop %v1471
      %v1520 = vrsqrt.pop %v1472
      %v1521 = vrsqrt.pop %v1473
      %v1522 = vrsqrt.pop %v1474
      %v1523 = vrsqrt.pop %v1475
      %v1524 = vrsqrt.pop %v1476
      %v1525 = vrsqrt.pop %v1477
      %v1526 = vrsqrt.pop %v1478
      %v1527 = vrsqrt.pop %v1479
      %v1528 = vrsqrt.pop %v1480
      %v1529 = vrsqrt.pop %v1481
      %v1530 = vrsqrt.pop %v1482
      %v1531 = vrsqrt.pop %v1483
      %v1532 = vrsqrt.pop %v1484
      %v1533 = vrsqrt.pop %v1485
      %v1534 = vrsqrt.pop %v1486
      %v1535 = vrsqrt.pop %v1487
      %v1536 = vrsqrt.pop %v1488
      %v1537 = vrsqrt.pop %v1489
      %v1538 = vrsqrt.pop %v1490
      %v1539 = vrsqrt.pop %v1491
      %v1540 = vrsqrt.pop %v1492
      %v1541 = vrsqrt.pop %v1493
      %v1542 = vrsqrt.pop %v1494
      %v1543 = vrsqrt.pop %v1495
      %v1544 = vrsqrt.pop %v1496
      %v1545 = vrsqrt.pop %v1497
      %v1546 = vrsqrt.pop %v1498
      %v1547 = vrsqrt.pop %v1499
      %v1548 = vmul.f32 %v1212, %v1500
      %v1549 = vmul.f32 %v1213, %v1501
      %v1550 = vmul.f32 %v1214, %v1502
      %v1551 = vmul.f32 %v1215, %v1503
      %v1552 = vmul.f32 %v1216, %v1504
      %v1553 = vmul.f32 %v1217, %v1505
      %v1554 = vmul.f32 %v1218, %v1506
      %v1555 = vmul.f32 %v1219, %v1507
      %v1556 = vmul.f32 %v1220, %v1508
      %v1557 = vmul.f32 %v1221, %v1509
      %v1558 = vmul.f32 %v1222, %v1510
      %v1559 = vmul.f32 %v1223, %v1511
      %v1560 = vmul.f32 %v1224, %v1512
      %v1561 = vmul.f32 %v1225, %v1513
      %v1562 = vmul.f32 %v1226, %v1514
      %v1563 = vmul.f32 %v1227, %v1515
      %v1564 = vmul.f32 %v1228, %v1516
      %v1565 = vmul.f32 %v1229, %v1517
      %v1566 = vmul.f32 %v1230, %v1518
      %v1567 = vmul.f32 %v1231, %v1519
      %v1568 = vmul.f32 %v1232, %v1520
      %v1569 = vmul.f32 %v1233, %v1521
      %v1570 = vmul.f32 %v1234, %v1522
      %v1571 = vmul.f32 %v1235, %v1523
      %v1572 = vmul.f32 %v1236, %v1524
      %v1573 = vmul.f32 %v1237, %v1525
      %v1574 = vmul.f32 %v1238, %v1526
      %v1575 = vmul.f32 %v1239, %v1527
      %v1576 = vmul.f32 %v1240, %v1528
      %v1577 = vmul.f32 %v1241, %v1529
      %v1578 = vmul.f32 %v1242, %v1530
      %v1579 = vmul.f32 %v1243, %v1531
      %v1580 = vmul.f32 %v1244, %v1532
      %v1581 = vmul.f32 %v1245, %v1533
      %v1582 = vmul.f32 %v1246, %v1534
      %v1583 = vmul.f32 %v1247, %v1535
      %v1584 = vmul.f32 %v1248, %v1536
      %v1585 = vmul.f32 %v1249, %v1537
      %v1586 = vmul.f32 %v1250, %v1538
      %v1587 = vmul.f32 %v1251, %v1539
      %v1588 = vmul.f32 %v1252, %v1540
      %v1589 = vmul.f32 %v1253, %v1541
      %v1590 = vmul.f32 %v1254, %v1542
      %v1591 = vmul.f32 %v1255, %v1543
      %v1592 = vmul.f32 %v1256, %v1544
      %v1593 = vmul.f32 %v1257, %v1545
      %v1594 = vmul.f32 %v1258, %v1546
      %v1595 = vmul.f32 %v1259, %v1547
      %v1596 = vld [vmem:[%s4] sm:$0x1]
      %v1598 = vlaneseq
      %v1599 = vshrl.u32 %v1598, 7
      %v1600 = vsub.s32 0, %v1599
      %v1601 = vrot.slane %v1596, %v1600
      %v1603 = vmul.f32 %v1548, %v1601
      %v1604 = vmul.f32 %v1549, %v1601
      %v1605 = vmul.f32 %v1550, %v1601
      %v1606 = vmul.f32 %v1551, %v1601
      %v1607 = vmul.f32 %v1552, %v1601
      %v1608 = vmul.f32 %v1553, %v1601
      %v1609 = vmul.f32 %v1554, %v1601
      %v1610 = vmul.f32 %v1555, %v1601
      %v1611 = vmul.f32 %v1556, %v1601
      %v1612 = vmul.f32 %v1557, %v1601
      %v1613 = vmul.f32 %v1558, %v1601
      %v1614 = vmul.f32 %v1559, %v1601
      %v1615 = vmul.f32 %v1560, %v1601
      %v1616 = vmul.f32 %v1561, %v1601
      %v1617 = vmul.f32 %v1562, %v1601
      %v1618 = vmul.f32 %v1563, %v1601
      %v1619 = vmul.f32 %v1564, %v1601
      %v1620 = vmul.f32 %v1565, %v1601
      %v1621 = vmul.f32 %v1566, %v1601
      %v1622 = vmul.f32 %v1567, %v1601
      %v1623 = vmul.f32 %v1568, %v1601
      %v1624 = vmul.f32 %v1569, %v1601
      %v1625 = vmul.f32 %v1570, %v1601
      %v1626 = vmul.f32 %v1571, %v1601
      %v1627 = vmul.f32 %v1572, %v1601
      %v1628 = vmul.f32 %v1573, %v1601
      %v1629 = vmul.f32 %v1574, %v1601
      %v1630 = vmul.f32 %v1575, %v1601
      %v1631 = vmul.f32 %v1576, %v1601
      %v1632 = vmul.f32 %v1577, %v1601
      %v1633 = vmul.f32 %v1578, %v1601
      %v1634 = vmul.f32 %v1579, %v1601
      %v1635 = vmul.f32 %v1580, %v1601
      %v1636 = vmul.f32 %v1581, %v1601
      %v1637 = vmul.f32 %v1582, %v1601
      %v1638 = vmul.f32 %v1583, %v1601
      %v1639 = vmul.f32 %v1584, %v1601
      %v1640 = vmul.f32 %v1585, %v1601
      %v1641 = vmul.f32 %v1586, %v1601
      %v1642 = vmul.f32 %v1587, %v1601
      %v1643 = vmul.f32 %v1588, %v1601
      %v1644 = vmul.f32 %v1589, %v1601
      %v1645 = vmul.f32 %v1590, %v1601
      %v1646 = vmul.f32 %v1591, %v1601
      %v1647 = vmul.f32 %v1592, %v1601
      %v1648 = vmul.f32 %v1593, %v1601
      %v1649 = vmul.f32 %v1594, %v1601
      %v1650 = vmul.f32 %v1595, %v1601
      %v1651 = vld [vmem:[%s5] sm:$0x1]
      %v1653 = vlaneseq
      %v1654 = vshrl.u32 %v1653, 7
      %v1655 = vsub.s32 0, %v1654
      %v1656 = vrot.slane %v1651, %v1655
      %v1658 = vadd.f32 %v1603, %v1656
      %v1659 = vadd.f32 %v1604, %v1656
      %v1660 = vadd.f32 %v1605, %v1656
      %v1661 = vadd.f32 %v1606, %v1656
      %v1662 = vadd.f32 %v1607, %v1656
      %v1663 = vadd.f32 %v1608, %v1656
      %v1664 = vadd.f32 %v1609, %v1656
      %v1665 = vadd.f32 %v1610, %v1656
      %v1666 = vadd.f32 %v1611, %v1656
      %v1667 = vadd.f32 %v1612, %v1656
      %v1668 = vadd.f32 %v1613, %v1656
      %v1669 = vadd.f32 %v1614, %v1656
      %v1670 = vadd.f32 %v1615, %v1656
      %v1671 = vadd.f32 %v1616, %v1656
      %v1672 = vadd.f32 %v1617, %v1656
      %v1673 = vadd.f32 %v1618, %v1656
      %v1674 = vadd.f32 %v1619, %v1656
      %v1675 = vadd.f32 %v1620, %v1656
      %v1676 = vadd.f32 %v1621, %v1656
      %v1677 = vadd.f32 %v1622, %v1656
      %v1678 = vadd.f32 %v1623, %v1656
      %v1679 = vadd.f32 %v1624, %v1656
      %v1680 = vadd.f32 %v1625, %v1656
      %v1681 = vadd.f32 %v1626, %v1656
      %v1682 = vadd.f32 %v1627, %v1656
      %v1683 = vadd.f32 %v1628, %v1656
      %v1684 = vadd.f32 %v1629, %v1656
      %v1685 = vadd.f32 %v1630, %v1656
      %v1686 = vadd.f32 %v1631, %v1656
      %v1687 = vadd.f32 %v1632, %v1656
      %v1688 = vadd.f32 %v1633, %v1656
      %v1689 = vadd.f32 %v1634, %v1656
      %v1690 = vadd.f32 %v1635, %v1656
      %v1691 = vadd.f32 %v1636, %v1656
      %v1692 = vadd.f32 %v1637, %v1656
      %v1693 = vadd.f32 %v1638, %v1656
      %v1694 = vadd.f32 %v1639, %v1656
      %v1695 = vadd.f32 %v1640, %v1656
      %v1696 = vadd.f32 %v1641, %v1656
      %v1697 = vadd.f32 %v1642, %v1656
      %v1698 = vadd.f32 %v1643, %v1656
      %v1699 = vadd.f32 %v1644, %v1656
      %v1700 = vadd.f32 %v1645, %v1656
      %v1701 = vadd.f32 %v1646, %v1656
      %v1702 = vadd.f32 %v1647, %v1656
      %v1703 = vadd.f32 %v1648, %v1656
      %v1704 = vadd.f32 %v1649, %v1656
      %v1705 = vadd.f32 %v1650, %v1656
      %v1706 = vmax.f32 %v1658, 0.0
      %v1707 = vmax.f32 %v1659, 0.0
      %v1708 = vmax.f32 %v1660, 0.0
      %v1709 = vmax.f32 %v1661, 0.0
      %v1710 = vmax.f32 %v1662, 0.0
      %v1711 = vmax.f32 %v1663, 0.0
      %v1712 = vmax.f32 %v1664, 0.0
      %v1713 = vmax.f32 %v1665, 0.0
      %v1714 = vmax.f32 %v1666, 0.0
      %v1715 = vmax.f32 %v1667, 0.0
      %v1716 = vmax.f32 %v1668, 0.0
      %v1717 = vmax.f32 %v1669, 0.0
      %v1718 = vmax.f32 %v1670, 0.0
      %v1719 = vmax.f32 %v1671, 0.0
      %v1720 = vmax.f32 %v1672, 0.0
      %v1721 = vmax.f32 %v1673, 0.0
      %v1722 = vmax.f32 %v1674, 0.0
      %v1723 = vmax.f32 %v1675, 0.0
      %v1724 = vmax.f32 %v1676, 0.0
      %v1725 = vmax.f32 %v1677, 0.0
      %v1726 = vmax.f32 %v1678, 0.0
      %v1727 = vmax.f32 %v1679, 0.0
      %v1728 = vmax.f32 %v1680, 0.0
      %v1729 = vmax.f32 %v1681, 0.0
      %v1730 = vmax.f32 %v1682, 0.0
      %v1731 = vmax.f32 %v1683, 0.0
      %v1732 = vmax.f32 %v1684, 0.0
      %v1733 = vmax.f32 %v1685, 0.0
      %v1734 = vmax.f32 %v1686, 0.0
      %v1735 = vmax.f32 %v1687, 0.0
      %v1736 = vmax.f32 %v1688, 0.0
      %v1737 = vmax.f32 %v1689, 0.0
      %v1738 = vmax.f32 %v1690, 0.0
      %v1739 = vmax.f32 %v1691, 0.0
      %v1740 = vmax.f32 %v1692, 0.0
      %v1741 = vmax.f32 %v1693, 0.0
      %v1742 = vmax.f32 %v1694, 0.0
      %v1743 = vmax.f32 %v1695, 0.0
      %v1744 = vmax.f32 %v1696, 0.0
      %v1745 = vmax.f32 %v1697, 0.0
      %v1746 = vmax.f32 %v1698, 0.0
      %v1747 = vmax.f32 %v1699, 0.0
      %v1748 = vmax.f32 %v1700, 0.0
      %v1749 = vmax.f32 %v1701, 0.0
      %v1750 = vmax.f32 %v1702, 0.0
      %v1751 = vmax.f32 %v1703, 0.0
      %v1752 = vmax.f32 %v1704, 0.0
      %v1753 = vmax.f32 %v1705, 0.0
      %v1754 = vpack.c.bf16 %v1707, %v1706
      %v1755 = vpack.c.bf16 %v1709, %v1708
      %v1756 = vpack.c.bf16 %v1711, %v1710
      %v1757 = vpack.c.bf16 %v1713, %v1712
      %v1758 = vpack.c.bf16 %v1715, %v1714
      %v1759 = vpack.c.bf16 %v1717, %v1716
      %v1760 = vpack.c.bf16 %v1719, %v1718
      %v1761 = vpack.c.bf16 %v1721, %v1720
      %v1762 = vpack.c.bf16 %v1723, %v1722
      %v1763 = vpack.c.bf16 %v1725, %v1724
      %v1764 = vpack.c.bf16 %v1727, %v1726
      %v1765 = vpack.c.bf16 %v1729, %v1728
      %v1766 = vpack.c.bf16 %v1731, %v1730
      %v1767 = vpack.c.bf16 %v1733, %v1732
      %v1768 = vpack.c.bf16 %v1735, %v1734
      %v1769 = vpack.c.bf16 %v1737, %v1736
      %v1770 = vpack.c.bf16 %v1739, %v1738
      %v1771 = vpack.c.bf16 %v1741, %v1740
      %v1772 = vpack.c.bf16 %v1743, %v1742
      %v1773 = vpack.c.bf16 %v1745, %v1744
      %v1774 = vpack.c.bf16 %v1747, %v1746
      %v1775 = vpack.c.bf16 %v1749, %v1748
      %v1776 = vpack.c.bf16 %v1751, %v1750
      %v1777 = vpack.c.bf16 %v1753, %v1752
      %v1778 = vld [vmem:[%s6] sm:$0xf]
      %v1779 = vld [vmem:[%s6 + $0x4] sm:$0xf]
      %v1780 = vld [vmem:[%s6 + $0x8] sm:$0xf]
      %v1781 = vld [vmem:[%s6 + $0xc] sm:$0xf]
      %v1782 = vld [vmem:[%s6 + $0x10] sm:$0xf]
      %v1783 = vld [vmem:[%s6 + $0x14] sm:$0xf]
      %v1784 = vld [vmem:[%s6 + $0x18] sm:$0xf]
      %v1785 = vld [vmem:[%s6 + $0x1c] sm:$0xf]
      %v1786 = vld [vmem:[%s6 + $0x20] sm:$0xf]
      %v1787 = vld [vmem:[%s6 + $0x24] sm:$0xf]
      %v1788 = vld [vmem:[%s6 + $0x28] sm:$0xf]
      %v1789 = vld [vmem:[%s6 + $0x2c] sm:$0xf]
      %v1790 = vld [vmem:[%s6 + $0x30] sm:$0xf]
      %v1791 = vld [vmem:[%s6 + $0x34] sm:$0xf]
      %v1792 = vld [vmem:[%s6 + $0x38] sm:$0xf]
      %v1793 = vld [vmem:[%s6 + $0x3c] sm:$0xf]
      %v1794 = vld [vmem:[%s7] sm:$0x1]
      %v1796 = vlaneseq
      %v1797 = vshrl.u32 %v1796, 7
      %v1798 = vsub.s32 0, %v1797
      %v1799 = vrot.slane %v1794, %v1798
      %v1817 = vunpack.c.l.b16 %v1778
      %v1818 = vunpack.c.l.b16 %v1779
      %v1819 = vunpack.c.l.b16 %v1780
      %v1820 = vunpack.c.l.b16 %v1781
      %v1821 = vunpack.c.l.b16 %v1782
      %v1822 = vunpack.c.l.b16 %v1783
      %v1823 = vunpack.c.l.b16 %v1784
      %v1824 = vunpack.c.l.b16 %v1785
      %v1825 = vunpack.c.l.b16 %v1786
      %v1826 = vunpack.c.l.b16 %v1787
      %v1827 = vunpack.c.l.b16 %v1788
      %v1828 = vunpack.c.l.b16 %v1789
      %v1829 = vunpack.c.l.b16 %v1790
      %v1830 = vunpack.c.l.b16 %v1791
      %v1831 = vunpack.c.l.b16 %v1792
      %v1832 = vunpack.c.l.b16 %v1793
      %v1833 = vpack.c.b16 %v1818, %v1817
      %v1834 = vpack.c.b16 %v1820, %v1819
      %v1835 = vpack.c.b16 %v1822, %v1821
      %v1836 = vpack.c.b16 %v1824, %v1823
      %v1837 = vpack.c.b16 %v1826, %v1825
      %v1838 = vpack.c.b16 %v1828, %v1827
      %v1839 = vpack.c.b16 %v1830, %v1829
      %v1840 = vpack.c.b16 %v1832, %v1831
      %1849 = vmatprep.subr.bf16.mxu0 0
      %1850 = vmatpush1.bf16.msra.mxu0 %v1840
      %1851 = vmatprep.subr.bf16.mxu0 0
      %1852 = vmatpush1.bf16.msra.mxu0 %v1839
      %1853 = vmatprep.subr.bf16.mxu0 0
      %1854 = vmatpush1.bf16.msra.mxu0 %v1838
      %1855 = vmatprep.subr.bf16.mxu0 0
      %1856 = vmatpush1.bf16.msra.mxu0 %v1837
      %1857 = vmatprep.subr.bf16.mxu0 0
      %1858 = vmatpush1.bf16.msra.mxu0 %v1836
      %1859 = vmatprep.subr.bf16.mxu0 0
      %1860 = vmatpush1.bf16.msra.mxu0 %v1835
      %1861 = vmatprep.subr.bf16.mxu0 0
      %1862 = vmatpush1.bf16.msra.mxu0 %v1834
      %1863 = vmatprep.subr.bf16.mxu0 0
      %1864 = vmatpush1.bf16.msra.mxu0 %v1833
      %1865 = vmatprep.subr.bf16.mxu0 0
      %1866 = vmatpush2.bf16.msra.mxu0 0
      %1867 = vmatprep.subr.bf16.mxu0 0
      %1868 = vmatpush2.bf16.msra.mxu0 0
      %1869 = vmatprep.subr.bf16.mxu0 0
      %1870 = vmatpush2.bf16.msra.mxu0 0
      %1871 = vmatprep.subr.bf16.mxu0 0
      %1872 = vmatpush2.bf16.msra.mxu0 0
      %1873 = vmatprep.subr.bf16.mxu0 0
      %1874 = vmatpush2.bf16.msra.mxu0 0
      %1875 = vmatprep.subr.bf16.mxu0 0
      %1876 = vmatpush2.bf16.msra.mxu0 0
      %1877 = vmatprep.subr.bf16.mxu0 0
      %1878 = vmatpush2.bf16.msra.mxu0 0
      %1879 = vmatprep.subr.bf16.mxu0 0
      %1880 = vmatpush2.bf16.msra.mxu0 0
      %1881 = vmatprep.mubr.bf16.mxu0 0
      %1882 = vmatmul.mubr.bf16.gmra.mxu0 %v1754
      %v1883 = vpop.f32.mrf.mxu0
      %v1884 = vadd.f32 %v1799, %v1883
      %v1885 = vpop.f32.mrf.mxu0
      %v1886 = vpop.f32.mrf.mxu0
      %v1887 = vadd.f32 %v1799, %v1886
      %v1888 = vpop.f32.mrf.mxu0
      %1889 = vmatprep.mubr.bf16.mxu0 0
      %1890 = vmatmul.mubr.bf16.gmra.mxu0 %v1755
      %v1891 = vpop.f32.mrf.mxu0
      %v1892 = vadd.f32 %v1799, %v1891
      %v1893 = vpop.f32.mrf.mxu0
      %v1894 = vpop.f32.mrf.mxu0
      %v1895 = vadd.f32 %v1799, %v1894
      %v1896 = vpop.f32.mrf.mxu0
      %1897 = vmatprep.mubr.bf16.mxu0 0
      %1898 = vmatmul.mubr.bf16.gmra.mxu0 %v1756
      %v1899 = vpop.f32.mrf.mxu0
      %v1900 = vadd.f32 %v1799, %v1899
      %v1901 = vpop.f32.mrf.mxu0
      %v1902 = vpop.f32.mrf.mxu0
      %v1903 = vadd.f32 %v1799, %v1902
      %v1904 = vpop.f32.mrf.mxu0
      %1905 = vmatprep.mubr.bf16.mxu0 0
      %1906 = vmatmul.mubr.bf16.gmra.mxu0 %v1757
      %v1907 = vpop.f32.mrf.mxu0
      %v1908 = vadd.f32 %v1799, %v1907
      %v1909 = vpop.f32.mrf.mxu0
      %v1910 = vpop.f32.mrf.mxu0
      %v1911 = vadd.f32 %v1799, %v1910
      %v1912 = vpop.f32.mrf.mxu0
      %1913 = vmatprep.mubr.bf16.mxu0 0
      %1914 = vmatmul.mubr.bf16.gmra.mxu0 %v1758
      %v1915 = vpop.f32.mrf.mxu0
      %v1916 = vadd.f32 %v1799, %v1915
      %v1917 = vpop.f32.mrf.mxu0
      %v1918 = vpop.f32.mrf.mxu0
      %v1919 = vadd.f32 %v1799, %v1918
      %v1920 = vpop.f32.mrf.mxu0
      %1921 = vmatprep.mubr.bf16.mxu0 0
      %1922 = vmatmul.mubr.bf16.gmra.mxu0 %v1759
      %v1923 = vpop.f32.mrf.mxu0
      %v1924 = vadd.f32 %v1799, %v1923
      %v1925 = vpop.f32.mrf.mxu0
      %v1926 = vpop.f32.mrf.mxu0
      %v1927 = vadd.f32 %v1799, %v1926
      %v1928 = vpop.f32.mrf.mxu0
      %1929 = vmatprep.mubr.bf16.mxu0 0
      %1930 = vmatmul.mubr.bf16.gmra.mxu0 %v1760
      %v1931 = vpop.f32.mrf.mxu0
      %v1932 = vadd.f32 %v1799, %v1931
      %v1933 = vpop.f32.mrf.mxu0
      %v1934 = vpop.f32.mrf.mxu0
      %v1935 = vadd.f32 %v1799, %v1934
      %v1936 = vpop.f32.mrf.mxu0
      %1937 = vmatprep.mubr.bf16.mxu0 0
      %1938 = vmatmul.mubr.bf16.gmra.mxu0 %v1761
      %v1939 = vpop.f32.mrf.mxu0
      %v1940 = vadd.f32 %v1799, %v1939
      %v1941 = vpop.f32.mrf.mxu0
      %v1942 = vpop.f32.mrf.mxu0
      %v1943 = vadd.f32 %v1799, %v1942
      %v1944 = vpop.f32.mrf.mxu0
      %1945 = vmatprep.mubr.bf16.mxu0 0
      %1946 = vmatmul.mubr.bf16.gmra.mxu0 %v1762
      %v1947 = vpop.f32.mrf.mxu0
      %v1948 = vadd.f32 %v1799, %v1947
      %v1949 = vpop.f32.mrf.mxu0
      %v1950 = vpop.f32.mrf.mxu0
      %v1951 = vadd.f32 %v1799, %v1950
      %v1952 = vpop.f32.mrf.mxu0
      %1953 = vmatprep.mubr.bf16.mxu0 0
      %1954 = vmatmul.mubr.bf16.gmra.mxu0 %v1763
      %v1955 = vpop.f32.mrf.mxu0
      %v1956 = vadd.f32 %v1799, %v1955
      %v1957 = vpop.f32.mrf.mxu0
      %v1958 = vpop.f32.mrf.mxu0
      %v1959 = vadd.f32 %v1799, %v1958
      %v1960 = vpop.f32.mrf.mxu0
      %1961 = vmatprep.mubr.bf16.mxu0 0
      %1962 = vmatmul.mubr.bf16.gmra.mxu0 %v1764
      %v1963 = vpop.f32.mrf.mxu0
      %v1964 = vadd.f32 %v1799, %v1963
      %v1965 = vpop.f32.mrf.mxu0
      %v1966 = vpop.f32.mrf.mxu0
      %v1967 = vadd.f32 %v1799, %v1966
      %v1968 = vpop.f32.mrf.mxu0
      %1969 = vmatprep.mubr.bf16.mxu0 0
      %1970 = vmatmul.mubr.bf16.gmra.mxu0 %v1765
      %v1971 = vpop.f32.mrf.mxu0
      %v1972 = vadd.f32 %v1799, %v1971
      %v1973 = vpop.f32.mrf.mxu0
      %v1974 = vpop.f32.mrf.mxu0
      %v1975 = vadd.f32 %v1799, %v1974
      %v1976 = vpop.f32.mrf.mxu0
      %1977 = vmatprep.mubr.bf16.mxu0 0
      %1978 = vmatmul.mubr.bf16.gmra.mxu0 %v1766
      %v1979 = vpop.f32.mrf.mxu0
      %v1980 = vadd.f32 %v1799, %v1979
      %v1981 = vpop.f32.mrf.mxu0
      %v1982 = vpop.f32.mrf.mxu0
      %v1983 = vadd.f32 %v1799, %v1982
      %v1984 = vpop.f32.mrf.mxu0
      %1985 = vmatprep.mubr.bf16.mxu0 0
      %1986 = vmatmul.mubr.bf16.gmra.mxu0 %v1767
      %v1987 = vpop.f32.mrf.mxu0
      %v1988 = vadd.f32 %v1799, %v1987
      %v1989 = vpop.f32.mrf.mxu0
      %v1990 = vpop.f32.mrf.mxu0
      %v1991 = vadd.f32 %v1799, %v1990
      %v1992 = vpop.f32.mrf.mxu0
      %1993 = vmatprep.mubr.bf16.mxu0 0
      %1994 = vmatmul.mubr.bf16.gmra.mxu0 %v1768
      %v1995 = vpop.f32.mrf.mxu0
      %v1996 = vadd.f32 %v1799, %v1995
      %v1997 = vpop.f32.mrf.mxu0
      %v1998 = vpop.f32.mrf.mxu0
      %v1999 = vadd.f32 %v1799, %v1998
      %v2000 = vpop.f32.mrf.mxu0
      %2001 = vmatprep.mubr.bf16.mxu0 0
      %2002 = vmatmul.mubr.bf16.gmra.mxu0 %v1769
      %v2003 = vpop.f32.mrf.mxu0
      %v2004 = vadd.f32 %v1799, %v2003
      %v2005 = vpop.f32.mrf.mxu0
      %v2006 = vpop.f32.mrf.mxu0
      %v2007 = vadd.f32 %v1799, %v2006
      %v2008 = vpop.f32.mrf.mxu0
      %2009 = vmatprep.mubr.bf16.mxu0 0
      %2010 = vmatmul.mubr.bf16.gmra.mxu0 %v1770
      %v2011 = vpop.f32.mrf.mxu0
      %v2012 = vadd.f32 %v1799, %v2011
      %v2013 = vpop.f32.mrf.mxu0
      %v2014 = vpop.f32.mrf.mxu0
      %v2015 = vadd.f32 %v1799, %v2014
      %v2016 = vpop.f32.mrf.mxu0
      %2017 = vmatprep.mubr.bf16.mxu0 0
      %2018 = vmatmul.mubr.bf16.gmra.mxu0 %v1771
      %v2019 = vpop.f32.mrf.mxu0
      %v2020 = vadd.f32 %v1799, %v2019
      %v2021 = vpop.f32.mrf.mxu0
      %v2022 = vpop.f32.mrf.mxu0
      %v2023 = vadd.f32 %v1799, %v2022
      %v2024 = vpop.f32.mrf.mxu0
      %2025 = vmatprep.mubr.bf16.mxu0 0
      %2026 = vmatmul.mubr.bf16.gmra.mxu0 %v1772
      %v2027 = vpop.f32.mrf.mxu0
      %v2028 = vadd.f32 %v1799, %v2027
      %v2029 = vpop.f32.mrf.mxu0
      %v2030 = vpop.f32.mrf.mxu0
      %v2031 = vadd.f32 %v1799, %v2030
      %v2032 = vpop.f32.mrf.mxu0
      %2033 = vmatprep.mubr.bf16.mxu0 0
      %2034 = vmatmul.mubr.bf16.gmra.mxu0 %v1773
      %v2035 = vpop.f32.mrf.mxu0
      %v2036 = vadd.f32 %v1799, %v2035
      %v2037 = vpop.f32.mrf.mxu0
      %v2038 = vpop.f32.mrf.mxu0
      %v2039 = vadd.f32 %v1799, %v2038
      %v2040 = vpop.f32.mrf.mxu0
      %2041 = vmatprep.mubr.bf16.mxu0 0
      %2042 = vmatmul.mubr.bf16.gmra.mxu0 %v1774
      %v2043 = vpop.f32.mrf.mxu0
      %v2044 = vadd.f32 %v1799, %v2043
      %v2045 = vpop.f32.mrf.mxu0
      %v2046 = vpop.f32.mrf.mxu0
      %v2047 = vadd.f32 %v1799, %v2046
      %v2048 = vpop.f32.mrf.mxu0
      %2049 = vmatprep.mubr.bf16.mxu0 0
      %2050 = vmatmul.mubr.bf16.gmra.mxu0 %v1775
      %v2051 = vpop.f32.mrf.mxu0
      %v2052 = vadd.f32 %v1799, %v2051
      %v2053 = vpop.f32.mrf.mxu0
      %v2054 = vpop.f32.mrf.mxu0
      %v2055 = vadd.f32 %v1799, %v2054
      %v2056 = vpop.f32.mrf.mxu0
      %2057 = vmatprep.mubr.bf16.mxu0 0
      %2058 = vmatmul.mubr.bf16.gmra.mxu0 %v1776
      %v2059 = vpop.f32.mrf.mxu0
      %v2060 = vadd.f32 %v1799, %v2059
      %v2061 = vpop.f32.mrf.mxu0
      %v2062 = vpop.f32.mrf.mxu0
      %v2063 = vadd.f32 %v1799, %v2062
      %v2064 = vpop.f32.mrf.mxu0
      %2065 = vmatprep.mubr.bf16.mxu0 0
      %2066 = vmatmul.mubr.bf16.gmra.mxu0 %v1777
      %v2067 = vpop.f32.mrf.mxu0
      %v2068 = vadd.f32 %v1799, %v2067
      %v2069 = vpop.f32.mrf.mxu0
      %v2070 = vpop.f32.mrf.mxu0
      %v2071 = vadd.f32 %v1799, %v2070
      %v2072 = vpop.f32.mrf.mxu0
      %2073 = vdwg.mxu0
      %2074 = vadd.xlane.f32.xlu0 %v1884
      %v2075 = vpop.xlane.xlu0 %2074
      %2076 = vadd.xlane.f32.xlu0 %v1887
      %v2077 = vpop.xlane.xlu0 %2076
      %2078 = vadd.xlane.f32.xlu0 %v1892
      %v2079 = vpop.xlane.xlu0 %2078
      %2080 = vadd.xlane.f32.xlu0 %v1895
      %v2081 = vpop.xlane.xlu0 %2080
      %2082 = vadd.xlane.f32.xlu0 %v1900
      %v2083 = vpop.xlane.xlu0 %2082
      %2084 = vadd.xlane.f32.xlu0 %v1903
      %v2085 = vpop.xlane.xlu0 %2084
      %2086 = vadd.xlane.f32.xlu0 %v1908
      %v2087 = vpop.xlane.xlu0 %2086
      %2088 = vadd.xlane.f32.xlu0 %v1911
      %v2089 = vpop.xlane.xlu0 %2088
      %2090 = vadd.xlane.f32.xlu0 %v1916
      %v2091 = vpop.xlane.xlu0 %2090
      %2092 = vadd.xlane.f32.xlu0 %v1919
      %v2093 = vpop.xlane.xlu0 %2092
      %2094 = vadd.xlane.f32.xlu0 %v1924
      %v2095 = vpop.xlane.xlu0 %2094
      %2096 = vadd.xlane.f32.xlu0 %v1927
      %v2097 = vpop.xlane.xlu0 %2096
      %2098 = vadd.xlane.f32.xlu0 %v1932
      %v2099 = vpop.xlane.xlu0 %2098
      %2100 = vadd.xlane.f32.xlu0 %v1935
      %v2101 = vpop.xlane.xlu0 %2100
      %2102 = vadd.xlane.f32.xlu0 %v1940
      %v2103 = vpop.xlane.xlu0 %2102
      %2104 = vadd.xlane.f32.xlu0 %v1943
      %v2105 = vpop.xlane.xlu0 %2104
      %2106 = vadd.xlane.f32.xlu0 %v1948
      %v2107 = vpop.xlane.xlu0 %2106
      %2108 = vadd.xlane.f32.xlu0 %v1951
      %v2109 = vpop.xlane.xlu0 %2108
      %2110 = vadd.xlane.f32.xlu0 %v1956
      %v2111 = vpop.xlane.xlu0 %2110
      %2112 = vadd.xlane.f32.xlu0 %v1959
      %v2113 = vpop.xlane.xlu0 %2112
      %2114 = vadd.xlane.f32.xlu0 %v1964
      %v2115 = vpop.xlane.xlu0 %2114
      %2116 = vadd.xlane.f32.xlu0 %v1967
      %v2117 = vpop.xlane.xlu0 %2116
      %2118 = vadd.xlane.f32.xlu0 %v1972
      %v2119 = vpop.xlane.xlu0 %2118
      %2120 = vadd.xlane.f32.xlu0 %v1975
      %v2121 = vpop.xlane.xlu0 %2120
      %2122 = vadd.xlane.f32.xlu0 %v1980
      %v2123 = vpop.xlane.xlu0 %2122
      %2124 = vadd.xlane.f32.xlu0 %v1983
      %v2125 = vpop.xlane.xlu0 %2124
      %2126 = vadd.xlane.f32.xlu0 %v1988
      %v2127 = vpop.xlane.xlu0 %2126
      %2128 = vadd.xlane.f32.xlu0 %v1991
      %v2129 = vpop.xlane.xlu0 %2128
      %2130 = vadd.xlane.f32.xlu0 %v1996
      %v2131 = vpop.xlane.xlu0 %2130
      %2132 = vadd.xlane.f32.xlu0 %v1999
      %v2133 = vpop.xlane.xlu0 %2132
      %2134 = vadd.xlane.f32.xlu0 %v2004
      %v2135 = vpop.xlane.xlu0 %2134
      %2136 = vadd.xlane.f32.xlu0 %v2007
      %v2137 = vpop.xlane.xlu0 %2136
      %2138 = vadd.xlane.f32.xlu0 %v2012
      %v2139 = vpop.xlane.xlu0 %2138
      %2140 = vadd.xlane.f32.xlu0 %v2015
      %v2141 = vpop.xlane.xlu0 %2140
      %2142 = vadd.xlane.f32.xlu0 %v2020
      %v2143 = vpop.xlane.xlu0 %2142
      %2144 = vadd.xlane.f32.xlu0 %v2023
      %v2145 = vpop.xlane.xlu0 %2144
      %2146 = vadd.xlane.f32.xlu0 %v2028
      %v2147 = vpop.xlane.xlu0 %2146
      %2148 = vadd.xlane.f32.xlu0 %v2031
      %v2149 = vpop.xlane.xlu0 %2148
      %2150 = vadd.xlane.f32.xlu0 %v2036
      %v2151 = vpop.xlane.xlu0 %2150
      %2152 = vadd.xlane.f32.xlu0 %v2039
      %v2153 = vpop.xlane.xlu0 %2152
      %2154 = vadd.xlane.f32.xlu0 %v2044
      %v2155 = vpop.xlane.xlu0 %2154
      %2156 = vadd.xlane.f32.xlu0 %v2047
      %v2157 = vpop.xlane.xlu0 %2156
      %2158 = vadd.xlane.f32.xlu0 %v2052
      %v2159 = vpop.xlane.xlu0 %2158
      %2160 = vadd.xlane.f32.xlu0 %v2055
      %v2161 = vpop.xlane.xlu0 %2160
      %2162 = vadd.xlane.f32.xlu0 %v2060
      %v2163 = vpop.xlane.xlu0 %2162
      %2164 = vadd.xlane.f32.xlu0 %v2063
      %v2165 = vpop.xlane.xlu0 %2164
      %2166 = vadd.xlane.f32.xlu0 %v2068
      %v2167 = vpop.xlane.xlu0 %2166
      %2168 = vadd.xlane.f32.xlu0 %v2071
      %v2169 = vpop.xlane.xlu0 %2168
      %v2170 = vmul.f32 %v2075, %v1163
      %v2171 = vmul.f32 %v2077, %v1163
      %v2172 = vmul.f32 %v2079, %v1163
      %v2173 = vmul.f32 %v2081, %v1163
      %v2174 = vmul.f32 %v2083, %v1163
      %v2175 = vmul.f32 %v2085, %v1163
      %v2176 = vmul.f32 %v2087, %v1163
      %v2177 = vmul.f32 %v2089, %v1163
      %v2178 = vmul.f32 %v2091, %v1163
      %v2179 = vmul.f32 %v2093, %v1163
      %v2180 = vmul.f32 %v2095, %v1163
      %v2181 = vmul.f32 %v2097, %v1163
      %v2182 = vmul.f32 %v2099, %v1163
      %v2183 = vmul.f32 %v2101, %v1163
      %v2184 = vmul.f32 %v2103, %v1163
      %v2185 = vmul.f32 %v2105, %v1163
      %v2186 = vmul.f32 %v2107, %v1163
      %v2187 = vmul.f32 %v2109, %v1163
      %v2188 = vmul.f32 %v2111, %v1163
      %v2189 = vmul.f32 %v2113, %v1163
      %v2190 = vmul.f32 %v2115, %v1163
      %v2191 = vmul.f32 %v2117, %v1163
      %v2192 = vmul.f32 %v2119, %v1163
      %v2193 = vmul.f32 %v2121, %v1163
      %v2194 = vmul.f32 %v2123, %v1163
      %v2195 = vmul.f32 %v2125, %v1163
      %v2196 = vmul.f32 %v2127, %v1163
      %v2197 = vmul.f32 %v2129, %v1163
      %v2198 = vmul.f32 %v2131, %v1163
      %v2199 = vmul.f32 %v2133, %v1163
      %v2200 = vmul.f32 %v2135, %v1163
      %v2201 = vmul.f32 %v2137, %v1163
      %v2202 = vmul.f32 %v2139, %v1163
      %v2203 = vmul.f32 %v2141, %v1163
      %v2204 = vmul.f32 %v2143, %v1163
      %v2205 = vmul.f32 %v2145, %v1163
      %v2206 = vmul.f32 %v2147, %v1163
      %v2207 = vmul.f32 %v2149, %v1163
      %v2208 = vmul.f32 %v2151, %v1163
      %v2209 = vmul.f32 %v2153, %v1163
      %v2210 = vmul.f32 %v2155, %v1163
      %v2211 = vmul.f32 %v2157, %v1163
      %v2212 = vmul.f32 %v2159, %v1163
      %v2213 = vmul.f32 %v2161, %v1163
      %v2214 = vmul.f32 %v2163, %v1163
      %v2215 = vmul.f32 %v2165, %v1163
      %v2216 = vmul.f32 %v2167, %v1163
      %v2217 = vmul.f32 %v2169, %v1163
      %v2218 = vsub.f32 %v1884, %v2170
      %v2219 = vsub.f32 %v1887, %v2171
      %v2220 = vsub.f32 %v1892, %v2172
      %v2221 = vsub.f32 %v1895, %v2173
      %v2222 = vsub.f32 %v1900, %v2174
      %v2223 = vsub.f32 %v1903, %v2175
      %v2224 = vsub.f32 %v1908, %v2176
      %v2225 = vsub.f32 %v1911, %v2177
      %v2226 = vsub.f32 %v1916, %v2178
      %v2227 = vsub.f32 %v1919, %v2179
      %v2228 = vsub.f32 %v1924, %v2180
      %v2229 = vsub.f32 %v1927, %v2181
      %v2230 = vsub.f32 %v1932, %v2182
      %v2231 = vsub.f32 %v1935, %v2183
      %v2232 = vsub.f32 %v1940, %v2184
      %v2233 = vsub.f32 %v1943, %v2185
      %v2234 = vsub.f32 %v1948, %v2186
      %v2235 = vsub.f32 %v1951, %v2187
      %v2236 = vsub.f32 %v1956, %v2188
      %v2237 = vsub.f32 %v1959, %v2189
      %v2238 = vsub.f32 %v1964, %v2190
      %v2239 = vsub.f32 %v1967, %v2191
      %v2240 = vsub.f32 %v1972, %v2192
      %v2241 = vsub.f32 %v1975, %v2193
      %v2242 = vsub.f32 %v1980, %v2194
      %v2243 = vsub.f32 %v1983, %v2195
      %v2244 = vsub.f32 %v1988, %v2196
      %v2245 = vsub.f32 %v1991, %v2197
      %v2246 = vsub.f32 %v1996, %v2198
      %v2247 = vsub.f32 %v1999, %v2199
      %v2248 = vsub.f32 %v2004, %v2200
      %v2249 = vsub.f32 %v2007, %v2201
      %v2250 = vsub.f32 %v2012, %v2202
      %v2251 = vsub.f32 %v2015, %v2203
      %v2252 = vsub.f32 %v2020, %v2204
      %v2253 = vsub.f32 %v2023, %v2205
      %v2254 = vsub.f32 %v2028, %v2206
      %v2255 = vsub.f32 %v2031, %v2207
      %v2256 = vsub.f32 %v2036, %v2208
      %v2257 = vsub.f32 %v2039, %v2209
      %v2258 = vsub.f32 %v2044, %v2210
      %v2259 = vsub.f32 %v2047, %v2211
      %v2260 = vsub.f32 %v2052, %v2212
      %v2261 = vsub.f32 %v2055, %v2213
      %v2262 = vsub.f32 %v2060, %v2214
      %v2263 = vsub.f32 %v2063, %v2215
      %v2264 = vsub.f32 %v2068, %v2216
      %v2265 = vsub.f32 %v2071, %v2217
      %v2266 = vmul.f32 %v2218, %v2218
      %v2267 = vmul.f32 %v2219, %v2219
      %v2268 = vmul.f32 %v2220, %v2220
      %v2269 = vmul.f32 %v2221, %v2221
      %v2270 = vmul.f32 %v2222, %v2222
      %v2271 = vmul.f32 %v2223, %v2223
      %v2272 = vmul.f32 %v2224, %v2224
      %v2273 = vmul.f32 %v2225, %v2225
      %v2274 = vmul.f32 %v2226, %v2226
      %v2275 = vmul.f32 %v2227, %v2227
      %v2276 = vmul.f32 %v2228, %v2228
      %v2277 = vmul.f32 %v2229, %v2229
      %v2278 = vmul.f32 %v2230, %v2230
      %v2279 = vmul.f32 %v2231, %v2231
      %v2280 = vmul.f32 %v2232, %v2232
      %v2281 = vmul.f32 %v2233, %v2233
      %v2282 = vmul.f32 %v2234, %v2234
      %v2283 = vmul.f32 %v2235, %v2235
      %v2284 = vmul.f32 %v2236, %v2236
      %v2285 = vmul.f32 %v2237, %v2237
      %v2286 = vmul.f32 %v2238, %v2238
      %v2287 = vmul.f32 %v2239, %v2239
      %v2288 = vmul.f32 %v2240, %v2240
      %v2289 = vmul.f32 %v2241, %v2241
      %v2290 = vmul.f32 %v2242, %v2242
      %v2291 = vmul.f32 %v2243, %v2243
      %v2292 = vmul.f32 %v2244, %v2244
      %v2293 = vmul.f32 %v2245, %v2245
      %v2294 = vmul.f32 %v2246, %v2246
      %v2295 = vmul.f32 %v2247, %v2247
      %v2296 = vmul.f32 %v2248, %v2248
      %v2297 = vmul.f32 %v2249, %v2249
      %v2298 = vmul.f32 %v2250, %v2250
      %v2299 = vmul.f32 %v2251, %v2251
      %v2300 = vmul.f32 %v2252, %v2252
      %v2301 = vmul.f32 %v2253, %v2253
      %v2302 = vmul.f32 %v2254, %v2254
      %v2303 = vmul.f32 %v2255, %v2255
      %v2304 = vmul.f32 %v2256, %v2256
      %v2305 = vmul.f32 %v2257, %v2257
      %v2306 = vmul.f32 %v2258, %v2258
      %v2307 = vmul.f32 %v2259, %v2259
      %v2308 = vmul.f32 %v2260, %v2260
      %v2309 = vmul.f32 %v2261, %v2261
      %v2310 = vmul.f32 %v2262, %v2262
      %v2311 = vmul.f32 %v2263, %v2263
      %v2312 = vmul.f32 %v2264, %v2264
      %v2313 = vmul.f32 %v2265, %v2265
      %2314 = vadd.xlane.f32.xlu0 %v2266
      %v2315 = vpop.xlane.xlu0 %2314
      %2316 = vadd.xlane.f32.xlu0 %v2267
      %v2317 = vpop.xlane.xlu0 %2316
      %2318 = vadd.xlane.f32.xlu0 %v2268
      %v2319 = vpop.xlane.xlu0 %2318
      %2320 = vadd.xlane.f32.xlu0 %v2269
      %v2321 = vpop.xlane.xlu0 %2320
      %2322 = vadd.xlane.f32.xlu0 %v2270
      %v2323 = vpop.xlane.xlu0 %2322
      %2324 = vadd.xlane.f32.xlu0 %v2271
      %v2325 = vpop.xlane.xlu0 %2324
      %2326 = vadd.xlane.f32.xlu0 %v2272
      %v2327 = vpop.xlane.xlu0 %2326
      %2328 = vadd.xlane.f32.xlu0 %v2273
      %v2329 = vpop.xlane.xlu0 %2328
      %2330 = vadd.xlane.f32.xlu0 %v2274
      %v2331 = vpop.xlane.xlu0 %2330
      %2332 = vadd.xlane.f32.xlu0 %v2275
      %v2333 = vpop.xlane.xlu0 %2332
      %2334 = vadd.xlane.f32.xlu0 %v2276
      %v2335 = vpop.xlane.xlu0 %2334
      %2336 = vadd.xlane.f32.xlu0 %v2277
      %v2337 = vpop.xlane.xlu0 %2336
      %2338 = vadd.xlane.f32.xlu0 %v2278
      %v2339 = vpop.xlane.xlu0 %2338
      %2340 = vadd.xlane.f32.xlu0 %v2279
      %v2341 = vpop.xlane.xlu0 %2340
      %2342 = vadd.xlane.f32.xlu0 %v2280
      %v2343 = vpop.xlane.xlu0 %2342
      %2344 = vadd.xlane.f32.xlu0 %v2281
      %v2345 = vpop.xlane.xlu0 %2344
      %2346 = vadd.xlane.f32.xlu0 %v2282
      %v2347 = vpop.xlane.xlu0 %2346
      %2348 = vadd.xlane.f32.xlu0 %v2283
      %v2349 = vpop.xlane.xlu0 %2348
      %2350 = vadd.xlane.f32.xlu0 %v2284
      %v2351 = vpop.xlane.xlu0 %2350
      %2352 = vadd.xlane.f32.xlu0 %v2285
      %v2353 = vpop.xlane.xlu0 %2352
      %2354 = vadd.xlane.f32.xlu0 %v2286
      %v2355 = vpop.xlane.xlu0 %2354
      %2356 = vadd.xlane.f32.xlu0 %v2287
      %v2357 = vpop.xlane.xlu0 %2356
      %2358 = vadd.xlane.f32.xlu0 %v2288
      %v2359 = vpop.xlane.xlu0 %2358
      %2360 = vadd.xlane.f32.xlu0 %v2289
      %v2361 = vpop.xlane.xlu0 %2360
      %2362 = vadd.xlane.f32.xlu0 %v2290
      %v2363 = vpop.xlane.xlu0 %2362
      %2364 = vadd.xlane.f32.xlu0 %v2291
      %v2365 = vpop.xlane.xlu0 %2364
      %2366 = vadd.xlane.f32.xlu0 %v2292
      %v2367 = vpop.xlane.xlu0 %2366
      %2368 = vadd.xlane.f32.xlu0 %v2293
      %v2369 = vpop.xlane.xlu0 %2368
      %2370 = vadd.xlane.f32.xlu0 %v2294
      %v2371 = vpop.xlane.xlu0 %2370
      %2372 = vadd.xlane.f32.xlu0 %v2295
      %v2373 = vpop.xlane.xlu0 %2372
      %2374 = vadd.xlane.f32.xlu0 %v2296
      %v2375 = vpop.xlane.xlu0 %2374
      %2376 = vadd.xlane.f32.xlu0 %v2297
      %v2377 = vpop.xlane.xlu0 %2376
      %2378 = vadd.xlane.f32.xlu0 %v2298
      %v2379 = vpop.xlane.xlu0 %2378
      %2380 = vadd.xlane.f32.xlu0 %v2299
      %v2381 = vpop.xlane.xlu0 %2380
      %2382 = vadd.xlane.f32.xlu0 %v2300
      %v2383 = vpop.xlane.xlu0 %2382
      %2384 = vadd.xlane.f32.xlu0 %v2301
      %v2385 = vpop.xlane.xlu0 %2384
      %2386 = vadd.xlane.f32.xlu0 %v2302
      %v2387 = vpop.xlane.xlu0 %2386
      %2388 = vadd.xlane.f32.xlu0 %v2303
      %v2389 = vpop.xlane.xlu0 %2388
      %2390 = vadd.xlane.f32.xlu0 %v2304
      %v2391 = vpop.xlane.xlu0 %2390
      %2392 = vadd.xlane.f32.xlu0 %v2305
      %v2393 = vpop.xlane.xlu0 %2392
      %2394 = vadd.xlane.f32.xlu0 %v2306
      %v2395 = vpop.xlane.xlu0 %2394
      %2396 = vadd.xlane.f32.xlu0 %v2307
      %v2397 = vpop.xlane.xlu0 %2396
      %2398 = vadd.xlane.f32.xlu0 %v2308
      %v2399 = vpop.xlane.xlu0 %2398
      %2400 = vadd.xlane.f32.xlu0 %v2309
      %v2401 = vpop.xlane.xlu0 %2400
      %2402 = vadd.xlane.f32.xlu0 %v2310
      %v2403 = vpop.xlane.xlu0 %2402
      %2404 = vadd.xlane.f32.xlu0 %v2311
      %v2405 = vpop.xlane.xlu0 %2404
      %2406 = vadd.xlane.f32.xlu0 %v2312
      %v2407 = vpop.xlane.xlu0 %2406
      %2408 = vadd.xlane.f32.xlu0 %v2313
      %v2409 = vpop.xlane.xlu0 %2408
      %v2410 = vmul.f32 %v2315, %v1163
      %v2411 = vmul.f32 %v2317, %v1163
      %v2412 = vmul.f32 %v2319, %v1163
      %v2413 = vmul.f32 %v2321, %v1163
      %v2414 = vmul.f32 %v2323, %v1163
      %v2415 = vmul.f32 %v2325, %v1163
      %v2416 = vmul.f32 %v2327, %v1163
      %v2417 = vmul.f32 %v2329, %v1163
      %v2418 = vmul.f32 %v2331, %v1163
      %v2419 = vmul.f32 %v2333, %v1163
      %v2420 = vmul.f32 %v2335, %v1163
      %v2421 = vmul.f32 %v2337, %v1163
      %v2422 = vmul.f32 %v2339, %v1163
      %v2423 = vmul.f32 %v2341, %v1163
      %v2424 = vmul.f32 %v2343, %v1163
      %v2425 = vmul.f32 %v2345, %v1163
      %v2426 = vmul.f32 %v2347, %v1163
      %v2427 = vmul.f32 %v2349, %v1163
      %v2428 = vmul.f32 %v2351, %v1163
      %v2429 = vmul.f32 %v2353, %v1163
      %v2430 = vmul.f32 %v2355, %v1163
      %v2431 = vmul.f32 %v2357, %v1163
      %v2432 = vmul.f32 %v2359, %v1163
      %v2433 = vmul.f32 %v2361, %v1163
      %v2434 = vmul.f32 %v2363, %v1163
      %v2435 = vmul.f32 %v2365, %v1163
      %v2436 = vmul.f32 %v2367, %v1163
      %v2437 = vmul.f32 %v2369, %v1163
      %v2438 = vmul.f32 %v2371, %v1163
      %v2439 = vmul.f32 %v2373, %v1163
      %v2440 = vmul.f32 %v2375, %v1163
      %v2441 = vmul.f32 %v2377, %v1163
      %v2442 = vmul.f32 %v2379, %v1163
      %v2443 = vmul.f32 %v2381, %v1163
      %v2444 = vmul.f32 %v2383, %v1163
      %v2445 = vmul.f32 %v2385, %v1163
      %v2446 = vmul.f32 %v2387, %v1163
      %v2447 = vmul.f32 %v2389, %v1163
      %v2448 = vmul.f32 %v2391, %v1163
      %v2449 = vmul.f32 %v2393, %v1163
      %v2450 = vmul.f32 %v2395, %v1163
      %v2451 = vmul.f32 %v2397, %v1163
      %v2452 = vmul.f32 %v2399, %v1163
      %v2453 = vmul.f32 %v2401, %v1163
      %v2454 = vmul.f32 %v2403, %v1163
      %v2455 = vmul.f32 %v2405, %v1163
      %v2456 = vmul.f32 %v2407, %v1163
      %v2457 = vmul.f32 %v2409, %v1163
      %v2458 = vadd.f32 %v2410, 1e-05
      %v2459 = vadd.f32 %v2411, 1e-05
      %v2460 = vadd.f32 %v2412, 1e-05
      %v2461 = vadd.f32 %v2413, 1e-05
      %v2462 = vadd.f32 %v2414, 1e-05
      %v2463 = vadd.f32 %v2415, 1e-05
      %v2464 = vadd.f32 %v2416, 1e-05
      %v2465 = vadd.f32 %v2417, 1e-05
      %v2466 = vadd.f32 %v2418, 1e-05
      %v2467 = vadd.f32 %v2419, 1e-05
      %v2468 = vadd.f32 %v2420, 1e-05
      %v2469 = vadd.f32 %v2421, 1e-05
      %v2470 = vadd.f32 %v2422, 1e-05
      %v2471 = vadd.f32 %v2423, 1e-05
      %v2472 = vadd.f32 %v2424, 1e-05
      %v2473 = vadd.f32 %v2425, 1e-05
      %v2474 = vadd.f32 %v2426, 1e-05
      %v2475 = vadd.f32 %v2427, 1e-05
      %v2476 = vadd.f32 %v2428, 1e-05
      %v2477 = vadd.f32 %v2429, 1e-05
      %v2478 = vadd.f32 %v2430, 1e-05
      %v2479 = vadd.f32 %v2431, 1e-05
      %v2480 = vadd.f32 %v2432, 1e-05
      %v2481 = vadd.f32 %v2433, 1e-05
      %v2482 = vadd.f32 %v2434, 1e-05
      %v2483 = vadd.f32 %v2435, 1e-05
      %v2484 = vadd.f32 %v2436, 1e-05
      %v2485 = vadd.f32 %v2437, 1e-05
      %v2486 = vadd.f32 %v2438, 1e-05
      %v2487 = vadd.f32 %v2439, 1e-05
      %v2488 = vadd.f32 %v2440, 1e-05
      %v2489 = vadd.f32 %v2441, 1e-05
      %v2490 = vadd.f32 %v2442, 1e-05
      %v2491 = vadd.f32 %v2443, 1e-05
      %v2492 = vadd.f32 %v2444, 1e-05
      %v2493 = vadd.f32 %v2445, 1e-05
      %v2494 = vadd.f32 %v2446, 1e-05
      %v2495 = vadd.f32 %v2447, 1e-05
      %v2496 = vadd.f32 %v2448, 1e-05
      %v2497 = vadd.f32 %v2449, 1e-05
      %v2498 = vadd.f32 %v2450, 1e-05
      %v2499 = vadd.f32 %v2451, 1e-05
      %v2500 = vadd.f32 %v2452, 1e-05
      %v2501 = vadd.f32 %v2453, 1e-05
      %v2502 = vadd.f32 %v2454, 1e-05
      %v2503 = vadd.f32 %v2455, 1e-05
      %v2504 = vadd.f32 %v2456, 1e-05
      %v2505 = vadd.f32 %v2457, 1e-05
      %v2506 = vrsqrt.pop %v2458
      %v2507 = vrsqrt.pop %v2459
      %v2508 = vrsqrt.pop %v2460
      %v2509 = vrsqrt.pop %v2461
      %v2510 = vrsqrt.pop %v2462
      %v2511 = vrsqrt.pop %v2463
      %v2512 = vrsqrt.pop %v2464
      %v2513 = vrsqrt.pop %v2465
      %v2514 = vrsqrt.pop %v2466
      %v2515 = vrsqrt.pop %v2467
      %v2516 = vrsqrt.pop %v2468
      %v2517 = vrsqrt.pop %v2469
      %v2518 = vrsqrt.pop %v2470
      %v2519 = vrsqrt.pop %v2471
      %v2520 = vrsqrt.pop %v2472
      %v2521 = vrsqrt.pop %v2473
      %v2522 = vrsqrt.pop %v2474
      %v2523 = vrsqrt.pop %v2475
      %v2524 = vrsqrt.pop %v2476
      %v2525 = vrsqrt.pop %v2477
      %v2526 = vrsqrt.pop %v2478
      %v2527 = vrsqrt.pop %v2479
      %v2528 = vrsqrt.pop %v2480
      %v2529 = vrsqrt.pop %v2481
      %v2530 = vrsqrt.pop %v2482
      %v2531 = vrsqrt.pop %v2483
      %v2532 = vrsqrt.pop %v2484
      %v2533 = vrsqrt.pop %v2485
      %v2534 = vrsqrt.pop %v2486
      %v2535 = vrsqrt.pop %v2487
      %v2536 = vrsqrt.pop %v2488
      %v2537 = vrsqrt.pop %v2489
      %v2538 = vrsqrt.pop %v2490
      %v2539 = vrsqrt.pop %v2491
      %v2540 = vrsqrt.pop %v2492
      %v2541 = vrsqrt.pop %v2493
      %v2542 = vrsqrt.pop %v2494
      %v2543 = vrsqrt.pop %v2495
      %v2544 = vrsqrt.pop %v2496
      %v2545 = vrsqrt.pop %v2497
      %v2546 = vrsqrt.pop %v2498
      %v2547 = vrsqrt.pop %v2499
      %v2548 = vrsqrt.pop %v2500
      %v2549 = vrsqrt.pop %v2501
      %v2550 = vrsqrt.pop %v2502
      %v2551 = vrsqrt.pop %v2503
      %v2552 = vrsqrt.pop %v2504
      %v2553 = vrsqrt.pop %v2505
      %v2554 = vmul.f32 %v2218, %v2506
      %v2555 = vmul.f32 %v2219, %v2507
      %v2556 = vmul.f32 %v2220, %v2508
      %v2557 = vmul.f32 %v2221, %v2509
      %v2558 = vmul.f32 %v2222, %v2510
      %v2559 = vmul.f32 %v2223, %v2511
      %v2560 = vmul.f32 %v2224, %v2512
      %v2561 = vmul.f32 %v2225, %v2513
      %v2562 = vmul.f32 %v2226, %v2514
      %v2563 = vmul.f32 %v2227, %v2515
      %v2564 = vmul.f32 %v2228, %v2516
      %v2565 = vmul.f32 %v2229, %v2517
      %v2566 = vmul.f32 %v2230, %v2518
      %v2567 = vmul.f32 %v2231, %v2519
      %v2568 = vmul.f32 %v2232, %v2520
      %v2569 = vmul.f32 %v2233, %v2521
      %v2570 = vmul.f32 %v2234, %v2522
      %v2571 = vmul.f32 %v2235, %v2523
      %v2572 = vmul.f32 %v2236, %v2524
      %v2573 = vmul.f32 %v2237, %v2525
      %v2574 = vmul.f32 %v2238, %v2526
      %v2575 = vmul.f32 %v2239, %v2527
      %v2576 = vmul.f32 %v2240, %v2528
      %v2577 = vmul.f32 %v2241, %v2529
      %v2578 = vmul.f32 %v2242, %v2530
      %v2579 = vmul.f32 %v2243, %v2531
      %v2580 = vmul.f32 %v2244, %v2532
      %v2581 = vmul.f32 %v2245, %v2533
      %v2582 = vmul.f32 %v2246, %v2534
      %v2583 = vmul.f32 %v2247, %v2535
      %v2584 = vmul.f32 %v2248, %v2536
      %v2585 = vmul.f32 %v2249, %v2537
      %v2586 = vmul.f32 %v2250, %v2538
      %v2587 = vmul.f32 %v2251, %v2539
      %v2588 = vmul.f32 %v2252, %v2540
      %v2589 = vmul.f32 %v2253, %v2541
      %v2590 = vmul.f32 %v2254, %v2542
      %v2591 = vmul.f32 %v2255, %v2543
      %v2592 = vmul.f32 %v2256, %v2544
      %v2593 = vmul.f32 %v2257, %v2545
      %v2594 = vmul.f32 %v2258, %v2546
      %v2595 = vmul.f32 %v2259, %v2547
      %v2596 = vmul.f32 %v2260, %v2548
      %v2597 = vmul.f32 %v2261, %v2549
      %v2598 = vmul.f32 %v2262, %v2550
      %v2599 = vmul.f32 %v2263, %v2551
      %v2600 = vmul.f32 %v2264, %v2552
      %v2601 = vmul.f32 %v2265, %v2553
      %v2602 = vld [vmem:[%s8] sm:$0x1]
      %v2604 = vlaneseq
      %v2605 = vshrl.u32 %v2604, 7
      %v2606 = vsub.s32 0, %v2605
      %v2607 = vrot.slane %v2602, %v2606
      %v2609 = vmul.f32 %v2554, %v2607
      %v2610 = vmul.f32 %v2555, %v2607
      %v2611 = vmul.f32 %v2556, %v2607
      %v2612 = vmul.f32 %v2557, %v2607
      %v2613 = vmul.f32 %v2558, %v2607
      %v2614 = vmul.f32 %v2559, %v2607
      %v2615 = vmul.f32 %v2560, %v2607
      %v2616 = vmul.f32 %v2561, %v2607
      %v2617 = vmul.f32 %v2562, %v2607
      %v2618 = vmul.f32 %v2563, %v2607
      %v2619 = vmul.f32 %v2564, %v2607
      %v2620 = vmul.f32 %v2565, %v2607
      %v2621 = vmul.f32 %v2566, %v2607
      %v2622 = vmul.f32 %v2567, %v2607
      %v2623 = vmul.f32 %v2568, %v2607
      %v2624 = vmul.f32 %v2569, %v2607
      %v2625 = vmul.f32 %v2570, %v2607
      %v2626 = vmul.f32 %v2571, %v2607
      %v2627 = vmul.f32 %v2572, %v2607
      %v2628 = vmul.f32 %v2573, %v2607
      %v2629 = vmul.f32 %v2574, %v2607
      %v2630 = vmul.f32 %v2575, %v2607
      %v2631 = vmul.f32 %v2576, %v2607
      %v2632 = vmul.f32 %v2577, %v2607
      %v2633 = vmul.f32 %v2578, %v2607
      %v2634 = vmul.f32 %v2579, %v2607
      %v2635 = vmul.f32 %v2580, %v2607
      %v2636 = vmul.f32 %v2581, %v2607
      %v2637 = vmul.f32 %v2582, %v2607
      %v2638 = vmul.f32 %v2583, %v2607
      %v2639 = vmul.f32 %v2584, %v2607
      %v2640 = vmul.f32 %v2585, %v2607
      %v2641 = vmul.f32 %v2586, %v2607
      %v2642 = vmul.f32 %v2587, %v2607
      %v2643 = vmul.f32 %v2588, %v2607
      %v2644 = vmul.f32 %v2589, %v2607
      %v2645 = vmul.f32 %v2590, %v2607
      %v2646 = vmul.f32 %v2591, %v2607
      %v2647 = vmul.f32 %v2592, %v2607
      %v2648 = vmul.f32 %v2593, %v2607
      %v2649 = vmul.f32 %v2594, %v2607
      %v2650 = vmul.f32 %v2595, %v2607
      %v2651 = vmul.f32 %v2596, %v2607
      %v2652 = vmul.f32 %v2597, %v2607
      %v2653 = vmul.f32 %v2598, %v2607
      %v2654 = vmul.f32 %v2599, %v2607
      %v2655 = vmul.f32 %v2600, %v2607
      %v2656 = vmul.f32 %v2601, %v2607
      %v2657 = vld [vmem:[%s9] sm:$0x1]
      %v2659 = vlaneseq
      %v2660 = vshrl.u32 %v2659, 7
      %v2661 = vsub.s32 0, %v2660
      %v2662 = vrot.slane %v2657, %v2661
      %v2664 = vadd.f32 %v2609, %v2662
      %v2665 = vadd.f32 %v2610, %v2662
      %v2666 = vadd.f32 %v2611, %v2662
      %v2667 = vadd.f32 %v2612, %v2662
      %v2668 = vadd.f32 %v2613, %v2662
      %v2669 = vadd.f32 %v2614, %v2662
      %v2670 = vadd.f32 %v2615, %v2662
      %v2671 = vadd.f32 %v2616, %v2662
      %v2672 = vadd.f32 %v2617, %v2662
      %v2673 = vadd.f32 %v2618, %v2662
      %v2674 = vadd.f32 %v2619, %v2662
      %v2675 = vadd.f32 %v2620, %v2662
      %v2676 = vadd.f32 %v2621, %v2662
      %v2677 = vadd.f32 %v2622, %v2662
      %v2678 = vadd.f32 %v2623, %v2662
      %v2679 = vadd.f32 %v2624, %v2662
      %v2680 = vadd.f32 %v2625, %v2662
      %v2681 = vadd.f32 %v2626, %v2662
      %v2682 = vadd.f32 %v2627, %v2662
      %v2683 = vadd.f32 %v2628, %v2662
      %v2684 = vadd.f32 %v2629, %v2662
      %v2685 = vadd.f32 %v2630, %v2662
      %v2686 = vadd.f32 %v2631, %v2662
      %v2687 = vadd.f32 %v2632, %v2662
      %v2688 = vadd.f32 %v2633, %v2662
      %v2689 = vadd.f32 %v2634, %v2662
      %v2690 = vadd.f32 %v2635, %v2662
      %v2691 = vadd.f32 %v2636, %v2662
      %v2692 = vadd.f32 %v2637, %v2662
      %v2693 = vadd.f32 %v2638, %v2662
      %v2694 = vadd.f32 %v2639, %v2662
      %v2695 = vadd.f32 %v2640, %v2662
      %v2696 = vadd.f32 %v2641, %v2662
      %v2697 = vadd.f32 %v2642, %v2662
      %v2698 = vadd.f32 %v2643, %v2662
      %v2699 = vadd.f32 %v2644, %v2662
      %v2700 = vadd.f32 %v2645, %v2662
      %v2701 = vadd.f32 %v2646, %v2662
      %v2702 = vadd.f32 %v2647, %v2662
      %v2703 = vadd.f32 %v2648, %v2662
      %v2704 = vadd.f32 %v2649, %v2662
      %v2705 = vadd.f32 %v2650, %v2662
      %v2706 = vadd.f32 %v2651, %v2662
      %v2707 = vadd.f32 %v2652, %v2662
      %v2708 = vadd.f32 %v2653, %v2662
      %v2709 = vadd.f32 %v2654, %v2662
      %v2710 = vadd.f32 %v2655, %v2662
      %v2711 = vadd.f32 %v2656, %v2662
      %v2712 = vmax.f32 %v2664, 0.0
      %v2713 = vmax.f32 %v2665, 0.0
      %v2714 = vmax.f32 %v2666, 0.0
      %v2715 = vmax.f32 %v2667, 0.0
      %v2716 = vmax.f32 %v2668, 0.0
      %v2717 = vmax.f32 %v2669, 0.0
      %v2718 = vmax.f32 %v2670, 0.0
      %v2719 = vmax.f32 %v2671, 0.0
      %v2720 = vmax.f32 %v2672, 0.0
      %v2721 = vmax.f32 %v2673, 0.0
      %v2722 = vmax.f32 %v2674, 0.0
      %v2723 = vmax.f32 %v2675, 0.0
      %v2724 = vmax.f32 %v2676, 0.0
      %v2725 = vmax.f32 %v2677, 0.0
      %v2726 = vmax.f32 %v2678, 0.0
      %v2727 = vmax.f32 %v2679, 0.0
      %v2728 = vmax.f32 %v2680, 0.0
      %v2729 = vmax.f32 %v2681, 0.0
      %v2730 = vmax.f32 %v2682, 0.0
      %v2731 = vmax.f32 %v2683, 0.0
      %v2732 = vmax.f32 %v2684, 0.0
      %v2733 = vmax.f32 %v2685, 0.0
      %v2734 = vmax.f32 %v2686, 0.0
      %v2735 = vmax.f32 %v2687, 0.0
      %v2736 = vmax.f32 %v2688, 0.0
      %v2737 = vmax.f32 %v2689, 0.0
      %v2738 = vmax.f32 %v2690, 0.0
      %v2739 = vmax.f32 %v2691, 0.0
      %v2740 = vmax.f32 %v2692, 0.0
      %v2741 = vmax.f32 %v2693, 0.0
      %v2742 = vmax.f32 %v2694, 0.0
      %v2743 = vmax.f32 %v2695, 0.0
      %v2744 = vmax.f32 %v2696, 0.0
      %v2745 = vmax.f32 %v2697, 0.0
      %v2746 = vmax.f32 %v2698, 0.0
      %v2747 = vmax.f32 %v2699, 0.0
      %v2748 = vmax.f32 %v2700, 0.0
      %v2749 = vmax.f32 %v2701, 0.0
      %v2750 = vmax.f32 %v2702, 0.0
      %v2751 = vmax.f32 %v2703, 0.0
      %v2752 = vmax.f32 %v2704, 0.0
      %v2753 = vmax.f32 %v2705, 0.0
      %v2754 = vmax.f32 %v2706, 0.0
      %v2755 = vmax.f32 %v2707, 0.0
      %v2756 = vmax.f32 %v2708, 0.0
      %v2757 = vmax.f32 %v2709, 0.0
      %v2758 = vmax.f32 %v2710, 0.0
      %v2759 = vmax.f32 %v2711, 0.0
      %v2760 = vmax.f32 %v831, 0.0
      %v2761 = vmax.f32 %v835, 0.0
      %v2762 = vmax.f32 %v841, 0.0
      %v2763 = vmax.f32 %v845, 0.0
      %v2764 = vmax.f32 %v851, 0.0
      %v2765 = vmax.f32 %v855, 0.0
      %v2766 = vmax.f32 %v861, 0.0
      %v2767 = vmax.f32 %v865, 0.0
      %v2768 = vmax.f32 %v871, 0.0
      %v2769 = vmax.f32 %v875, 0.0
      %v2770 = vmax.f32 %v881, 0.0
      %v2771 = vmax.f32 %v885, 0.0
      %v2772 = vmax.f32 %v891, 0.0
      %v2773 = vmax.f32 %v895, 0.0
      %v2774 = vmax.f32 %v901, 0.0
      %v2775 = vmax.f32 %v905, 0.0
      %v2776 = vmax.f32 %v911, 0.0
      %v2777 = vmax.f32 %v915, 0.0
      %v2778 = vmax.f32 %v921, 0.0
      %v2779 = vmax.f32 %v925, 0.0
      %v2780 = vmax.f32 %v931, 0.0
      %v2781 = vmax.f32 %v935, 0.0
      %v2782 = vmax.f32 %v941, 0.0
      %v2783 = vmax.f32 %v945, 0.0
      %v2784 = vmax.f32 %v951, 0.0
      %v2785 = vmax.f32 %v955, 0.0
      %v2786 = vmax.f32 %v961, 0.0
      %v2787 = vmax.f32 %v965, 0.0
      %v2788 = vmax.f32 %v971, 0.0
      %v2789 = vmax.f32 %v975, 0.0
      %v2790 = vmax.f32 %v981, 0.0
      %v2791 = vmax.f32 %v985, 0.0
      %v2792 = vmax.f32 %v991, 0.0
      %v2793 = vmax.f32 %v995, 0.0
      %v2794 = vmax.f32 %v1001, 0.0
      %v2795 = vmax.f32 %v1005, 0.0
      %v2796 = vmax.f32 %v1011, 0.0
      %v2797 = vmax.f32 %v1015, 0.0
      %v2798 = vmax.f32 %v1021, 0.0
      %v2799 = vmax.f32 %v1025, 0.0
      %v2800 = vmax.f32 %v1031, 0.0
      %v2801 = vmax.f32 %v1035, 0.0
      %v2802 = vmax.f32 %v1041, 0.0
      %v2803 = vmax.f32 %v1045, 0.0
      %v2804 = vmax.f32 %v1051, 0.0
      %v2805 = vmax.f32 %v1055, 0.0
      %v2806 = vmax.f32 %v1061, 0.0
      %v2807 = vmax.f32 %v1065, 0.0
      %v2808 = vpack.c.bf16 %v2761, %v2760
      %v2809 = vpack.c.bf16 %v2763, %v2762
      %v2810 = vpack.c.bf16 %v2765, %v2764
      %v2811 = vpack.c.bf16 %v2767, %v2766
      %v2812 = vpack.c.bf16 %v2769, %v2768
      %v2813 = vpack.c.bf16 %v2771, %v2770
      %v2814 = vpack.c.bf16 %v2773, %v2772
      %v2815 = vpack.c.bf16 %v2775, %v2774
      %v2816 = vpack.c.bf16 %v2777, %v2776
      %v2817 = vpack.c.bf16 %v2779, %v2778
      %v2818 = vpack.c.bf16 %v2781, %v2780
      %v2819 = vpack.c.bf16 %v2783, %v2782
      %v2820 = vpack.c.bf16 %v2785, %v2784
      %v2821 = vpack.c.bf16 %v2787, %v2786
      %v2822 = vpack.c.bf16 %v2789, %v2788
      %v2823 = vpack.c.bf16 %v2791, %v2790
      %v2824 = vpack.c.bf16 %v2793, %v2792
      %v2825 = vpack.c.bf16 %v2795, %v2794
      %v2826 = vpack.c.bf16 %v2797, %v2796
      %v2827 = vpack.c.bf16 %v2799, %v2798
      %v2828 = vpack.c.bf16 %v2801, %v2800
      %v2829 = vpack.c.bf16 %v2803, %v2802
      %v2830 = vpack.c.bf16 %v2805, %v2804
      %v2831 = vpack.c.bf16 %v2807, %v2806
      %v2832 = vld [vmem:[%s10] sm:$0xf]
      %v2833 = vld [vmem:[%s10 + $0x4] sm:$0xf]
      %v2834 = vld [vmem:[%s10 + $0x8] sm:$0xf]
      %v2835 = vld [vmem:[%s10 + $0xc] sm:$0xf]
      %v2836 = vld [vmem:[%s10 + $0x10] sm:$0xf]
      %v2837 = vld [vmem:[%s10 + $0x14] sm:$0xf]
      %v2838 = vld [vmem:[%s10 + $0x18] sm:$0xf]
      %v2839 = vld [vmem:[%s10 + $0x1c] sm:$0xf]
      %v2840 = vld [vmem:[%s10 + $0x20] sm:$0xf]
      %v2841 = vld [vmem:[%s10 + $0x24] sm:$0xf]
      %v2842 = vld [vmem:[%s10 + $0x28] sm:$0xf]
      %v2843 = vld [vmem:[%s10 + $0x2c] sm:$0xf]
      %v2844 = vld [vmem:[%s10 + $0x30] sm:$0xf]
      %v2845 = vld [vmem:[%s10 + $0x34] sm:$0xf]
      %v2846 = vld [vmem:[%s10 + $0x38] sm:$0xf]
      %v2847 = vld [vmem:[%s10 + $0x3c] sm:$0xf]
      %v2848 = vld [vmem:[%s11] sm:$0x1]
      %v2850 = vlaneseq
      %v2851 = vshrl.u32 %v2850, 7
      %v2852 = vsub.s32 0, %v2851
      %v2853 = vrot.slane %v2848, %v2852
      %v2871 = vunpack.c.l.b16 %v2832
      %v2872 = vunpack.c.l.b16 %v2833
      %v2873 = vunpack.c.l.b16 %v2834
      %v2874 = vunpack.c.l.b16 %v2835
      %v2875 = vunpack.c.l.b16 %v2836
      %v2876 = vunpack.c.l.b16 %v2837
      %v2877 = vunpack.c.l.b16 %v2838
      %v2878 = vunpack.c.l.b16 %v2839
      %v2879 = vunpack.c.l.b16 %v2840
      %v2880 = vunpack.c.l.b16 %v2841
      %v2881 = vunpack.c.l.b16 %v2842
      %v2882 = vunpack.c.l.b16 %v2843
      %v2883 = vunpack.c.l.b16 %v2844
      %v2884 = vunpack.c.l.b16 %v2845
      %v2885 = vunpack.c.l.b16 %v2846
      %v2886 = vunpack.c.l.b16 %v2847
      %v2887 = vpack.c.b16 %v2872, %v2871
      %v2888 = vpack.c.b16 %v2874, %v2873
      %v2889 = vpack.c.b16 %v2876, %v2875
      %v2890 = vpack.c.b16 %v2878, %v2877
      %v2891 = vpack.c.b16 %v2880, %v2879
      %v2892 = vpack.c.b16 %v2882, %v2881
      %v2893 = vpack.c.b16 %v2884, %v2883
      %v2894 = vpack.c.b16 %v2886, %v2885
      %2903 = vmatprep.subr.bf16.mxu0 0
      %2904 = vmatpush1.bf16.msra.mxu0 %v2894
      %2905 = vmatprep.subr.bf16.mxu0 0
      %2906 = vmatpush1.bf16.msra.mxu0 %v2893
      %2907 = vmatprep.subr.bf16.mxu0 0
      %2908 = vmatpush1.bf16.msra.mxu0 %v2892
      %2909 = vmatprep.subr.bf16.mxu0 0
      %2910 = vmatpush1.bf16.msra.mxu0 %v2891
      %2911 = vmatprep.subr.bf16.mxu0 0
      %2912 = vmatpush1.bf16.msra.mxu0 %v2890
      %2913 = vmatprep.subr.bf16.mxu0 0
      %2914 = vmatpush1.bf16.msra.mxu0 %v2889
      %2915 = vmatprep.subr.bf16.mxu0 0
      %2916 = vmatpush1.bf16.msra.mxu0 %v2888
      %2917 = vmatprep.subr.bf16.mxu0 0
      %2918 = vmatpush1.bf16.msra.mxu0 %v2887
      %2919 = vmatprep.subr.bf16.mxu0 0
      %2920 = vmatpush2.bf16.msra.mxu0 0
      %2921 = vmatprep.subr.bf16.mxu0 0
      %2922 = vmatpush2.bf16.msra.mxu0 0
      %2923 = vmatprep.subr.bf16.mxu0 0
      %2924 = vmatpush2.bf16.msra.mxu0 0
      %2925 = vmatprep.subr.bf16.mxu0 0
      %2926 = vmatpush2.bf16.msra.mxu0 0
      %2927 = vmatprep.subr.bf16.mxu0 0
      %2928 = vmatpush2.bf16.msra.mxu0 0
      %2929 = vmatprep.subr.bf16.mxu0 0
      %2930 = vmatpush2.bf16.msra.mxu0 0
      %2931 = vmatprep.subr.bf16.mxu0 0
      %2932 = vmatpush2.bf16.msra.mxu0 0
      %2933 = vmatprep.subr.bf16.mxu0 0
      %2934 = vmatpush2.bf16.msra.mxu0 0
      %2935 = vmatprep.mubr.bf16.mxu0 0
      %2936 = vmatmul.mubr.bf16.gmra.mxu0 %v2808
      %v2937 = vpop.f32.mrf.mxu0
      %v2938 = vadd.f32 %v2853, %v2937
      %v2939 = vpop.f32.mrf.mxu0
      %v2940 = vpop.f32.mrf.mxu0
      %v2941 = vadd.f32 %v2853, %v2940
      %v2942 = vpop.f32.mrf.mxu0
      %2943 = vmatprep.mubr.bf16.mxu0 0
      %2944 = vmatmul.mubr.bf16.gmra.mxu0 %v2809
      %v2945 = vpop.f32.mrf.mxu0
      %v2946 = vadd.f32 %v2853, %v2945
      %v2947 = vpop.f32.mrf.mxu0
      %v2948 = vpop.f32.mrf.mxu0
      %v2949 = vadd.f32 %v2853, %v2948
      %v2950 = vpop.f32.mrf.mxu0
      %2951 = vmatprep.mubr.bf16.mxu0 0
      %2952 = vmatmul.mubr.bf16.gmra.mxu0 %v2810
      %v2953 = vpop.f32.mrf.mxu0
      %v2954 = vadd.f32 %v2853, %v2953
      %v2955 = vpop.f32.mrf.mxu0
      %v2956 = vpop.f32.mrf.mxu0
      %v2957 = vadd.f32 %v2853, %v2956
      %v2958 = vpop.f32.mrf.mxu0
      %2959 = vmatprep.mubr.bf16.mxu0 0
      %2960 = vmatmul.mubr.bf16.gmra.mxu0 %v2811
      %v2961 = vpop.f32.mrf.mxu0
      %v2962 = vadd.f32 %v2853, %v2961
      %v2963 = vpop.f32.mrf.mxu0
      %v2964 = vpop.f32.mrf.mxu0
      %v2965 = vadd.f32 %v2853, %v2964
      %v2966 = vpop.f32.mrf.mxu0
      %2967 = vmatprep.mubr.bf16.mxu0 0
      %2968 = vmatmul.mubr.bf16.gmra.mxu0 %v2812
      %v2969 = vpop.f32.mrf.mxu0
      %v2970 = vadd.f32 %v2853, %v2969
      %v2971 = vpop.f32.mrf.mxu0
      %v2972 = vpop.f32.mrf.mxu0
      %v2973 = vadd.f32 %v2853, %v2972
      %v2974 = vpop.f32.mrf.mxu0
      %2975 = vmatprep.mubr.bf16.mxu0 0
      %2976 = vmatmul.mubr.bf16.gmra.mxu0 %v2813
      %v2977 = vpop.f32.mrf.mxu0
      %v2978 = vadd.f32 %v2853, %v2977
      %v2979 = vpop.f32.mrf.mxu0
      %v2980 = vpop.f32.mrf.mxu0
      %v2981 = vadd.f32 %v2853, %v2980
      %v2982 = vpop.f32.mrf.mxu0
      %2983 = vmatprep.mubr.bf16.mxu0 0
      %2984 = vmatmul.mubr.bf16.gmra.mxu0 %v2814
      %v2985 = vpop.f32.mrf.mxu0
      %v2986 = vadd.f32 %v2853, %v2985
      %v2987 = vpop.f32.mrf.mxu0
      %v2988 = vpop.f32.mrf.mxu0
      %v2989 = vadd.f32 %v2853, %v2988
      %v2990 = vpop.f32.mrf.mxu0
      %2991 = vmatprep.mubr.bf16.mxu0 0
      %2992 = vmatmul.mubr.bf16.gmra.mxu0 %v2815
      %v2993 = vpop.f32.mrf.mxu0
      %v2994 = vadd.f32 %v2853, %v2993
      %v2995 = vpop.f32.mrf.mxu0
      %v2996 = vpop.f32.mrf.mxu0
      %v2997 = vadd.f32 %v2853, %v2996
      %v2998 = vpop.f32.mrf.mxu0
      %2999 = vmatprep.mubr.bf16.mxu0 0
      %3000 = vmatmul.mubr.bf16.gmra.mxu0 %v2816
      %v3001 = vpop.f32.mrf.mxu0
      %v3002 = vadd.f32 %v2853, %v3001
      %v3003 = vpop.f32.mrf.mxu0
      %v3004 = vpop.f32.mrf.mxu0
      %v3005 = vadd.f32 %v2853, %v3004
      %v3006 = vpop.f32.mrf.mxu0
      %3007 = vmatprep.mubr.bf16.mxu0 0
      %3008 = vmatmul.mubr.bf16.gmra.mxu0 %v2817
      %v3009 = vpop.f32.mrf.mxu0
      %v3010 = vadd.f32 %v2853, %v3009
      %v3011 = vpop.f32.mrf.mxu0
      %v3012 = vpop.f32.mrf.mxu0
      %v3013 = vadd.f32 %v2853, %v3012
      %v3014 = vpop.f32.mrf.mxu0
      %3015 = vmatprep.mubr.bf16.mxu0 0
      %3016 = vmatmul.mubr.bf16.gmra.mxu0 %v2818
      %v3017 = vpop.f32.mrf.mxu0
      %v3018 = vadd.f32 %v2853, %v3017
      %v3019 = vpop.f32.mrf.mxu0
      %v3020 = vpop.f32.mrf.mxu0
      %v3021 = vadd.f32 %v2853, %v3020
      %v3022 = vpop.f32.mrf.mxu0
      %3023 = vmatprep.mubr.bf16.mxu0 0
      %3024 = vmatmul.mubr.bf16.gmra.mxu0 %v2819
      %v3025 = vpop.f32.mrf.mxu0
      %v3026 = vadd.f32 %v2853, %v3025
      %v3027 = vpop.f32.mrf.mxu0
      %v3028 = vpop.f32.mrf.mxu0
      %v3029 = vadd.f32 %v2853, %v3028
      %v3030 = vpop.f32.mrf.mxu0
      %3031 = vmatprep.mubr.bf16.mxu0 0
      %3032 = vmatmul.mubr.bf16.gmra.mxu0 %v2820
      %v3033 = vpop.f32.mrf.mxu0
      %v3034 = vadd.f32 %v2853, %v3033
      %v3035 = vpop.f32.mrf.mxu0
      %v3036 = vpop.f32.mrf.mxu0
      %v3037 = vadd.f32 %v2853, %v3036
      %v3038 = vpop.f32.mrf.mxu0
      %3039 = vmatprep.mubr.bf16.mxu0 0
      %3040 = vmatmul.mubr.bf16.gmra.mxu0 %v2821
      %v3041 = vpop.f32.mrf.mxu0
      %v3042 = vadd.f32 %v2853, %v3041
      %v3043 = vpop.f32.mrf.mxu0
      %v3044 = vpop.f32.mrf.mxu0
      %v3045 = vadd.f32 %v2853, %v3044
      %v3046 = vpop.f32.mrf.mxu0
      %3047 = vmatprep.mubr.bf16.mxu0 0
      %3048 = vmatmul.mubr.bf16.gmra.mxu0 %v2822
      %v3049 = vpop.f32.mrf.mxu0
      %v3050 = vadd.f32 %v2853, %v3049
      %v3051 = vpop.f32.mrf.mxu0
      %v3052 = vpop.f32.mrf.mxu0
      %v3053 = vadd.f32 %v2853, %v3052
      %v3054 = vpop.f32.mrf.mxu0
      %3055 = vmatprep.mubr.bf16.mxu0 0
      %3056 = vmatmul.mubr.bf16.gmra.mxu0 %v2823
      %v3057 = vpop.f32.mrf.mxu0
      %v3058 = vadd.f32 %v2853, %v3057
      %v3059 = vpop.f32.mrf.mxu0
      %v3060 = vpop.f32.mrf.mxu0
      %v3061 = vadd.f32 %v2853, %v3060
      %v3062 = vpop.f32.mrf.mxu0
      %3063 = vmatprep.mubr.bf16.mxu0 0
      %3064 = vmatmul.mubr.bf16.gmra.mxu0 %v2824
      %v3065 = vpop.f32.mrf.mxu0
      %v3066 = vadd.f32 %v2853, %v3065
      %v3067 = vpop.f32.mrf.mxu0
      %v3068 = vpop.f32.mrf.mxu0
      %v3069 = vadd.f32 %v2853, %v3068
      %v3070 = vpop.f32.mrf.mxu0
      %3071 = vmatprep.mubr.bf16.mxu0 0
      %3072 = vmatmul.mubr.bf16.gmra.mxu0 %v2825
      %v3073 = vpop.f32.mrf.mxu0
      %v3074 = vadd.f32 %v2853, %v3073
      %v3075 = vpop.f32.mrf.mxu0
      %v3076 = vpop.f32.mrf.mxu0
      %v3077 = vadd.f32 %v2853, %v3076
      %v3078 = vpop.f32.mrf.mxu0
      %3079 = vmatprep.mubr.bf16.mxu0 0
      %3080 = vmatmul.mubr.bf16.gmra.mxu0 %v2826
      %v3081 = vpop.f32.mrf.mxu0
      %v3082 = vadd.f32 %v2853, %v3081
      %v3083 = vpop.f32.mrf.mxu0
      %v3084 = vpop.f32.mrf.mxu0
      %v3085 = vadd.f32 %v2853, %v3084
      %v3086 = vpop.f32.mrf.mxu0
      %3087 = vmatprep.mubr.bf16.mxu0 0
      %3088 = vmatmul.mubr.bf16.gmra.mxu0 %v2827
      %v3089 = vpop.f32.mrf.mxu0
      %v3090 = vadd.f32 %v2853, %v3089
      %v3091 = vpop.f32.mrf.mxu0
      %v3092 = vpop.f32.mrf.mxu0
      %v3093 = vadd.f32 %v2853, %v3092
      %v3094 = vpop.f32.mrf.mxu0
      %3095 = vmatprep.mubr.bf16.mxu0 0
      %3096 = vmatmul.mubr.bf16.gmra.mxu0 %v2828
      %v3097 = vpop.f32.mrf.mxu0
      %v3098 = vadd.f32 %v2853, %v3097
      %v3099 = vpop.f32.mrf.mxu0
      %v3100 = vpop.f32.mrf.mxu0
      %v3101 = vadd.f32 %v2853, %v3100
      %v3102 = vpop.f32.mrf.mxu0
      %3103 = vmatprep.mubr.bf16.mxu0 0
      %3104 = vmatmul.mubr.bf16.gmra.mxu0 %v2829
      %v3105 = vpop.f32.mrf.mxu0
      %v3106 = vadd.f32 %v2853, %v3105
      %v3107 = vpop.f32.mrf.mxu0
      %v3108 = vpop.f32.mrf.mxu0
      %v3109 = vadd.f32 %v2853, %v3108
      %v3110 = vpop.f32.mrf.mxu0
      %3111 = vmatprep.mubr.bf16.mxu0 0
      %3112 = vmatmul.mubr.bf16.gmra.mxu0 %v2830
      %v3113 = vpop.f32.mrf.mxu0
      %v3114 = vadd.f32 %v2853, %v3113
      %v3115 = vpop.f32.mrf.mxu0
      %v3116 = vpop.f32.mrf.mxu0
      %v3117 = vadd.f32 %v2853, %v3116
      %v3118 = vpop.f32.mrf.mxu0
      %3119 = vmatprep.mubr.bf16.mxu0 0
      %3120 = vmatmul.mubr.bf16.gmra.mxu0 %v2831
      %v3121 = vpop.f32.mrf.mxu0
      %v3122 = vadd.f32 %v2853, %v3121
      %v3123 = vpop.f32.mrf.mxu0
      %v3124 = vpop.f32.mrf.mxu0
      %v3125 = vadd.f32 %v2853, %v3124
      %v3126 = vpop.f32.mrf.mxu0
      %3127 = vdwg.mxu0
      %v3128 = vmax.f32 %v2938, 0.0
      %v3129 = vmax.f32 %v2941, 0.0
      %v3130 = vmax.f32 %v2946, 0.0
      %v3131 = vmax.f32 %v2949, 0.0
      %v3132 = vmax.f32 %v2954, 0.0
      %v3133 = vmax.f32 %v2957, 0.0
      %v3134 = vmax.f32 %v2962, 0.0
      %v3135 = vmax.f32 %v2965, 0.0
      %v3136 = vmax.f32 %v2970, 0.0
      %v3137 = vmax.f32 %v2973, 0.0
      %v3138 = vmax.f32 %v2978, 0.0
      %v3139 = vmax.f32 %v2981, 0.0
      %v3140 = vmax.f32 %v2986, 0.0
      %v3141 = vmax.f32 %v2989, 0.0
      %v3142 = vmax.f32 %v2994, 0.0
      %v3143 = vmax.f32 %v2997, 0.0
      %v3144 = vmax.f32 %v3002, 0.0
      %v3145 = vmax.f32 %v3005, 0.0
      %v3146 = vmax.f32 %v3010, 0.0
      %v3147 = vmax.f32 %v3013, 0.0
      %v3148 = vmax.f32 %v3018, 0.0
      %v3149 = vmax.f32 %v3021, 0.0
      %v3150 = vmax.f32 %v3026, 0.0
      %v3151 = vmax.f32 %v3029, 0.0
      %v3152 = vmax.f32 %v3034, 0.0
      %v3153 = vmax.f32 %v3037, 0.0
      %v3154 = vmax.f32 %v3042, 0.0
      %v3155 = vmax.f32 %v3045, 0.0
      %v3156 = vmax.f32 %v3050, 0.0
      %v3157 = vmax.f32 %v3053, 0.0
      %v3158 = vmax.f32 %v3058, 0.0
      %v3159 = vmax.f32 %v3061, 0.0
      %v3160 = vmax.f32 %v3066, 0.0
      %v3161 = vmax.f32 %v3069, 0.0
      %v3162 = vmax.f32 %v3074, 0.0
      %v3163 = vmax.f32 %v3077, 0.0
      %v3164 = vmax.f32 %v3082, 0.0
      %v3165 = vmax.f32 %v3085, 0.0
      %v3166 = vmax.f32 %v3090, 0.0
      %v3167 = vmax.f32 %v3093, 0.0
      %v3168 = vmax.f32 %v3098, 0.0
      %v3169 = vmax.f32 %v3101, 0.0
      %v3170 = vmax.f32 %v3106, 0.0
      %v3171 = vmax.f32 %v3109, 0.0
      %v3172 = vmax.f32 %v3114, 0.0
      %v3173 = vmax.f32 %v3117, 0.0
      %v3174 = vmax.f32 %v3122, 0.0
      %v3175 = vmax.f32 %v3125, 0.0
      %v3176 = vpack.c.bf16 %v2713, %v2712
      %v3177 = vpack.c.bf16 %v2715, %v2714
      %v3178 = vpack.c.bf16 %v2717, %v2716
      %v3179 = vpack.c.bf16 %v2719, %v2718
      %v3180 = vpack.c.bf16 %v2721, %v2720
      %v3181 = vpack.c.bf16 %v2723, %v2722
      %v3182 = vpack.c.bf16 %v2725, %v2724
      %v3183 = vpack.c.bf16 %v2727, %v2726
      %v3184 = vpack.c.bf16 %v2729, %v2728
      %v3185 = vpack.c.bf16 %v2731, %v2730
      %v3186 = vpack.c.bf16 %v2733, %v2732
      %v3187 = vpack.c.bf16 %v2735, %v2734
      %v3188 = vpack.c.bf16 %v2737, %v2736
      %v3189 = vpack.c.bf16 %v2739, %v2738
      %v3190 = vpack.c.bf16 %v2741, %v2740
      %v3191 = vpack.c.bf16 %v2743, %v2742
      %v3192 = vpack.c.bf16 %v2745, %v2744
      %v3193 = vpack.c.bf16 %v2747, %v2746
      %v3194 = vpack.c.bf16 %v2749, %v2748
      %v3195 = vpack.c.bf16 %v2751, %v2750
      %v3196 = vpack.c.bf16 %v2753, %v2752
      %v3197 = vpack.c.bf16 %v2755, %v2754
      %v3198 = vpack.c.bf16 %v2757, %v2756
      %v3199 = vpack.c.bf16 %v2759, %v2758
      %v3200 = vpack.c.bf16 %v3129, %v3128
      %v3201 = vpack.c.bf16 %v3131, %v3130
      %v3202 = vpack.c.bf16 %v3133, %v3132
      %v3203 = vpack.c.bf16 %v3135, %v3134
      %v3204 = vpack.c.bf16 %v3137, %v3136
      %v3205 = vpack.c.bf16 %v3139, %v3138
      %v3206 = vpack.c.bf16 %v3141, %v3140
      %v3207 = vpack.c.bf16 %v3143, %v3142
      %v3208 = vpack.c.bf16 %v3145, %v3144
      %v3209 = vpack.c.bf16 %v3147, %v3146
      %v3210 = vpack.c.bf16 %v3149, %v3148
      %v3211 = vpack.c.bf16 %v3151, %v3150
      %v3212 = vpack.c.bf16 %v3153, %v3152
      %v3213 = vpack.c.bf16 %v3155, %v3154
      %v3214 = vpack.c.bf16 %v3157, %v3156
      %v3215 = vpack.c.bf16 %v3159, %v3158
      %v3216 = vpack.c.bf16 %v3161, %v3160
      %v3217 = vpack.c.bf16 %v3163, %v3162
      %v3218 = vpack.c.bf16 %v3165, %v3164
      %v3219 = vpack.c.bf16 %v3167, %v3166
      %v3220 = vpack.c.bf16 %v3169, %v3168
      %v3221 = vpack.c.bf16 %v3171, %v3170
      %v3222 = vpack.c.bf16 %v3173, %v3172
      %v3223 = vpack.c.bf16 %v3175, %v3174
      %v3224 = vld [vmem:[%s12] sm:$0xf]
      %v3225 = vld [vmem:[%s12 + $0x4] sm:$0xf]
      %v3226 = vld [vmem:[%s12 + $0x8] sm:$0xf]
      %v3227 = vld [vmem:[%s12 + $0xc] sm:$0xf]
      %v3228 = vld [vmem:[%s12 + $0x10] sm:$0xf]
      %v3229 = vld [vmem:[%s12 + $0x14] sm:$0xf]
      %v3230 = vld [vmem:[%s12 + $0x18] sm:$0xf]
      %v3231 = vld [vmem:[%s12 + $0x1c] sm:$0xf]
      %v3232 = vld [vmem:[%s12 + $0x20] sm:$0xf]
      %v3233 = vld [vmem:[%s12 + $0x24] sm:$0xf]
      %v3234 = vld [vmem:[%s12 + $0x28] sm:$0xf]
      %v3235 = vld [vmem:[%s12 + $0x2c] sm:$0xf]
      %v3236 = vld [vmem:[%s12 + $0x30] sm:$0xf]
      %v3237 = vld [vmem:[%s12 + $0x34] sm:$0xf]
      %v3238 = vld [vmem:[%s12 + $0x38] sm:$0xf]
      %v3239 = vld [vmem:[%s12 + $0x3c] sm:$0xf]
      %v3240 = vld [vmem:[%s12 + $0x40] sm:$0xf]
      %v3241 = vld [vmem:[%s12 + $0x44] sm:$0xf]
      %v3242 = vld [vmem:[%s12 + $0x48] sm:$0xf]
      %v3243 = vld [vmem:[%s12 + $0x4c] sm:$0xf]
      %v3244 = vld [vmem:[%s12 + $0x50] sm:$0xf]
      %v3245 = vld [vmem:[%s12 + $0x54] sm:$0xf]
      %v3246 = vld [vmem:[%s12 + $0x58] sm:$0xf]
      %v3247 = vld [vmem:[%s12 + $0x5c] sm:$0xf]
      %v3248 = vld [vmem:[%s12 + $0x60] sm:$0xf]
      %v3249 = vld [vmem:[%s12 + $0x64] sm:$0xf]
      %v3250 = vld [vmem:[%s12 + $0x68] sm:$0xf]
      %v3251 = vld [vmem:[%s12 + $0x6c] sm:$0xf]
      %v3252 = vld [vmem:[%s12 + $0x70] sm:$0xf]
      %v3253 = vld [vmem:[%s12 + $0x74] sm:$0xf]
      %v3254 = vld [vmem:[%s12 + $0x78] sm:$0xf]
      %v3255 = vld [vmem:[%s12 + $0x7c] sm:$0xf]
      %v3256 = vld [vmem:[%s13] sm:$0x1]
      %v3258 = vlaneseq
      %v3259 = vshrl.u32 %v3258, 7
      %v3260 = vsub.s32 0, %v3259
      %v3261 = vrot.slane %v3256, %v3260
      %v3295 = vunpack.c.l.b16 %v3224
      %v3296 = vunpack.c.l.b16 %v3225
      %v3297 = vunpack.c.l.b16 %v3226
      %v3298 = vunpack.c.l.b16 %v3227
      %v3299 = vunpack.c.l.b16 %v3228
      %v3300 = vunpack.c.l.b16 %v3229
      %v3301 = vunpack.c.l.b16 %v3230
      %v3302 = vunpack.c.l.b16 %v3231
      %v3303 = vunpack.c.l.b16 %v3232
      %v3304 = vunpack.c.l.b16 %v3233
      %v3305 = vunpack.c.l.b16 %v3234
      %v3306 = vunpack.c.l.b16 %v3235
      %v3307 = vunpack.c.l.b16 %v3236
      %v3308 = vunpack.c.l.b16 %v3237
      %v3309 = vunpack.c.l.b16 %v3238
      %v3310 = vunpack.c.l.b16 %v3239
      %v3311 = vunpack.c.l.b16 %v3240
      %v3312 = vunpack.c.l.b16 %v3241
      %v3313 = vunpack.c.l.b16 %v3242
      %v3314 = vunpack.c.l.b16 %v3243
      %v3315 = vunpack.c.l.b16 %v3244
      %v3316 = vunpack.c.l.b16 %v3245
      %v3317 = vunpack.c.l.b16 %v3246
      %v3318 = vunpack.c.l.b16 %v3247
      %v3319 = vunpack.c.l.b16 %v3248
      %v3320 = vunpack.c.l.b16 %v3249
      %v3321 = vunpack.c.l.b16 %v3250
      %v3322 = vunpack.c.l.b16 %v3251
      %v3323 = vunpack.c.l.b16 %v3252
      %v3324 = vunpack.c.l.b16 %v3253
      %v3325 = vunpack.c.l.b16 %v3254
      %v3326 = vunpack.c.l.b16 %v3255
      %v3327 = vpack.c.b16 %v3296, %v3295
      %v3328 = vpack.c.b16 %v3298, %v3297
      %v3329 = vpack.c.b16 %v3300, %v3299
      %v3330 = vpack.c.b16 %v3302, %v3301
      %v3331 = vpack.c.b16 %v3304, %v3303
      %v3332 = vpack.c.b16 %v3306, %v3305
      %v3333 = vpack.c.b16 %v3308, %v3307
      %v3334 = vpack.c.b16 %v3310, %v3309
      %v3335 = vpack.c.b16 %v3312, %v3311
      %v3336 = vpack.c.b16 %v3314, %v3313
      %v3337 = vpack.c.b16 %v3316, %v3315
      %v3338 = vpack.c.b16 %v3318, %v3317
      %v3339 = vpack.c.b16 %v3320, %v3319
      %v3340 = vpack.c.b16 %v3322, %v3321
      %v3341 = vpack.c.b16 %v3324, %v3323
      %v3342 = vpack.c.b16 %v3326, %v3325
      %3359 = vmatprep.subr.bf16.mxu0 0
      %3360 = vmatpush1.bf16.msra.mxu0 %v3334
      %3361 = vmatprep.subr.bf16.mxu0 0
      %3362 = vmatpush1.bf16.msra.mxu0 %v3333
      %3363 = vmatprep.subr.bf16.mxu0 0
      %3364 = vmatpush1.bf16.msra.mxu0 %v3332
      %3365 = vmatprep.subr.bf16.mxu0 0
      %3366 = vmatpush1.bf16.msra.mxu0 %v3331
      %3367 = vmatprep.subr.bf16.mxu0 0
      %3368 = vmatpush1.bf16.msra.mxu0 %v3330
      %3369 = vmatprep.subr.bf16.mxu0 0
      %3370 = vmatpush1.bf16.msra.mxu0 %v3329
      %3371 = vmatprep.subr.bf16.mxu0 0
      %3372 = vmatpush1.bf16.msra.mxu0 %v3328
      %3373 = vmatprep.subr.bf16.mxu0 0
      %3374 = vmatpush1.bf16.msra.mxu0 %v3327
      %3375 = vmatprep.subr.bf16.mxu0 0
      %3376 = vmatpush2.bf16.msra.mxu0 %v3342
      %3377 = vmatprep.subr.bf16.mxu0 0
      %3378 = vmatpush2.bf16.msra.mxu0 %v3341
      %3379 = vmatprep.subr.bf16.mxu0 0
      %3380 = vmatpush2.bf16.msra.mxu0 %v3340
      %3381 = vmatprep.subr.bf16.mxu0 0
      %3382 = vmatpush2.bf16.msra.mxu0 %v3339
      %3383 = vmatprep.subr.bf16.mxu0 0
      %3384 = vmatpush2.bf16.msra.mxu0 %v3338
      %3385 = vmatprep.subr.bf16.mxu0 0
      %3386 = vmatpush2.bf16.msra.mxu0 %v3337
      %3387 = vmatprep.subr.bf16.mxu0 0
      %3388 = vmatpush2.bf16.msra.mxu0 %v3336
      %3389 = vmatprep.subr.bf16.mxu0 0
      %3390 = vmatpush2.bf16.msra.mxu0 %v3335
      %3391 = vmatprep.mubr.bf16.mxu0 %v3200
      %3392 = vmatmul.mubr.bf16.gmra.mxu0 %v3176
      %v3393 = vpop.f32.mrf.mxu0
      %v3394 = vadd.f32 %v3261, %v3393
      %v3395 = vpop.f32.mrf.mxu0
      %v3396 = vpop.f32.mrf.mxu0
      %v3397 = vadd.f32 %v3261, %v3396
      %v3398 = vpop.f32.mrf.mxu0
      %3399 = vmatprep.mubr.bf16.mxu0 %v3201
      %3400 = vmatmul.mubr.bf16.gmra.mxu0 %v3177
      %v3401 = vpop.f32.mrf.mxu0
      %v3402 = vadd.f32 %v3261, %v3401
      %v3403 = vpop.f32.mrf.mxu0
      %v3404 = vpop.f32.mrf.mxu0
      %v3405 = vadd.f32 %v3261, %v3404
      %v3406 = vpop.f32.mrf.mxu0
      %3407 = vmatprep.mubr.bf16.mxu0 %v3202
      %3408 = vmatmul.mubr.bf16.gmra.mxu0 %v3178
      %v3409 = vpop.f32.mrf.mxu0
      %v3410 = vadd.f32 %v3261, %v3409
      %v3411 = vpop.f32.mrf.mxu0
      %v3412 = vpop.f32.mrf.mxu0
      %v3413 = vadd.f32 %v3261, %v3412
      %v3414 = vpop.f32.mrf.mxu0
      %3415 = vmatprep.mubr.bf16.mxu0 %v3203
      %3416 = vmatmul.mubr.bf16.gmra.mxu0 %v3179
      %v3417 = vpop.f32.mrf.mxu0
      %v3418 = vadd.f32 %v3261, %v3417
      %v3419 = vpop.f32.mrf.mxu0
      %v3420 = vpop.f32.mrf.mxu0
      %v3421 = vadd.f32 %v3261, %v3420
      %v3422 = vpop.f32.mrf.mxu0
      %3423 = vmatprep.mubr.bf16.mxu0 %v3204
      %3424 = vmatmul.mubr.bf16.gmra.mxu0 %v3180
      %v3425 = vpop.f32.mrf.mxu0
      %v3426 = vadd.f32 %v3261, %v3425
      %v3427 = vpop.f32.mrf.mxu0
      %v3428 = vpop.f32.mrf.mxu0
      %v3429 = vadd.f32 %v3261, %v3428
      %v3430 = vpop.f32.mrf.mxu0
      %3431 = vmatprep.mubr.bf16.mxu0 %v3205
      %3432 = vmatmul.mubr.bf16.gmra.mxu0 %v3181
      %v3433 = vpop.f32.mrf.mxu0
      %v3434 = vadd.f32 %v3261, %v3433
      %v3435 = vpop.f32.mrf.mxu0
      %v3436 = vpop.f32.mrf.mxu0
      %v3437 = vadd.f32 %v3261, %v3436
      %v3438 = vpop.f32.mrf.mxu0
      %3439 = vmatprep.mubr.bf16.mxu0 %v3206
      %3440 = vmatmul.mubr.bf16.gmra.mxu0 %v3182
      %v3441 = vpop.f32.mrf.mxu0
      %v3442 = vadd.f32 %v3261, %v3441
      %v3443 = vpop.f32.mrf.mxu0
      %v3444 = vpop.f32.mrf.mxu0
      %v3445 = vadd.f32 %v3261, %v3444
      %v3446 = vpop.f32.mrf.mxu0
      %3447 = vmatprep.mubr.bf16.mxu0 %v3207
      %3448 = vmatmul.mubr.bf16.gmra.mxu0 %v3183
      %v3449 = vpop.f32.mrf.mxu0
      %v3450 = vadd.f32 %v3261, %v3449
      %v3451 = vpop.f32.mrf.mxu0
      %v3452 = vpop.f32.mrf.mxu0
      %v3453 = vadd.f32 %v3261, %v3452
      %v3454 = vpop.f32.mrf.mxu0
      %3455 = vmatprep.mubr.bf16.mxu0 %v3208
      %3456 = vmatmul.mubr.bf16.gmra.mxu0 %v3184
      %v3457 = vpop.f32.mrf.mxu0
      %v3458 = vadd.f32 %v3261, %v3457
      %v3459 = vpop.f32.mrf.mxu0
      %v3460 = vpop.f32.mrf.mxu0
      %v3461 = vadd.f32 %v3261, %v3460
      %v3462 = vpop.f32.mrf.mxu0
      %3463 = vmatprep.mubr.bf16.mxu0 %v3209
      %3464 = vmatmul.mubr.bf16.gmra.mxu0 %v3185
      %v3465 = vpop.f32.mrf.mxu0
      %v3466 = vadd.f32 %v3261, %v3465
      %v3467 = vpop.f32.mrf.mxu0
      %v3468 = vpop.f32.mrf.mxu0
      %v3469 = vadd.f32 %v3261, %v3468
      %v3470 = vpop.f32.mrf.mxu0
      %3471 = vmatprep.mubr.bf16.mxu0 %v3210
      %3472 = vmatmul.mubr.bf16.gmra.mxu0 %v3186
      %v3473 = vpop.f32.mrf.mxu0
      %v3474 = vadd.f32 %v3261, %v3473
      %v3475 = vpop.f32.mrf.mxu0
      %v3476 = vpop.f32.mrf.mxu0
      %v3477 = vadd.f32 %v3261, %v3476
      %v3478 = vpop.f32.mrf.mxu0
      %3479 = vmatprep.mubr.bf16.mxu0 %v3211
      %3480 = vmatmul.mubr.bf16.gmra.mxu0 %v3187
      %v3481 = vpop.f32.mrf.mxu0
      %v3482 = vadd.f32 %v3261, %v3481
      %v3483 = vpop.f32.mrf.mxu0
      %v3484 = vpop.f32.mrf.mxu0
      %v3485 = vadd.f32 %v3261, %v3484
      %v3486 = vpop.f32.mrf.mxu0
      %3487 = vmatprep.mubr.bf16.mxu0 %v3212
      %3488 = vmatmul.mubr.bf16.gmra.mxu0 %v3188
      %v3489 = vpop.f32.mrf.mxu0
      %v3490 = vadd.f32 %v3261, %v3489
      %v3491 = vpop.f32.mrf.mxu0
      %v3492 = vpop.f32.mrf.mxu0
      %v3493 = vadd.f32 %v3261, %v3492
      %v3494 = vpop.f32.mrf.mxu0
      %3495 = vmatprep.mubr.bf16.mxu0 %v3213
      %3496 = vmatmul.mubr.bf16.gmra.mxu0 %v3189
      %v3497 = vpop.f32.mrf.mxu0
      %v3498 = vadd.f32 %v3261, %v3497
      %v3499 = vpop.f32.mrf.mxu0
      %v3500 = vpop.f32.mrf.mxu0
      %v3501 = vadd.f32 %v3261, %v3500
      %v3502 = vpop.f32.mrf.mxu0
      %3503 = vmatprep.mubr.bf16.mxu0 %v3214
      %3504 = vmatmul.mubr.bf16.gmra.mxu0 %v3190
      %v3505 = vpop.f32.mrf.mxu0
      %v3506 = vadd.f32 %v3261, %v3505
      %v3507 = vpop.f32.mrf.mxu0
      %v3508 = vpop.f32.mrf.mxu0
      %v3509 = vadd.f32 %v3261, %v3508
      %v3510 = vpop.f32.mrf.mxu0
      %3511 = vmatprep.mubr.bf16.mxu0 %v3215
      %3512 = vmatmul.mubr.bf16.gmra.mxu0 %v3191
      %v3513 = vpop.f32.mrf.mxu0
      %v3514 = vadd.f32 %v3261, %v3513
      %v3515 = vpop.f32.mrf.mxu0
      %v3516 = vpop.f32.mrf.mxu0
      %v3517 = vadd.f32 %v3261, %v3516
      %v3518 = vpop.f32.mrf.mxu0
      %3519 = vmatprep.mubr.bf16.mxu0 %v3216
      %3520 = vmatmul.mubr.bf16.gmra.mxu0 %v3192
      %v3521 = vpop.f32.mrf.mxu0
      %v3522 = vadd.f32 %v3261, %v3521
      %v3523 = vpop.f32.mrf.mxu0
      %v3524 = vpop.f32.mrf.mxu0
      %v3525 = vadd.f32 %v3261, %v3524
      %v3526 = vpop.f32.mrf.mxu0
      %3527 = vmatprep.mubr.bf16.mxu0 %v3217
      %3528 = vmatmul.mubr.bf16.gmra.mxu0 %v3193
      %v3529 = vpop.f32.mrf.mxu0
      %v3530 = vadd.f32 %v3261, %v3529
      %v3531 = vpop.f32.mrf.mxu0
      %v3532 = vpop.f32.mrf.mxu0
      %v3533 = vadd.f32 %v3261, %v3532
      %v3534 = vpop.f32.mrf.mxu0
      %3535 = vmatprep.mubr.bf16.mxu0 %v3218
      %3536 = vmatmul.mubr.bf16.gmra.mxu0 %v3194
      %v3537 = vpop.f32.mrf.mxu0
      %v3538 = vadd.f32 %v3261, %v3537
      %v3539 = vpop.f32.mrf.mxu0
      %v3540 = vpop.f32.mrf.mxu0
      %v3541 = vadd.f32 %v3261, %v3540
      %v3542 = vpop.f32.mrf.mxu0
      %3543 = vmatprep.mubr.bf16.mxu0 %v3219
      %3544 = vmatmul.mubr.bf16.gmra.mxu0 %v3195
      %v3545 = vpop.f32.mrf.mxu0
      %v3546 = vadd.f32 %v3261, %v3545
      %v3547 = vpop.f32.mrf.mxu0
      %v3548 = vpop.f32.mrf.mxu0
      %v3549 = vadd.f32 %v3261, %v3548
      %v3550 = vpop.f32.mrf.mxu0
      %3551 = vmatprep.mubr.bf16.mxu0 %v3220
      %3552 = vmatmul.mubr.bf16.gmra.mxu0 %v3196
      %v3553 = vpop.f32.mrf.mxu0
      %v3554 = vadd.f32 %v3261, %v3553
      %v3555 = vpop.f32.mrf.mxu0
      %v3556 = vpop.f32.mrf.mxu0
      %v3557 = vadd.f32 %v3261, %v3556
      %v3558 = vpop.f32.mrf.mxu0
      %3559 = vmatprep.mubr.bf16.mxu0 %v3221
      %3560 = vmatmul.mubr.bf16.gmra.mxu0 %v3197
      %v3561 = vpop.f32.mrf.mxu0
      %v3562 = vadd.f32 %v3261, %v3561
      %v3563 = vpop.f32.mrf.mxu0
      %v3564 = vpop.f32.mrf.mxu0
      %v3565 = vadd.f32 %v3261, %v3564
      %v3566 = vpop.f32.mrf.mxu0
      %3567 = vmatprep.mubr.bf16.mxu0 %v3222
      %3568 = vmatmul.mubr.bf16.gmra.mxu0 %v3198
      %v3569 = vpop.f32.mrf.mxu0
      %v3570 = vadd.f32 %v3261, %v3569
      %v3571 = vpop.f32.mrf.mxu0
      %v3572 = vpop.f32.mrf.mxu0
      %v3573 = vadd.f32 %v3261, %v3572
      %v3574 = vpop.f32.mrf.mxu0
      %3575 = vmatprep.mubr.bf16.mxu0 %v3223
      %3576 = vmatmul.mubr.bf16.gmra.mxu0 %v3199
      %v3577 = vpop.f32.mrf.mxu0
      %v3578 = vadd.f32 %v3261, %v3577
      %v3579 = vpop.f32.mrf.mxu0
      %v3580 = vpop.f32.mrf.mxu0
      %v3581 = vadd.f32 %v3261, %v3580
      %v3582 = vpop.f32.mrf.mxu0
      %3583 = vdwg.mxu0
      %v3584 = vld [vmem:[%s485] sm:$0xff]
      %v3585 = vld [vmem:[%s485 + $0x8] sm:$0xff]
      %v3586 = vld [vmem:[%s485 + $0x10] sm:$0xff]
      %v3587 = vld [vmem:[%s485 + $0x18] sm:$0xff]
      %v3588 = vld [vmem:[%s485 + $0x20] sm:$0xff]
      %v3589 = vld [vmem:[%s485 + $0x28] sm:$0xff]
      %v3590 = vld [vmem:[%s485 + $0x30] sm:$0xff]
      %v3591 = vld [vmem:[%s485 + $0x38] sm:$0xff]
      %v3592 = vld [vmem:[%s485 + $0x40] sm:$0xff]
      %v3593 = vld [vmem:[%s485 + $0x48] sm:$0xff]
      %v3594 = vld [vmem:[%s485 + $0x50] sm:$0xff]
      %v3595 = vld [vmem:[%s485 + $0x58] sm:$0xff]
      %v3596 = vld [vmem:[%s485 + $0x60] sm:$0xff]
      %v3597 = vld [vmem:[%s485 + $0x68] sm:$0xff]
      %v3598 = vld [vmem:[%s485 + $0x70] sm:$0xff]
      %v3599 = vld [vmem:[%s485 + $0x78] sm:$0xff]
      %v3600 = vld [vmem:[%s485 + $0x80] sm:$0xff]
      %v3601 = vld [vmem:[%s485 + $0x88] sm:$0xff]
      %v3602 = vld [vmem:[%s485 + $0x90] sm:$0xff]
      %v3603 = vld [vmem:[%s485 + $0x98] sm:$0xff]
      %v3604 = vld [vmem:[%s485 + $0xa0] sm:$0xff]
      %v3605 = vld [vmem:[%s485 + $0xa8] sm:$0xff]
      %v3606 = vld [vmem:[%s485 + $0xb0] sm:$0xff]
      %v3607 = vld [vmem:[%s485 + $0xb8] sm:$0xff]
      %v3608 = vld [vmem:[%s485 + $0xc0] sm:$0xff]
      %v3609 = vld [vmem:[%s485 + $0xc8] sm:$0xff]
      %v3610 = vld [vmem:[%s485 + $0xd0] sm:$0xff]
      %v3611 = vld [vmem:[%s485 + $0xd8] sm:$0xff]
      %v3612 = vld [vmem:[%s485 + $0xe0] sm:$0xff]
      %v3613 = vld [vmem:[%s485 + $0xe8] sm:$0xff]
      %v3614 = vld [vmem:[%s485 + $0xf0] sm:$0xff]
      %v3615 = vld [vmem:[%s485 + $0xf8] sm:$0xff]
      %v3616 = vld [vmem:[%s485 + $0x100] sm:$0xff]
      %v3617 = vld [vmem:[%s485 + $0x108] sm:$0xff]
      %v3618 = vld [vmem:[%s485 + $0x110] sm:$0xff]
      %v3619 = vld [vmem:[%s485 + $0x118] sm:$0xff]
      %v3620 = vld [vmem:[%s485 + $0x120] sm:$0xff]
      %v3621 = vld [vmem:[%s485 + $0x128] sm:$0xff]
      %v3622 = vld [vmem:[%s485 + $0x130] sm:$0xff]
      %v3623 = vld [vmem:[%s485 + $0x138] sm:$0xff]
      %v3624 = vld [vmem:[%s485 + $0x140] sm:$0xff]
      %v3625 = vld [vmem:[%s485 + $0x148] sm:$0xff]
      %v3626 = vld [vmem:[%s485 + $0x150] sm:$0xff]
      %v3627 = vld [vmem:[%s485 + $0x158] sm:$0xff]
      %v3628 = vld [vmem:[%s485 + $0x160] sm:$0xff]
      %v3629 = vld [vmem:[%s485 + $0x168] sm:$0xff]
      %v3630 = vld [vmem:[%s485 + $0x170] sm:$0xff]
      %v3631 = vld [vmem:[%s485 + $0x178] sm:$0xff]
      %v3632 = vmax.f32 %v3584, 0.0
      %v3633 = vmax.f32 %v3585, 0.0
      %v3634 = vmax.f32 %v3586, 0.0
      %v3635 = vmax.f32 %v3587, 0.0
      %v3636 = vmax.f32 %v3588, 0.0
      %v3637 = vmax.f32 %v3589, 0.0
      %v3638 = vmax.f32 %v3590, 0.0
      %v3639 = vmax.f32 %v3591, 0.0
      %v3640 = vmax.f32 %v3592, 0.0
      %v3641 = vmax.f32 %v3593, 0.0
      %v3642 = vmax.f32 %v3594, 0.0
      %v3643 = vmax.f32 %v3595, 0.0
      %v3644 = vmax.f32 %v3596, 0.0
      %v3645 = vmax.f32 %v3597, 0.0
      %v3646 = vmax.f32 %v3598, 0.0
      %v3647 = vmax.f32 %v3599, 0.0
      %v3648 = vmax.f32 %v3600, 0.0
      %v3649 = vmax.f32 %v3601, 0.0
      %v3650 = vmax.f32 %v3602, 0.0
      %v3651 = vmax.f32 %v3603, 0.0
      %v3652 = vmax.f32 %v3604, 0.0
      %v3653 = vmax.f32 %v3605, 0.0
      %v3654 = vmax.f32 %v3606, 0.0
      %v3655 = vmax.f32 %v3607, 0.0
      %v3656 = vmax.f32 %v3608, 0.0
      %v3657 = vmax.f32 %v3609, 0.0
      %v3658 = vmax.f32 %v3610, 0.0
      %v3659 = vmax.f32 %v3611, 0.0
      %v3660 = vmax.f32 %v3612, 0.0
      %v3661 = vmax.f32 %v3613, 0.0
      %v3662 = vmax.f32 %v3614, 0.0
      %v3663 = vmax.f32 %v3615, 0.0
      %v3664 = vmax.f32 %v3616, 0.0
      %v3665 = vmax.f32 %v3617, 0.0
      %v3666 = vmax.f32 %v3618, 0.0
      %v3667 = vmax.f32 %v3619, 0.0
      %v3668 = vmax.f32 %v3620, 0.0
      %v3669 = vmax.f32 %v3621, 0.0
      %v3670 = vmax.f32 %v3622, 0.0
      %v3671 = vmax.f32 %v3623, 0.0
      %v3672 = vmax.f32 %v3624, 0.0
      %v3673 = vmax.f32 %v3625, 0.0
      %v3674 = vmax.f32 %v3626, 0.0
      %v3675 = vmax.f32 %v3627, 0.0
      %v3676 = vmax.f32 %v3628, 0.0
      %v3677 = vmax.f32 %v3629, 0.0
      %v3678 = vmax.f32 %v3630, 0.0
      %v3679 = vmax.f32 %v3631, 0.0
      %v3680 = vmin.f32 %v3632, 1.0
      %v3681 = vmin.f32 %v3633, 1.0
      %v3682 = vmin.f32 %v3634, 1.0
      %v3683 = vmin.f32 %v3635, 1.0
      %v3684 = vmin.f32 %v3636, 1.0
      %v3685 = vmin.f32 %v3637, 1.0
      %v3686 = vmin.f32 %v3638, 1.0
      %v3687 = vmin.f32 %v3639, 1.0
      %v3688 = vmin.f32 %v3640, 1.0
      %v3689 = vmin.f32 %v3641, 1.0
      %v3690 = vmin.f32 %v3642, 1.0
      %v3691 = vmin.f32 %v3643, 1.0
      %v3692 = vmin.f32 %v3644, 1.0
      %v3693 = vmin.f32 %v3645, 1.0
      %v3694 = vmin.f32 %v3646, 1.0
      %v3695 = vmin.f32 %v3647, 1.0
      %v3696 = vmin.f32 %v3648, 1.0
      %v3697 = vmin.f32 %v3649, 1.0
      %v3698 = vmin.f32 %v3650, 1.0
      %v3699 = vmin.f32 %v3651, 1.0
      %v3700 = vmin.f32 %v3652, 1.0
      %v3701 = vmin.f32 %v3653, 1.0
      %v3702 = vmin.f32 %v3654, 1.0
      %v3703 = vmin.f32 %v3655, 1.0
      %v3704 = vmin.f32 %v3656, 1.0
      %v3705 = vmin.f32 %v3657, 1.0
      %v3706 = vmin.f32 %v3658, 1.0
      %v3707 = vmin.f32 %v3659, 1.0
      %v3708 = vmin.f32 %v3660, 1.0
      %v3709 = vmin.f32 %v3661, 1.0
      %v3710 = vmin.f32 %v3662, 1.0
      %v3711 = vmin.f32 %v3663, 1.0
      %v3712 = vmin.f32 %v3664, 1.0
      %v3713 = vmin.f32 %v3665, 1.0
      %v3714 = vmin.f32 %v3666, 1.0
      %v3715 = vmin.f32 %v3667, 1.0
      %v3716 = vmin.f32 %v3668, 1.0
      %v3717 = vmin.f32 %v3669, 1.0
      %v3718 = vmin.f32 %v3670, 1.0
      %v3719 = vmin.f32 %v3671, 1.0
      %v3720 = vmin.f32 %v3672, 1.0
      %v3721 = vmin.f32 %v3673, 1.0
      %v3722 = vmin.f32 %v3674, 1.0
      %v3723 = vmin.f32 %v3675, 1.0
      %v3724 = vmin.f32 %v3676, 1.0
      %v3725 = vmin.f32 %v3677, 1.0
      %v3726 = vmin.f32 %v3678, 1.0
      %v3727 = vmin.f32 %v3679, 1.0
      %v3728 = vmax.f32 %v3680, 1e-05
      %v3729 = vmax.f32 %v3681, 1e-05
      %v3730 = vmax.f32 %v3682, 1e-05
      %v3731 = vmax.f32 %v3683, 1e-05
      %v3732 = vmax.f32 %v3684, 1e-05
      %v3733 = vmax.f32 %v3685, 1e-05
      %v3734 = vmax.f32 %v3686, 1e-05
      %v3735 = vmax.f32 %v3687, 1e-05
      %v3736 = vmax.f32 %v3688, 1e-05
      %v3737 = vmax.f32 %v3689, 1e-05
      %v3738 = vmax.f32 %v3690, 1e-05
      %v3739 = vmax.f32 %v3691, 1e-05
      %v3740 = vmax.f32 %v3692, 1e-05
      %v3741 = vmax.f32 %v3693, 1e-05
      %v3742 = vmax.f32 %v3694, 1e-05
      %v3743 = vmax.f32 %v3695, 1e-05
      %v3744 = vmax.f32 %v3696, 1e-05
      %v3745 = vmax.f32 %v3697, 1e-05
      %v3746 = vmax.f32 %v3698, 1e-05
      %v3747 = vmax.f32 %v3699, 1e-05
      %v3748 = vmax.f32 %v3700, 1e-05
      %v3749 = vmax.f32 %v3701, 1e-05
      %v3750 = vmax.f32 %v3702, 1e-05
      %v3751 = vmax.f32 %v3703, 1e-05
      %v3752 = vmax.f32 %v3704, 1e-05
      %v3753 = vmax.f32 %v3705, 1e-05
      %v3754 = vmax.f32 %v3706, 1e-05
      %v3755 = vmax.f32 %v3707, 1e-05
      %v3756 = vmax.f32 %v3708, 1e-05
      %v3757 = vmax.f32 %v3709, 1e-05
      %v3758 = vmax.f32 %v3710, 1e-05
      %v3759 = vmax.f32 %v3711, 1e-05
      %v3760 = vmax.f32 %v3712, 1e-05
      %v3761 = vmax.f32 %v3713, 1e-05
      %v3762 = vmax.f32 %v3714, 1e-05
      %v3763 = vmax.f32 %v3715, 1e-05
      %v3764 = vmax.f32 %v3716, 1e-05
      %v3765 = vmax.f32 %v3717, 1e-05
      %v3766 = vmax.f32 %v3718, 1e-05
      %v3767 = vmax.f32 %v3719, 1e-05
      %v3768 = vmax.f32 %v3720, 1e-05
      %v3769 = vmax.f32 %v3721, 1e-05
      %v3770 = vmax.f32 %v3722, 1e-05
      %v3771 = vmax.f32 %v3723, 1e-05
      %v3772 = vmax.f32 %v3724, 1e-05
      %v3773 = vmax.f32 %v3725, 1e-05
      %v3774 = vmax.f32 %v3726, 1e-05
      %v3775 = vmax.f32 %v3727, 1e-05
      %v3776 = vsub.f32 1.0, %v3680
      %v3777 = vsub.f32 1.0, %v3681
      %v3778 = vsub.f32 1.0, %v3682
      %v3779 = vsub.f32 1.0, %v3683
      %v3780 = vsub.f32 1.0, %v3684
      %v3781 = vsub.f32 1.0, %v3685
      %v3782 = vsub.f32 1.0, %v3686
      %v3783 = vsub.f32 1.0, %v3687
      %v3784 = vsub.f32 1.0, %v3688
      %v3785 = vsub.f32 1.0, %v3689
      %v3786 = vsub.f32 1.0, %v3690
      %v3787 = vsub.f32 1.0, %v3691
      %v3788 = vsub.f32 1.0, %v3692
      %v3789 = vsub.f32 1.0, %v3693
      %v3790 = vsub.f32 1.0, %v3694
      %v3791 = vsub.f32 1.0, %v3695
      %v3792 = vsub.f32 1.0, %v3696
      %v3793 = vsub.f32 1.0, %v3697
      %v3794 = vsub.f32 1.0, %v3698
      %v3795 = vsub.f32 1.0, %v3699
      %v3796 = vsub.f32 1.0, %v3700
      %v3797 = vsub.f32 1.0, %v3701
      %v3798 = vsub.f32 1.0, %v3702
      %v3799 = vsub.f32 1.0, %v3703
      %v3800 = vsub.f32 1.0, %v3704
      %v3801 = vsub.f32 1.0, %v3705
      %v3802 = vsub.f32 1.0, %v3706
      %v3803 = vsub.f32 1.0, %v3707
      %v3804 = vsub.f32 1.0, %v3708
      %v3805 = vsub.f32 1.0, %v3709
      %v3806 = vsub.f32 1.0, %v3710
      %v3807 = vsub.f32 1.0, %v3711
      %v3808 = vsub.f32 1.0, %v3712
      %v3809 = vsub.f32 1.0, %v3713
      %v3810 = vsub.f32 1.0, %v3714
      %v3811 = vsub.f32 1.0, %v3715
      %v3812 = vsub.f32 1.0, %v3716
      %v3813 = vsub.f32 1.0, %v3717
      %v3814 = vsub.f32 1.0, %v3718
      %v3815 = vsub.f32 1.0, %v3719
      %v3816 = vsub.f32 1.0, %v3720
      %v3817 = vsub.f32 1.0, %v3721
      %v3818 = vsub.f32 1.0, %v3722
      %v3819 = vsub.f32 1.0, %v3723
      %v3820 = vsub.f32 1.0, %v3724
      %v3821 = vsub.f32 1.0, %v3725
      %v3822 = vsub.f32 1.0, %v3726
      %v3823 = vsub.f32 1.0, %v3727
      %v3824 = vmax.f32 %v3776, 1e-05
      %v3825 = vmax.f32 %v3777, 1e-05
      %v3826 = vmax.f32 %v3778, 1e-05
      %v3827 = vmax.f32 %v3779, 1e-05
      %v3828 = vmax.f32 %v3780, 1e-05
      %v3829 = vmax.f32 %v3781, 1e-05
      %v3830 = vmax.f32 %v3782, 1e-05
      %v3831 = vmax.f32 %v3783, 1e-05
      %v3832 = vmax.f32 %v3784, 1e-05
      %v3833 = vmax.f32 %v3785, 1e-05
      %v3834 = vmax.f32 %v3786, 1e-05
      %v3835 = vmax.f32 %v3787, 1e-05
      %v3836 = vmax.f32 %v3788, 1e-05
      %v3837 = vmax.f32 %v3789, 1e-05
      %v3838 = vmax.f32 %v3790, 1e-05
      %v3839 = vmax.f32 %v3791, 1e-05
      %v3840 = vmax.f32 %v3792, 1e-05
      %v3841 = vmax.f32 %v3793, 1e-05
      %v3842 = vmax.f32 %v3794, 1e-05
      %v3843 = vmax.f32 %v3795, 1e-05
      %v3844 = vmax.f32 %v3796, 1e-05
      %v3845 = vmax.f32 %v3797, 1e-05
      %v3846 = vmax.f32 %v3798, 1e-05
      %v3847 = vmax.f32 %v3799, 1e-05
      %v3848 = vmax.f32 %v3800, 1e-05
      %v3849 = vmax.f32 %v3801, 1e-05
      %v3850 = vmax.f32 %v3802, 1e-05
      %v3851 = vmax.f32 %v3803, 1e-05
      %v3852 = vmax.f32 %v3804, 1e-05
      %v3853 = vmax.f32 %v3805, 1e-05
      %v3854 = vmax.f32 %v3806, 1e-05
      %v3855 = vmax.f32 %v3807, 1e-05
      %v3856 = vmax.f32 %v3808, 1e-05
      %v3857 = vmax.f32 %v3809, 1e-05
      %v3858 = vmax.f32 %v3810, 1e-05
      %v3859 = vmax.f32 %v3811, 1e-05
      %v3860 = vmax.f32 %v3812, 1e-05
      %v3861 = vmax.f32 %v3813, 1e-05
      %v3862 = vmax.f32 %v3814, 1e-05
      %v3863 = vmax.f32 %v3815, 1e-05
      %v3864 = vmax.f32 %v3816, 1e-05
      %v3865 = vmax.f32 %v3817, 1e-05
      %v3866 = vmax.f32 %v3818, 1e-05
      %v3867 = vmax.f32 %v3819, 1e-05
      %v3868 = vmax.f32 %v3820, 1e-05
      %v3869 = vmax.f32 %v3821, 1e-05
      %v3870 = vmax.f32 %v3822, 1e-05
      %v3871 = vmax.f32 %v3823, 1e-05
      %v3872 = vrcp.pop %v3824
      %v3873 = vmul.f32 %v3728, %v3872
      %v3874 = vrcp.pop %v3825
      %v3875 = vmul.f32 %v3729, %v3874
      %v3876 = vrcp.pop %v3826
      %v3877 = vmul.f32 %v3730, %v3876
      %v3878 = vrcp.pop %v3827
      %v3879 = vmul.f32 %v3731, %v3878
      %v3880 = vrcp.pop %v3828
      %v3881 = vmul.f32 %v3732, %v3880
      %v3882 = vrcp.pop %v3829
      %v3883 = vmul.f32 %v3733, %v3882
      %v3884 = vrcp.pop %v3830
      %v3885 = vmul.f32 %v3734, %v3884
      %v3886 = vrcp.pop %v3831
      %v3887 = vmul.f32 %v3735, %v3886
      %v3888 = vrcp.pop %v3832
      %v3889 = vmul.f32 %v3736, %v3888
      %v3890 = vrcp.pop %v3833
      %v3891 = vmul.f32 %v3737, %v3890
      %v3892 = vrcp.pop %v3834
      %v3893 = vmul.f32 %v3738, %v3892
      %v3894 = vrcp.pop %v3835
      %v3895 = vmul.f32 %v3739, %v3894
      %v3896 = vrcp.pop %v3836
      %v3897 = vmul.f32 %v3740, %v3896
      %v3898 = vrcp.pop %v3837
      %v3899 = vmul.f32 %v3741, %v3898
      %v3900 = vrcp.pop %v3838
      %v3901 = vmul.f32 %v3742, %v3900
      %v3902 = vrcp.pop %v3839
      %v3903 = vmul.f32 %v3743, %v3902
      %v3904 = vrcp.pop %v3840
      %v3905 = vmul.f32 %v3744, %v3904
      %v3906 = vrcp.pop %v3841
      %v3907 = vmul.f32 %v3745, %v3906
      %v3908 = vrcp.pop %v3842
      %v3909 = vmul.f32 %v3746, %v3908
      %v3910 = vrcp.pop %v3843
      %v3911 = vmul.f32 %v3747, %v3910
      %v3912 = vrcp.pop %v3844
      %v3913 = vmul.f32 %v3748, %v3912
      %v3914 = vrcp.pop %v3845
      %v3915 = vmul.f32 %v3749, %v3914
      %v3916 = vrcp.pop %v3846
      %v3917 = vmul.f32 %v3750, %v3916
      %v3918 = vrcp.pop %v3847
      %v3919 = vmul.f32 %v3751, %v3918
      %v3920 = vrcp.pop %v3848
      %v3921 = vmul.f32 %v3752, %v3920
      %v3922 = vrcp.pop %v3849
      %v3923 = vmul.f32 %v3753, %v3922
      %v3924 = vrcp.pop %v3850
      %v3925 = vmul.f32 %v3754, %v3924
      %v3926 = vrcp.pop %v3851
      %v3927 = vmul.f32 %v3755, %v3926
      %v3928 = vrcp.pop %v3852
      %v3929 = vmul.f32 %v3756, %v3928
      %v3930 = vrcp.pop %v3853
      %v3931 = vmul.f32 %v3757, %v3930
      %v3932 = vrcp.pop %v3854
      %v3933 = vmul.f32 %v3758, %v3932
      %v3934 = vrcp.pop %v3855
      %v3935 = vmul.f32 %v3759, %v3934
      %v3936 = vrcp.pop %v3856
      %v3937 = vmul.f32 %v3760, %v3936
      %v3938 = vrcp.pop %v3857
      %v3939 = vmul.f32 %v3761, %v3938
      %v3940 = vrcp.pop %v3858
      %v3941 = vmul.f32 %v3762, %v3940
      %v3942 = vrcp.pop %v3859
      %v3943 = vmul.f32 %v3763, %v3942
      %v3944 = vrcp.pop %v3860
      %v3945 = vmul.f32 %v3764, %v3944
      %v3946 = vrcp.pop %v3861
      %v3947 = vmul.f32 %v3765, %v3946
      %v3948 = vrcp.pop %v3862
      %v3949 = vmul.f32 %v3766, %v3948
      %v3950 = vrcp.pop %v3863
      %v3951 = vmul.f32 %v3767, %v3950
      %v3952 = vrcp.pop %v3864
      %v3953 = vmul.f32 %v3768, %v3952
      %v3954 = vrcp.pop %v3865
      %v3955 = vmul.f32 %v3769, %v3954
      %v3956 = vrcp.pop %v3866
      %v3957 = vmul.f32 %v3770, %v3956
      %v3958 = vrcp.pop %v3867
      %v3959 = vmul.f32 %v3771, %v3958
      %v3960 = vrcp.pop %v3868
      %v3961 = vmul.f32 %v3772, %v3960
      %v3962 = vrcp.pop %v3869
      %v3963 = vmul.f32 %v3773, %v3962
      %v3964 = vrcp.pop %v3870
      %v3965 = vmul.f32 %v3774, %v3964
      %v3966 = vrcp.pop %v3871
      %v3967 = vmul.f32 %v3775, %v3966
      %v3968 = vlog2.pop %v3873
      %v3969 = vmul.f32 %v3968, 0.6931472
      %v3970 = vlog2.pop %v3875
      %v3971 = vmul.f32 %v3970, 0.6931472
      %v3972 = vlog2.pop %v3877
      %v3973 = vmul.f32 %v3972, 0.6931472
      %v3974 = vlog2.pop %v3879
      %v3975 = vmul.f32 %v3974, 0.6931472
      %v3976 = vlog2.pop %v3881
      %v3977 = vmul.f32 %v3976, 0.6931472
      %v3978 = vlog2.pop %v3883
      %v3979 = vmul.f32 %v3978, 0.6931472
      %v3980 = vlog2.pop %v3885
      %v3981 = vmul.f32 %v3980, 0.6931472
      %v3982 = vlog2.pop %v3887
      %v3983 = vmul.f32 %v3982, 0.6931472
      %v3984 = vlog2.pop %v3889
      %v3985 = vmul.f32 %v3984, 0.6931472
      %v3986 = vlog2.pop %v3891
      %v3987 = vmul.f32 %v3986, 0.6931472
      %v3988 = vlog2.pop %v3893
      %v3989 = vmul.f32 %v3988, 0.6931472
      %v3990 = vlog2.pop %v3895
      %v3991 = vmul.f32 %v3990, 0.6931472
      %v3992 = vlog2.pop %v3897
      %v3993 = vmul.f32 %v3992, 0.6931472
      %v3994 = vlog2.pop %v3899
      %v3995 = vmul.f32 %v3994, 0.6931472
      %v3996 = vlog2.pop %v3901
      %v3997 = vmul.f32 %v3996, 0.6931472
      %v3998 = vlog2.pop %v3903
      %v3999 = vmul.f32 %v3998, 0.6931472
      %v4000 = vlog2.pop %v3905
      %v4001 = vmul.f32 %v4000, 0.6931472
      %v4002 = vlog2.pop %v3907
      %v4003 = vmul.f32 %v4002, 0.6931472
      %v4004 = vlog2.pop %v3909
      %v4005 = vmul.f32 %v4004, 0.6931472
      %v4006 = vlog2.pop %v3911
      %v4007 = vmul.f32 %v4006, 0.6931472
      %v4008 = vlog2.pop %v3913
      %v4009 = vmul.f32 %v4008, 0.6931472
      %v4010 = vlog2.pop %v3915
      %v4011 = vmul.f32 %v4010, 0.6931472
      %v4012 = vlog2.pop %v3917
      %v4013 = vmul.f32 %v4012, 0.6931472
      %v4014 = vlog2.pop %v3919
      %v4015 = vmul.f32 %v4014, 0.6931472
      %v4016 = vlog2.pop %v3921
      %v4017 = vmul.f32 %v4016, 0.6931472
      %v4018 = vlog2.pop %v3923
      %v4019 = vmul.f32 %v4018, 0.6931472
      %v4020 = vlog2.pop %v3925
      %v4021 = vmul.f32 %v4020, 0.6931472
      %v4022 = vlog2.pop %v3927
      %v4023 = vmul.f32 %v4022, 0.6931472
      %v4024 = vlog2.pop %v3929
      %v4025 = vmul.f32 %v4024, 0.6931472
      %v4026 = vlog2.pop %v3931
      %v4027 = vmul.f32 %v4026, 0.6931472
      %v4028 = vlog2.pop %v3933
      %v4029 = vmul.f32 %v4028, 0.6931472
      %v4030 = vlog2.pop %v3935
      %v4031 = vmul.f32 %v4030, 0.6931472
      %v4032 = vlog2.pop %v3937
      %v4033 = vmul.f32 %v4032, 0.6931472
      %v4034 = vlog2.pop %v3939
      %v4035 = vmul.f32 %v4034, 0.6931472
      %v4036 = vlog2.pop %v3941
      %v4037 = vmul.f32 %v4036, 0.6931472
      %v4038 = vlog2.pop %v3943
      %v4039 = vmul.f32 %v4038, 0.6931472
      %v4040 = vlog2.pop %v3945
      %v4041 = vmul.f32 %v4040, 0.6931472
      %v4042 = vlog2.pop %v3947
      %v4043 = vmul.f32 %v4042, 0.6931472
      %v4044 = vlog2.pop %v3949
      %v4045 = vmul.f32 %v4044, 0.6931472
      %v4046 = vlog2.pop %v3951
      %v4047 = vmul.f32 %v4046, 0.6931472
      %v4048 = vlog2.pop %v3953
      %v4049 = vmul.f32 %v4048, 0.6931472
      %v4050 = vlog2.pop %v3955
      %v4051 = vmul.f32 %v4050, 0.6931472
      %v4052 = vlog2.pop %v3957
      %v4053 = vmul.f32 %v4052, 0.6931472
      %v4054 = vlog2.pop %v3959
      %v4055 = vmul.f32 %v4054, 0.6931472
      %v4056 = vlog2.pop %v3961
      %v4057 = vmul.f32 %v4056, 0.6931472
      %v4058 = vlog2.pop %v3963
      %v4059 = vmul.f32 %v4058, 0.6931472
      %v4060 = vlog2.pop %v3965
      %v4061 = vmul.f32 %v4060, 0.6931472
      %v4062 = vlog2.pop %v3967
      %v4063 = vmul.f32 %v4062, 0.6931472
      %v4064 = vlaneseq
      %v4065 = vand.u32 %v4064, 127
      %vm4066 = vcmp.eq.s32.totalorder %v4065, 16
      %vm4067 = vcmp.eq.s32.totalorder %v4065, 32
      %vm4068 = vmor %vm4066, %vm4067
      %vm4069 = vcmp.eq.s32.totalorder %v4065, 17
      %vm4070 = vcmp.eq.s32.totalorder %v4065, 33
      %vm4071 = vmor %vm4069, %vm4070
      %vm4072 = vcmp.eq.s32.totalorder %v4065, 20
      %vm4073 = vcmp.eq.s32.totalorder %v4065, 34
      %vm4074 = vmor %vm4072, %vm4073
      %4076 = vset.pattern.permute.xlu0 2
      %4077 = vperm.xlu0 %4076, %v3969
      %v4078 = vpop.permute.xlu0 %4077
      %4081 = vset.pattern.permute.xlu0 2
      %4082 = vperm.xlu0 %4081, %v3971
      %v4083 = vpop.permute.xlu0 %4082
      %4086 = vset.pattern.permute.xlu0 2
      %4087 = vperm.xlu0 %4086, %v3973
      %v4088 = vpop.permute.xlu0 %4087
      %4091 = vset.pattern.permute.xlu0 2
      %4092 = vperm.xlu0 %4091, %v3975
      %v4093 = vpop.permute.xlu0 %4092
      %4096 = vset.pattern.permute.xlu0 2
      %4097 = vperm.xlu0 %4096, %v3977
      %v4098 = vpop.permute.xlu0 %4097
      %4101 = vset.pattern.permute.xlu0 2
      %4102 = vperm.xlu0 %4101, %v3979
      %v4103 = vpop.permute.xlu0 %4102
      %4106 = vset.pattern.permute.xlu0 2
      %4107 = vperm.xlu0 %4106, %v3981
      %v4108 = vpop.permute.xlu0 %4107
      %4111 = vset.pattern.permute.xlu0 2
      %4112 = vperm.xlu0 %4111, %v3983
      %v4113 = vpop.permute.xlu0 %4112
      %4116 = vset.pattern.permute.xlu0 2
      %4117 = vperm.xlu0 %4116, %v3985
      %v4118 = vpop.permute.xlu0 %4117
      %4121 = vset.pattern.permute.xlu0 2
      %4122 = vperm.xlu0 %4121, %v3987
      %v4123 = vpop.permute.xlu0 %4122
      %4126 = vset.pattern.permute.xlu0 2
      %4127 = vperm.xlu0 %4126, %v3989
      %v4128 = vpop.permute.xlu0 %4127
      %4131 = vset.pattern.permute.xlu0 2
      %4132 = vperm.xlu0 %4131, %v3991
      %v4133 = vpop.permute.xlu0 %4132
      %4136 = vset.pattern.permute.xlu0 2
      %4137 = vperm.xlu0 %4136, %v3993
      %v4138 = vpop.permute.xlu0 %4137
      %4141 = vset.pattern.permute.xlu0 2
      %4142 = vperm.xlu0 %4141, %v3995
      %v4143 = vpop.permute.xlu0 %4142
      %4146 = vset.pattern.permute.xlu0 2
      %4147 = vperm.xlu0 %4146, %v3997
      %v4148 = vpop.permute.xlu0 %4147
      %4151 = vset.pattern.permute.xlu0 2
      %4152 = vperm.xlu0 %4151, %v3999
      %v4153 = vpop.permute.xlu0 %4152
      %4156 = vset.pattern.permute.xlu0 2
      %4157 = vperm.xlu0 %4156, %v4001
      %v4158 = vpop.permute.xlu0 %4157
      %4161 = vset.pattern.permute.xlu0 2
      %4162 = vperm.xlu0 %4161, %v4003
      %v4163 = vpop.permute.xlu0 %4162
      %4166 = vset.pattern.permute.xlu0 2
      %4167 = vperm.xlu0 %4166, %v4005
      %v4168 = vpop.permute.xlu0 %4167
      %4171 = vset.pattern.permute.xlu0 2
      %4172 = vperm.xlu0 %4171, %v4007
      %v4173 = vpop.permute.xlu0 %4172
      %4176 = vset.pattern.permute.xlu0 2
      %4177 = vperm.xlu0 %4176, %v4009
      %v4178 = vpop.permute.xlu0 %4177
      %4181 = vset.pattern.permute.xlu0 2
      %4182 = vperm.xlu0 %4181, %v4011
      %v4183 = vpop.permute.xlu0 %4182
      %4186 = vset.pattern.permute.xlu0 2
      %4187 = vperm.xlu0 %4186, %v4013
      %v4188 = vpop.permute.xlu0 %4187
      %4191 = vset.pattern.permute.xlu0 2
      %4192 = vperm.xlu0 %4191, %v4015
      %v4193 = vpop.permute.xlu0 %4192
      %4196 = vset.pattern.permute.xlu0 2
      %4197 = vperm.xlu0 %4196, %v4017
      %v4198 = vpop.permute.xlu0 %4197
      %4201 = vset.pattern.permute.xlu0 2
      %4202 = vperm.xlu0 %4201, %v4019
      %v4203 = vpop.permute.xlu0 %4202
      %4206 = vset.pattern.permute.xlu0 2
      %4207 = vperm.xlu0 %4206, %v4021
      %v4208 = vpop.permute.xlu0 %4207
      %4211 = vset.pattern.permute.xlu0 2
      %4212 = vperm.xlu0 %4211, %v4023
      %v4213 = vpop.permute.xlu0 %4212
      %4216 = vset.pattern.permute.xlu0 2
      %4217 = vperm.xlu0 %4216, %v4025
      %v4218 = vpop.permute.xlu0 %4217
      %4221 = vset.pattern.permute.xlu0 2
      %4222 = vperm.xlu0 %4221, %v4027
      %v4223 = vpop.permute.xlu0 %4222
      %4226 = vset.pattern.permute.xlu0 2
      %4227 = vperm.xlu0 %4226, %v4029
      %v4228 = vpop.permute.xlu0 %4227
      %4231 = vset.pattern.permute.xlu0 2
      %4232 = vperm.xlu0 %4231, %v4031
      %v4233 = vpop.permute.xlu0 %4232
      %4236 = vset.pattern.permute.xlu0 2
      %4237 = vperm.xlu0 %4236, %v4033
      %v4238 = vpop.permute.xlu0 %4237
      %4241 = vset.pattern.permute.xlu0 2
      %4242 = vperm.xlu0 %4241, %v4035
      %v4243 = vpop.permute.xlu0 %4242
      %4246 = vset.pattern.permute.xlu0 2
      %4247 = vperm.xlu0 %4246, %v4037
      %v4248 = vpop.permute.xlu0 %4247
      %4251 = vset.pattern.permute.xlu0 2
      %4252 = vperm.xlu0 %4251, %v4039
      %v4253 = vpop.permute.xlu0 %4252
      %4256 = vset.pattern.permute.xlu0 2
      %4257 = vperm.xlu0 %4256, %v4041
      %v4258 = vpop.permute.xlu0 %4257
      %4261 = vset.pattern.permute.xlu0 2
      %4262 = vperm.xlu0 %4261, %v4043
      %v4263 = vpop.permute.xlu0 %4262
      %4266 = vset.pattern.permute.xlu0 2
      %4267 = vperm.xlu0 %4266, %v4045
      %v4268 = vpop.permute.xlu0 %4267
      %4271 = vset.pattern.permute.xlu0 2
      %4272 = vperm.xlu0 %4271, %v4047
      %v4273 = vpop.permute.xlu0 %4272
      %4276 = vset.pattern.permute.xlu0 2
      %4277 = vperm.xlu0 %4276, %v4049
      %v4278 = vpop.permute.xlu0 %4277
      %4281 = vset.pattern.permute.xlu0 2
      %4282 = vperm.xlu0 %4281, %v4051
      %v4283 = vpop.permute.xlu0 %4282
      %4286 = vset.pattern.permute.xlu0 2
      %4287 = vperm.xlu0 %4286, %v4053
      %v4288 = vpop.permute.xlu0 %4287
      %4291 = vset.pattern.permute.xlu0 2
      %4292 = vperm.xlu0 %4291, %v4055
      %v4293 = vpop.permute.xlu0 %4292
      %4296 = vset.pattern.permute.xlu0 2
      %4297 = vperm.xlu0 %4296, %v4057
      %v4298 = vpop.permute.xlu0 %4297
      %4301 = vset.pattern.permute.xlu0 2
      %4302 = vperm.xlu0 %4301, %v4059
      %v4303 = vpop.permute.xlu0 %4302
      %4306 = vset.pattern.permute.xlu0 2
      %4307 = vperm.xlu0 %4306, %v4061
      %v4308 = vpop.permute.xlu0 %4307
      %4311 = vset.pattern.permute.xlu0 2
      %4312 = vperm.xlu0 %4311, %v4063
      %v4313 = vpop.permute.xlu0 %4312
      %v4315 = vsel %vm4074, %v4078, 0.0
      %v4316 = vsel %vm4074, %v4083, 0.0
      %v4317 = vsel %vm4074, %v4088, 0.0
      %v4318 = vsel %vm4074, %v4093, 0.0
      %v4319 = vsel %vm4074, %v4098, 0.0
      %v4320 = vsel %vm4074, %v4103, 0.0
      %v4321 = vsel %vm4074, %v4108, 0.0
      %v4322 = vsel %vm4074, %v4113, 0.0
      %v4323 = vsel %vm4074, %v4118, 0.0
      %v4324 = vsel %vm4074, %v4123, 0.0
      %v4325 = vsel %vm4074, %v4128, 0.0
      %v4326 = vsel %vm4074, %v4133, 0.0
      %v4327 = vsel %vm4074, %v4138, 0.0
      %v4328 = vsel %vm4074, %v4143, 0.0
      %v4329 = vsel %vm4074, %v4148, 0.0
      %v4330 = vsel %vm4074, %v4153, 0.0
      %v4331 = vsel %vm4074, %v4158, 0.0
      %v4332 = vsel %vm4074, %v4163, 0.0
      %v4333 = vsel %vm4074, %v4168, 0.0
      %v4334 = vsel %vm4074, %v4173, 0.0
      %v4335 = vsel %vm4074, %v4178, 0.0
      %v4336 = vsel %vm4074, %v4183, 0.0
      %v4337 = vsel %vm4074, %v4188, 0.0
      %v4338 = vsel %vm4074, %v4193, 0.0
      %v4339 = vsel %vm4074, %v4198, 0.0
      %v4340 = vsel %vm4074, %v4203, 0.0
      %v4341 = vsel %vm4074, %v4208, 0.0
      %v4342 = vsel %vm4074, %v4213, 0.0
      %v4343 = vsel %vm4074, %v4218, 0.0
      %v4344 = vsel %vm4074, %v4223, 0.0
      %v4345 = vsel %vm4074, %v4228, 0.0
      %v4346 = vsel %vm4074, %v4233, 0.0
      %v4347 = vsel %vm4074, %v4238, 0.0
      %v4348 = vsel %vm4074, %v4243, 0.0
      %v4349 = vsel %vm4074, %v4248, 0.0
      %v4350 = vsel %vm4074, %v4253, 0.0
      %v4351 = vsel %vm4074, %v4258, 0.0
      %v4352 = vsel %vm4074, %v4263, 0.0
      %v4353 = vsel %vm4074, %v4268, 0.0
      %v4354 = vsel %vm4074, %v4273, 0.0
      %v4355 = vsel %vm4074, %v4278, 0.0
      %v4356 = vsel %vm4074, %v4283, 0.0
      %v4357 = vsel %vm4074, %v4288, 0.0
      %v4358 = vsel %vm4074, %v4293, 0.0
      %v4359 = vsel %vm4074, %v4298, 0.0
      %v4360 = vsel %vm4074, %v4303, 0.0
      %v4361 = vsel %vm4074, %v4308, 0.0
      %v4362 = vsel %vm4074, %v4313, 0.0
      %4363 = vset.pattern.permute.xlu0 1
      %4364 = vperm.xlu0 %4363, %v3969
      %v4365 = vpop.permute.xlu0 %4364
      %4367 = vset.pattern.permute.xlu0 1
      %4368 = vperm.xlu0 %4367, %v3971
      %v4369 = vpop.permute.xlu0 %4368
      %4371 = vset.pattern.permute.xlu0 1
      %4372 = vperm.xlu0 %4371, %v3973
      %v4373 = vpop.permute.xlu0 %4372
      %4375 = vset.pattern.permute.xlu0 1
      %4376 = vperm.xlu0 %4375, %v3975
      %v4377 = vpop.permute.xlu0 %4376
      %4379 = vset.pattern.permute.xlu0 1
      %4380 = vperm.xlu0 %4379, %v3977
      %v4381 = vpop.permute.xlu0 %4380
      %4383 = vset.pattern.permute.xlu0 1
      %4384 = vperm.xlu0 %4383, %v3979
      %v4385 = vpop.permute.xlu0 %4384
      %4387 = vset.pattern.permute.xlu0 1
      %4388 = vperm.xlu0 %4387, %v3981
      %v4389 = vpop.permute.xlu0 %4388
      %4391 = vset.pattern.permute.xlu0 1
      %4392 = vperm.xlu0 %4391, %v3983
      %v4393 = vpop.permute.xlu0 %4392
      %4395 = vset.pattern.permute.xlu0 1
      %4396 = vperm.xlu0 %4395, %v3985
      %v4397 = vpop.permute.xlu0 %4396
      %4399 = vset.pattern.permute.xlu0 1
      %4400 = vperm.xlu0 %4399, %v3987
      %v4401 = vpop.permute.xlu0 %4400
      %4403 = vset.pattern.permute.xlu0 1
      %4404 = vperm.xlu0 %4403, %v3989
      %v4405 = vpop.permute.xlu0 %4404
      %4407 = vset.pattern.permute.xlu0 1
      %4408 = vperm.xlu0 %4407, %v3991
      %v4409 = vpop.permute.xlu0 %4408
      %4411 = vset.pattern.permute.xlu0 1
      %4412 = vperm.xlu0 %4411, %v3993
      %v4413 = vpop.permute.xlu0 %4412
      %4415 = vset.pattern.permute.xlu0 1
      %4416 = vperm.xlu0 %4415, %v3995
      %v4417 = vpop.permute.xlu0 %4416
      %4419 = vset.pattern.permute.xlu0 1
      %4420 = vperm.xlu0 %4419, %v3997
      %v4421 = vpop.permute.xlu0 %4420
      %4423 = vset.pattern.permute.xlu0 1
      %4424 = vperm.xlu0 %4423, %v3999
      %v4425 = vpop.permute.xlu0 %4424
      %4427 = vset.pattern.permute.xlu0 1
      %4428 = vperm.xlu0 %4427, %v4001
      %v4429 = vpop.permute.xlu0 %4428
      %4431 = vset.pattern.permute.xlu0 1
      %4432 = vperm.xlu0 %4431, %v4003
      %v4433 = vpop.permute.xlu0 %4432
      %4435 = vset.pattern.permute.xlu0 1
      %4436 = vperm.xlu0 %4435, %v4005
      %v4437 = vpop.permute.xlu0 %4436
      %4439 = vset.pattern.permute.xlu0 1
      %4440 = vperm.xlu0 %4439, %v4007
      %v4441 = vpop.permute.xlu0 %4440
      %4443 = vset.pattern.permute.xlu0 1
      %4444 = vperm.xlu0 %4443, %v4009
      %v4445 = vpop.permute.xlu0 %4444
      %4447 = vset.pattern.permute.xlu0 1
      %4448 = vperm.xlu0 %4447, %v4011
      %v4449 = vpop.permute.xlu0 %4448
      %4451 = vset.pattern.permute.xlu0 1
      %4452 = vperm.xlu0 %4451, %v4013
      %v4453 = vpop.permute.xlu0 %4452
      %4455 = vset.pattern.permute.xlu0 1
      %4456 = vperm.xlu0 %4455, %v4015
      %v4457 = vpop.permute.xlu0 %4456
      %4459 = vset.pattern.permute.xlu0 1
      %4460 = vperm.xlu0 %4459, %v4017
      %v4461 = vpop.permute.xlu0 %4460
      %4463 = vset.pattern.permute.xlu0 1
      %4464 = vperm.xlu0 %4463, %v4019
      %v4465 = vpop.permute.xlu0 %4464
      %4467 = vset.pattern.permute.xlu0 1
      %4468 = vperm.xlu0 %4467, %v4021
      %v4469 = vpop.permute.xlu0 %4468
      %4471 = vset.pattern.permute.xlu0 1
      %4472 = vperm.xlu0 %4471, %v4023
      %v4473 = vpop.permute.xlu0 %4472
      %4475 = vset.pattern.permute.xlu0 1
      %4476 = vperm.xlu0 %4475, %v4025
      %v4477 = vpop.permute.xlu0 %4476
      %4479 = vset.pattern.permute.xlu0 1
      %4480 = vperm.xlu0 %4479, %v4027
      %v4481 = vpop.permute.xlu0 %4480
      %4483 = vset.pattern.permute.xlu0 1
      %4484 = vperm.xlu0 %4483, %v4029
      %v4485 = vpop.permute.xlu0 %4484
      %4487 = vset.pattern.permute.xlu0 1
      %4488 = vperm.xlu0 %4487, %v4031
      %v4489 = vpop.permute.xlu0 %4488
      %4491 = vset.pattern.permute.xlu0 1
      %4492 = vperm.xlu0 %4491, %v4033
      %v4493 = vpop.permute.xlu0 %4492
      %4495 = vset.pattern.permute.xlu0 1
      %4496 = vperm.xlu0 %4495, %v4035
      %v4497 = vpop.permute.xlu0 %4496
      %4499 = vset.pattern.permute.xlu0 1
      %4500 = vperm.xlu0 %4499, %v4037
      %v4501 = vpop.permute.xlu0 %4500
      %4503 = vset.pattern.permute.xlu0 1
      %4504 = vperm.xlu0 %4503, %v4039
      %v4505 = vpop.permute.xlu0 %4504
      %4507 = vset.pattern.permute.xlu0 1
      %4508 = vperm.xlu0 %4507, %v4041
      %v4509 = vpop.permute.xlu0 %4508
      %4511 = vset.pattern.permute.xlu0 1
      %4512 = vperm.xlu0 %4511, %v4043
      %v4513 = vpop.permute.xlu0 %4512
      %4515 = vset.pattern.permute.xlu0 1
      %4516 = vperm.xlu0 %4515, %v4045
      %v4517 = vpop.permute.xlu0 %4516
      %4519 = vset.pattern.permute.xlu0 1
      %4520 = vperm.xlu0 %4519, %v4047
      %v4521 = vpop.permute.xlu0 %4520
      %4523 = vset.pattern.permute.xlu0 1
      %4524 = vperm.xlu0 %4523, %v4049
      %v4525 = vpop.permute.xlu0 %4524
      %4527 = vset.pattern.permute.xlu0 1
      %4528 = vperm.xlu0 %4527, %v4051
      %v4529 = vpop.permute.xlu0 %4528
      %4531 = vset.pattern.permute.xlu0 1
      %4532 = vperm.xlu0 %4531, %v4053
      %v4533 = vpop.permute.xlu0 %4532
      %4535 = vset.pattern.permute.xlu0 1
      %4536 = vperm.xlu0 %4535, %v4055
      %v4537 = vpop.permute.xlu0 %4536
      %4539 = vset.pattern.permute.xlu0 1
      %4540 = vperm.xlu0 %4539, %v4057
      %v4541 = vpop.permute.xlu0 %4540
      %4543 = vset.pattern.permute.xlu0 1
      %4544 = vperm.xlu0 %4543, %v4059
      %v4545 = vpop.permute.xlu0 %4544
      %4547 = vset.pattern.permute.xlu0 1
      %4548 = vperm.xlu0 %4547, %v4061
      %v4549 = vpop.permute.xlu0 %4548
      %4551 = vset.pattern.permute.xlu0 1
      %4552 = vperm.xlu0 %4551, %v4063
      %v4553 = vpop.permute.xlu0 %4552
      %v4555 = vsel %vm4071, %v4365, %v4315
      %v4556 = vsel %vm4071, %v4369, %v4316
      %v4557 = vsel %vm4071, %v4373, %v4317
      %v4558 = vsel %vm4071, %v4377, %v4318
      %v4559 = vsel %vm4071, %v4381, %v4319
      %v4560 = vsel %vm4071, %v4385, %v4320
      %v4561 = vsel %vm4071, %v4389, %v4321
      %v4562 = vsel %vm4071, %v4393, %v4322
      %v4563 = vsel %vm4071, %v4397, %v4323
      %v4564 = vsel %vm4071, %v4401, %v4324
      %v4565 = vsel %vm4071, %v4405, %v4325
      %v4566 = vsel %vm4071, %v4409, %v4326
      %v4567 = vsel %vm4071, %v4413, %v4327
      %v4568 = vsel %vm4071, %v4417, %v4328
      %v4569 = vsel %vm4071, %v4421, %v4329
      %v4570 = vsel %vm4071, %v4425, %v4330
      %v4571 = vsel %vm4071, %v4429, %v4331
      %v4572 = vsel %vm4071, %v4433, %v4332
      %v4573 = vsel %vm4071, %v4437, %v4333
      %v4574 = vsel %vm4071, %v4441, %v4334
      %v4575 = vsel %vm4071, %v4445, %v4335
      %v4576 = vsel %vm4071, %v4449, %v4336
      %v4577 = vsel %vm4071, %v4453, %v4337
      %v4578 = vsel %vm4071, %v4457, %v4338
      %v4579 = vsel %vm4071, %v4461, %v4339
      %v4580 = vsel %vm4071, %v4465, %v4340
      %v4581 = vsel %vm4071, %v4469, %v4341
      %v4582 = vsel %vm4071, %v4473, %v4342
      %v4583 = vsel %vm4071, %v4477, %v4343
      %v4584 = vsel %vm4071, %v4481, %v4344
      %v4585 = vsel %vm4071, %v4485, %v4345
      %v4586 = vsel %vm4071, %v4489, %v4346
      %v4587 = vsel %vm4071, %v4493, %v4347
      %v4588 = vsel %vm4071, %v4497, %v4348
      %v4589 = vsel %vm4071, %v4501, %v4349
      %v4590 = vsel %vm4071, %v4505, %v4350
      %v4591 = vsel %vm4071, %v4509, %v4351
      %v4592 = vsel %vm4071, %v4513, %v4352
      %v4593 = vsel %vm4071, %v4517, %v4353
      %v4594 = vsel %vm4071, %v4521, %v4354
      %v4595 = vsel %vm4071, %v4525, %v4355
      %v4596 = vsel %vm4071, %v4529, %v4356
      %v4597 = vsel %vm4071, %v4533, %v4357
      %v4598 = vsel %vm4071, %v4537, %v4358
      %v4599 = vsel %vm4071, %v4541, %v4359
      %v4600 = vsel %vm4071, %v4545, %v4360
      %v4601 = vsel %vm4071, %v4549, %v4361
      %v4602 = vsel %vm4071, %v4553, %v4362
      %4603 = vset.pattern.permute.xlu0 0
      %4604 = vperm.xlu0 %4603, %v3969
      %v4605 = vpop.permute.xlu0 %4604
      %4607 = vset.pattern.permute.xlu0 0
      %4608 = vperm.xlu0 %4607, %v3971
      %v4609 = vpop.permute.xlu0 %4608
      %4611 = vset.pattern.permute.xlu0 0
      %4612 = vperm.xlu0 %4611, %v3973
      %v4613 = vpop.permute.xlu0 %4612
      %4615 = vset.pattern.permute.xlu0 0
      %4616 = vperm.xlu0 %4615, %v3975
      %v4617 = vpop.permute.xlu0 %4616
      %4619 = vset.pattern.permute.xlu0 0
      %4620 = vperm.xlu0 %4619, %v3977
      %v4621 = vpop.permute.xlu0 %4620
      %4623 = vset.pattern.permute.xlu0 0
      %4624 = vperm.xlu0 %4623, %v3979
      %v4625 = vpop.permute.xlu0 %4624
      %4627 = vset.pattern.permute.xlu0 0
      %4628 = vperm.xlu0 %4627, %v3981
      %v4629 = vpop.permute.xlu0 %4628
      %4631 = vset.pattern.permute.xlu0 0
      %4632 = vperm.xlu0 %4631, %v3983
      %v4633 = vpop.permute.xlu0 %4632
      %4635 = vset.pattern.permute.xlu0 0
      %4636 = vperm.xlu0 %4635, %v3985
      %v4637 = vpop.permute.xlu0 %4636
      %4639 = vset.pattern.permute.xlu0 0
      %4640 = vperm.xlu0 %4639, %v3987
      %v4641 = vpop.permute.xlu0 %4640
      %4643 = vset.pattern.permute.xlu0 0
      %4644 = vperm.xlu0 %4643, %v3989
      %v4645 = vpop.permute.xlu0 %4644
      %4647 = vset.pattern.permute.xlu0 0
      %4648 = vperm.xlu0 %4647, %v3991
      %v4649 = vpop.permute.xlu0 %4648
      %4651 = vset.pattern.permute.xlu0 0
      %4652 = vperm.xlu0 %4651, %v3993
      %v4653 = vpop.permute.xlu0 %4652
      %4655 = vset.pattern.permute.xlu0 0
      %4656 = vperm.xlu0 %4655, %v3995
      %v4657 = vpop.permute.xlu0 %4656
      %4659 = vset.pattern.permute.xlu0 0
      %4660 = vperm.xlu0 %4659, %v3997
      %v4661 = vpop.permute.xlu0 %4660
      %4663 = vset.pattern.permute.xlu0 0
      %4664 = vperm.xlu0 %4663, %v3999
      %v4665 = vpop.permute.xlu0 %4664
      %4667 = vset.pattern.permute.xlu0 0
      %4668 = vperm.xlu0 %4667, %v4001
      %v4669 = vpop.permute.xlu0 %4668
      %4671 = vset.pattern.permute.xlu0 0
      %4672 = vperm.xlu0 %4671, %v4003
      %v4673 = vpop.permute.xlu0 %4672
      %4675 = vset.pattern.permute.xlu0 0
      %4676 = vperm.xlu0 %4675, %v4005
      %v4677 = vpop.permute.xlu0 %4676
      %4679 = vset.pattern.permute.xlu0 0
      %4680 = vperm.xlu0 %4679, %v4007
      %v4681 = vpop.permute.xlu0 %4680
      %4683 = vset.pattern.permute.xlu0 0
      %4684 = vperm.xlu0 %4683, %v4009
      %v4685 = vpop.permute.xlu0 %4684
      %4687 = vset.pattern.permute.xlu0 0
      %4688 = vperm.xlu0 %4687, %v4011
      %v4689 = vpop.permute.xlu0 %4688
      %4691 = vset.pattern.permute.xlu0 0
      %4692 = vperm.xlu0 %4691, %v4013
      %v4693 = vpop.permute.xlu0 %4692
      %4695 = vset.pattern.permute.xlu0 0
      %4696 = vperm.xlu0 %4695, %v4015
      %v4697 = vpop.permute.xlu0 %4696
      %4699 = vset.pattern.permute.xlu0 0
      %4700 = vperm.xlu0 %4699, %v4017
      %v4701 = vpop.permute.xlu0 %4700
      %4703 = vset.pattern.permute.xlu0 0
      %4704 = vperm.xlu0 %4703, %v4019
      %v4705 = vpop.permute.xlu0 %4704
      %4707 = vset.pattern.permute.xlu0 0
      %4708 = vperm.xlu0 %4707, %v4021
      %v4709 = vpop.permute.xlu0 %4708
      %4711 = vset.pattern.permute.xlu0 0
      %4712 = vperm.xlu0 %4711, %v4023
      %v4713 = vpop.permute.xlu0 %4712
      %4715 = vset.pattern.permute.xlu0 0
      %4716 = vperm.xlu0 %4715, %v4025
      %v4717 = vpop.permute.xlu0 %4716
      %4719 = vset.pattern.permute.xlu0 0
      %4720 = vperm.xlu0 %4719, %v4027
      %v4721 = vpop.permute.xlu0 %4720
      %4723 = vset.pattern.permute.xlu0 0
      %4724 = vperm.xlu0 %4723, %v4029
      %v4725 = vpop.permute.xlu0 %4724
      %4727 = vset.pattern.permute.xlu0 0
      %4728 = vperm.xlu0 %4727, %v4031
      %v4729 = vpop.permute.xlu0 %4728
      %4731 = vset.pattern.permute.xlu0 0
      %4732 = vperm.xlu0 %4731, %v4033
      %v4733 = vpop.permute.xlu0 %4732
      %4735 = vset.pattern.permute.xlu0 0
      %4736 = vperm.xlu0 %4735, %v4035
      %v4737 = vpop.permute.xlu0 %4736
      %4739 = vset.pattern.permute.xlu0 0
      %4740 = vperm.xlu0 %4739, %v4037
      %v4741 = vpop.permute.xlu0 %4740
      %4743 = vset.pattern.permute.xlu0 0
      %4744 = vperm.xlu0 %4743, %v4039
      %v4745 = vpop.permute.xlu0 %4744
      %4747 = vset.pattern.permute.xlu0 0
      %4748 = vperm.xlu0 %4747, %v4041
      %v4749 = vpop.permute.xlu0 %4748
      %4751 = vset.pattern.permute.xlu0 0
      %4752 = vperm.xlu0 %4751, %v4043
      %v4753 = vpop.permute.xlu0 %4752
      %4755 = vset.pattern.permute.xlu0 0
      %4756 = vperm.xlu0 %4755, %v4045
      %v4757 = vpop.permute.xlu0 %4756
      %4759 = vset.pattern.permute.xlu0 0
      %4760 = vperm.xlu0 %4759, %v4047
      %v4761 = vpop.permute.xlu0 %4760
      %4763 = vset.pattern.permute.xlu0 0
      %4764 = vperm.xlu0 %4763, %v4049
      %v4765 = vpop.permute.xlu0 %4764
      %4767 = vset.pattern.permute.xlu0 0
      %4768 = vperm.xlu0 %4767, %v4051
      %v4769 = vpop.permute.xlu0 %4768
      %4771 = vset.pattern.permute.xlu0 0
      %4772 = vperm.xlu0 %4771, %v4053
      %v4773 = vpop.permute.xlu0 %4772
      %4775 = vset.pattern.permute.xlu0 0
      %4776 = vperm.xlu0 %4775, %v4055
      %v4777 = vpop.permute.xlu0 %4776
      %4779 = vset.pattern.permute.xlu0 0
      %4780 = vperm.xlu0 %4779, %v4057
      %v4781 = vpop.permute.xlu0 %4780
      %4783 = vset.pattern.permute.xlu0 0
      %4784 = vperm.xlu0 %4783, %v4059
      %v4785 = vpop.permute.xlu0 %4784
      %4787 = vset.pattern.permute.xlu0 0
      %4788 = vperm.xlu0 %4787, %v4061
      %v4789 = vpop.permute.xlu0 %4788
      %4791 = vset.pattern.permute.xlu0 0
      %4792 = vperm.xlu0 %4791, %v4063
      %v4793 = vpop.permute.xlu0 %4792
      %v4795 = vsel %vm4068, %v4605, %v4555
      %v4796 = vsel %vm4068, %v4609, %v4556
      %v4797 = vsel %vm4068, %v4613, %v4557
      %v4798 = vsel %vm4068, %v4617, %v4558
      %v4799 = vsel %vm4068, %v4621, %v4559
      %v4800 = vsel %vm4068, %v4625, %v4560
      %v4801 = vsel %vm4068, %v4629, %v4561
      %v4802 = vsel %vm4068, %v4633, %v4562
      %v4803 = vsel %vm4068, %v4637, %v4563
      %v4804 = vsel %vm4068, %v4641, %v4564
      %v4805 = vsel %vm4068, %v4645, %v4565
      %v4806 = vsel %vm4068, %v4649, %v4566
      %v4807 = vsel %vm4068, %v4653, %v4567
      %v4808 = vsel %vm4068, %v4657, %v4568
      %v4809 = vsel %vm4068, %v4661, %v4569
      %v4810 = vsel %vm4068, %v4665, %v4570
      %v4811 = vsel %vm4068, %v4669, %v4571
      %v4812 = vsel %vm4068, %v4673, %v4572
      %v4813 = vsel %vm4068, %v4677, %v4573
      %v4814 = vsel %vm4068, %v4681, %v4574
      %v4815 = vsel %vm4068, %v4685, %v4575
      %v4816 = vsel %vm4068, %v4689, %v4576
      %v4817 = vsel %vm4068, %v4693, %v4577
      %v4818 = vsel %vm4068, %v4697, %v4578
      %v4819 = vsel %vm4068, %v4701, %v4579
      %v4820 = vsel %vm4068, %v4705, %v4580
      %v4821 = vsel %vm4068, %v4709, %v4581
      %v4822 = vsel %vm4068, %v4713, %v4582
      %v4823 = vsel %vm4068, %v4717, %v4583
      %v4824 = vsel %vm4068, %v4721, %v4584
      %v4825 = vsel %vm4068, %v4725, %v4585
      %v4826 = vsel %vm4068, %v4729, %v4586
      %v4827 = vsel %vm4068, %v4733, %v4587
      %v4828 = vsel %vm4068, %v4737, %v4588
      %v4829 = vsel %vm4068, %v4741, %v4589
      %v4830 = vsel %vm4068, %v4745, %v4590
      %v4831 = vsel %vm4068, %v4749, %v4591
      %v4832 = vsel %vm4068, %v4753, %v4592
      %v4833 = vsel %vm4068, %v4757, %v4593
      %v4834 = vsel %vm4068, %v4761, %v4594
      %v4835 = vsel %vm4068, %v4765, %v4595
      %v4836 = vsel %vm4068, %v4769, %v4596
      %v4837 = vsel %vm4068, %v4773, %v4597
      %v4838 = vsel %vm4068, %v4777, %v4598
      %v4839 = vsel %vm4068, %v4781, %v4599
      %v4840 = vsel %vm4068, %v4785, %v4600
      %v4841 = vsel %vm4068, %v4789, %v4601
      %v4842 = vsel %vm4068, %v4793, %v4602
      %v4843 = vadd.f32 %v3394, %v4795
      %v4844 = vadd.f32 %v3397, %v4796
      %v4845 = vadd.f32 %v3402, %v4797
      %v4846 = vadd.f32 %v3405, %v4798
      %v4847 = vadd.f32 %v3410, %v4799
      %v4848 = vadd.f32 %v3413, %v4800
      %v4849 = vadd.f32 %v3418, %v4801
      %v4850 = vadd.f32 %v3421, %v4802
      %v4851 = vadd.f32 %v3426, %v4803
      %v4852 = vadd.f32 %v3429, %v4804
      %v4853 = vadd.f32 %v3434, %v4805
      %v4854 = vadd.f32 %v3437, %v4806
      %v4855 = vadd.f32 %v3442, %v4807
      %v4856 = vadd.f32 %v3445, %v4808
      %v4857 = vadd.f32 %v3450, %v4809
      %v4858 = vadd.f32 %v3453, %v4810
      %v4859 = vadd.f32 %v3458, %v4811
      %v4860 = vadd.f32 %v3461, %v4812
      %v4861 = vadd.f32 %v3466, %v4813
      %v4862 = vadd.f32 %v3469, %v4814
      %v4863 = vadd.f32 %v3474, %v4815
      %v4864 = vadd.f32 %v3477, %v4816
      %v4865 = vadd.f32 %v3482, %v4817
      %v4866 = vadd.f32 %v3485, %v4818
      %v4867 = vadd.f32 %v3490, %v4819
      %v4868 = vadd.f32 %v3493, %v4820
      %v4869 = vadd.f32 %v3498, %v4821
      %v4870 = vadd.f32 %v3501, %v4822
      %v4871 = vadd.f32 %v3506, %v4823
      %v4872 = vadd.f32 %v3509, %v4824
      %v4873 = vadd.f32 %v3514, %v4825
      %v4874 = vadd.f32 %v3517, %v4826
      %v4875 = vadd.f32 %v3522, %v4827
      %v4876 = vadd.f32 %v3525, %v4828
      %v4877 = vadd.f32 %v3530, %v4829
      %v4878 = vadd.f32 %v3533, %v4830
      %v4879 = vadd.f32 %v3538, %v4831
      %v4880 = vadd.f32 %v3541, %v4832
      %v4881 = vadd.f32 %v3546, %v4833
      %v4882 = vadd.f32 %v3549, %v4834
      %v4883 = vadd.f32 %v3554, %v4835
      %v4884 = vadd.f32 %v3557, %v4836
      %v4885 = vadd.f32 %v3562, %v4837
      %v4886 = vadd.f32 %v3565, %v4838
      %v4887 = vadd.f32 %v3570, %v4839
      %v4888 = vadd.f32 %v3573, %v4840
      %v4889 = vadd.f32 %v3578, %v4841
      %v4890 = vadd.f32 %v3581, %v4842
      %vm4891 = vmor %vm4066, %vm4069
      %vm4892 = vmor %vm4891, %vm4072
      %v4893 = vsel %vm4069, 102.4, 8.0
      %v4894 = vsel %vm4066, 102.4, %v4893
      %v4895 = vsel %vm4069, -51.2, -5.0
      %v4896 = vsel %vm4066, -51.2, %v4895
      %v4897 = vsub.f32 0.0, %v4843
      %v4898 = vsub.f32 0.0, %v4844
      %v4899 = vsub.f32 0.0, %v4845
      %v4900 = vsub.f32 0.0, %v4846
      %v4901 = vsub.f32 0.0, %v4847
      %v4902 = vsub.f32 0.0, %v4848
      %v4903 = vsub.f32 0.0, %v4849
      %v4904 = vsub.f32 0.0, %v4850
      %v4905 = vsub.f32 0.0, %v4851
      %v4906 = vsub.f32 0.0, %v4852
      %v4907 = vsub.f32 0.0, %v4853
      %v4908 = vsub.f32 0.0, %v4854
      %v4909 = vsub.f32 0.0, %v4855
      %v4910 = vsub.f32 0.0, %v4856
      %v4911 = vsub.f32 0.0, %v4857
      %v4912 = vsub.f32 0.0, %v4858
      %v4913 = vsub.f32 0.0, %v4859
      %v4914 = vsub.f32 0.0, %v4860
      %v4915 = vsub.f32 0.0, %v4861
      %v4916 = vsub.f32 0.0, %v4862
      %v4917 = vsub.f32 0.0, %v4863
      %v4918 = vsub.f32 0.0, %v4864
      %v4919 = vsub.f32 0.0, %v4865
      %v4920 = vsub.f32 0.0, %v4866
      %v4921 = vsub.f32 0.0, %v4867
      %v4922 = vsub.f32 0.0, %v4868
      %v4923 = vsub.f32 0.0, %v4869
      %v4924 = vsub.f32 0.0, %v4870
      %v4925 = vsub.f32 0.0, %v4871
      %v4926 = vsub.f32 0.0, %v4872
      %v4927 = vsub.f32 0.0, %v4873
      %v4928 = vsub.f32 0.0, %v4874
      %v4929 = vsub.f32 0.0, %v4875
      %v4930 = vsub.f32 0.0, %v4876
      %v4931 = vsub.f32 0.0, %v4877
      %v4932 = vsub.f32 0.0, %v4878
      %v4933 = vsub.f32 0.0, %v4879
      %v4934 = vsub.f32 0.0, %v4880
      %v4935 = vsub.f32 0.0, %v4881
      %v4936 = vsub.f32 0.0, %v4882
      %v4937 = vsub.f32 0.0, %v4883
      %v4938 = vsub.f32 0.0, %v4884
      %v4939 = vsub.f32 0.0, %v4885
      %v4940 = vsub.f32 0.0, %v4886
      %v4941 = vsub.f32 0.0, %v4887
      %v4942 = vsub.f32 0.0, %v4888
      %v4943 = vsub.f32 0.0, %v4889
      %v4944 = vsub.f32 0.0, %v4890
      %v4945 = vmul.f32 %v4897, 1.442695
      %v4946 = vpow.pop %v4945
      %v4947 = vmul.f32 %v4898, 1.442695
      %v4948 = vpow.pop %v4947
      %v4949 = vmul.f32 %v4899, 1.442695
      %v4950 = vpow.pop %v4949
      %v4951 = vmul.f32 %v4900, 1.442695
      %v4952 = vpow.pop %v4951
      %v4953 = vmul.f32 %v4901, 1.442695
      %v4954 = vpow.pop %v4953
      %v4955 = vmul.f32 %v4902, 1.442695
      %v4956 = vpow.pop %v4955
      %v4957 = vmul.f32 %v4903, 1.442695
      %v4958 = vpow.pop %v4957
      %v4959 = vmul.f32 %v4904, 1.442695
      %v4960 = vpow.pop %v4959
      %v4961 = vmul.f32 %v4905, 1.442695
      %v4962 = vpow.pop %v4961
      %v4963 = vmul.f32 %v4906, 1.442695
      %v4964 = vpow.pop %v4963
      %v4965 = vmul.f32 %v4907, 1.442695
      %v4966 = vpow.pop %v4965
      %v4967 = vmul.f32 %v4908, 1.442695
      %v4968 = vpow.pop %v4967
      %v4969 = vmul.f32 %v4909, 1.442695
      %v4970 = vpow.pop %v4969
      %v4971 = vmul.f32 %v4910, 1.442695
      %v4972 = vpow.pop %v4971
      %v4973 = vmul.f32 %v4911, 1.442695
      %v4974 = vpow.pop %v4973
      %v4975 = vmul.f32 %v4912, 1.442695
      %v4976 = vpow.pop %v4975
      %v4977 = vmul.f32 %v4913, 1.442695
      %v4978 = vpow.pop %v4977
      %v4979 = vmul.f32 %v4914, 1.442695
      %v4980 = vpow.pop %v4979
      %v4981 = vmul.f32 %v4915, 1.442695
      %v4982 = vpow.pop %v4981
      %v4983 = vmul.f32 %v4916, 1.442695
      %v4984 = vpow.pop %v4983
      %v4985 = vmul.f32 %v4917, 1.442695
      %v4986 = vpow.pop %v4985
      %v4987 = vmul.f32 %v4918, 1.442695
      %v4988 = vpow.pop %v4987
      %v4989 = vmul.f32 %v4919, 1.442695
      %v4990 = vpow.pop %v4989
      %v4991 = vmul.f32 %v4920, 1.442695
      %v4992 = vpow.pop %v4991
      %v4993 = vmul.f32 %v4921, 1.442695
      %v4994 = vpow.pop %v4993
      %v4995 = vmul.f32 %v4922, 1.442695
      %v4996 = vpow.pop %v4995
      %v4997 = vmul.f32 %v4923, 1.442695
      %v4998 = vpow.pop %v4997
      %v4999 = vmul.f32 %v4924, 1.442695
      %v5000 = vpow.pop %v4999
      %v5001 = vmul.f32 %v4925, 1.442695
      %v5002 = vpow.pop %v5001
      %v5003 = vmul.f32 %v4926, 1.442695
      %v5004 = vpow.pop %v5003
      %v5005 = vmul.f32 %v4927, 1.442695
      %v5006 = vpow.pop %v5005
      %v5007 = vmul.f32 %v4928, 1.442695
      %v5008 = vpow.pop %v5007
      %v5009 = vmul.f32 %v4929, 1.442695
      %v5010 = vpow.pop %v5009
      %v5011 = vmul.f32 %v4930, 1.442695
      %v5012 = vpow.pop %v5011
      %v5013 = vmul.f32 %v4931, 1.442695
      %v5014 = vpow.pop %v5013
      %v5015 = vmul.f32 %v4932, 1.442695
      %v5016 = vpow.pop %v5015
      %v5017 = vmul.f32 %v4933, 1.442695
      %v5018 = vpow.pop %v5017
      %v5019 = vmul.f32 %v4934, 1.442695
      %v5020 = vpow.pop %v5019
      %v5021 = vmul.f32 %v4935, 1.442695
      %v5022 = vpow.pop %v5021
      %v5023 = vmul.f32 %v4936, 1.442695
      %v5024 = vpow.pop %v5023
      %v5025 = vmul.f32 %v4937, 1.442695
      %v5026 = vpow.pop %v5025
      %v5027 = vmul.f32 %v4938, 1.442695
      %v5028 = vpow.pop %v5027
      %v5029 = vmul.f32 %v4939, 1.442695
      %v5030 = vpow.pop %v5029
      %v5031 = vmul.f32 %v4940, 1.442695
      %v5032 = vpow.pop %v5031
      %v5033 = vmul.f32 %v4941, 1.442695
      %v5034 = vpow.pop %v5033
      %v5035 = vmul.f32 %v4942, 1.442695
      %v5036 = vpow.pop %v5035
      %v5037 = vmul.f32 %v4943, 1.442695
      %v5038 = vpow.pop %v5037
      %v5039 = vmul.f32 %v4944, 1.442695
      %v5040 = vpow.pop %v5039
      %v5041 = vadd.f32 %v4946, 1.0
      %v5042 = vadd.f32 %v4948, 1.0
      %v5043 = vadd.f32 %v4950, 1.0
      %v5044 = vadd.f32 %v4952, 1.0
      %v5045 = vadd.f32 %v4954, 1.0
      %v5046 = vadd.f32 %v4956, 1.0
      %v5047 = vadd.f32 %v4958, 1.0
      %v5048 = vadd.f32 %v4960, 1.0
      %v5049 = vadd.f32 %v4962, 1.0
      %v5050 = vadd.f32 %v4964, 1.0
      %v5051 = vadd.f32 %v4966, 1.0
      %v5052 = vadd.f32 %v4968, 1.0
      %v5053 = vadd.f32 %v4970, 1.0
      %v5054 = vadd.f32 %v4972, 1.0
      %v5055 = vadd.f32 %v4974, 1.0
      %v5056 = vadd.f32 %v4976, 1.0
      %v5057 = vadd.f32 %v4978, 1.0
      %v5058 = vadd.f32 %v4980, 1.0
      %v5059 = vadd.f32 %v4982, 1.0
      %v5060 = vadd.f32 %v4984, 1.0
      %v5061 = vadd.f32 %v4986, 1.0
      %v5062 = vadd.f32 %v4988, 1.0
      %v5063 = vadd.f32 %v4990, 1.0
      %v5064 = vadd.f32 %v4992, 1.0
      %v5065 = vadd.f32 %v4994, 1.0
      %v5066 = vadd.f32 %v4996, 1.0
      %v5067 = vadd.f32 %v4998, 1.0
      %v5068 = vadd.f32 %v5000, 1.0
      %v5069 = vadd.f32 %v5002, 1.0
      %v5070 = vadd.f32 %v5004, 1.0
      %v5071 = vadd.f32 %v5006, 1.0
      %v5072 = vadd.f32 %v5008, 1.0
      %v5073 = vadd.f32 %v5010, 1.0
      %v5074 = vadd.f32 %v5012, 1.0
      %v5075 = vadd.f32 %v5014, 1.0
      %v5076 = vadd.f32 %v5016, 1.0
      %v5077 = vadd.f32 %v5018, 1.0
      %v5078 = vadd.f32 %v5020, 1.0
      %v5079 = vadd.f32 %v5022, 1.0
      %v5080 = vadd.f32 %v5024, 1.0
      %v5081 = vadd.f32 %v5026, 1.0
      %v5082 = vadd.f32 %v5028, 1.0
      %v5083 = vadd.f32 %v5030, 1.0
      %v5084 = vadd.f32 %v5032, 1.0
      %v5085 = vadd.f32 %v5034, 1.0
      %v5086 = vadd.f32 %v5036, 1.0
      %v5087 = vadd.f32 %v5038, 1.0
      %v5088 = vadd.f32 %v5040, 1.0
      %v5089 = vrcp.pop %v5041
      %v5090 = vrcp.pop %v5042
      %v5091 = vrcp.pop %v5043
      %v5092 = vrcp.pop %v5044
      %v5093 = vrcp.pop %v5045
      %v5094 = vrcp.pop %v5046
      %v5095 = vrcp.pop %v5047
      %v5096 = vrcp.pop %v5048
      %v5097 = vrcp.pop %v5049
      %v5098 = vrcp.pop %v5050
      %v5099 = vrcp.pop %v5051
      %v5100 = vrcp.pop %v5052
      %v5101 = vrcp.pop %v5053
      %v5102 = vrcp.pop %v5054
      %v5103 = vrcp.pop %v5055
      %v5104 = vrcp.pop %v5056
      %v5105 = vrcp.pop %v5057
      %v5106 = vrcp.pop %v5058
      %v5107 = vrcp.pop %v5059
      %v5108 = vrcp.pop %v5060
      %v5109 = vrcp.pop %v5061
      %v5110 = vrcp.pop %v5062
      %v5111 = vrcp.pop %v5063
      %v5112 = vrcp.pop %v5064
      %v5113 = vrcp.pop %v5065
      %v5114 = vrcp.pop %v5066
      %v5115 = vrcp.pop %v5067
      %v5116 = vrcp.pop %v5068
      %v5117 = vrcp.pop %v5069
      %v5118 = vrcp.pop %v5070
      %v5119 = vrcp.pop %v5071
      %v5120 = vrcp.pop %v5072
      %v5121 = vrcp.pop %v5073
      %v5122 = vrcp.pop %v5074
      %v5123 = vrcp.pop %v5075
      %v5124 = vrcp.pop %v5076
      %v5125 = vrcp.pop %v5077
      %v5126 = vrcp.pop %v5078
      %v5127 = vrcp.pop %v5079
      %v5128 = vrcp.pop %v5080
      %v5129 = vrcp.pop %v5081
      %v5130 = vrcp.pop %v5082
      %v5131 = vrcp.pop %v5083
      %v5132 = vrcp.pop %v5084
      %v5133 = vrcp.pop %v5085
      %v5134 = vrcp.pop %v5086
      %v5135 = vrcp.pop %v5087
      %v5136 = vrcp.pop %v5088
      %v5137 = vmul.f32 %v5089, %v4894
      %v5138 = vmul.f32 %v5090, %v4894
      %v5139 = vmul.f32 %v5091, %v4894
      %v5140 = vmul.f32 %v5092, %v4894
      %v5141 = vmul.f32 %v5093, %v4894
      %v5142 = vmul.f32 %v5094, %v4894
      %v5143 = vmul.f32 %v5095, %v4894
      %v5144 = vmul.f32 %v5096, %v4894
      %v5145 = vmul.f32 %v5097, %v4894
      %v5146 = vmul.f32 %v5098, %v4894
      %v5147 = vmul.f32 %v5099, %v4894
      %v5148 = vmul.f32 %v5100, %v4894
      %v5149 = vmul.f32 %v5101, %v4894
      %v5150 = vmul.f32 %v5102, %v4894
      %v5151 = vmul.f32 %v5103, %v4894
      %v5152 = vmul.f32 %v5104, %v4894
      %v5153 = vmul.f32 %v5105, %v4894
      %v5154 = vmul.f32 %v5106, %v4894
      %v5155 = vmul.f32 %v5107, %v4894
      %v5156 = vmul.f32 %v5108, %v4894
      %v5157 = vmul.f32 %v5109, %v4894
      %v5158 = vmul.f32 %v5110, %v4894
      %v5159 = vmul.f32 %v5111, %v4894
      %v5160 = vmul.f32 %v5112, %v4894
      %v5161 = vmul.f32 %v5113, %v4894
      %v5162 = vmul.f32 %v5114, %v4894
      %v5163 = vmul.f32 %v5115, %v4894
      %v5164 = vmul.f32 %v5116, %v4894
      %v5165 = vmul.f32 %v5117, %v4894
      %v5166 = vmul.f32 %v5118, %v4894
      %v5167 = vmul.f32 %v5119, %v4894
      %v5168 = vmul.f32 %v5120, %v4894
      %v5169 = vmul.f32 %v5121, %v4894
      %v5170 = vmul.f32 %v5122, %v4894
      %v5171 = vmul.f32 %v5123, %v4894
      %v5172 = vmul.f32 %v5124, %v4894
      %v5173 = vmul.f32 %v5125, %v4894
      %v5174 = vmul.f32 %v5126, %v4894
      %v5175 = vmul.f32 %v5127, %v4894
      %v5176 = vmul.f32 %v5128, %v4894
      %v5177 = vmul.f32 %v5129, %v4894
      %v5178 = vmul.f32 %v5130, %v4894
      %v5179 = vmul.f32 %v5131, %v4894
      %v5180 = vmul.f32 %v5132, %v4894
      %v5181 = vmul.f32 %v5133, %v4894
      %v5182 = vmul.f32 %v5134, %v4894
      %v5183 = vmul.f32 %v5135, %v4894
      %v5184 = vmul.f32 %v5136, %v4894
      %v5185 = vadd.f32 %v5137, %v4896
      %v5186 = vadd.f32 %v5138, %v4896
      %v5187 = vadd.f32 %v5139, %v4896
      %v5188 = vadd.f32 %v5140, %v4896
      %v5189 = vadd.f32 %v5141, %v4896
      %v5190 = vadd.f32 %v5142, %v4896
      %v5191 = vadd.f32 %v5143, %v4896
      %v5192 = vadd.f32 %v5144, %v4896
      %v5193 = vadd.f32 %v5145, %v4896
      %v5194 = vadd.f32 %v5146, %v4896
      %v5195 = vadd.f32 %v5147, %v4896
      %v5196 = vadd.f32 %v5148, %v4896
      %v5197 = vadd.f32 %v5149, %v4896
      %v5198 = vadd.f32 %v5150, %v4896
      %v5199 = vadd.f32 %v5151, %v4896
      %v5200 = vadd.f32 %v5152, %v4896
      %v5201 = vadd.f32 %v5153, %v4896
      %v5202 = vadd.f32 %v5154, %v4896
      %v5203 = vadd.f32 %v5155, %v4896
      %v5204 = vadd.f32 %v5156, %v4896
      %v5205 = vadd.f32 %v5157, %v4896
      %v5206 = vadd.f32 %v5158, %v4896
      %v5207 = vadd.f32 %v5159, %v4896
      %v5208 = vadd.f32 %v5160, %v4896
      %v5209 = vadd.f32 %v5161, %v4896
      %v5210 = vadd.f32 %v5162, %v4896
      %v5211 = vadd.f32 %v5163, %v4896
      %v5212 = vadd.f32 %v5164, %v4896
      %v5213 = vadd.f32 %v5165, %v4896
      %v5214 = vadd.f32 %v5166, %v4896
      %v5215 = vadd.f32 %v5167, %v4896
      %v5216 = vadd.f32 %v5168, %v4896
      %v5217 = vadd.f32 %v5169, %v4896
      %v5218 = vadd.f32 %v5170, %v4896
      %v5219 = vadd.f32 %v5171, %v4896
      %v5220 = vadd.f32 %v5172, %v4896
      %v5221 = vadd.f32 %v5173, %v4896
      %v5222 = vadd.f32 %v5174, %v4896
      %v5223 = vadd.f32 %v5175, %v4896
      %v5224 = vadd.f32 %v5176, %v4896
      %v5225 = vadd.f32 %v5177, %v4896
      %v5226 = vadd.f32 %v5178, %v4896
      %v5227 = vadd.f32 %v5179, %v4896
      %v5228 = vadd.f32 %v5180, %v4896
      %v5229 = vadd.f32 %v5181, %v4896
      %v5230 = vadd.f32 %v5182, %v4896
      %v5231 = vadd.f32 %v5183, %v4896
      %v5232 = vadd.f32 %v5184, %v4896
      %v5233 = vsel %vm4892, %v5185, %v4843
      %v5234 = vsel %vm4892, %v5186, %v4844
      %v5235 = vsel %vm4892, %v5187, %v4845
      %v5236 = vsel %vm4892, %v5188, %v4846
      %v5237 = vsel %vm4892, %v5189, %v4847
      %v5238 = vsel %vm4892, %v5190, %v4848
      %v5239 = vsel %vm4892, %v5191, %v4849
      %v5240 = vsel %vm4892, %v5192, %v4850
      %v5241 = vsel %vm4892, %v5193, %v4851
      %v5242 = vsel %vm4892, %v5194, %v4852
      %v5243 = vsel %vm4892, %v5195, %v4853
      %v5244 = vsel %vm4892, %v5196, %v4854
      %v5245 = vsel %vm4892, %v5197, %v4855
      %v5246 = vsel %vm4892, %v5198, %v4856
      %v5247 = vsel %vm4892, %v5199, %v4857
      %v5248 = vsel %vm4892, %v5200, %v4858
      %v5249 = vsel %vm4892, %v5201, %v4859
      %v5250 = vsel %vm4892, %v5202, %v4860
      %v5251 = vsel %vm4892, %v5203, %v4861
      %v5252 = vsel %vm4892, %v5204, %v4862
      %v5253 = vsel %vm4892, %v5205, %v4863
      %v5254 = vsel %vm4892, %v5206, %v4864
      %v5255 = vsel %vm4892, %v5207, %v4865
      %v5256 = vsel %vm4892, %v5208, %v4866
      %v5257 = vsel %vm4892, %v5209, %v4867
      %v5258 = vsel %vm4892, %v5210, %v4868
      %v5259 = vsel %vm4892, %v5211, %v4869
      %v5260 = vsel %vm4892, %v5212, %v4870
      %v5261 = vsel %vm4892, %v5213, %v4871
      %v5262 = vsel %vm4892, %v5214, %v4872
      %v5263 = vsel %vm4892, %v5215, %v4873
      %v5264 = vsel %vm4892, %v5216, %v4874
      %v5265 = vsel %vm4892, %v5217, %v4875
      %v5266 = vsel %vm4892, %v5218, %v4876
      %v5267 = vsel %vm4892, %v5219, %v4877
      %v5268 = vsel %vm4892, %v5220, %v4878
      %v5269 = vsel %vm4892, %v5221, %v4879
      %v5270 = vsel %vm4892, %v5222, %v4880
      %v5271 = vsel %vm4892, %v5223, %v4881
      %v5272 = vsel %vm4892, %v5224, %v4882
      %v5273 = vsel %vm4892, %v5225, %v4883
      %v5274 = vsel %vm4892, %v5226, %v4884
      %v5275 = vsel %vm4892, %v5227, %v4885
      %v5276 = vsel %vm4892, %v5228, %v4886
      %v5277 = vsel %vm4892, %v5229, %v4887
      %v5278 = vsel %vm4892, %v5230, %v4888
      %v5279 = vsel %vm4892, %v5231, %v4889
      %v5280 = vsel %vm4892, %v5232, %v4890
      %5281 = vst [vmem:[%s491] sm:$0xff] %v5233
      %5282 = vst [vmem:[%s491 + $0x8] sm:$0xff] %v5234
      %5283 = vst [vmem:[%s491 + $0x10] sm:$0xff] %v5235
      %5284 = vst [vmem:[%s491 + $0x18] sm:$0xff] %v5236
      %5285 = vst [vmem:[%s491 + $0x20] sm:$0xff] %v5237
      %5286 = vst [vmem:[%s491 + $0x28] sm:$0xff] %v5238
      %5287 = vst [vmem:[%s491 + $0x30] sm:$0xff] %v5239
      %5288 = vst [vmem:[%s491 + $0x38] sm:$0xff] %v5240
      %5289 = vst [vmem:[%s491 + $0x40] sm:$0xff] %v5241
      %5290 = vst [vmem:[%s491 + $0x48] sm:$0xff] %v5242
      %5291 = vst [vmem:[%s491 + $0x50] sm:$0xff] %v5243
      %5292 = vst [vmem:[%s491 + $0x58] sm:$0xff] %v5244
      %5293 = vst [vmem:[%s491 + $0x60] sm:$0xff] %v5245
      %5294 = vst [vmem:[%s491 + $0x68] sm:$0xff] %v5246
      %5295 = vst [vmem:[%s491 + $0x70] sm:$0xff] %v5247
      %5296 = vst [vmem:[%s491 + $0x78] sm:$0xff] %v5248
      %5297 = vst [vmem:[%s491 + $0x80] sm:$0xff] %v5249
      %5298 = vst [vmem:[%s491 + $0x88] sm:$0xff] %v5250
      %5299 = vst [vmem:[%s491 + $0x90] sm:$0xff] %v5251
      %5300 = vst [vmem:[%s491 + $0x98] sm:$0xff] %v5252
      %5301 = vst [vmem:[%s491 + $0xa0] sm:$0xff] %v5253
      %5302 = vst [vmem:[%s491 + $0xa8] sm:$0xff] %v5254
      %5303 = vst [vmem:[%s491 + $0xb0] sm:$0xff] %v5255
      %5304 = vst [vmem:[%s491 + $0xb8] sm:$0xff] %v5256
      %5305 = vst [vmem:[%s491 + $0xc0] sm:$0xff] %v5257
      %5306 = vst [vmem:[%s491 + $0xc8] sm:$0xff] %v5258
      %5307 = vst [vmem:[%s491 + $0xd0] sm:$0xff] %v5259
      %5308 = vst [vmem:[%s491 + $0xd8] sm:$0xff] %v5260
      %5309 = vst [vmem:[%s491 + $0xe0] sm:$0xff] %v5261
      %5310 = vst [vmem:[%s491 + $0xe8] sm:$0xff] %v5262
      %5311 = vst [vmem:[%s491 + $0xf0] sm:$0xff] %v5263
      %5312 = vst [vmem:[%s491 + $0xf8] sm:$0xff] %v5264
      %5313 = vst [vmem:[%s491 + $0x100] sm:$0xff] %v5265
      %5314 = vst [vmem:[%s491 + $0x108] sm:$0xff] %v5266
      %5315 = vst [vmem:[%s491 + $0x110] sm:$0xff] %v5267
      %5316 = vst [vmem:[%s491 + $0x118] sm:$0xff] %v5268
      %5317 = vst [vmem:[%s491 + $0x120] sm:$0xff] %v5269
      %5318 = vst [vmem:[%s491 + $0x128] sm:$0xff] %v5270
      %5319 = vst [vmem:[%s491 + $0x130] sm:$0xff] %v5271
      %5320 = vst [vmem:[%s491 + $0x138] sm:$0xff] %v5272
      %5321 = vst [vmem:[%s491 + $0x140] sm:$0xff] %v5273
      %5322 = vst [vmem:[%s491 + $0x148] sm:$0xff] %v5274
      %5323 = vst [vmem:[%s491 + $0x150] sm:$0xff] %v5275
      %5324 = vst [vmem:[%s491 + $0x158] sm:$0xff] %v5276
      %5325 = vst [vmem:[%s491 + $0x160] sm:$0xff] %v5277
      %5326 = vst [vmem:[%s491 + $0x168] sm:$0xff] %v5278
      %5327 = vst [vmem:[%s491 + $0x170] sm:$0xff] %v5279
      %5328 = vst [vmem:[%s491 + $0x178] sm:$0xff] %v5280
      %s5329 = smul.u32 48, %s25
      %p5330 = scmp.lt.s32.totalorder %s5329, 95
      %s5331 = scalar_select %p5330, %s5329, 95
      %s5332 = smul.addr %s5331, 8
      %s5333 = scalar_lea.vmem %s14, %s5332
      // Predicated region
      $region77: #{stereo_track_head_forward.3} parent=75 // pred_check
        %p5334 = pneg %p347
      $region78: #{stereo_track_head_forward.3} parent=75 // pred_check_branch
        %5336 = sbr.rel (%p5334) target = $region80
      $region79: #{stereo_track_head_forward.3} parent=75 // pred_region
        %s5337 = smul.u32 48, %s25
      $region80: #{stereo_track_head_forward.3} parent=75 // pred_fallthru
        _
    $region76: #{stereo_track_head_forward.3} parent=5 // pred_fallthru
      _
    %p5338 = scmp.le.s32.totalorder 2, %s20
    // Predicated region
    $region81: #{stereo_track_head_forward.3} parent=5 // pred_check
      %p5339 = pneg %p5338
    $region82: #{stereo_track_head_forward.3} parent=5 // pred_check_branch
      %5341 = sbr.rel (%p5339) target = $region84
    $region83: #{stereo_track_head_forward.3} parent=5 // pred_region
      %s5342 = ssub.s32 %s20, 2
      // Predicated region
      $region85: #{stereo_track_head_forward.3} parent=83 // pred_check
        %p5343 = pneg %p353
      $region86: #{stereo_track_head_forward.3} parent=83 // pred_check_branch
        %5345 = sbr.rel (%p5343) target = $region88
      $region87: #{stereo_track_head_forward.3} parent=83 // pred_region
        %s5346 = smul.u32 48, %s26
        %p5347 = scmp.lt.s32.totalorder %s5346, 95
        %s5348 = scalar_select %p5347, %s5346, 95
        %s5349 = smul.addr %s5348, 8
        %s5350 = scalar_lea.vmem %s14, %s5349
      $region88: #{stereo_track_head_forward.3} parent=83 // pred_fallthru
        _
    $region84: #{stereo_track_head_forward.3} parent=5 // pred_fallthru
      _
  $region6: #{stereo_track_head_forward.3} parent=0 // loop_footer
    %s24 = sadd.s32 1, %s20
  $region7: #{stereo_track_head_forward.3} parent=0 // loop_footer_branch
    %19 = sbr.rel target = $region3
  $region8: #{stereo_track_head_forward.3} parent=0 // loop_exit
    _

// kernel: stereo_track_head_forward.2
$region0: #{stereo_track_head_forward.2}
  #allocation0 [shape = 'u32[]', space=smem, size = 0x4, offset = 0x4, fixed_abs, tag = 'smem constant byte address 0x4 - core index']
  #allocation1 [shape = 'u32[144,128]{1,0:T(1,128)}', space=vmem, size = 0x12000, scoped, tag = 'internal scratch']
  #allocation2 [shape = 'f32[326,128]{1,0:T(8,128)}', space=vmem, size = 0x29000, scoped, tag = 'scratch operand']
  %s0 = inlined_call_operand.vmem [shape: bf16[2,288,64], index: 0, kind: input, shape index: {}]
  %s1 = inlined_call_operand.vmem [shape: f32[288,1], index: 1, kind: input, shape index: {}]
  %s2 = inlined_call_operand.vmem [shape: bf16[64,128], index: 2, kind: input, shape index: {}]
  %s3 = inlined_call_operand.vmem [shape: f32[1,128], index: 3, kind: input, shape index: {}]
  %s4 = inlined_call_operand.vmem [shape: bf16[1152,128], index: 4, kind: input, shape index: {}]
  %s5 = inlined_call_operand.vmem [shape: f32[1,128], index: 5, kind: input, shape index: {}]
  %s6 = inlined_call_operand.vmem [shape: f32[1,128], index: 6, kind: input, shape index: {}]
  %s7 = inlined_call_operand.vmem [shape: f32[2,256,128], index: 7, kind: output, shape index: {0}]
  %s8 = inlined_call_operand.vmem [shape: f32[2,128,256], index: 8, kind: output, shape index: {1}]
  %9 = xla_tuple %s7, %s8
  %s10 = sld [smem:[#allocation0]]
  $region69: #{stereo_track_head_forward.2} parent=0
    _
  %s12 = ssub.s32 1, %s10
  %s13 = scalar_select 0, %s12, %s10
  loop: start=0, step=1, limit=4
  $region2: #{stereo_track_head_forward.2} parent=0 // loop_pre_header
    _
  $region3: #{stereo_track_head_forward.2} parent=0 // loop_header
    %s15 = sphi 0, %s19
    %p16 = scmp.ge.s32.totalorder %s15, 4
    %s25 = sphi 0, %s27
    %s28 = sphi 0, %s25
    %s29 = sphi 0, %s28
    %s45 = sphi 0, %s29
    %s49 = sphi 0, %s49
    %s51 = sphi 0, %s49
    %s52 = sphi 0, %s51
    %s66 = sphi 0, %s52
    %s70 = sphi 0, %s70
    %s72 = sphi 0, %s70
    %s73 = sphi 0, %s72
    %s87 = sphi 0, %s73
    %s91 = sphi 0, %s91
    %s93 = sphi 0, %s91
    %s94 = sphi 0, %s93
    %s108 = sphi 0, %s94
    %s112 = sphi 0, %s112
    %s114 = sphi 0, %s112
    %s115 = sphi 0, %s114
    %s129 = sphi 0, %s115
    %s133 = sphi 0, %s133
    %s135 = sphi 0, %s133
    %s136 = sphi 0, %s135
    %s150 = sphi 0, %s136
    %s154 = sphi 0, %s154
    %s156 = sphi 0, %s154
    %s157 = sphi 0, %s156
    %s171 = sphi 0, %s157
    %s177 = sphi 0, %s179
    %s180 = sphi 0, %s177
    %s181 = sphi 0, %s180
    %s197 = sphi 0, %s181
    %s203 = sphi 0, %s205
    %s206 = sphi 0, %s203
    %s207 = sphi 0, %s206
    %s223 = sphi 0, %s207
  $region4: #{stereo_track_head_forward.2} parent=0 // loop_header_branch
    %18 = sbr.rel (%p16) target = $region8
  $region5: #{stereo_track_head_forward.2} parent=0 // loop_body
    %s20 = ssub.s32 %s15, 1
    %s21 = ssub.s32 %s15, 2
    %s22 = sadd.s32 %s15, 1
    %s23 = ssub.s32 %s15, %s22
    %p24 = scmp.eq.s32.totalorder %s23, 0
    %s26 = sadd.s32 %s25, 1
    %s27 = scalar_select %p24, %s25, %s26
    %p30 = pneg %p24
    %p31 = scmp.eq.s32.totalorder %s15, 1
    %p32 = por %p30, %p31
    %p33 = scmp.ne.s32.totalorder %s25, %s28
    %p34 = scmp.eq.s32.totalorder %s15, 0
    %p35 = por %p33, %p34
    %p36 = scmp.ne.s32.totalorder %s25, %s28
    %p37 = scmp.eq.s32.totalorder %s20, 1
    %p38 = por %p36, %p37
    %p39 = scmp.ne.s32.totalorder %s28, %s29
    %p40 = scmp.eq.s32.totalorder %s20, 0
    %p41 = por %p39, %p40
    %p42 = scmp.ne.s32.totalorder %s28, %s29
    %p43 = scmp.eq.s32.totalorder %s21, 1
    %p44 = por %p42, %p43
    %p46 = scmp.ne.s32.totalorder %s29, %s45
    %p47 = scmp.eq.s32.totalorder %s21, 0
    %p48 = por %p46, %p47
    %s50 = sadd.s32 %s49, 1
    %p53 = scmp.eq.s32.totalorder %s15, 1
    %p54 = scmp.ne.s32.totalorder %s49, %s51
    %p55 = scmp.eq.s32.totalorder %s15, 0
    %p56 = por %p54, %p55
    %p57 = scmp.ne.s32.totalorder %s49, %s51
    %p58 = scmp.eq.s32.totalorder %s20, 1
    %p59 = por %p57, %p58
    %p60 = scmp.ne.s32.totalorder %s51, %s52
    %p61 = scmp.eq.s32.totalorder %s20, 0
    %p62 = por %p60, %p61
    %p63 = scmp.ne.s32.totalorder %s51, %s52
    %p64 = scmp.eq.s32.totalorder %s21, 1
    %p65 = por %p63, %p64
    %p67 = scmp.ne.s32.totalorder %s52, %s66
    %p68 = scmp.eq.s32.totalorder %s21, 0
    %p69 = por %p67, %p68
    %s71 = sadd.s32 %s70, 1
    %p74 = scmp.eq.s32.totalorder %s15, 1
    %p75 = scmp.ne.s32.totalorder %s70, %s72
    %p76 = scmp.eq.s32.totalorder %s15, 0
    %p77 = por %p75, %p76
    %p78 = scmp.ne.s32.totalorder %s70, %s72
    %p79 = scmp.eq.s32.totalorder %s20, 1
    %p80 = por %p78, %p79
    %p81 = scmp.ne.s32.totalorder %s72, %s73
    %p82 = scmp.eq.s32.totalorder %s20, 0
    %p83 = por %p81, %p82
    %p84 = scmp.ne.s32.totalorder %s72, %s73
    %p85 = scmp.eq.s32.totalorder %s21, 1
    %p86 = por %p84, %p85
    %p88 = scmp.ne.s32.totalorder %s73, %s87
    %p89 = scmp.eq.s32.totalorder %s21, 0
    %p90 = por %p88, %p89
    %s92 = sadd.s32 %s91, 1
    %p95 = scmp.eq.s32.totalorder %s15, 1
    %p96 = scmp.ne.s32.totalorder %s91, %s93
    %p97 = scmp.eq.s32.totalorder %s15, 0
    %p98 = por %p96, %p97
    %p99 = scmp.ne.s32.totalorder %s91, %s93
    %p100 = scmp.eq.s32.totalorder %s20, 1
    %p101 = por %p99, %p100
    %p102 = scmp.ne.s32.totalorder %s93, %s94
    %p103 = scmp.eq.s32.totalorder %s20, 0
    %p104 = por %p102, %p103
    %p105 = scmp.ne.s32.totalorder %s93, %s94
    %p106 = scmp.eq.s32.totalorder %s21, 1
    %p107 = por %p105, %p106
    %p109 = scmp.ne.s32.totalorder %s94, %s108
    %p110 = scmp.eq.s32.totalorder %s21, 0
    %p111 = por %p109, %p110
    %s113 = sadd.s32 %s112, 1
    %p116 = scmp.eq.s32.totalorder %s15, 1
    %p117 = scmp.ne.s32.totalorder %s112, %s114
    %p118 = scmp.eq.s32.totalorder %s15, 0
    %p119 = por %p117, %p118
    %p120 = scmp.ne.s32.totalorder %s112, %s114
    %p121 = scmp.eq.s32.totalorder %s20, 1
    %p122 = por %p120, %p121
    %p123 = scmp.ne.s32.totalorder %s114, %s115
    %p124 = scmp.eq.s32.totalorder %s20, 0
    %p125 = por %p123, %p124
    %p126 = scmp.ne.s32.totalorder %s114, %s115
    %p127 = scmp.eq.s32.totalorder %s21, 1
    %p128 = por %p126, %p127
    %p130 = scmp.ne.s32.totalorder %s115, %s129
    %p131 = scmp.eq.s32.totalorder %s21, 0
    %p132 = por %p130, %p131
    %s134 = sadd.s32 %s133, 1
    %p137 = scmp.eq.s32.totalorder %s15, 1
    %p138 = scmp.ne.s32.totalorder %s133, %s135
    %p139 = scmp.eq.s32.totalorder %s15, 0
    %p140 = por %p138, %p139
    %p141 = scmp.ne.s32.totalorder %s133, %s135
    %p142 = scmp.eq.s32.totalorder %s20, 1
    %p143 = por %p141, %p142
    %p144 = scmp.ne.s32.totalorder %s135, %s136
    %p145 = scmp.eq.s32.totalorder %s20, 0
    %p146 = por %p144, %p145
    %p147 = scmp.ne.s32.totalorder %s135, %s136
    %p148 = scmp.eq.s32.totalorder %s21, 1
    %p149 = por %p147, %p148
    %p151 = scmp.ne.s32.totalorder %s136, %s150
    %p152 = scmp.eq.s32.totalorder %s21, 0
    %p153 = por %p151, %p152
    %s155 = sadd.s32 %s154, 1
    %p158 = scmp.eq.s32.totalorder %s15, 1
    %p159 = scmp.ne.s32.totalorder %s154, %s156
    %p160 = scmp.eq.s32.totalorder %s15, 0
    %p161 = por %p159, %p160
    %p162 = scmp.ne.s32.totalorder %s154, %s156
    %p163 = scmp.eq.s32.totalorder %s20, 1
    %p164 = por %p162, %p163
    %p165 = scmp.ne.s32.totalorder %s156, %s157
    %p166 = scmp.eq.s32.totalorder %s20, 0
    %p167 = por %p165, %p166
    %p168 = scmp.ne.s32.totalorder %s156, %s157
    %p169 = scmp.eq.s32.totalorder %s21, 1
    %p170 = por %p168, %p169
    %p172 = scmp.ne.s32.totalorder %s157, %s171
    %p173 = scmp.eq.s32.totalorder %s21, 0
    %p174 = por %p172, %p173
    %s175 = ssub.s32 %s15, %s22
    %p176 = scmp.eq.s32.totalorder %s175, 0
    %s178 = sadd.s32 %s177, 1
    %s179 = scalar_select %p176, %s177, %s178
    %p182 = pneg %p176
    %p183 = scmp.eq.s32.totalorder %s15, 1
    %p184 = por %p182, %p183
    %p185 = scmp.ne.s32.totalorder %s177, %s180
    %p186 = scmp.eq.s32.totalorder %s15, 0
    %p187 = por %p185, %p186
    %p188 = scmp.ne.s32.totalorder %s177, %s180
    %p189 = scmp.eq.s32.totalorder %s20, 1
    %p190 = por %p188, %p189
    %p191 = scmp.ne.s32.totalorder %s180, %s181
    %p192 = scmp.eq.s32.totalorder %s20, 0
    %p193 = por %p191, %p192
    %p194 = scmp.ne.s32.totalorder %s180, %s181
    %p195 = scmp.eq.s32.totalorder %s21, 1
    %p196 = por %p194, %p195
    %p198 = scmp.ne.s32.totalorder %s181, %s197
    %p199 = scmp.eq.s32.totalorder %s21, 0
    %p200 = por %p198, %p199
    %s201 = ssub.s32 %s15, %s22
    %p202 = scmp.eq.s32.totalorder %s201, 0
    %s204 = sadd.s32 %s203, 1
    %s205 = scalar_select %p202, %s203, %s204
    %p208 = pneg %p202
    %p209 = scmp.eq.s32.totalorder %s15, 1
    %p210 = por %p208, %p209
    %p211 = scmp.ne.s32.totalorder %s203, %s206
    %p212 = scmp.eq.s32.totalorder %s15, 0
    %p213 = por %p211, %p212
    %p214 = scmp.ne.s32.totalorder %s203, %s206
    %p215 = scmp.eq.s32.totalorder %s20, 1
    %p216 = por %p214, %p215
    %p217 = scmp.ne.s32.totalorder %s206, %s207
    %p218 = scmp.eq.s32.totalorder %s20, 0
    %p219 = por %p217, %p218
    %p220 = scmp.ne.s32.totalorder %s206, %s207
    %p221 = scmp.eq.s32.totalorder %s21, 1
    %p222 = por %p220, %p221
    %p224 = scmp.ne.s32.totalorder %s207, %s223
    %p225 = scmp.eq.s32.totalorder %s21, 0
    %p226 = por %p224, %p225
    %p227 = scmp.le.s32.totalorder 1, %s15
    %p228 = scmp.lt.s32.totalorder %s15, 3
    %p229 = pnand %p227, %p228
    %p230 = pneg %p229
    // Predicated region
    $region9: #{stereo_track_head_forward.2} parent=5 // pred_check
      _
    $region10: #{stereo_track_head_forward.2} parent=5 // pred_check_branch
      %232 = sbr.rel (%p229) target = $region12
    $region11: #{stereo_track_head_forward.2} parent=5 // pred_region
      %s233 = ssub.s32 %s15, 1
      // Predicated region
      $region13: #{stereo_track_head_forward.2} parent=11 // pred_check
        %p234 = pneg %p62
      $region14: #{stereo_track_head_forward.2} parent=11 // pred_check_branch
        %236 = sbr.rel (%p234) target = $region16
      $region15: #{stereo_track_head_forward.2} parent=11 // pred_region
        _
      $region16: #{stereo_track_head_forward.2} parent=11 // pred_fallthru
        _
      // Predicated region
      $region17: #{stereo_track_head_forward.2} parent=11 // pred_check
        %p237 = pneg %p83
      $region18: #{stereo_track_head_forward.2} parent=11 // pred_check_branch
        %239 = sbr.rel (%p237) target = $region20
      $region19: #{stereo_track_head_forward.2} parent=11 // pred_region
        _
      $region20: #{stereo_track_head_forward.2} parent=11 // pred_fallthru
        _
      // Predicated region
      $region21: #{stereo_track_head_forward.2} parent=11 // pred_check
        %p240 = pneg %p104
      $region22: #{stereo_track_head_forward.2} parent=11 // pred_check_branch
        %242 = sbr.rel (%p240) target = $region24
      $region23: #{stereo_track_head_forward.2} parent=11 // pred_region
        _
      $region24: #{stereo_track_head_forward.2} parent=11 // pred_fallthru
        _
      // Predicated region
      $region25: #{stereo_track_head_forward.2} parent=11 // pred_check
        %p243 = pneg %p125
      $region26: #{stereo_track_head_forward.2} parent=11 // pred_check_branch
        %245 = sbr.rel (%p243) target = $region28
      $region27: #{stereo_track_head_forward.2} parent=11 // pred_region
        _
      $region28: #{stereo_track_head_forward.2} parent=11 // pred_fallthru
        _
      // Predicated region
      $region29: #{stereo_track_head_forward.2} parent=11 // pred_check
        %p246 = pneg %p146
      $region30: #{stereo_track_head_forward.2} parent=11 // pred_check_branch
        %248 = sbr.rel (%p246) target = $region32
      $region31: #{stereo_track_head_forward.2} parent=11 // pred_region
        _
      $region32: #{stereo_track_head_forward.2} parent=11 // pred_fallthru
        _
      // Predicated region
      $region33: #{stereo_track_head_forward.2} parent=11 // pred_check
        %p249 = pneg %p167
      $region34: #{stereo_track_head_forward.2} parent=11 // pred_check_branch
        %251 = sbr.rel (%p249) target = $region36
      $region35: #{stereo_track_head_forward.2} parent=11 // pred_region
        _
      $region36: #{stereo_track_head_forward.2} parent=11 // pred_fallthru
        _
    $region12: #{stereo_track_head_forward.2} parent=5 // pred_fallthru
      _
    %p252 = scmp.lt.s32.totalorder %s15, 2
    // Predicated region
    $region37: #{stereo_track_head_forward.2} parent=5 // pred_check
      %p253 = pneg %p252
    $region38: #{stereo_track_head_forward.2} parent=5 // pred_check_branch
      %255 = sbr.rel (%p253) target = $region40
    $region39: #{stereo_track_head_forward.2} parent=5 // pred_region
      // Predicated region
      $region41: #{stereo_track_head_forward.2} parent=39 // pred_check
        %p256 = pneg %p35
      $region42: #{stereo_track_head_forward.2} parent=39 // pred_check_branch
        %258 = sbr.rel (%p256) target = $region44
      $region43: #{stereo_track_head_forward.2} parent=39 // pred_region
        %p259 = scmp.lt.s32.totalorder %s15, 1
        %s260 = scalar_select %p259, %s15, 1
        %s261 = smul.addr %s260, 36
        %s262 = smul.addr %s261, 4
        %s263 = scalar_lea.vmem %s0, %s262
      $region44: #{stereo_track_head_forward.2} parent=39 // pred_fallthru
        _
    $region40: #{stereo_track_head_forward.2} parent=5 // pred_fallthru
      _
    %p264 = scmp.le.s32.totalorder 1, %s15
    %p265 = scmp.lt.s32.totalorder %s15, 3
    %p266 = pnand %p264, %p265
    %p267 = pneg %p266
    // Predicated region
    $region45: #{stereo_track_head_forward.2} parent=5 // pred_check
      _
    $region46: #{stereo_track_head_forward.2} parent=5 // pred_check_branch
      %269 = sbr.rel (%p266) target = $region48
    $region47: #{stereo_track_head_forward.2} parent=5 // pred_region
      %s270 = ssub.s32 %s15, 1
      %p271 = scmp.lt.s32.totalorder %s20, 1
      %s272 = scalar_select %p271, %s20, 1
      %s273 = smul.addr %s272, 36
      %s274 = smul.addr %s273, 4
      %s275 = scalar_lea.vmem %s0, %s274
      %p276 = pneg %p41
      %p277 = pneg %p38
      %p278 = pneg %p62
      %p279 = pneg %p59
      %p280 = pneg %p83
      %p281 = pneg %p80
      %p282 = pneg %p104
      %p283 = pneg %p101
      %p284 = pneg %p125
      %p285 = pneg %p122
      %p286 = pneg %p146
      %p287 = pneg %p143
      %p288 = pneg %p167
      %p289 = pneg %p164
      %p290 = pneg %p193
      %p291 = pneg %p190
      %p292 = scmp.lt.s32.totalorder %s20, 1
      %s293 = scalar_select %p292, %s20, 1
      %s294 = smul.addr %s293, 32
      %s295 = smul.addr %s294, 8
      %s296 = scalar_lea.vmem %s7, %s295
      %p297 = pneg %p219
      %p298 = pneg %p216
      %p299 = scmp.lt.s32.totalorder %s20, 1
      %s300 = scalar_select %p299, %s20, 1
      %s301 = smul.addr %s300, 32
      %s302 = smul.addr %s301, 8
      %s303 = scalar_lea.vmem %s8, %s302
      %p304 = scmp.lt.s32.totalorder %s20, 1
      %s305 = scalar_select %p304, %s20, 1
      %s306 = smul.addr %s305, 36
      %s307 = smul.addr %s306, 4
      %s308 = scalar_lea.vmem %s0, %s307
      %p309 = scmp.lt.s32.totalorder %s20, 1
      %s310 = scalar_select %p309, %s20, 1
      %s311 = smul.addr %s310, 32
      %s312 = smul.addr %s311, 8
      %s313 = scalar_lea.vmem %s7, %s312
      %p314 = scmp.lt.s32.totalorder %s20, 1
      %s315 = scalar_select %p314, %s20, 1
      %s316 = smul.addr %s315, 32
      %s317 = smul.addr %s316, 8
      %s318 = scalar_lea.vmem %s8, %s317
      %v320 = vld [vmem:[%s1] sm:$0xff]
      %v321 = vld [vmem:[%s1 + $0x8] sm:$0xff]
      %v322 = vld [vmem:[%s1 + $0x10] sm:$0xff]
      %v323 = vld [vmem:[%s1 + $0x18] sm:$0xff]
      %v324 = vld [vmem:[%s1 + $0x20] sm:$0xff]
      %v325 = vld [vmem:[%s1 + $0x28] sm:$0xff]
      %v326 = vld [vmem:[%s1 + $0x30] sm:$0xff]
      %v327 = vld [vmem:[%s1 + $0x38] sm:$0xff]
      %v328 = vld [vmem:[%s1 + $0x40] sm:$0xff]
      %v329 = vld [vmem:[%s1 + $0x48] sm:$0xff]
      %v330 = vld [vmem:[%s1 + $0x50] sm:$0xff]
      %v331 = vld [vmem:[%s1 + $0x58] sm:$0xff]
      %v332 = vld [vmem:[%s1 + $0x60] sm:$0xff]
      %v333 = vld [vmem:[%s1 + $0x68] sm:$0xff]
      %v334 = vld [vmem:[%s1 + $0x70] sm:$0xff]
      %v335 = vld [vmem:[%s1 + $0x78] sm:$0xff]
      %v336 = vld [vmem:[%s1 + $0x80] sm:$0xff]
      %v337 = vld [vmem:[%s1 + $0x88] sm:$0xff]
      %v338 = vld [vmem:[%s1 + $0x90] sm:$0xff]
      %v339 = vld [vmem:[%s1 + $0x98] sm:$0xff]
      %v340 = vld [vmem:[%s1 + $0xa0] sm:$0xff]
      %v341 = vld [vmem:[%s1 + $0xa8] sm:$0xff]
      %v342 = vld [vmem:[%s1 + $0xb0] sm:$0xff]
      %v343 = vld [vmem:[%s1 + $0xb8] sm:$0xff]
      %v344 = vld [vmem:[%s1 + $0xc0] sm:$0xff]
      %v345 = vld [vmem:[%s1 + $0xc8] sm:$0xff]
      %v346 = vld [vmem:[%s1 + $0xd0] sm:$0xff]
      %v347 = vld [vmem:[%s1 + $0xd8] sm:$0xff]
      %v348 = vld [vmem:[%s1 + $0xe0] sm:$0xff]
      %v349 = vld [vmem:[%s1 + $0xe8] sm:$0xff]
      %v350 = vld [vmem:[%s1 + $0xf0] sm:$0xff]
      %v351 = vld [vmem:[%s1 + $0xf8] sm:$0xff]
      %v352 = vld [vmem:[%s1 + $0x100] sm:$0xff]
      %v353 = vld [vmem:[%s1 + $0x108] sm:$0xff]
      %v354 = vld [vmem:[%s1 + $0x110] sm:$0xff]
      %v355 = vld [vmem:[%s1 + $0x118] sm:$0xff]
      %356 = vst [vmem:[#allocation2] sm:$0xff] 0.0
      %357 = vst [vmem:[#allocation2 + $0x8] sm:$0xff] 0.0
      %358 = vst [vmem:[#allocation2 + $0x10] sm:$0x7] 0.0
      %359 = vst [vmem:[#allocation2 + $0x133] sm:$0xff] 0.0
      %360 = vst [vmem:[#allocation2 + $0x13b] sm:$0xff] 0.0
      %361 = vst [vmem:[#allocation2 + $0x143] sm:$0x7] 0.0
      %v362 = vld [vmem:[%s308] sm:$0xf]
      %v363 = vld [vmem:[%s308 + $0x4] sm:$0xf]
      %v364 = vld [vmem:[%s308 + $0x8] sm:$0xf]
      %v365 = vld [vmem:[%s308 + $0xc] sm:$0xf]
      %v366 = vld [vmem:[%s308 + $0x10] sm:$0xf]
      %v367 = vld [vmem:[%s308 + $0x14] sm:$0xf]
      %v368 = vld [vmem:[%s308 + $0x18] sm:$0xf]
      %v369 = vld [vmem:[%s308 + $0x1c] sm:$0xf]
      %v370 = vld [vmem:[%s308 + $0x20] sm:$0xf]
      %v371 = vld [vmem:[%s308 + $0x24] sm:$0xf]
      %v372 = vld [vmem:[%s308 + $0x28] sm:$0xf]
      %v373 = vld [vmem:[%s308 + $0x2c] sm:$0xf]
      %v374 = vld [vmem:[%s308 + $0x30] sm:$0xf]
      %v375 = vld [vmem:[%s308 + $0x34] sm:$0xf]
      %v376 = vld [vmem:[%s308 + $0x38] sm:$0xf]
      %v377 = vld [vmem:[%s308 + $0x3c] sm:$0xf]
      %v378 = vld [vmem:[%s308 + $0x40] sm:$0xf]
      %v379 = vld [vmem:[%s308 + $0x44] sm:$0xf]
      %v380 = vld [vmem:[%s308 + $0x48] sm:$0xf]
      %v381 = vld [vmem:[%s308 + $0x4c] sm:$0xf]
      %v382 = vld [vmem:[%s308 + $0x50] sm:$0xf]
      %v383 = vld [vmem:[%s308 + $0x54] sm:$0xf]
      %v384 = vld [vmem:[%s308 + $0x58] sm:$0xf]
      %v385 = vld [vmem:[%s308 + $0x5c] sm:$0xf]
      %v386 = vld [vmem:[%s308 + $0x60] sm:$0xf]
      %v387 = vld [vmem:[%s308 + $0x64] sm:$0xf]
      %v388 = vld [vmem:[%s308 + $0x68] sm:$0xf]
      %v389 = vld [vmem:[%s308 + $0x6c] sm:$0xf]
      %v390 = vld [vmem:[%s308 + $0x70] sm:$0xf]
      %v391 = vld [vmem:[%s308 + $0x74] sm:$0xf]
      %v392 = vld [vmem:[%s308 + $0x78] sm:$0xf]
      %v393 = vld [vmem:[%s308 + $0x7c] sm:$0xf]
      %v394 = vld [vmem:[%s308 + $0x80] sm:$0xf]
      %v395 = vld [vmem:[%s308 + $0x84] sm:$0xf]
      %v396 = vld [vmem:[%s308 + $0x88] sm:$0xf]
      %v397 = vld [vmem:[%s308 + $0x8c] sm:$0xf]
      %v398 = vld [vmem:[%s2] sm:$0xf]
      %v399 = vld [vmem:[%s2 + $0x4] sm:$0xf]
      %v400 = vld [vmem:[%s2 + $0x8] sm:$0xf]
      %v401 = vld [vmem:[%s2 + $0xc] sm:$0xf]
      %v402 = vld [vmem:[%s2 + $0x10] sm:$0xf]
      %v403 = vld [vmem:[%s2 + $0x14] sm:$0xf]
      %v404 = vld [vmem:[%s2 + $0x18] sm:$0xf]
      %v405 = vld [vmem:[%s2 + $0x1c] sm:$0xf]
      %v406 = vld [vmem:[%s3] sm:$0x1]
      %v408 = vlaneseq
      %v409 = vshrl.u32 %v408, 7
      %v410 = vsub.s32 0, %v409
      %v411 = vrot.slane %v406, %v410
      %v449 = vunpack.c.l.b16 %v362
      %v450 = vunpack.c.l.b16 %v363
      %v451 = vunpack.c.l.b16 %v364
      %v452 = vunpack.c.l.b16 %v365
      %v453 = vunpack.c.l.b16 %v366
      %v454 = vunpack.c.l.b16 %v367
      %v455 = vunpack.c.l.b16 %v368
      %v456 = vunpack.c.l.b16 %v369
      %v457 = vunpack.c.l.b16 %v370
      %v458 = vunpack.c.l.b16 %v371
      %v459 = vunpack.c.l.b16 %v372
      %v460 = vunpack.c.l.b16 %v373
      %v461 = vunpack.c.l.b16 %v374
      %v462 = vunpack.c.l.b16 %v375
      %v463 = vunpack.c.l.b16 %v376
      %v464 = vunpack.c.l.b16 %v377
      %v465 = vunpack.c.l.b16 %v378
      %v466 = vunpack.c.l.b16 %v379
      %v467 = vunpack.c.l.b16 %v380
      %v468 = vunpack.c.l.b16 %v381
      %v469 = vunpack.c.l.b16 %v382
      %v470 = vunpack.c.l.b16 %v383
      %v471 = vunpack.c.l.b16 %v384
      %v472 = vunpack.c.l.b16 %v385
      %v473 = vunpack.c.l.b16 %v386
      %v474 = vunpack.c.l.b16 %v387
      %v475 = vunpack.c.l.b16 %v388
      %v476 = vunpack.c.l.b16 %v389
      %v477 = vunpack.c.l.b16 %v390
      %v478 = vunpack.c.l.b16 %v391
      %v479 = vunpack.c.l.b16 %v392
      %v480 = vunpack.c.l.b16 %v393
      %v481 = vunpack.c.l.b16 %v394
      %v482 = vunpack.c.l.b16 %v395
      %v483 = vunpack.c.l.b16 %v396
      %v484 = vunpack.c.l.b16 %v397
      %v485 = vpack.c.b16 %v450, %v449
      %v486 = vpack.c.b16 %v452, %v451
      %v487 = vpack.c.b16 %v454, %v453
      %v488 = vpack.c.b16 %v456, %v455
      %v489 = vpack.c.b16 %v458, %v457
      %v490 = vpack.c.b16 %v460, %v459
      %v491 = vpack.c.b16 %v462, %v461
      %v492 = vpack.c.b16 %v464, %v463
      %v493 = vpack.c.b16 %v466, %v465
      %v494 = vpack.c.b16 %v468, %v467
      %v495 = vpack.c.b16 %v470, %v469
      %v496 = vpack.c.b16 %v472, %v471
      %v497 = vpack.c.b16 %v474, %v473
      %v498 = vpack.c.b16 %v476, %v475
      %v499 = vpack.c.b16 %v478, %v477
      %v500 = vpack.c.b16 %v480, %v479
      %v501 = vpack.c.b16 %v482, %v481
      %v502 = vpack.c.b16 %v484, %v483
      %v511 = vunpack.c.l.b16 %v398
      %v512 = vunpack.c.l.b16 %v399
      %v513 = vunpack.c.l.b16 %v400
      %v514 = vunpack.c.l.b16 %v401
      %v515 = vunpack.c.l.b16 %v402
      %v516 = vunpack.c.l.b16 %v403
      %v517 = vunpack.c.l.b16 %v404
      %v518 = vunpack.c.l.b16 %v405
      %v519 = vpack.c.b16 %v512, %v511
      %v520 = vpack.c.b16 %v514, %v513
      %v521 = vpack.c.b16 %v516, %v515
      %v522 = vpack.c.b16 %v518, %v517
      %vm527 = vcmask 523264
      %v529 = vsel %vm527, %v485, 0
      %v532 = vsel %vm527, %v486, 0
      %v535 = vsel %vm527, %v487, 0
      %v538 = vsel %vm527, %v488, 0
      %v541 = vsel %vm527, %v489, 0
      %v544 = vsel %vm527, %v490, 0
      %v547 = vsel %vm527, %v491, 0
      %v550 = vsel %vm527, %v492, 0
      %v553 = vsel %vm527, %v493, 0
      %v556 = vsel %vm527, %v494, 0
      %v559 = vsel %vm527, %v495, 0
      %v562 = vsel %vm527, %v496, 0
      %v565 = vsel %vm527, %v497, 0
      %v568 = vsel %vm527, %v498, 0
      %v571 = vsel %vm527, %v499, 0
      %v574 = vsel %vm527, %v500, 0
      %v577 = vsel %vm527, %v501, 0
      %v580 = vsel %vm527, %v502, 0
      %582 = vmatprep.subr.bf16.mxu0 0
      %583 = vmatpush1.bf16.msra.mxu0 0
      %584 = vmatprep.subr.bf16.mxu0 0
      %585 = vmatpush1.bf16.msra.mxu0 0
      %586 = vmatprep.subr.bf16.mxu0 0
      %587 = vmatpush1.bf16.msra.mxu0 0
      %588 = vmatprep.subr.bf16.mxu0 0
      %589 = vmatpush1.bf16.msra.mxu0 0
      %590 = vmatprep.subr.bf16.mxu0 0
      %591 = vmatpush1.bf16.msra.mxu0 %v522
      %592 = vmatprep.subr.bf16.mxu0 0
      %593 = vmatpush1.bf16.msra.mxu0 %v521
      %594 = vmatprep.subr.bf16.mxu0 0
      %595 = vmatpush1.bf16.msra.mxu0 %v520
      %596 = vmatprep.subr.bf16.mxu0 0
      %597 = vmatpush1.bf16.msra.mxu0 %v519
      %598 = vmatprep.subr.bf16.mxu0 0
      %599 = vmatpush2.bf16.msra.mxu0 0
      %600 = vmatprep.subr.bf16.mxu0 0
      %601 = vmatpush2.bf16.msra.mxu0 0
      %602 = vmatprep.subr.bf16.mxu0 0
      %603 = vmatpush2.bf16.msra.mxu0 0
      %604 = vmatprep.subr.bf16.mxu0 0
      %605 = vmatpush2.bf16.msra.mxu0 0
      %606 = vmatprep.subr.bf16.mxu0 0
      %607 = vmatpush2.bf16.msra.mxu0 0
      %608 = vmatprep.subr.bf16.mxu0 0
      %609 = vmatpush2.bf16.msra.mxu0 0
      %610 = vmatprep.subr.bf16.mxu0 0
      %611 = vmatpush2.bf16.msra.mxu0 0
      %612 = vmatprep.subr.bf16.mxu0 0
      %613 = vmatpush2.bf16.msra.mxu0 0
      %614 = vmatprep.mubr.bf16.mxu0 0
      %615 = vmatmul.mubr.bf16.gmra.mxu0 %v529
      %v616 = vpop.f32.mrf.mxu0
      %v617 = vadd.f32 %v411, %v616
      %v618 = vpop.f32.mrf.mxu0
      %v619 = vpop.f32.mrf.mxu0
      %v620 = vadd.f32 %v411, %v619
      %v621 = vpop.f32.mrf.mxu0
      %622 = vmatprep.mubr.bf16.mxu0 0
      %623 = vmatmul.mubr.bf16.gmra.mxu0 %v532
      %v624 = vpop.f32.mrf.mxu0
      %v625 = vadd.f32 %v411, %v624
      %v626 = vpop.f32.mrf.mxu0
      %v627 = vpop.f32.mrf.mxu0
      %v628 = vadd.f32 %v411, %v627
      %v629 = vpop.f32.mrf.mxu0
      %630 = vmatprep.mubr.bf16.mxu0 0
      %631 = vmatmul.mubr.bf16.gmra.mxu0 %v535
      %v632 = vpop.f32.mrf.mxu0
      %v633 = vadd.f32 %v411, %v632
      %v634 = vpop.f32.mrf.mxu0
      %v635 = vpop.f32.mrf.mxu0
      %v636 = vadd.f32 %v411, %v635
      %v637 = vpop.f32.mrf.mxu0
      %638 = vmatprep.mubr.bf16.mxu0 0
      %639 = vmatmul.mubr.bf16.gmra.mxu0 %v538
      %v640 = vpop.f32.mrf.mxu0
      %v641 = vadd.f32 %v411, %v640
      %v642 = vpop.f32.mrf.mxu0
      %v643 = vpop.f32.mrf.mxu0
      %v644 = vadd.f32 %v411, %v643
      %v645 = vpop.f32.mrf.mxu0
      %646 = vmatprep.mubr.bf16.mxu0 0
      %647 = vmatmul.mubr.bf16.gmra.mxu0 %v541
      %v648 = vpop.f32.mrf.mxu0
      %v649 = vadd.f32 %v411, %v648
      %v650 = vpop.f32.mrf.mxu0
      %v651 = vpop.f32.mrf.mxu0
      %v652 = vadd.f32 %v411, %v651
      %v653 = vpop.f32.mrf.mxu0
      %654 = vmatprep.mubr.bf16.mxu0 0
      %655 = vmatmul.mubr.bf16.gmra.mxu0 %v544
      %v656 = vpop.f32.mrf.mxu0
      %v657 = vadd.f32 %v411, %v656
      %v658 = vpop.f32.mrf.mxu0
      %v659 = vpop.f32.mrf.mxu0
      %v660 = vadd.f32 %v411, %v659
      %v661 = vpop.f32.mrf.mxu0
      %662 = vmatprep.mubr.bf16.mxu0 0
      %663 = vmatmul.mubr.bf16.gmra.mxu0 %v547
      %v664 = vpop.f32.mrf.mxu0
      %v665 = vadd.f32 %v411, %v664
      %v666 = vpop.f32.mrf.mxu0
      %v667 = vpop.f32.mrf.mxu0
      %v668 = vadd.f32 %v411, %v667
      %v669 = vpop.f32.mrf.mxu0
      %670 = vmatprep.mubr.bf16.mxu0 0
      %671 = vmatmul.mubr.bf16.gmra.mxu0 %v550
      %v672 = vpop.f32.mrf.mxu0
      %v673 = vadd.f32 %v411, %v672
      %v674 = vpop.f32.mrf.mxu0
      %v675 = vpop.f32.mrf.mxu0
      %v676 = vadd.f32 %v411, %v675
      %v677 = vpop.f32.mrf.mxu0
      %678 = vmatprep.mubr.bf16.mxu0 0
      %679 = vmatmul.mubr.bf16.gmra.mxu0 %v553
      %v680 = vpop.f32.mrf.mxu0
      %v681 = vadd.f32 %v411, %v680
      %v682 = vpop.f32.mrf.mxu0
      %v683 = vpop.f32.mrf.mxu0
      %v684 = vadd.f32 %v411, %v683
      %v685 = vpop.f32.mrf.mxu0
      %686 = vmatprep.mubr.bf16.mxu0 0
      %687 = vmatmul.mubr.bf16.gmra.mxu0 %v556
      %v688 = vpop.f32.mrf.mxu0
      %v689 = vadd.f32 %v411, %v688
      %v690 = vpop.f32.mrf.mxu0
      %v691 = vpop.f32.mrf.mxu0
      %v692 = vadd.f32 %v411, %v691
      %v693 = vpop.f32.mrf.mxu0
      %694 = vmatprep.mubr.bf16.mxu0 0
      %695 = vmatmul.mubr.bf16.gmra.mxu0 %v559
      %v696 = vpop.f32.mrf.mxu0
      %v697 = vadd.f32 %v411, %v696
      %v698 = vpop.f32.mrf.mxu0
      %v699 = vpop.f32.mrf.mxu0
      %v700 = vadd.f32 %v411, %v699
      %v701 = vpop.f32.mrf.mxu0
      %702 = vmatprep.mubr.bf16.mxu0 0
      %703 = vmatmul.mubr.bf16.gmra.mxu0 %v562
      %v704 = vpop.f32.mrf.mxu0
      %v705 = vadd.f32 %v411, %v704
      %v706 = vpop.f32.mrf.mxu0
      %v707 = vpop.f32.mrf.mxu0
      %v708 = vadd.f32 %v411, %v707
      %v709 = vpop.f32.mrf.mxu0
      %710 = vmatprep.mubr.bf16.mxu0 0
      %711 = vmatmul.mubr.bf16.gmra.mxu0 %v565
      %v712 = vpop.f32.mrf.mxu0
      %v713 = vadd.f32 %v411, %v712
      %v714 = vpop.f32.mrf.mxu0
      %v715 = vpop.f32.mrf.mxu0
      %v716 = vadd.f32 %v411, %v715
      %v717 = vpop.f32.mrf.mxu0
      %718 = vmatprep.mubr.bf16.mxu0 0
      %719 = vmatmul.mubr.bf16.gmra.mxu0 %v568
      %v720 = vpop.f32.mrf.mxu0
      %v721 = vadd.f32 %v411, %v720
      %v722 = vpop.f32.mrf.mxu0
      %v723 = vpop.f32.mrf.mxu0
      %v724 = vadd.f32 %v411, %v723
      %v725 = vpop.f32.mrf.mxu0
      %726 = vmatprep.mubr.bf16.mxu0 0
      %727 = vmatmul.mubr.bf16.gmra.mxu0 %v571
      %v728 = vpop.f32.mrf.mxu0
      %v729 = vadd.f32 %v411, %v728
      %v730 = vpop.f32.mrf.mxu0
      %v731 = vpop.f32.mrf.mxu0
      %v732 = vadd.f32 %v411, %v731
      %v733 = vpop.f32.mrf.mxu0
      %734 = vmatprep.mubr.bf16.mxu0 0
      %735 = vmatmul.mubr.bf16.gmra.mxu0 %v574
      %v736 = vpop.f32.mrf.mxu0
      %v737 = vadd.f32 %v411, %v736
      %v738 = vpop.f32.mrf.mxu0
      %v739 = vpop.f32.mrf.mxu0
      %v740 = vadd.f32 %v411, %v739
      %v741 = vpop.f32.mrf.mxu0
      %742 = vmatprep.mubr.bf16.mxu0 0
      %743 = vmatmul.mubr.bf16.gmra.mxu0 %v577
      %v744 = vpop.f32.mrf.mxu0
      %v745 = vadd.f32 %v411, %v744
      %v746 = vpop.f32.mrf.mxu0
      %v747 = vpop.f32.mrf.mxu0
      %v748 = vadd.f32 %v411, %v747
      %v749 = vpop.f32.mrf.mxu0
      %750 = vmatprep.mubr.bf16.mxu0 0
      %751 = vmatmul.mubr.bf16.gmra.mxu0 %v580
      %v752 = vpop.f32.mrf.mxu0
      %v753 = vadd.f32 %v411, %v752
      %v754 = vpop.f32.mrf.mxu0
      %v755 = vpop.f32.mrf.mxu0
      %v756 = vadd.f32 %v411, %v755
      %v757 = vpop.f32.mrf.mxu0
      %758 = vdwg.mxu0
      %760 = vset.pattern.permute.xlu0 0
      %761 = vperm.xlu0 %760, %v320
      %v762 = vpop.permute.xlu0 %761
      %765 = vset.pattern.permute.xlu0 0
      %766 = vperm.xlu0 %765, %v321
      %v767 = vpop.permute.xlu0 %766
      %770 = vset.pattern.permute.xlu0 0
      %771 = vperm.xlu0 %770, %v322
      %v772 = vpop.permute.xlu0 %771
      %775 = vset.pattern.permute.xlu0 0
      %776 = vperm.xlu0 %775, %v323
      %v777 = vpop.permute.xlu0 %776
      %780 = vset.pattern.permute.xlu0 0
      %781 = vperm.xlu0 %780, %v324
      %v782 = vpop.permute.xlu0 %781
      %785 = vset.pattern.permute.xlu0 0
      %786 = vperm.xlu0 %785, %v325
      %v787 = vpop.permute.xlu0 %786
      %790 = vset.pattern.permute.xlu0 0
      %791 = vperm.xlu0 %790, %v326
      %v792 = vpop.permute.xlu0 %791
      %795 = vset.pattern.permute.xlu0 0
      %796 = vperm.xlu0 %795, %v327
      %v797 = vpop.permute.xlu0 %796
      %800 = vset.pattern.permute.xlu0 0
      %801 = vperm.xlu0 %800, %v328
      %v802 = vpop.permute.xlu0 %801
      %805 = vset.pattern.permute.xlu0 0
      %806 = vperm.xlu0 %805, %v329
      %v807 = vpop.permute.xlu0 %806
      %810 = vset.pattern.permute.xlu0 0
      %811 = vperm.xlu0 %810, %v330
      %v812 = vpop.permute.xlu0 %811
      %815 = vset.pattern.permute.xlu0 0
      %816 = vperm.xlu0 %815, %v331
      %v817 = vpop.permute.xlu0 %816
      %820 = vset.pattern.permute.xlu0 0
      %821 = vperm.xlu0 %820, %v332
      %v822 = vpop.permute.xlu0 %821
      %825 = vset.pattern.permute.xlu0 0
      %826 = vperm.xlu0 %825, %v333
      %v827 = vpop.permute.xlu0 %826
      %830 = vset.pattern.permute.xlu0 0
      %831 = vperm.xlu0 %830, %v334
      %v832 = vpop.permute.xlu0 %831
      %835 = vset.pattern.permute.xlu0 0
      %836 = vperm.xlu0 %835, %v335
      %v837 = vpop.permute.xlu0 %836
      %840 = vset.pattern.permute.xlu0 0
      %841 = vperm.xlu0 %840, %v336
      %v842 = vpop.permute.xlu0 %841
      %845 = vset.pattern.permute.xlu0 0
      %846 = vperm.xlu0 %845, %v337
      %v847 = vpop.permute.xlu0 %846
      %850 = vset.pattern.permute.xlu0 0
      %851 = vperm.xlu0 %850, %v338
      %v852 = vpop.permute.xlu0 %851
      %855 = vset.pattern.permute.xlu0 0
      %856 = vperm.xlu0 %855, %v339
      %v857 = vpop.permute.xlu0 %856
      %860 = vset.pattern.permute.xlu0 0
      %861 = vperm.xlu0 %860, %v340
      %v862 = vpop.permute.xlu0 %861
      %865 = vset.pattern.permute.xlu0 0
      %866 = vperm.xlu0 %865, %v341
      %v867 = vpop.permute.xlu0 %866
      %870 = vset.pattern.permute.xlu0 0
      %871 = vperm.xlu0 %870, %v342
      %v872 = vpop.permute.xlu0 %871
      %875 = vset.pattern.permute.xlu0 0
      %876 = vperm.xlu0 %875, %v343
      %v877 = vpop.permute.xlu0 %876
      %880 = vset.pattern.permute.xlu0 0
      %881 = vperm.xlu0 %880, %v344
      %v882 = vpop.permute.xlu0 %881
      %885 = vset.pattern.permute.xlu0 0
      %886 = vperm.xlu0 %885, %v345
      %v887 = vpop.permute.xlu0 %886
      %890 = vset.pattern.permute.xlu0 0
      %891 = vperm.xlu0 %890, %v346
      %v892 = vpop.permute.xlu0 %891
      %895 = vset.pattern.permute.xlu0 0
      %896 = vperm.xlu0 %895, %v347
      %v897 = vpop.permute.xlu0 %896
      %900 = vset.pattern.permute.xlu0 0
      %901 = vperm.xlu0 %900, %v348
      %v902 = vpop.permute.xlu0 %901
      %905 = vset.pattern.permute.xlu0 0
      %906 = vperm.xlu0 %905, %v349
      %v907 = vpop.permute.xlu0 %906
      %910 = vset.pattern.permute.xlu0 0
      %911 = vperm.xlu0 %910, %v350
      %v912 = vpop.permute.xlu0 %911
      %915 = vset.pattern.permute.xlu0 0
      %916 = vperm.xlu0 %915, %v351
      %v917 = vpop.permute.xlu0 %916
      %920 = vset.pattern.permute.xlu0 0
      %921 = vperm.xlu0 %920, %v352
      %v922 = vpop.permute.xlu0 %921
      %925 = vset.pattern.permute.xlu0 0
      %926 = vperm.xlu0 %925, %v353
      %v927 = vpop.permute.xlu0 %926
      %930 = vset.pattern.permute.xlu0 0
      %931 = vperm.xlu0 %930, %v354
      %v932 = vpop.permute.xlu0 %931
      %935 = vset.pattern.permute.xlu0 0
      %936 = vperm.xlu0 %935, %v355
      %v937 = vpop.permute.xlu0 %936
      %v939 = vmul.f32 %v617, %v762
      %v940 = vmul.f32 %v620, %v767
      %v941 = vmul.f32 %v625, %v772
      %v942 = vmul.f32 %v628, %v777
      %v943 = vmul.f32 %v633, %v782
      %v944 = vmul.f32 %v636, %v787
      %v945 = vmul.f32 %v641, %v792
      %v946 = vmul.f32 %v644, %v797
      %v947 = vmul.f32 %v649, %v802
      %v948 = vmul.f32 %v652, %v807
      %v949 = vmul.f32 %v657, %v812
      %v950 = vmul.f32 %v660, %v817
      %v951 = vmul.f32 %v665, %v822
      %v952 = vmul.f32 %v668, %v827
      %v953 = vmul.f32 %v673, %v832
      %v954 = vmul.f32 %v676, %v837
      %v955 = vmul.f32 %v681, %v842
      %v956 = vmul.f32 %v684, %v847
      %v957 = vmul.f32 %v689, %v852
      %v958 = vmul.f32 %v692, %v857
      %v959 = vmul.f32 %v697, %v862
      %v960 = vmul.f32 %v700, %v867
      %v961 = vmul.f32 %v705, %v872
      %v962 = vmul.f32 %v708, %v877
      %v963 = vmul.f32 %v713, %v882
      %v964 = vmul.f32 %v716, %v887
      %v965 = vmul.f32 %v721, %v892
      %v966 = vmul.f32 %v724, %v897
      %v967 = vmul.f32 %v729, %v902
      %v968 = vmul.f32 %v732, %v907
      %v969 = vmul.f32 %v737, %v912
      %v970 = vmul.f32 %v740, %v917
      %v971 = vmul.f32 %v745, %v922
      %v972 = vmul.f32 %v748, %v927
      %v973 = vmul.f32 %v753, %v932
      %v974 = vmul.f32 %v756, %v937
      %975 = vst [vmem:[#allocation2 + $0x13] sm:$0xff] %v939
      %976 = vst [vmem:[#allocation2 + $0x1b] sm:$0xff] %v940
      %977 = vst [vmem:[#allocation2 + $0x23] sm:$0xff] %v941
      %978 = vst [vmem:[#allocation2 + $0x2b] sm:$0xff] %v942
      %979 = vst [vmem:[#allocation2 + $0x33] sm:$0xff] %v943
      %980 = vst [vmem:[#allocation2 + $0x3b] sm:$0xff] %v944
      %981 = vst [vmem:[#allocation2 + $0x43] sm:$0xff] %v945
      %982 = vst [vmem:[#allocation2 + $0x4b] sm:$0xff] %v946
      %983 = vst [vmem:[#allocation2 + $0x53] sm:$0xff] %v947
      %984 = vst [vmem:[#allocation2 + $0x5b] sm:$0xff] %v948
      %985 = vst [vmem:[#allocation2 + $0x63] sm:$0xff] %v949
      %986 = vst [vmem:[#allocation2 + $0x6b] sm:$0xff] %v950
      %987 = vst [vmem:[#allocation2 + $0x73] sm:$0xff] %v951
      %988 = vst [vmem:[#allocation2 + $0x7b] sm:$0xff] %v952
      %989 = vst [vmem:[#allocation2 + $0x83] sm:$0xff] %v953
      %990 = vst [vmem:[#allocation2 + $0x8b] sm:$0xff] %v954
      %991 = vst [vmem:[#allocation2 + $0x93] sm:$0xff] %v955
      %992 = vst [vmem:[#allocation2 + $0x9b] sm:$0xff] %v956
      %993 = vst [vmem:[#allocation2 + $0xa3] sm:$0xff] %v957
      %994 = vst [vmem:[#allocation2 + $0xab] sm:$0xff] %v958
      %995 = vst [vmem:[#allocation2 + $0xb3] sm:$0xff] %v959
      %996 = vst [vmem:[#allocation2 + $0xbb] sm:$0xff] %v960
      %997 = vst [vmem:[#allocation2 + $0xc3] sm:$0xff] %v961
      %998 = vst [vmem:[#allocation2 + $0xcb] sm:$0xff] %v962
      %999 = vst [vmem:[#allocation2 + $0xd3] sm:$0xff] %v963
      %1000 = vst [vmem:[#allocation2 + $0xdb] sm:$0xff] %v964
      %1001 = vst [vmem:[#allocation2 + $0xe3] sm:$0xff] %v965
      %1002 = vst [vmem:[#allocation2 + $0xeb] sm:$0xff] %v966
      %1003 = vst [vmem:[#allocation2 + $0xf3] sm:$0xff] %v967
      %1004 = vst [vmem:[#allocation2 + $0xfb] sm:$0xff] %v968
      %1005 = vst [vmem:[#allocation2 + $0x103] sm:$0xff] %v969
      %1006 = vst [vmem:[#allocation2 + $0x10b] sm:$0xff] %v970
      %1007 = vst [vmem:[#allocation2 + $0x113] sm:$0xff] %v971
      %1008 = vst [vmem:[#allocation2 + $0x11b] sm:$0xff] %v972
      %1009 = vst [vmem:[#allocation2 + $0x123] sm:$0xff] %v973
      %1010 = vst [vmem:[#allocation2 + $0x12b] sm:$0xff] %v974
      %v1011 = vld [vmem:[#allocation2] sm:$0xff]
      %v1012 = vld [vmem:[#allocation2 + $0x8] sm:$0xff]
      %v1013 = vld [vmem:[#allocation2 + $0x10] sm:$0xff]
      %v1014 = vld [vmem:[#allocation2 + $0x18] sm:$0xff]
      %v1015 = vld [vmem:[#allocation2 + $0x20] sm:$0xff]
      %v1016 = vld [vmem:[#allocation2 + $0x28] sm:$0xff]
      %v1017 = vld [vmem:[#allocation2 + $0x30] sm:$0xff]
      %v1018 = vld [vmem:[#allocation2 + $0x38] sm:$0xff]
      %v1019 = vld [vmem:[#allocation2 + $0x40] sm:$0xff]
      %v1020 = vld [vmem:[#allocation2 + $0x48] sm:$0xff]
      %v1021 = vld [vmem:[#allocation2 + $0x50] sm:$0xff]
      %v1022 = vld [vmem:[#allocation2 + $0x58] sm:$0xff]
      %v1023 = vld [vmem:[#allocation2 + $0x60] sm:$0xff]
      %v1024 = vld [vmem:[#allocation2 + $0x68] sm:$0xff]
      %v1025 = vld [vmem:[#allocation2 + $0x70] sm:$0xff]
      %v1026 = vld [vmem:[#allocation2 + $0x78] sm:$0xff]
      %v1027 = vld [vmem:[#allocation2 + $0x80] sm:$0xff]
      %v1028 = vld [vmem:[#allocation2 + $0x88] sm:$0xff]
      %v1029 = vld [vmem:[#allocation2 + $0x90] sm:$0xff]
      %v1030 = vld [vmem:[#allocation2 + $0x98] sm:$0xff]
      %v1031 = vld [vmem:[#allocation2 + $0xa0] sm:$0xff]
      %v1032 = vld [vmem:[#allocation2 + $0xa8] sm:$0xff]
      %v1033 = vld [vmem:[#allocation2 + $0xb0] sm:$0xff]
      %v1034 = vld [vmem:[#allocation2 + $0xb8] sm:$0xff]
      %v1035 = vld [vmem:[#allocation2 + $0xc0] sm:$0xff]
      %v1036 = vld [vmem:[#allocation2 + $0xc8] sm:$0xff]
      %v1037 = vld [vmem:[#allocation2 + $0xd0] sm:$0xff]
      %v1038 = vld [vmem:[#allocation2 + $0xd8] sm:$0xff]
      %v1039 = vld [vmem:[#allocation2 + $0xe0] sm:$0xff]
      %v1040 = vld [vmem:[#allocation2 + $0xe8] sm:$0xff]
      %v1041 = vld [vmem:[#allocation2 + $0xf0] sm:$0xff]
      %v1042 = vld [vmem:[#allocation2 + $0xf8] sm:$0xff]
      %v1043 = vld [vmem:[#allocation2 + $0x100] sm:$0xff]
      %v1044 = vld [vmem:[#allocation2 + $0x108] sm:$0xff]
      %v1045 = vld [vmem:[#allocation2 + $0x110] sm:$0xff]
      %v1046 = vld [vmem:[#allocation2 + $0x118] sm:$0xff]
      %v1047 = vpack.c.bf16 %v1012, %v1011
      %v1048 = vpack.c.bf16 %v1014, %v1013
      %v1049 = vpack.c.bf16 %v1016, %v1015
      %v1050 = vpack.c.bf16 %v1018, %v1017
      %v1051 = vpack.c.bf16 %v1020, %v1019
      %v1052 = vpack.c.bf16 %v1022, %v1021
      %v1053 = vpack.c.bf16 %v1024, %v1023
      %v1054 = vpack.c.bf16 %v1026, %v1025
      %v1055 = vpack.c.bf16 %v1028, %v1027
      %v1056 = vpack.c.bf16 %v1030, %v1029
      %v1057 = vpack.c.bf16 %v1032, %v1031
      %v1058 = vpack.c.bf16 %v1034, %v1033
      %v1059 = vpack.c.bf16 %v1036, %v1035
      %v1060 = vpack.c.bf16 %v1038, %v1037
      %v1061 = vpack.c.bf16 %v1040, %v1039
      %v1062 = vpack.c.bf16 %v1042, %v1041
      %v1063 = vpack.c.bf16 %v1044, %v1043
      %v1064 = vpack.c.bf16 %v1046, %v1045
      %v1065 = vld [vmem:[#allocation2 + $0x1] sm:$0xff]
      %v1066 = vld [vmem:[#allocation2 + $0x9] sm:$0xff]
      %v1067 = vld [vmem:[#allocation2 + $0x11] sm:$0xff]
      %v1068 = vld [vmem:[#allocation2 + $0x19] sm:$0xff]
      %v1069 = vld [vmem:[#allocation2 + $0x21] sm:$0xff]
      %v1070 = vld [vmem:[#allocation2 + $0x29] sm:$0xff]
      %v1071 = vld [vmem:[#allocation2 + $0x31] sm:$0xff]
      %v1072 = vld [vmem:[#allocation2 + $0x39] sm:$0xff]
      %v1073 = vld [vmem:[#allocation2 + $0x41] sm:$0xff]
      %v1074 = vld [vmem:[#allocation2 + $0x49] sm:$0xff]
      %v1075 = vld [vmem:[#allocation2 + $0x51] sm:$0xff]
      %v1076 = vld [vmem:[#allocation2 + $0x59] sm:$0xff]
      %v1077 = vld [vmem:[#allocation2 + $0x61] sm:$0xff]
      %v1078 = vld [vmem:[#allocation2 + $0x69] sm:$0xff]
      %v1079 = vld [vmem:[#allocation2 + $0x71] sm:$0xff]
      %v1080 = vld [vmem:[#allocation2 + $0x79] sm:$0xff]
      %v1081 = vld [vmem:[#allocation2 + $0x81] sm:$0xff]
      %v1082 = vld [vmem:[#allocation2 + $0x89] sm:$0xff]
      %v1083 = vld [vmem:[#allocation2 + $0x91] sm:$0xff]
      %v1084 = vld [vmem:[#allocation2 + $0x99] sm:$0xff]
      %v1085 = vld [vmem:[#allocation2 + $0xa1] sm:$0xff]
      %v1086 = vld [vmem:[#allocation2 + $0xa9] sm:$0xff]
      %v1087 = vld [vmem:[#allocation2 + $0xb1] sm:$0xff]
      %v1088 = vld [vmem:[#allocation2 + $0xb9] sm:$0xff]
      %v1089 = vld [vmem:[#allocation2 + $0xc1] sm:$0xff]
      %v1090 = vld [vmem:[#allocation2 + $0xc9] sm:$0xff]
      %v1091 = vld [vmem:[#allocation2 + $0xd1] sm:$0xff]
      %v1092 = vld [vmem:[#allocation2 + $0xd9] sm:$0xff]
      %v1093 = vld [vmem:[#allocation2 + $0xe1] sm:$0xff]
      %v1094 = vld [vmem:[#allocation2 + $0xe9] sm:$0xff]
      %v1095 = vld [vmem:[#allocation2 + $0xf1] sm:$0xff]
      %v1096 = vld [vmem:[#allocation2 + $0xf9] sm:$0xff]
      %v1097 = vld [vmem:[#allocation2 + $0x101] sm:$0xff]
      %v1098 = vld [vmem:[#allocation2 + $0x109] sm:$0xff]
      %v1099 = vld [vmem:[#allocation2 + $0x111] sm:$0xff]
      %v1100 = vld [vmem:[#allocation2 + $0x119] sm:$0xff]
      %v1101 = vpack.c.bf16 %v1066, %v1065
      %v1102 = vpack.c.bf16 %v1068, %v1067
      %v1103 = vpack.c.bf16 %v1070, %v1069
      %v1104 = vpack.c.bf16 %v1072, %v1071
      %v1105 = vpack.c.bf16 %v1074, %v1073
      %v1106 = vpack.c.bf16 %v1076, %v1075
      %v1107 = vpack.c.bf16 %v1078, %v1077
      %v1108 = vpack.c.bf16 %v1080, %v1079
      %v1109 = vpack.c.bf16 %v1082, %v1081
      %v1110 = vpack.c.bf16 %v1084, %v1083
      %v1111 = vpack.c.bf16 %v1086, %v1085
      %v1112 = vpack.c.bf16 %v1088, %v1087
      %v1113 = vpack.c.bf16 %v1090, %v1089
      %v1114 = vpack.c.bf16 %v1092, %v1091
      %v1115 = vpack.c.bf16 %v1094, %v1093
      %v1116 = vpack.c.bf16 %v1096, %v1095
      %v1117 = vpack.c.bf16 %v1098, %v1097
      %v1118 = vpack.c.bf16 %v1100, %v1099
      %v1119 = vld [vmem:[#allocation2 + $0x2] sm:$0xff]
      %v1120 = vld [vmem:[#allocation2 + $0xa] sm:$0xff]
      %v1121 = vld [vmem:[#allocation2 + $0x12] sm:$0xff]
      %v1122 = vld [vmem:[#allocation2 + $0x1a] sm:$0xff]
      %v1123 = vld [vmem:[#allocation2 + $0x22] sm:$0xff]
      %v1124 = vld [vmem:[#allocation2 + $0x2a] sm:$0xff]
      %v1125 = vld [vmem:[#allocation2 + $0x32] sm:$0xff]
      %v1126 = vld [vmem:[#allocation2 + $0x3a] sm:$0xff]
      %v1127 = vld [vmem:[#allocation2 + $0x42] sm:$0xff]
      %v1128 = vld [vmem:[#allocation2 + $0x4a] sm:$0xff]
      %v1129 = vld [vmem:[#allocation2 + $0x52] sm:$0xff]
      %v1130 = vld [vmem:[#allocation2 + $0x5a] sm:$0xff]
      %v1131 = vld [vmem:[#allocation2 + $0x62] sm:$0xff]
      %v1132 = vld [vmem:[#allocation2 + $0x6a] sm:$0xff]
      %v1133 = vld [vmem:[#allocation2 + $0x72] sm:$0xff]
      %v1134 = vld [vmem:[#allocation2 + $0x7a] sm:$0xff]
      %v1135 = vld [vmem:[#allocation2 + $0x82] sm:$0xff]
      %v1136 = vld [vmem:[#allocation2 + $0x8a] sm:$0xff]
      %v1137 = vld [vmem:[#allocation2 + $0x92] sm:$0xff]
      %v1138 = vld [vmem:[#allocation2 + $0x9a] sm:$0xff]
      %v1139 = vld [vmem:[#allocation2 + $0xa2] sm:$0xff]
      %v1140 = vld [vmem:[#allocation2 + $0xaa] sm:$0xff]
      %v1141 = vld [vmem:[#allocation2 + $0xb2] sm:$0xff]
      %v1142 = vld [vmem:[#allocation2 + $0xba] sm:$0xff]
      %v1143 = vld [vmem:[#allocation2 + $0xc2] sm:$0xff]
      %v1144 = vld [vmem:[#allocation2 + $0xca] sm:$0xff]
      %v1145 = vld [vmem:[#allocation2 + $0xd2] sm:$0xff]
      %v1146 = vld [vmem:[#allocation2 + $0xda] sm:$0xff]
      %v1147 = vld [vmem:[#allocation2 + $0xe2] sm:$0xff]
      %v1148 = vld [vmem:[#allocation2 + $0xea] sm:$0xff]
      %v1149 = vld [vmem:[#allocation2 + $0xf2] sm:$0xff]
      %v1150 = vld [vmem:[#allocation2 + $0xfa] sm:$0xff]
      %v1151 = vld [vmem:[#allocation2 + $0x102] sm:$0xff]
      %v1152 = vld [vmem:[#allocation2 + $0x10a] sm:$0xff]
      %v1153 = vld [vmem:[#allocation2 + $0x112] sm:$0xff]
      %v1154 = vld [vmem:[#allocation2 + $0x11a] sm:$0xff]
      %v1155 = vpack.c.bf16 %v1120, %v1119
      %v1156 = vpack.c.bf16 %v1122, %v1121
      %v1157 = vpack.c.bf16 %v1124, %v1123
      %v1158 = vpack.c.bf16 %v1126, %v1125
      %v1159 = vpack.c.bf16 %v1128, %v1127
      %v1160 = vpack.c.bf16 %v1130, %v1129
      %v1161 = vpack.c.bf16 %v1132, %v1131
      %v1162 = vpack.c.bf16 %v1134, %v1133
      %v1163 = vpack.c.bf16 %v1136, %v1135
      %v1164 = vpack.c.bf16 %v1138, %v1137
      %v1165 = vpack.c.bf16 %v1140, %v1139
      %v1166 = vpack.c.bf16 %v1142, %v1141
      %v1167 = vpack.c.bf16 %v1144, %v1143
      %v1168 = vpack.c.bf16 %v1146, %v1145
      %v1169 = vpack.c.bf16 %v1148, %v1147
      %v1170 = vpack.c.bf16 %v1150, %v1149
      %v1171 = vpack.c.bf16 %v1152, %v1151
      %v1172 = vpack.c.bf16 %v1154, %v1153
      %v1173 = vld [vmem:[#allocation2 + $0x122] sm:$0xff]
      %v1174 = vld [vmem:[#allocation2 + $0x12a] sm:$0xff]
      %v1175 = vpack.c.bf16 %v1174, %v1173
      %v1176 = vld [vmem:[#allocation2 + $0x13] sm:$0xff]
      %v1177 = vld [vmem:[#allocation2 + $0x1b] sm:$0xff]
      %v1178 = vld [vmem:[#allocation2 + $0x23] sm:$0xff]
      %v1179 = vld [vmem:[#allocation2 + $0x2b] sm:$0xff]
      %v1180 = vld [vmem:[#allocation2 + $0x33] sm:$0xff]
      %v1181 = vld [vmem:[#allocation2 + $0x3b] sm:$0xff]
      %v1182 = vld [vmem:[#allocation2 + $0x43] sm:$0xff]
      %v1183 = vld [vmem:[#allocation2 + $0x4b] sm:$0xff]
      %v1184 = vld [vmem:[#allocation2 + $0x53] sm:$0xff]
      %v1185 = vld [vmem:[#allocation2 + $0x5b] sm:$0xff]
      %v1186 = vld [vmem:[#allocation2 + $0x63] sm:$0xff]
      %v1187 = vld [vmem:[#allocation2 + $0x6b] sm:$0xff]
      %v1188 = vld [vmem:[#allocation2 + $0x73] sm:$0xff]
      %v1189 = vld [vmem:[#allocation2 + $0x7b] sm:$0xff]
      %v1190 = vld [vmem:[#allocation2 + $0x83] sm:$0xff]
      %v1191 = vld [vmem:[#allocation2 + $0x8b] sm:$0xff]
      %v1192 = vld [vmem:[#allocation2 + $0x93] sm:$0xff]
      %v1193 = vld [vmem:[#allocation2 + $0x9b] sm:$0xff]
      %v1194 = vld [vmem:[#allocation2 + $0xa3] sm:$0xff]
      %v1195 = vld [vmem:[#allocation2 + $0xab] sm:$0xff]
      %v1196 = vld [vmem:[#allocation2 + $0xb3] sm:$0xff]
      %v1197 = vld [vmem:[#allocation2 + $0xbb] sm:$0xff]
      %v1198 = vld [vmem:[#allocation2 + $0xc3] sm:$0xff]
      %v1199 = vld [vmem:[#allocation2 + $0xcb] sm:$0xff]
      %v1200 = vld [vmem:[#allocation2 + $0xd3] sm:$0xff]
      %v1201 = vld [vmem:[#allocation2 + $0xdb] sm:$0xff]
      %v1202 = vld [vmem:[#allocation2 + $0xe3] sm:$0xff]
      %v1203 = vld [vmem:[#allocation2 + $0xeb] sm:$0xff]
      %v1204 = vld [vmem:[#allocation2 + $0xf3] sm:$0xff]
      %v1205 = vld [vmem:[#allocation2 + $0xfb] sm:$0xff]
      %v1206 = vld [vmem:[#allocation2 + $0x103] sm:$0xff]
      %v1207 = vld [vmem:[#allocation2 + $0x10b] sm:$0xff]
      %v1208 = vld [vmem:[#allocation2 + $0x113] sm:$0xff]
      %v1209 = vld [vmem:[#allocation2 + $0x11b] sm:$0xff]
      %v1210 = vld [vmem:[#allocation2 + $0x123] sm:$0xff]
      %v1211 = vld [vmem:[#allocation2 + $0x12b] sm:$0xff]
      %v1212 = vpack.c.bf16 %v1177, %v1176
      %v1213 = vpack.c.bf16 %v1179, %v1178
      %v1214 = vpack.c.bf16 %v1181, %v1180
      %v1215 = vpack.c.bf16 %v1183, %v1182
      %v1216 = vpack.c.bf16 %v1185, %v1184
      %v1217 = vpack.c.bf16 %v1187, %v1186
      %v1218 = vpack.c.bf16 %v1189, %v1188
      %v1219 = vpack.c.bf16 %v1191, %v1190
      %v1220 = vpack.c.bf16 %v1193, %v1192
      %v1221 = vpack.c.bf16 %v1195, %v1194
      %v1222 = vpack.c.bf16 %v1197, %v1196
      %v1223 = vpack.c.bf16 %v1199, %v1198
      %v1224 = vpack.c.bf16 %v1201, %v1200
      %v1225 = vpack.c.bf16 %v1203, %v1202
      %v1226 = vpack.c.bf16 %v1205, %v1204
      %v1227 = vpack.c.bf16 %v1207, %v1206
      %v1228 = vpack.c.bf16 %v1209, %v1208
      %v1229 = vpack.c.bf16 %v1211, %v1210
      %v1230 = vld [vmem:[#allocation2 + $0x14] sm:$0xff]
      %v1231 = vld [vmem:[#allocation2 + $0x1c] sm:$0xff]
      %v1232 = vld [vmem:[#allocation2 + $0x24] sm:$0xff]
      %v1233 = vld [vmem:[#allocation2 + $0x2c] sm:$0xff]
      %v1234 = vld [vmem:[#allocation2 + $0x34] sm:$0xff]
      %v1235 = vld [vmem:[#allocation2 + $0x3c] sm:$0xff]
      %v1236 = vld [vmem:[#allocation2 + $0x44] sm:$0xff]
      %v1237 = vld [vmem:[#allocation2 + $0x4c] sm:$0xff]
      %v1238 = vld [vmem:[#allocation2 + $0x54] sm:$0xff]
      %v1239 = vld [vmem:[#allocation2 + $0x5c] sm:$0xff]
      %v1240 = vld [vmem:[#allocation2 + $0x64] sm:$0xff]
      %v1241 = vld [vmem:[#allocation2 + $0x6c] sm:$0xff]
      %v1242 = vld [vmem:[#allocation2 + $0x74] sm:$0xff]
      %v1243 = vld [vmem:[#allocation2 + $0x7c] sm:$0xff]
      %v1244 = vld [vmem:[#allocation2 + $0x84] sm:$0xff]
      %v1245 = vld [vmem:[#allocation2 + $0x8c] sm:$0xff]
      %v1246 = vld [vmem:[#allocation2 + $0x94] sm:$0xff]
      %v1247 = vld [vmem:[#allocation2 + $0x9c] sm:$0xff]
      %v1248 = vld [vmem:[#allocation2 + $0xa4] sm:$0xff]
      %v1249 = vld [vmem:[#allocation2 + $0xac] sm:$0xff]
      %v1250 = vld [vmem:[#allocation2 + $0xb4] sm:$0xff]
      %v1251 = vld [vmem:[#allocation2 + $0xbc] sm:$0xff]
      %v1252 = vld [vmem:[#allocation2 + $0xc4] sm:$0xff]
      %v1253 = vld [vmem:[#allocation2 + $0xcc] sm:$0xff]
      %v1254 = vld [vmem:[#allocation2 + $0xd4] sm:$0xff]
      %v1255 = vld [vmem:[#allocation2 + $0xdc] sm:$0xff]
      %v1256 = vld [vmem:[#allocation2 + $0xe4] sm:$0xff]
      %v1257 = vld [vmem:[#allocation2 + $0xec] sm:$0xff]
      %v1258 = vld [vmem:[#allocation2 + $0xf4] sm:$0xff]
      %v1259 = vld [vmem:[#allocation2 + $0xfc] sm:$0xff]
      %v1260 = vld [vmem:[#allocation2 + $0x104] sm:$0xff]
      %v1261 = vld [vmem:[#allocation2 + $0x10c] sm:$0xff]
      %v1262 = vld [vmem:[#allocation2 + $0x114] sm:$0xff]
      %v1263 = vld [vmem:[#allocation2 + $0x11c] sm:$0xff]
      %v1264 = vld [vmem:[#allocation2 + $0x124] sm:$0xff]
      %v1265 = vld [vmem:[#allocation2 + $0x12c] sm:$0xff]
      %v1266 = vpack.c.bf16 %v1231, %v1230
      %v1267 = vpack.c.bf16 %v1233, %v1232
      %v1268 = vpack.c.bf16 %v1235, %v1234
      %v1269 = vpack.c.bf16 %v1237, %v1236
      %v1270 = vpack.c.bf16 %v1239, %v1238
      %v1271 = vpack.c.bf16 %v1241, %v1240
      %v1272 = vpack.c.bf16 %v1243, %v1242
      %v1273 = vpack.c.bf16 %v1245, %v1244
      %v1274 = vpack.c.bf16 %v1247, %v1246
      %v1275 = vpack.c.bf16 %v1249, %v1248
      %v1276 = vpack.c.bf16 %v1251, %v1250
      %v1277 = vpack.c.bf16 %v1253, %v1252
      %v1278 = vpack.c.bf16 %v1255, %v1254
      %v1279 = vpack.c.bf16 %v1257, %v1256
      %v1280 = vpack.c.bf16 %v1259, %v1258
      %v1281 = vpack.c.bf16 %v1261, %v1260
      %v1282 = vpack.c.bf16 %v1263, %v1262
      %v1283 = vpack.c.bf16 %v1265, %v1264
      %v1284 = vld [vmem:[#allocation2 + $0x134] sm:$0xff]
      %v1285 = vld [vmem:[#allocation2 + $0x13c] sm:$0xff]
      %v1286 = vpack.c.bf16 %v1285, %v1284
      %v1287 = vld [vmem:[#allocation2 + $0x25] sm:$0xff]
      %v1288 = vld [vmem:[#allocation2 + $0x2d] sm:$0xff]
      %v1289 = vld [vmem:[#allocation2 + $0x35] sm:$0xff]
      %v1290 = vld [vmem:[#allocation2 + $0x3d] sm:$0xff]
      %v1291 = vld [vmem:[#allocation2 + $0x45] sm:$0xff]
      %v1292 = vld [vmem:[#allocation2 + $0x4d] sm:$0xff]
      %v1293 = vld [vmem:[#allocation2 + $0x55] sm:$0xff]
      %v1294 = vld [vmem:[#allocation2 + $0x5d] sm:$0xff]
      %v1295 = vld [vmem:[#allocation2 + $0x65] sm:$0xff]
      %v1296 = vld [vmem:[#allocation2 + $0x6d] sm:$0xff]
      %v1297 = vld [vmem:[#allocation2 + $0x75] sm:$0xff]
      %v1298 = vld [vmem:[#allocation2 + $0x7d] sm:$0xff]
      %v1299 = vld [vmem:[#allocation2 + $0x85] sm:$0xff]
      %v1300 = vld [vmem:[#allocation2 + $0x8d] sm:$0xff]
      %v1301 = vld [vmem:[#allocation2 + $0x95] sm:$0xff]
      %v1302 = vld [vmem:[#allocation2 + $0x9d] sm:$0xff]
      %v1303 = vld [vmem:[#allocation2 + $0xa5] sm:$0xff]
      %v1304 = vld [vmem:[#allocation2 + $0xad] sm:$0xff]
      %v1305 = vld [vmem:[#allocation2 + $0xb5] sm:$0xff]
      %v1306 = vld [vmem:[#allocation2 + $0xbd] sm:$0xff]
      %v1307 = vld [vmem:[#allocation2 + $0xc5] sm:$0xff]
      %v1308 = vld [vmem:[#allocation2 + $0xcd] sm:$0xff]
      %v1309 = vld [vmem:[#allocation2 + $0xd5] sm:$0xff]
      %v1310 = vld [vmem:[#allocation2 + $0xdd] sm:$0xff]
      %v1311 = vld [vmem:[#allocation2 + $0xe5] sm:$0xff]
      %v1312 = vld [vmem:[#allocation2 + $0xed] sm:$0xff]
      %v1313 = vld [vmem:[#allocation2 + $0xf5] sm:$0xff]
      %v1314 = vld [vmem:[#allocation2 + $0xfd] sm:$0xff]
      %v1315 = vld [vmem:[#allocation2 + $0x105] sm:$0xff]
      %v1316 = vld [vmem:[#allocation2 + $0x10d] sm:$0xff]
      %v1317 = vld [vmem:[#allocation2 + $0x115] sm:$0xff]
      %v1318 = vld [vmem:[#allocation2 + $0x11d] sm:$0xff]
      %v1319 = vld [vmem:[#allocation2 + $0x125] sm:$0xff]
      %v1320 = vld [vmem:[#allocation2 + $0x12d] sm:$0xff]
      %v1321 = vld [vmem:[#allocation2 + $0x135] sm:$0xff]
      %v1322 = vld [vmem:[#allocation2 + $0x13d] sm:$0xff]
      %v1323 = vpack.c.bf16 %v1288, %v1287
      %v1324 = vpack.c.bf16 %v1290, %v1289
      %v1325 = vpack.c.bf16 %v1292, %v1291
      %v1326 = vpack.c.bf16 %v1294, %v1293
      %v1327 = vpack.c.bf16 %v1296, %v1295
      %v1328 = vpack.c.bf16 %v1298, %v1297
      %v1329 = vpack.c.bf16 %v1300, %v1299
      %v1330 = vpack.c.bf16 %v1302, %v1301
      %v1331 = vpack.c.bf16 %v1304, %v1303
      %v1332 = vpack.c.bf16 %v1306, %v1305
      %v1333 = vpack.c.bf16 %v1308, %v1307
      %v1334 = vpack.c.bf16 %v1310, %v1309
      %v1335 = vpack.c.bf16 %v1312, %v1311
      %v1336 = vpack.c.bf16 %v1314, %v1313
      %v1337 = vpack.c.bf16 %v1316, %v1315
      %v1338 = vpack.c.bf16 %v1318, %v1317
      %v1339 = vpack.c.bf16 %v1320, %v1319
      %v1340 = vpack.c.bf16 %v1322, %v1321
      %v1341 = vld [vmem:[#allocation2 + $0x26] sm:$0xff]
      %v1342 = vld [vmem:[#allocation2 + $0x2e] sm:$0xff]
      %v1343 = vld [vmem:[#allocation2 + $0x36] sm:$0xff]
      %v1344 = vld [vmem:[#allocation2 + $0x3e] sm:$0xff]
      %v1345 = vld [vmem:[#allocation2 + $0x46] sm:$0xff]
      %v1346 = vld [vmem:[#allocation2 + $0x4e] sm:$0xff]
      %v1347 = vld [vmem:[#allocation2 + $0x56] sm:$0xff]
      %v1348 = vld [vmem:[#allocation2 + $0x5e] sm:$0xff]
      %v1349 = vld [vmem:[#allocation2 + $0x66] sm:$0xff]
      %v1350 = vld [vmem:[#allocation2 + $0x6e] sm:$0xff]
      %v1351 = vld [vmem:[#allocation2 + $0x76] sm:$0xff]
      %v1352 = vld [vmem:[#allocation2 + $0x7e] sm:$0xff]
      %v1353 = vld [vmem:[#allocation2 + $0x86] sm:$0xff]
      %v1354 = vld [vmem:[#allocation2 + $0x8e] sm:$0xff]
      %v1355 = vld [vmem:[#allocation2 + $0x96] sm:$0xff]
      %v1356 = vld [vmem:[#allocation2 + $0x9e] sm:$0xff]
      %v1357 = vld [vmem:[#allocation2 + $0xa6] sm:$0xff]
      %v1358 = vld [vmem:[#allocation2 + $0xae] sm:$0xff]
      %v1359 = vld [vmem:[#allocation2 + $0xb6] sm:$0xff]
      %v1360 = vld [vmem:[#allocation2 + $0xbe] sm:$0xff]
      %v1361 = vld [vmem:[#allocation2 + $0xc6] sm:$0xff]
      %v1362 = vld [vmem:[#allocation2 + $0xce] sm:$0xff]
      %v1363 = vld [vmem:[#allocation2 + $0xd6] sm:$0xff]
      %v1364 = vld [vmem:[#allocation2 + $0xde] sm:$0xff]
      %v1365 = vld [vmem:[#allocation2 + $0xe6] sm:$0xff]
      %v1366 = vld [vmem:[#allocation2 + $0xee] sm:$0xff]
      %v1367 = vld [vmem:[#allocation2 + $0xf6] sm:$0xff]
      %v1368 = vld [vmem:[#allocation2 + $0xfe] sm:$0xff]
      %v1369 = vld [vmem:[#allocation2 + $0x106] sm:$0xff]
      %v1370 = vld [vmem:[#allocation2 + $0x10e] sm:$0xff]
      %v1371 = vld [vmem:[#allocation2 + $0x116] sm:$0xff]
      %v1372 = vld [vmem:[#allocation2 + $0x11e] sm:$0xff]
      %v1373 = vld [vmem:[#allocation2 + $0x126] sm:$0xff]
      %v1374 = vld [vmem:[#allocation2 + $0x12e] sm:$0xff]
      %v1375 = vld [vmem:[#allocation2 + $0x136] sm:$0xff]
      %v1376 = vld [vmem:[#allocation2 + $0x13e] sm:$0xff]
      %v1377 = vpack.c.bf16 %v1342, %v1341
      %v1378 = vpack.c.bf16 %v1344, %v1343
      %v1379 = vpack.c.bf16 %v1346, %v1345
      %v1380 = vpack.c.bf16 %v1348, %v1347
      %v1381 = vpack.c.bf16 %v1350, %v1349
      %v1382 = vpack.c.bf16 %v1352, %v1351
      %v1383 = vpack.c.bf16 %v1354, %v1353
      %v1384 = vpack.c.bf16 %v1356, %v1355
      %v1385 = vpack.c.bf16 %v1358, %v1357
      %v1386 = vpack.c.bf16 %v1360, %v1359
      %v1387 = vpack.c.bf16 %v1362, %v1361
      %v1388 = vpack.c.bf16 %v1364, %v1363
      %v1389 = vpack.c.bf16 %v1366, %v1365
      %v1390 = vpack.c.bf16 %v1368, %v1367
      %v1391 = vpack.c.bf16 %v1370, %v1369
      %v1392 = vpack.c.bf16 %v1372, %v1371
      %v1393 = vpack.c.bf16 %v1374, %v1373
      %v1394 = vpack.c.bf16 %v1376, %v1375
      %v1395 = vld [vmem:[%s4] sm:$0xf]
      %v1396 = vld [vmem:[%s4 + $0x4] sm:$0xf]
      %v1397 = vld [vmem:[%s4 + $0x8] sm:$0xf]
      %v1398 = vld [vmem:[%s4 + $0xc] sm:$0xf]
      %v1399 = vld [vmem:[%s4 + $0x10] sm:$0xf]
      %v1400 = vld [vmem:[%s4 + $0x14] sm:$0xf]
      %v1401 = vld [vmem:[%s4 + $0x18] sm:$0xf]
      %v1402 = vld [vmem:[%s4 + $0x1c] sm:$0xf]
      %v1403 = vld [vmem:[%s4 + $0x20] sm:$0xf]
      %v1404 = vld [vmem:[%s4 + $0x24] sm:$0xf]
      %v1405 = vld [vmem:[%s4 + $0x28] sm:$0xf]
      %v1406 = vld [vmem:[%s4 + $0x2c] sm:$0xf]
      %v1407 = vld [vmem:[%s4 + $0x30] sm:$0xf]
      %v1408 = vld [vmem:[%s4 + $0x34] sm:$0xf]
      %v1409 = vld [vmem:[%s4 + $0x38] sm:$0xf]
      %v1410 = vld [vmem:[%s4 + $0x3c] sm:$0xf]
      %v1411 = vld [vmem:[%s4 + $0x40] sm:$0xf]
      %v1412 = vld [vmem:[%s4 + $0x44] sm:$0xf]
      %v1413 = vld [vmem:[%s4 + $0x48] sm:$0xf]
      %v1414 = vld [vmem:[%s4 + $0x4c] sm:$0xf]
      %v1415 = vld [vmem:[%s4 + $0x50] sm:$0xf]
      %v1416 = vld [vmem:[%s4 + $0x54] sm:$0xf]
      %v1417 = vld [vmem:[%s4 + $0x58] sm:$0xf]
      %v1418 = vld [vmem:[%s4 + $0x5c] sm:$0xf]
      %v1419 = vld [vmem:[%s4 + $0x60] sm:$0xf]
      %v1420 = vld [vmem:[%s4 + $0x64] sm:$0xf]
      %v1421 = vld [vmem:[%s4 + $0x68] sm:$0xf]
      %v1422 = vld [vmem:[%s4 + $0x6c] sm:$0xf]
      %v1423 = vld [vmem:[%s4 + $0x70] sm:$0xf]
      %v1424 = vld [vmem:[%s4 + $0x74] sm:$0xf]
      %v1425 = vld [vmem:[%s4 + $0x78] sm:$0xf]
      %v1426 = vld [vmem:[%s4 + $0x7c] sm:$0xf]
      %v1427 = vld [vmem:[%s4 + $0x80] sm:$0xf]
      %v1428 = vld [vmem:[%s4 + $0x84] sm:$0xf]
      %v1429 = vld [vmem:[%s4 + $0x88] sm:$0xf]
      %v1430 = vld [vmem:[%s4 + $0x8c] sm:$0xf]
      %v1431 = vld [vmem:[%s4 + $0x90] sm:$0xf]
      %v1432 = vld [vmem:[%s4 + $0x94] sm:$0xf]
      %v1433 = vld [vmem:[%s4 + $0x98] sm:$0xf]
      %v1434 = vld [vmem:[%s4 + $0x9c] sm:$0xf]
      %v1435 = vld [vmem:[%s4 + $0xa0] sm:$0xf]
      %v1436 = vld [vmem:[%s4 + $0xa4] sm:$0xf]
      %v1437 = vld [vmem:[%s4 + $0xa8] sm:$0xf]
      %v1438 = vld [vmem:[%s4 + $0xac] sm:$0xf]
      %v1439 = vld [vmem:[%s4 + $0xb0] sm:$0xf]
      %v1440 = vld [vmem:[%s4 + $0xb4] sm:$0xf]
      %v1441 = vld [vmem:[%s4 + $0xb8] sm:$0xf]
      %v1442 = vld [vmem:[%s4 + $0xbc] sm:$0xf]
      %v1443 = vld [vmem:[%s4 + $0xc0] sm:$0xf]
      %v1444 = vld [vmem:[%s4 + $0xc4] sm:$0xf]
      %v1445 = vld [vmem:[%s4 + $0xc8] sm:$0xf]
      %v1446 = vld [vmem:[%s4 + $0xcc] sm:$0xf]
      %v1447 = vld [vmem:[%s4 + $0xd0] sm:$0xf]
      %v1448 = vld [vmem:[%s4 + $0xd4] sm:$0xf]
      %v1449 = vld [vmem:[%s4 + $0xd8] sm:$0xf]
      %v1450 = vld [vmem:[%s4 + $0xdc] sm:$0xf]
      %v1451 = vld [vmem:[%s4 + $0xe0] sm:$0xf]
      %v1452 = vld [vmem:[%s4 + $0xe4] sm:$0xf]
      %v1453 = vld [vmem:[%s4 + $0xe8] sm:$0xf]
      %v1454 = vld [vmem:[%s4 + $0xec] sm:$0xf]
      %v1455 = vld [vmem:[%s4 + $0xf0] sm:$0xf]
      %v1456 = vld [vmem:[%s4 + $0xf4] sm:$0xf]
      %v1457 = vld [vmem:[%s4 + $0xf8] sm:$0xf]
      %v1458 = vld [vmem:[%s4 + $0xfc] sm:$0xf]
      %v1459 = vld [vmem:[%s4 + $0x100] sm:$0xf]
      %v1460 = vld [vmem:[%s4 + $0x104] sm:$0xf]
      %v1461 = vld [vmem:[%s4 + $0x108] sm:$0xf]
      %v1462 = vld [vmem:[%s4 + $0x10c] sm:$0xf]
      %v1463 = vld [vmem:[%s4 + $0x110] sm:$0xf]
      %v1464 = vld [vmem:[%s4 + $0x114] sm:$0xf]
      %v1465 = vld [vmem:[%s4 + $0x118] sm:$0xf]
      %v1466 = vld [vmem:[%s4 + $0x11c] sm:$0xf]
      %v1467 = vld [vmem:[%s4 + $0x120] sm:$0xf]
      %v1468 = vld [vmem:[%s4 + $0x124] sm:$0xf]
      %v1469 = vld [vmem:[%s4 + $0x128] sm:$0xf]
      %v1470 = vld [vmem:[%s4 + $0x12c] sm:$0xf]
      %v1471 = vld [vmem:[%s4 + $0x130] sm:$0xf]
      %v1472 = vld [vmem:[%s4 + $0x134] sm:$0xf]
      %v1473 = vld [vmem:[%s4 + $0x138] sm:$0xf]
      %v1474 = vld [vmem:[%s4 + $0x13c] sm:$0xf]
      %v1475 = vld [vmem:[%s4 + $0x140] sm:$0xf]
      %v1476 = vld [vmem:[%s4 + $0x144] sm:$0xf]
      %v1477 = vld [vmem:[%s4 + $0x148] sm:$0xf]
      %v1478 = vld [vmem:[%s4 + $0x14c] sm:$0xf]
      %v1479 = vld [vmem:[%s4 + $0x150] sm:$0xf]
      %v1480 = vld [vmem:[%s4 + $0x154] sm:$0xf]
      %v1481 = vld [vmem:[%s4 + $0x158] sm:$0xf]
      %v1482 = vld [vmem:[%s4 + $0x15c] sm:$0xf]
      %v1483 = vld [vmem:[%s4 + $0x160] sm:$0xf]
      %v1484 = vld [vmem:[%s4 + $0x164] sm:$0xf]
      %v1485 = vld [vmem:[%s4 + $0x168] sm:$0xf]
      %v1486 = vld [vmem:[%s4 + $0x16c] sm:$0xf]
      %v1487 = vld [vmem:[%s4 + $0x170] sm:$0xf]
      %v1488 = vld [vmem:[%s4 + $0x174] sm:$0xf]
      %v1489 = vld [vmem:[%s4 + $0x178] sm:$0xf]
      %v1490 = vld [vmem:[%s4 + $0x17c] sm:$0xf]
      %v1491 = vld [vmem:[%s4 + $0x180] sm:$0xf]
      %v1492 = vld [vmem:[%s4 + $0x184] sm:$0xf]
      %v1493 = vld [vmem:[%s4 + $0x188] sm:$0xf]
      %v1494 = vld [vmem:[%s4 + $0x18c] sm:$0xf]
      %v1495 = vld [vmem:[%s4 + $0x190] sm:$0xf]
      %v1496 = vld [vmem:[%s4 + $0x194] sm:$0xf]
      %v1497 = vld [vmem:[%s4 + $0x198] sm:$0xf]
      %v1498 = vld [vmem:[%s4 + $0x19c] sm:$0xf]
      %v1499 = vld [vmem:[%s4 + $0x1a0] sm:$0xf]
      %v1500 = vld [vmem:[%s4 + $0x1a4] sm:$0xf]
      %v1501 = vld [vmem:[%s4 + $0x1a8] sm:$0xf]
      %v1502 = vld [vmem:[%s4 + $0x1ac] sm:$0xf]
      %v1503 = vld [vmem:[%s4 + $0x1b0] sm:$0xf]
      %v1504 = vld [vmem:[%s4 + $0x1b4] sm:$0xf]
      %v1505 = vld [vmem:[%s4 + $0x1b8] sm:$0xf]
      %v1506 = vld [vmem:[%s4 + $0x1bc] sm:$0xf]
      %v1507 = vld [vmem:[%s4 + $0x1c0] sm:$0xf]
      %v1508 = vld [vmem:[%s4 + $0x1c4] sm:$0xf]
      %v1509 = vld [vmem:[%s4 + $0x1c8] sm:$0xf]
      %v1510 = vld [vmem:[%s4 + $0x1cc] sm:$0xf]
      %v1511 = vld [vmem:[%s4 + $0x1d0] sm:$0xf]
      %v1512 = vld [vmem:[%s4 + $0x1d4] sm:$0xf]
      %v1513 = vld [vmem:[%s4 + $0x1d8] sm:$0xf]
      %v1514 = vld [vmem:[%s4 + $0x1dc] sm:$0xf]
      %v1515 = vld [vmem:[%s4 + $0x1e0] sm:$0xf]
      %v1516 = vld [vmem:[%s4 + $0x1e4] sm:$0xf]
      %v1517 = vld [vmem:[%s4 + $0x1e8] sm:$0xf]
      %v1518 = vld [vmem:[%s4 + $0x1ec] sm:$0xf]
      %v1519 = vld [vmem:[%s4 + $0x1f0] sm:$0xf]
      %v1520 = vld [vmem:[%s4 + $0x1f4] sm:$0xf]
      %v1521 = vld [vmem:[%s4 + $0x1f8] sm:$0xf]
      %v1522 = vld [vmem:[%s4 + $0x1fc] sm:$0xf]
      %v1523 = vld [vmem:[%s4 + $0x200] sm:$0xf]
      %v1524 = vld [vmem:[%s4 + $0x204] sm:$0xf]
      %v1525 = vld [vmem:[%s4 + $0x208] sm:$0xf]
      %v1526 = vld [vmem:[%s4 + $0x20c] sm:$0xf]
      %v1527 = vld [vmem:[%s4 + $0x210] sm:$0xf]
      %v1528 = vld [vmem:[%s4 + $0x214] sm:$0xf]
      %v1529 = vld [vmem:[%s4 + $0x218] sm:$0xf]
      %v1530 = vld [vmem:[%s4 + $0x21c] sm:$0xf]
      %v1531 = vld [vmem:[%s4 + $0x220] sm:$0xf]
      %v1532 = vld [vmem:[%s4 + $0x224] sm:$0xf]
      %v1533 = vld [vmem:[%s4 + $0x228] sm:$0xf]
      %v1534 = vld [vmem:[%s4 + $0x22c] sm:$0xf]
      %v1535 = vld [vmem:[%s4 + $0x230] sm:$0xf]
      %v1536 = vld [vmem:[%s4 + $0x234] sm:$0xf]
      %v1537 = vld [vmem:[%s4 + $0x238] sm:$0xf]
      %v1538 = vld [vmem:[%s4 + $0x23c] sm:$0xf]
      %v1683 = vunpack.c.l.b16 %v1395
      %v1684 = vunpack.c.l.b16 %v1396
      %v1685 = vunpack.c.l.b16 %v1397
      %v1686 = vunpack.c.l.b16 %v1398
      %v1687 = vunpack.c.l.b16 %v1399
      %v1688 = vunpack.c.l.b16 %v1400
      %v1689 = vunpack.c.l.b16 %v1401
      %v1690 = vunpack.c.l.b16 %v1402
      %v1691 = vunpack.c.l.b16 %v1403
      %v1692 = vunpack.c.l.b16 %v1404
      %v1693 = vunpack.c.l.b16 %v1405
      %v1694 = vunpack.c.l.b16 %v1406
      %v1695 = vunpack.c.l.b16 %v1407
      %v1696 = vunpack.c.l.b16 %v1408
      %v1697 = vunpack.c.l.b16 %v1409
      %v1698 = vunpack.c.l.b16 %v1410
      %v1699 = vunpack.c.l.b16 %v1411
      %v1700 = vunpack.c.l.b16 %v1412
      %v1701 = vunpack.c.l.b16 %v1413
      %v1702 = vunpack.c.l.b16 %v1414
      %v1703 = vunpack.c.l.b16 %v1415
      %v1704 = vunpack.c.l.b16 %v1416
      %v1705 = vunpack.c.l.b16 %v1417
      %v1706 = vunpack.c.l.b16 %v1418
      %v1707 = vunpack.c.l.b16 %v1419
      %v1708 = vunpack.c.l.b16 %v1420
      %v1709 = vunpack.c.l.b16 %v1421
      %v1710 = vunpack.c.l.b16 %v1422
      %v1711 = vunpack.c.l.b16 %v1423
      %v1712 = vunpack.c.l.b16 %v1424
      %v1713 = vunpack.c.l.b16 %v1425
      %v1714 = vunpack.c.l.b16 %v1426
      %v1715 = vunpack.c.l.b16 %v1427
      %v1716 = vunpack.c.l.b16 %v1428
      %v1717 = vunpack.c.l.b16 %v1429
      %v1718 = vunpack.c.l.b16 %v1430
      %v1719 = vunpack.c.l.b16 %v1431
      %v1720 = vunpack.c.l.b16 %v1432
      %v1721 = vunpack.c.l.b16 %v1433
      %v1722 = vunpack.c.l.b16 %v1434
      %v1723 = vunpack.c.l.b16 %v1435
      %v1724 = vunpack.c.l.b16 %v1436
      %v1725 = vunpack.c.l.b16 %v1437
      %v1726 = vunpack.c.l.b16 %v1438
      %v1727 = vunpack.c.l.b16 %v1439
      %v1728 = vunpack.c.l.b16 %v1440
      %v1729 = vunpack.c.l.b16 %v1441
      %v1730 = vunpack.c.l.b16 %v1442
      %v1731 = vunpack.c.l.b16 %v1443
      %v1732 = vunpack.c.l.b16 %v1444
      %v1733 = vunpack.c.l.b16 %v1445
      %v1734 = vunpack.c.l.b16 %v1446
      %v1735 = vunpack.c.l.b16 %v1447
      %v1736 = vunpack.c.l.b16 %v1448
      %v1737 = vunpack.c.l.b16 %v1449
      %v1738 = vunpack.c.l.b16 %v1450
      %v1739 = vunpack.c.l.b16 %v1451
      %v1740 = vunpack.c.l.b16 %v1452
      %v1741 = vunpack.c.l.b16 %v1453
      %v1742 = vunpack.c.l.b16 %v1454
      %v1743 = vunpack.c.l.b16 %v1455
      %v1744 = vunpack.c.l.b16 %v1456
      %v1745 = vunpack.c.l.b16 %v1457
      %v1746 = vunpack.c.l.b16 %v1458
      %v1747 = vunpack.c.l.b16 %v1459
      %v1748 = vunpack.c.l.b16 %v1460
      %v1749 = vunpack.c.l.b16 %v1461
      %v1750 = vunpack.c.l.b16 %v1462
      %v1751 = vunpack.c.l.b16 %v1463
      %v1752 = vunpack.c.l.b16 %v1464
      %v1753 = vunpack.c.l.b16 %v1465
      %v1754 = vunpack.c.l.b16 %v1466
      %v1755 = vunpack.c.l.b16 %v1467
      %v1756 = vunpack.c.l.b16 %v1468
      %v1757 = vunpack.c.l.b16 %v1469
      %v1758 = vunpack.c.l.b16 %v1470
      %v1759 = vunpack.c.l.b16 %v1471
      %v1760 = vunpack.c.l.b16 %v1472
      %v1761 = vunpack.c.l.b16 %v1473
      %v1762 = vunpack.c.l.b16 %v1474
      %v1763 = vunpack.c.l.b16 %v1475
      %v1764 = vunpack.c.l.b16 %v1476
      %v1765 = vunpack.c.l.b16 %v1477
      %v1766 = vunpack.c.l.b16 %v1478
      %v1767 = vunpack.c.l.b16 %v1479
      %v1768 = vunpack.c.l.b16 %v1480
      %v1769 = vunpack.c.l.b16 %v1481
      %v1770 = vunpack.c.l.b16 %v1482
      %v1771 = vunpack.c.l.b16 %v1483
      %v1772 = vunpack.c.l.b16 %v1484
      %v1773 = vunpack.c.l.b16 %v1485
      %v1774 = vunpack.c.l.b16 %v1486
      %v1775 = vunpack.c.l.b16 %v1487
      %v1776 = vunpack.c.l.b16 %v1488
      %v1777 = vunpack.c.l.b16 %v1489
      %v1778 = vunpack.c.l.b16 %v1490
      %v1779 = vunpack.c.l.b16 %v1491
      %v1780 = vunpack.c.l.b16 %v1492
      %v1781 = vunpack.c.l.b16 %v1493
      %v1782 = vunpack.c.l.b16 %v1494
      %v1783 = vunpack.c.l.b16 %v1495
      %v1784 = vunpack.c.l.b16 %v1496
      %v1785 = vunpack.c.l.b16 %v1497
      %v1786 = vunpack.c.l.b16 %v1498
      %v1787 = vunpack.c.l.b16 %v1499
      %v1788 = vunpack.c.l.b16 %v1500
      %v1789 = vunpack.c.l.b16 %v1501
      %v1790 = vunpack.c.l.b16 %v1502
      %v1791 = vunpack.c.l.b16 %v1503
      %v1792 = vunpack.c.l.b16 %v1504
      %v1793 = vunpack.c.l.b16 %v1505
      %v1794 = vunpack.c.l.b16 %v1506
      %v1795 = vunpack.c.l.b16 %v1507
      %v1796 = vunpack.c.l.b16 %v1508
      %v1797 = vunpack.c.l.b16 %v1509
      %v1798 = vunpack.c.l.b16 %v1510
      %v1799 = vunpack.c.l.b16 %v1511
      %v1800 = vunpack.c.l.b16 %v1512
      %v1801 = vunpack.c.l.b16 %v1513
      %v1802 = vunpack.c.l.b16 %v1514
      %v1803 = vunpack.c.l.b16 %v1515
      %v1804 = vunpack.c.l.b16 %v1516
      %v1805 = vunpack.c.l.b16 %v1517
      %v1806 = vunpack.c.l.b16 %v1518
      %v1807 = vunpack.c.l.b16 %v1519
      %v1808 = vunpack.c.l.b16 %v1520
      %v1809 = vunpack.c.l.b16 %v1521
      %v1810 = vunpack.c.l.b16 %v1522
      %v1811 = vunpack.c.l.b16 %v1523
      %v1812 = vunpack.c.l.b16 %v1524
      %v1813 = vunpack.c.l.b16 %v1525
      %v1814 = vunpack.c.l.b16 %v1526
      %v1815 = vunpack.c.l.b16 %v1527
      %v1816 = vunpack.c.l.b16 %v1528
      %v1817 = vunpack.c.l.b16 %v1529
      %v1818 = vunpack.c.l.b16 %v1530
      %v1819 = vunpack.c.l.b16 %v1531
      %v1820 = vunpack.c.l.b16 %v1532
      %v1821 = vunpack.c.l.b16 %v1533
      %v1822 = vunpack.c.l.b16 %v1534
      %v1823 = vunpack.c.l.b16 %v1535
      %v1824 = vunpack.c.l.b16 %v1536
      %v1825 = vunpack.c.l.b16 %v1537
      %v1826 = vunpack.c.l.b16 %v1538
      %v1827 = vpack.c.b16 %v1684, %v1683
      %v1828 = vpack.c.b16 %v1686, %v1685
      %v1829 = vpack.c.b16 %v1688, %v1687
      %v1830 = vpack.c.b16 %v1690, %v1689
      %v1831 = vpack.c.b16 %v1692, %v1691
      %v1832 = vpack.c.b16 %v1694, %v1693
      %v1833 = vpack.c.b16 %v1696, %v1695
      %v1834 = vpack.c.b16 %v1698, %v1697
      %v1835 = vpack.c.b16 %v1700, %v1699
      %v1836 = vpack.c.b16 %v1702, %v1701
      %v1837 = vpack.c.b16 %v1704, %v1703
      %v1838 = vpack.c.b16 %v1706, %v1705
      %v1839 = vpack.c.b16 %v1708, %v1707
      %v1840 = vpack.c.b16 %v1710, %v1709
      %v1841 = vpack.c.b16 %v1712, %v1711
      %v1842 = vpack.c.b16 %v1714, %v1713
      %v1843 = vpack.c.b16 %v1716, %v1715
      %v1844 = vpack.c.b16 %v1718, %v1717
      %v1845 = vpack.c.b16 %v1720, %v1719
      %v1846 = vpack.c.b16 %v1722, %v1721
      %v1847 = vpack.c.b16 %v1724, %v1723
      %v1848 = vpack.c.b16 %v1726, %v1725
      %v1849 = vpack.c.b16 %v1728, %v1727
      %v1850 = vpack.c.b16 %v1730, %v1729
      %v1851 = vpack.c.b16 %v1732, %v1731
      %v1852 = vpack.c.b16 %v1734, %v1733
      %v1853 = vpack.c.b16 %v1736, %v1735
      %v1854 = vpack.c.b16 %v1738, %v1737
      %v1855 = vpack.c.b16 %v1740, %v1739
      %v1856 = vpack.c.b16 %v1742, %v1741
      %v1857 = vpack.c.b16 %v1744, %v1743
      %v1858 = vpack.c.b16 %v1746, %v1745
      %v1859 = vpack.c.b16 %v1748, %v1747
      %v1860 = vpack.c.b16 %v1750, %v1749
      %v1861 = vpack.c.b16 %v1752, %v1751
      %v1862 = vpack.c.b16 %v1754, %v1753
      %v1863 = vpack.c.b16 %v1756, %v1755
      %v1864 = vpack.c.b16 %v1758, %v1757
      %v1865 = vpack.c.b16 %v1760, %v1759
      %v1866 = vpack.c.b16 %v1762, %v1761
      %v1867 = vpack.c.b16 %v1764, %v1763
      %v1868 = vpack.c.b16 %v1766, %v1765
      %v1869 = vpack.c.b16 %v1768, %v1767
      %v1870 = vpack.c.b16 %v1770, %v1769
      %v1871 = vpack.c.b16 %v1772, %v1771
      %v1872 = vpack.c.b16 %v1774, %v1773
      %v1873 = vpack.c.b16 %v1776, %v1775
      %v1874 = vpack.c.b16 %v1778, %v1777
      %v1875 = vpack.c.b16 %v1780, %v1779
      %v1876 = vpack.c.b16 %v1782, %v1781
      %v1877 = vpack.c.b16 %v1784, %v1783
      %v1878 = vpack.c.b16 %v1786, %v1785
      %v1879 = vpack.c.b16 %v1788, %v1787
      %v1880 = vpack.c.b16 %v1790, %v1789
      %v1881 = vpack.c.b16 %v1792, %v1791
      %v1882 = vpack.c.b16 %v1794, %v1793
      %v1883 = vpack.c.b16 %v1796, %v1795
      %v1884 = vpack.c.b16 %v1798, %v1797
      %v1885 = vpack.c.b16 %v1800, %v1799
      %v1886 = vpack.c.b16 %v1802, %v1801
      %v1887 = vpack.c.b16 %v1804, %v1803
      %v1888 = vpack.c.b16 %v1806, %v1805
      %v1889 = vpack.c.b16 %v1808, %v1807
      %v1890 = vpack.c.b16 %v1810, %v1809
      %v1891 = vpack.c.b16 %v1812, %v1811
      %v1892 = vpack.c.b16 %v1814, %v1813
      %v1893 = vpack.c.b16 %v1816, %v1815
      %v1894 = vpack.c.b16 %v1818, %v1817
      %v1895 = vpack.c.b16 %v1820, %v1819
      %v1896 = vpack.c.b16 %v1822, %v1821
      %v1897 = vpack.c.b16 %v1824, %v1823
      %v1898 = vpack.c.b16 %v1826, %v1825
      %1971 = vmatprep.subr.bf16.mxu0 0
      %1972 = vmatpush1.bf16.msra.mxu0 %v1834
      %1973 = vmatprep.subr.bf16.mxu0 0
      %1974 = vmatpush1.bf16.msra.mxu0 %v1833
      %1975 = vmatprep.subr.bf16.mxu0 0
      %1976 = vmatpush1.bf16.msra.mxu0 %v1832
      %1977 = vmatprep.subr.bf16.mxu0 0
      %1978 = vmatpush1.bf16.msra.mxu0 %v1831
      %1979 = vmatprep.subr.bf16.mxu0 0
      %1980 = vmatpush1.bf16.msra.mxu0 %v1830
      %1981 = vmatprep.subr.bf16.mxu0 0
      %1982 = vmatpush1.bf16.msra.mxu0 %v1829
      %1983 = vmatprep.subr.bf16.mxu0 0
      %1984 = vmatpush1.bf16.msra.mxu0 %v1828
      %1985 = vmatprep.subr.bf16.mxu0 0
      %1986 = vmatpush1.bf16.msra.mxu0 %v1827
      %1987 = vmatprep.subr.bf16.mxu0 0
      %1988 = vmatpush2.bf16.msra.mxu0 %v1842
      %1989 = vmatprep.subr.bf16.mxu0 0
      %1990 = vmatpush2.bf16.msra.mxu0 %v1841
      %1991 = vmatprep.subr.bf16.mxu0 0
      %1992 = vmatpush2.bf16.msra.mxu0 %v1840
      %1993 = vmatprep.subr.bf16.mxu0 0
      %1994 = vmatpush2.bf16.msra.mxu0 %v1839
      %1995 = vmatprep.subr.bf16.mxu0 0
      %1996 = vmatpush2.bf16.msra.mxu0 %v1838
      %1997 = vmatprep.subr.bf16.mxu0 0
      %1998 = vmatpush2.bf16.msra.mxu0 %v1837
      %1999 = vmatprep.subr.bf16.mxu0 0
      %2000 = vmatpush2.bf16.msra.mxu0 %v1836
      %2001 = vmatprep.subr.bf16.mxu0 0
      %2002 = vmatpush2.bf16.msra.mxu0 %v1835
      %2003 = vmatprep.mubr.bf16.mxu0 %v1101
      %2004 = vmatmul.mubr.bf16.gmra.mxu0 %v1047
      %v2005 = vpop.f32.mrf.mxu0
      %v2006 = vadd.f32 0.0, %v2005
      %v2007 = vpop.f32.mrf.mxu0
      %v2008 = vpop.f32.mrf.mxu0
      %v2009 = vadd.f32 0.0, %v2008
      %v2010 = vpop.f32.mrf.mxu0
      %2011 = vmatprep.mubr.bf16.mxu0 %v1102
      %2012 = vmatmul.mubr.bf16.gmra.mxu0 %v1048
      %v2013 = vpop.f32.mrf.mxu0
      %v2014 = vadd.f32 0.0, %v2013
      %v2015 = vpop.f32.mrf.mxu0
      %v2016 = vpop.f32.mrf.mxu0
      %v2017 = vadd.f32 0.0, %v2016
      %v2018 = vpop.f32.mrf.mxu0
      %2019 = vmatprep.mubr.bf16.mxu0 %v1103
      %2020 = vmatmul.mubr.bf16.gmra.mxu0 %v1049
      %v2021 = vpop.f32.mrf.mxu0
      %v2022 = vadd.f32 0.0, %v2021
      %v2023 = vpop.f32.mrf.mxu0
      %v2024 = vpop.f32.mrf.mxu0
      %v2025 = vadd.f32 0.0, %v2024
      %v2026 = vpop.f32.mrf.mxu0
      %2027 = vmatprep.mubr.bf16.mxu0 %v1104
      %2028 = vmatmul.mubr.bf16.gmra.mxu0 %v1050
      %v2029 = vpop.f32.mrf.mxu0
      %v2030 = vadd.f32 0.0, %v2029
      %v2031 = vpop.f32.mrf.mxu0
      %v2032 = vpop.f32.mrf.mxu0
      %v2033 = vadd.f32 0.0, %v2032
      %v2034 = vpop.f32.mrf.mxu0
      %2035 = vmatprep.mubr.bf16.mxu0 %v1105
      %2036 = vmatmul.mubr.bf16.gmra.mxu0 %v1051
      %v2037 = vpop.f32.mrf.mxu0
      %v2038 = vadd.f32 0.0, %v2037
      %v2039 = vpop.f32.mrf.mxu0
      %v2040 = vpop.f32.mrf.mxu0
      %v2041 = vadd.f32 0.0, %v2040
      %v2042 = vpop.f32.mrf.mxu0
      %2043 = vmatprep.mubr.bf16.mxu0 %v1106
      %2044 = vmatmul.mubr.bf16.gmra.mxu0 %v1052
      %v2045 = vpop.f32.mrf.mxu0
      %v2046 = vadd.f32 0.0, %v2045
      %v2047 = vpop.f32.mrf.mxu0
      %v2048 = vpop.f32.mrf.mxu0
      %v2049 = vadd.f32 0.0, %v2048
      %v2050 = vpop.f32.mrf.mxu0
      %2051 = vmatprep.mubr.bf16.mxu0 %v1107
      %2052 = vmatmul.mubr.bf16.gmra.mxu0 %v1053
      %v2053 = vpop.f32.mrf.mxu0
      %v2054 = vadd.f32 0.0, %v2053
      %v2055 = vpop.f32.mrf.mxu0
      %v2056 = vpop.f32.mrf.mxu0
      %v2057 = vadd.f32 0.0, %v2056
      %v2058 = vpop.f32.mrf.mxu0
      %2059 = vmatprep.mubr.bf16.mxu0 %v1108
      %2060 = vmatmul.mubr.bf16.gmra.mxu0 %v1054
      %v2061 = vpop.f32.mrf.mxu0
      %v2062 = vadd.f32 0.0, %v2061
      %v2063 = vpop.f32.mrf.mxu0
      %v2064 = vpop.f32.mrf.mxu0
      %v2065 = vadd.f32 0.0, %v2064
      %v2066 = vpop.f32.mrf.mxu0
      %2067 = vmatprep.mubr.bf16.mxu0 %v1109
      %2068 = vmatmul.mubr.bf16.gmra.mxu0 %v1055
      %v2069 = vpop.f32.mrf.mxu0
      %v2070 = vadd.f32 0.0, %v2069
      %v2071 = vpop.f32.mrf.mxu0
      %v2072 = vpop.f32.mrf.mxu0
      %v2073 = vadd.f32 0.0, %v2072
      %v2074 = vpop.f32.mrf.mxu0
      %2075 = vmatprep.mubr.bf16.mxu0 %v1110
      %2076 = vmatmul.mubr.bf16.gmra.mxu0 %v1056
      %v2077 = vpop.f32.mrf.mxu0
      %v2078 = vadd.f32 0.0, %v2077
      %v2079 = vpop.f32.mrf.mxu0
      %v2080 = vpop.f32.mrf.mxu0
      %v2081 = vadd.f32 0.0, %v2080
      %v2082 = vpop.f32.mrf.mxu0
      %2083 = vmatprep.mubr.bf16.mxu0 %v1111
      %2084 = vmatmul.mubr.bf16.gmra.mxu0 %v1057
      %v2085 = vpop.f32.mrf.mxu0
      %v2086 = vadd.f32 0.0, %v2085
      %v2087 = vpop.f32.mrf.mxu0
      %v2088 = vpop.f32.mrf.mxu0
      %v2089 = vadd.f32 0.0, %v2088
      %v2090 = vpop.f32.mrf.mxu0
      %2091 = vmatprep.mubr.bf16.mxu0 %v1112
      %2092 = vmatmul.mubr.bf16.gmra.mxu0 %v1058
      %v2093 = vpop.f32.mrf.mxu0
      %v2094 = vadd.f32 0.0, %v2093
      %v2095 = vpop.f32.mrf.mxu0
      %v2096 = vpop.f32.mrf.mxu0
      %v2097 = vadd.f32 0.0, %v2096
      %v2098 = vpop.f32.mrf.mxu0
      %2099 = vmatprep.mubr.bf16.mxu0 %v1113
      %2100 = vmatmul.mubr.bf16.gmra.mxu0 %v1059
      %v2101 = vpop.f32.mrf.mxu0
      %v2102 = vadd.f32 0.0, %v2101
      %v2103 = vpop.f32.mrf.mxu0
      %v2104 = vpop.f32.mrf.mxu0
      %v2105 = vadd.f32 0.0, %v2104
      %v2106 = vpop.f32.mrf.mxu0
      %2107 = vmatprep.mubr.bf16.mxu0 %v1114
      %2108 = vmatmul.mubr.bf16.gmra.mxu0 %v1060
      %v2109 = vpop.f32.mrf.mxu0
      %v2110 = vadd.f32 0.0, %v2109
      %v2111 = vpop.f32.mrf.mxu0
      %v2112 = vpop.f32.mrf.mxu0
      %v2113 = vadd.f32 0.0, %v2112
      %v2114 = vpop.f32.mrf.mxu0
      %2115 = vmatprep.mubr.bf16.mxu0 %v1115
      %2116 = vmatmul.mubr.bf16.gmra.mxu0 %v1061
      %v2117 = vpop.f32.mrf.mxu0
      %v2118 = vadd.f32 0.0, %v2117
      %v2119 = vpop.f32.mrf.mxu0
      %v2120 = vpop.f32.mrf.mxu0
      %v2121 = vadd.f32 0.0, %v2120
      %v2122 = vpop.f32.mrf.mxu0
      %2123 = vmatprep.mubr.bf16.mxu0 %v1116
      %2124 = vmatmul.mubr.bf16.gmra.mxu0 %v1062
      %v2125 = vpop.f32.mrf.mxu0
      %v2126 = vadd.f32 0.0, %v2125
      %v2127 = vpop.f32.mrf.mxu0
      %v2128 = vpop.f32.mrf.mxu0
      %v2129 = vadd.f32 0.0, %v2128
      %v2130 = vpop.f32.mrf.mxu0
      %2131 = vmatprep.mubr.bf16.mxu0 %v1117
      %2132 = vmatmul.mubr.bf16.gmra.mxu0 %v1063
      %v2133 = vpop.f32.mrf.mxu0
      %v2134 = vadd.f32 0.0, %v2133
      %v2135 = vpop.f32.mrf.mxu0
      %v2136 = vpop.f32.mrf.mxu0
      %v2137 = vadd.f32 0.0, %v2136
      %v2138 = vpop.f32.mrf.mxu0
      %2139 = vmatprep.mubr.bf16.mxu0 %v1118
      %2140 = vmatmul.mubr.bf16.gmra.mxu0 %v1064
      %v2141 = vpop.f32.mrf.mxu0
      %v2142 = vadd.f32 0.0, %v2141
      %v2143 = vpop.f32.mrf.mxu0
      %v2144 = vpop.f32.mrf.mxu0
      %v2145 = vadd.f32 0.0, %v2144
      %v2146 = vpop.f32.mrf.mxu0
      %2147 = vdwg.mxu0
      %2148 = vmatprep.subr.bf16.mxu0 0
      %2149 = vmatpush1.bf16.msra.mxu0 %v1850
      %2150 = vmatprep.subr.bf16.mxu0 0
      %2151 = vmatpush1.bf16.msra.mxu0 %v1849
      %2152 = vmatprep.subr.bf16.mxu0 0
      %2153 = vmatpush1.bf16.msra.mxu0 %v1848
      %2154 = vmatprep.subr.bf16.mxu0 0
      %2155 = vmatpush1.bf16.msra.mxu0 %v1847
      %2156 = vmatprep.subr.bf16.mxu0 0
      %2157 = vmatpush1.bf16.msra.mxu0 %v1846
      %2158 = vmatprep.subr.bf16.mxu0 0
      %2159 = vmatpush1.bf16.msra.mxu0 %v1845
      %2160 = vmatprep.subr.bf16.mxu0 0
      %2161 = vmatpush1.bf16.msra.mxu0 %v1844
      %2162 = vmatprep.subr.bf16.mxu0 0
      %2163 = vmatpush1.bf16.msra.mxu0 %v1843
      %2164 = vmatprep.subr.bf16.mxu0 0
      %2165 = vmatpush2.bf16.msra.mxu0 %v1858
      %2166 = vmatprep.subr.bf16.mxu0 0
      %2167 = vmatpush2.bf16.msra.mxu0 %v1857
      %2168 = vmatprep.subr.bf16.mxu0 0
      %2169 = vmatpush2.bf16.msra.mxu0 %v1856
      %2170 = vmatprep.subr.bf16.mxu0 0
      %2171 = vmatpush2.bf16.msra.mxu0 %v1855
      %2172 = vmatprep.subr.bf16.mxu0 0
      %2173 = vmatpush2.bf16.msra.mxu0 %v1854
      %2174 = vmatprep.subr.bf16.mxu0 0
      %2175 = vmatpush2.bf16.msra.mxu0 %v1853
      %2176 = vmatprep.subr.bf16.mxu0 0
      %2177 = vmatpush2.bf16.msra.mxu0 %v1852
      %2178 = vmatprep.subr.bf16.mxu0 0
      %2179 = vmatpush2.bf16.msra.mxu0 %v1851
      %2180 = vmatprep.mubr.bf16.mxu0 %v1156
      %2181 = vmatmul.mubr.bf16.gmra.mxu0 %v1155
      %v2182 = vpop.f32.mrf.mxu0
      %v2183 = vadd.f32 %v2006, %v2182
      %v2184 = vpop.f32.mrf.mxu0
      %v2185 = vpop.f32.mrf.mxu0
      %v2186 = vadd.f32 %v2009, %v2185
      %v2187 = vpop.f32.mrf.mxu0
      %2188 = vmatprep.mubr.bf16.mxu0 %v1157
      %2189 = vmatmul.mubr.bf16.gmra.mxu0 %v1156
      %v2190 = vpop.f32.mrf.mxu0
      %v2191 = vadd.f32 %v2014, %v2190
      %v2192 = vpop.f32.mrf.mxu0
      %v2193 = vpop.f32.mrf.mxu0
      %v2194 = vadd.f32 %v2017, %v2193
      %v2195 = vpop.f32.mrf.mxu0
      %2196 = vmatprep.mubr.bf16.mxu0 %v1158
      %2197 = vmatmul.mubr.bf16.gmra.mxu0 %v1157
      %v2198 = vpop.f32.mrf.mxu0
      %v2199 = vadd.f32 %v2022, %v2198
      %v2200 = vpop.f32.mrf.mxu0
      %v2201 = vpop.f32.mrf.mxu0
      %v2202 = vadd.f32 %v2025, %v2201
      %v2203 = vpop.f32.mrf.mxu0
      %2204 = vmatprep.mubr.bf16.mxu0 %v1159
      %2205 = vmatmul.mubr.bf16.gmra.mxu0 %v1158
      %v2206 = vpop.f32.mrf.mxu0
      %v2207 = vadd.f32 %v2030, %v2206
      %v2208 = vpop.f32.mrf.mxu0
      %v2209 = vpop.f32.mrf.mxu0
      %v2210 = vadd.f32 %v2033, %v2209
      %v2211 = vpop.f32.mrf.mxu0
      %2212 = vmatprep.mubr.bf16.mxu0 %v1160
      %2213 = vmatmul.mubr.bf16.gmra.mxu0 %v1159
      %v2214 = vpop.f32.mrf.mxu0
      %v2215 = vadd.f32 %v2038, %v2214
      %v2216 = vpop.f32.mrf.mxu0
      %v2217 = vpop.f32.mrf.mxu0
      %v2218 = vadd.f32 %v2041, %v2217
      %v2219 = vpop.f32.mrf.mxu0
      %2220 = vmatprep.mubr.bf16.mxu0 %v1161
      %2221 = vmatmul.mubr.bf16.gmra.mxu0 %v1160
      %v2222 = vpop.f32.mrf.mxu0
      %v2223 = vadd.f32 %v2046, %v2222
      %v2224 = vpop.f32.mrf.mxu0
      %v2225 = vpop.f32.mrf.mxu0
      %v2226 = vadd.f32 %v2049, %v2225
      %v2227 = vpop.f32.mrf.mxu0
      %2228 = vmatprep.mubr.bf16.mxu0 %v1162
      %2229 = vmatmul.mubr.bf16.gmra.mxu0 %v1161
      %v2230 = vpop.f32.mrf.mxu0
      %v2231 = vadd.f32 %v2054, %v2230
      %v2232 = vpop.f32.mrf.mxu0
      %v2233 = vpop.f32.mrf.mxu0
      %v2234 = vadd.f32 %v2057, %v2233
      %v2235 = vpop.f32.mrf.mxu0
      %2236 = vmatprep.mubr.bf16.mxu0 %v1163
      %2237 = vmatmul.mubr.bf16.gmra.mxu0 %v1162
      %v2238 = vpop.f32.mrf.mxu0
      %v2239 = vadd.f32 %v2062, %v2238
      %v2240 = vpop.f32.mrf.mxu0
      %v2241 = vpop.f32.mrf.mxu0
      %v2242 = vadd.f32 %v2065, %v2241
      %v2243 = vpop.f32.mrf.mxu0
      %2244 = vmatprep.mubr.bf16.mxu0 %v1164
      %2245 = vmatmul.mubr.bf16.gmra.mxu0 %v1163
      %v2246 = vpop.f32.mrf.mxu0
      %v2247 = vadd.f32 %v2070, %v2246
      %v2248 = vpop.f32.mrf.mxu0
      %v2249 = vpop.f32.mrf.mxu0
      %v2250 = vadd.f32 %v2073, %v2249
      %v2251 = vpop.f32.mrf.mxu0
      %2252 = vmatprep.mubr.bf16.mxu0 %v1165
      %2253 = vmatmul.mubr.bf16.gmra.mxu0 %v1164
      %v2254 = vpop.f32.mrf.mxu0
      %v2255 = vadd.f32 %v2078, %v2254
      %v2256 = vpop.f32.mrf.mxu0
      %v2257 = vpop.f32.mrf.mxu0
      %v2258 = vadd.f32 %v2081, %v2257
      %v2259 = vpop.f32.mrf.mxu0
      %2260 = vmatprep.mubr.bf16.mxu0 %v1166
      %2261 = vmatmul.mubr.bf16.gmra.mxu0 %v1165
      %v2262 = vpop.f32.mrf.mxu0
      %v2263 = vadd.f32 %v2086, %v2262
      %v2264 = vpop.f32.mrf.mxu0
      %v2265 = vpop.f32.mrf.mxu0
      %v2266 = vadd.f32 %v2089, %v2265
      %v2267 = vpop.f32.mrf.mxu0
      %2268 = vmatprep.mubr.bf16.mxu0 %v1167
      %2269 = vmatmul.mubr.bf16.gmra.mxu0 %v1166
      %v2270 = vpop.f32.mrf.mxu0
      %v2271 = vadd.f32 %v2094, %v2270
      %v2272 = vpop.f32.mrf.mxu0
      %v2273 = vpop.f32.mrf.mxu0
      %v2274 = vadd.f32 %v2097, %v2273
      %v2275 = vpop.f32.mrf.mxu0
      %2276 = vmatprep.mubr.bf16.mxu0 %v1168
      %2277 = vmatmul.mubr.bf16.gmra.mxu0 %v1167
      %v2278 = vpop.f32.mrf.mxu0
      %v2279 = vadd.f32 %v2102, %v2278
      %v2280 = vpop.f32.mrf.mxu0
      %v2281 = vpop.f32.mrf.mxu0
      %v2282 = vadd.f32 %v2105, %v2281
      %v2283 = vpop.f32.mrf.mxu0
      %2284 = vmatprep.mubr.bf16.mxu0 %v1169
      %2285 = vmatmul.mubr.bf16.gmra.mxu0 %v1168
      %v2286 = vpop.f32.mrf.mxu0
      %v2287 = vadd.f32 %v2110, %v2286
      %v2288 = vpop.f32.mrf.mxu0
      %v2289 = vpop.f32.mrf.mxu0
      %v2290 = vadd.f32 %v2113, %v2289
      %v2291 = vpop.f32.mrf.mxu0
      %2292 = vmatprep.mubr.bf16.mxu0 %v1170
      %2293 = vmatmul.mubr.bf16.gmra.mxu0 %v1169
      %v2294 = vpop.f32.mrf.mxu0
      %v2295 = vadd.f32 %v2118, %v2294
      %v2296 = vpop.f32.mrf.mxu0
      %v2297 = vpop.f32.mrf.mxu0
      %v2298 = vadd.f32 %v2121, %v2297
      %v2299 = vpop.f32.mrf.mxu0
      %2300 = vmatprep.mubr.bf16.mxu0 %v1171
      %2301 = vmatmul.mubr.bf16.gmra.mxu0 %v1170
      %v2302 = vpop.f32.mrf.mxu0
      %v2303 = vadd.f32 %v2126, %v2302
      %v2304 = vpop.f32.mrf.mxu0
      %v2305 = vpop.f32.mrf.mxu0
      %v2306 = vadd.f32 %v2129, %v2305
      %v2307 = vpop.f32.mrf.mxu0
      %2308 = vmatprep.mubr.bf16.mxu0 %v1172
      %2309 = vmatmul.mubr.bf16.gmra.mxu0 %v1171
      %v2310 = vpop.f32.mrf.mxu0
      %v2311 = vadd.f32 %v2134, %v2310
      %v2312 = vpop.f32.mrf.mxu0
      %v2313 = vpop.f32.mrf.mxu0
      %v2314 = vadd.f32 %v2137, %v2313
      %v2315 = vpop.f32.mrf.mxu0
      %2316 = vmatprep.mubr.bf16.mxu0 %v1175
      %2317 = vmatmul.mubr.bf16.gmra.mxu0 %v1172
      %v2318 = vpop.f32.mrf.mxu0
      %v2319 = vadd.f32 %v2142, %v2318
      %v2320 = vpop.f32.mrf.mxu0
      %v2321 = vpop.f32.mrf.mxu0
      %v2322 = vadd.f32 %v2145, %v2321
      %v2323 = vpop.f32.mrf.mxu0
      %2324 = vdwg.mxu0
      %2325 = vmatprep.subr.bf16.mxu0 0
      %2326 = vmatpush1.bf16.msra.mxu0 %v1866
      %2327 = vmatprep.subr.bf16.mxu0 0
      %2328 = vmatpush1.bf16.msra.mxu0 %v1865
      %2329 = vmatprep.subr.bf16.mxu0 0
      %2330 = vmatpush1.bf16.msra.mxu0 %v1864
      %2331 = vmatprep.subr.bf16.mxu0 0
      %2332 = vmatpush1.bf16.msra.mxu0 %v1863
      %2333 = vmatprep.subr.bf16.mxu0 0
      %2334 = vmatpush1.bf16.msra.mxu0 %v1862
      %2335 = vmatprep.subr.bf16.mxu0 0
      %2336 = vmatpush1.bf16.msra.mxu0 %v1861
      %2337 = vmatprep.subr.bf16.mxu0 0
      %2338 = vmatpush1.bf16.msra.mxu0 %v1860
      %2339 = vmatprep.subr.bf16.mxu0 0
      %2340 = vmatpush1.bf16.msra.mxu0 %v1859
      %2341 = vmatprep.subr.bf16.mxu0 0
      %2342 = vmatpush2.bf16.msra.mxu0 %v1874
      %2343 = vmatprep.subr.bf16.mxu0 0
      %2344 = vmatpush2.bf16.msra.mxu0 %v1873
      %2345 = vmatprep.subr.bf16.mxu0 0
      %2346 = vmatpush2.bf16.msra.mxu0 %v1872
      %2347 = vmatprep.subr.bf16.mxu0 0
      %2348 = vmatpush2.bf16.msra.mxu0 %v1871
      %2349 = vmatprep.subr.bf16.mxu0 0
      %2350 = vmatpush2.bf16.msra.mxu0 %v1870
      %2351 = vmatprep.subr.bf16.mxu0 0
      %2352 = vmatpush2.bf16.msra.mxu0 %v1869
      %2353 = vmatprep.subr.bf16.mxu0 0
      %2354 = vmatpush2.bf16.msra.mxu0 %v1868
      %2355 = vmatprep.subr.bf16.mxu0 0
      %2356 = vmatpush2.bf16.msra.mxu0 %v1867
      %2357 = vmatprep.mubr.bf16.mxu0 %v1266
      %2358 = vmatmul.mubr.bf16.gmra.mxu0 %v1212
      %v2359 = vpop.f32.mrf.mxu0
      %v2360 = vadd.f32 %v2183, %v2359
      %v2361 = vpop.f32.mrf.mxu0
      %v2362 = vpop.f32.mrf.mxu0
      %v2363 = vadd.f32 %v2186, %v2362
      %v2364 = vpop.f32.mrf.mxu0
      %2365 = vmatprep.mubr.bf16.mxu0 %v1267
      %2366 = vmatmul.mubr.bf16.gmra.mxu0 %v1213
      %v2367 = vpop.f32.mrf.mxu0
      %v2368 = vadd.f32 %v2191, %v2367
      %v2369 = vpop.f32.mrf.mxu0
      %v2370 = vpop.f32.mrf.mxu0
      %v2371 = vadd.f32 %v2194, %v2370
      %v2372 = vpop.f32.mrf.mxu0
      %2373 = vmatprep.mubr.bf16.mxu0 %v1268
      %2374 = vmatmul.mubr.bf16.gmra.mxu0 %v1214
      %v2375 = vpop.f32.mrf.mxu0
      %v2376 = vadd.f32 %v2199, %v2375
      %v2377 = vpop.f32.mrf.mxu0
      %v2378 = vpop.f32.mrf.mxu0
      %v2379 = vadd.f32 %v2202, %v2378
      %v2380 = vpop.f32.mrf.mxu0
      %2381 = vmatprep.mubr.bf16.mxu0 %v1269
      %2382 = vmatmul.mubr.bf16.gmra.mxu0 %v1215
      %v2383 = vpop.f32.mrf.mxu0
      %v2384 = vadd.f32 %v2207, %v2383
      %v2385 = vpop.f32.mrf.mxu0
      %v2386 = vpop.f32.mrf.mxu0
      %v2387 = vadd.f32 %v2210, %v2386
      %v2388 = vpop.f32.mrf.mxu0
      %2389 = vmatprep.mubr.bf16.mxu0 %v1270
      %2390 = vmatmul.mubr.bf16.gmra.mxu0 %v1216
      %v2391 = vpop.f32.mrf.mxu0
      %v2392 = vadd.f32 %v2215, %v2391
      %v2393 = vpop.f32.mrf.mxu0
      %v2394 = vpop.f32.mrf.mxu0
      %v2395 = vadd.f32 %v2218, %v2394
      %v2396 = vpop.f32.mrf.mxu0
      %2397 = vmatprep.mubr.bf16.mxu0 %v1271
      %2398 = vmatmul.mubr.bf16.gmra.mxu0 %v1217
      %v2399 = vpop.f32.mrf.mxu0
      %v2400 = vadd.f32 %v2223, %v2399
      %v2401 = vpop.f32.mrf.mxu0
      %v2402 = vpop.f32.mrf.mxu0
      %v2403 = vadd.f32 %v2226, %v2402
      %v2404 = vpop.f32.mrf.mxu0
      %2405 = vmatprep.mubr.bf16.mxu0 %v1272
      %2406 = vmatmul.mubr.bf16.gmra.mxu0 %v1218
      %v2407 = vpop.f32.mrf.mxu0
      %v2408 = vadd.f32 %v2231, %v2407
      %v2409 = vpop.f32.mrf.mxu0
      %v2410 = vpop.f32.mrf.mxu0
      %v2411 = vadd.f32 %v2234, %v2410
      %v2412 = vpop.f32.mrf.mxu0
      %2413 = vmatprep.mubr.bf16.mxu0 %v1273
      %2414 = vmatmul.mubr.bf16.gmra.mxu0 %v1219
      %v2415 = vpop.f32.mrf.mxu0
      %v2416 = vadd.f32 %v2239, %v2415
      %v2417 = vpop.f32.mrf.mxu0
      %v2418 = vpop.f32.mrf.mxu0
      %v2419 = vadd.f32 %v2242, %v2418
      %v2420 = vpop.f32.mrf.mxu0
      %2421 = vmatprep.mubr.bf16.mxu0 %v1274
      %2422 = vmatmul.mubr.bf16.gmra.mxu0 %v1220
      %v2423 = vpop.f32.mrf.mxu0
      %v2424 = vadd.f32 %v2247, %v2423
      %v2425 = vpop.f32.mrf.mxu0
      %v2426 = vpop.f32.mrf.mxu0
      %v2427 = vadd.f32 %v2250, %v2426
      %v2428 = vpop.f32.mrf.mxu0
      %2429 = vmatprep.mubr.bf16.mxu0 %v1275
      %2430 = vmatmul.mubr.bf16.gmra.mxu0 %v1221
      %v2431 = vpop.f32.mrf.mxu0
      %v2432 = vadd.f32 %v2255, %v2431
      %v2433 = vpop.f32.mrf.mxu0
      %v2434 = vpop.f32.mrf.mxu0
      %v2435 = vadd.f32 %v2258, %v2434
      %v2436 = vpop.f32.mrf.mxu0
      %2437 = vmatprep.mubr.bf16.mxu0 %v1276
      %2438 = vmatmul.mubr.bf16.gmra.mxu0 %v1222
      %v2439 = vpop.f32.mrf.mxu0
      %v2440 = vadd.f32 %v2263, %v2439
      %v2441 = vpop.f32.mrf.mxu0
      %v2442 = vpop.f32.mrf.mxu0
      %v2443 = vadd.f32 %v2266, %v2442
      %v2444 = vpop.f32.mrf.mxu0
      %2445 = vmatprep.mubr.bf16.mxu0 %v1277
      %2446 = vmatmul.mubr.bf16.gmra.mxu0 %v1223
      %v2447 = vpop.f32.mrf.mxu0
      %v2448 = vadd.f32 %v2271, %v2447
      %v2449 = vpop.f32.mrf.mxu0
      %v2450 = vpop.f32.mrf.mxu0
      %v2451 = vadd.f32 %v2274, %v2450
      %v2452 = vpop.f32.mrf.mxu0
      %2453 = vmatprep.mubr.bf16.mxu0 %v1278
      %2454 = vmatmul.mubr.bf16.gmra.mxu0 %v1224
      %v2455 = vpop.f32.mrf.mxu0
      %v2456 = vadd.f32 %v2279, %v2455
      %v2457 = vpop.f32.mrf.mxu0
      %v2458 = vpop.f32.mrf.mxu0
      %v2459 = vadd.f32 %v2282, %v2458
      %v2460 = vpop.f32.mrf.mxu0
      %2461 = vmatprep.mubr.bf16.mxu0 %v1279
      %2462 = vmatmul.mubr.bf16.gmra.mxu0 %v1225
      %v2463 = vpop.f32.mrf.mxu0
      %v2464 = vadd.f32 %v2287, %v2463
      %v2465 = vpop.f32.mrf.mxu0
      %v2466 = vpop.f32.mrf.mxu0
      %v2467 = vadd.f32 %v2290, %v2466
      %v2468 = vpop.f32.mrf.mxu0
      %2469 = vmatprep.mubr.bf16.mxu0 %v1280
      %2470 = vmatmul.mubr.bf16.gmra.mxu0 %v1226
      %v2471 = vpop.f32.mrf.mxu0
      %v2472 = vadd.f32 %v2295, %v2471
      %v2473 = vpop.f32.mrf.mxu0
      %v2474 = vpop.f32.mrf.mxu0
      %v2475 = vadd.f32 %v2298, %v2474
      %v2476 = vpop.f32.mrf.mxu0
      %2477 = vmatprep.mubr.bf16.mxu0 %v1281
      %2478 = vmatmul.mubr.bf16.gmra.mxu0 %v1227
      %v2479 = vpop.f32.mrf.mxu0
      %v2480 = vadd.f32 %v2303, %v2479
      %v2481 = vpop.f32.mrf.mxu0
      %v2482 = vpop.f32.mrf.mxu0
      %v2483 = vadd.f32 %v2306, %v2482
      %v2484 = vpop.f32.mrf.mxu0
      %2485 = vmatprep.mubr.bf16.mxu0 %v1282
      %2486 = vmatmul.mubr.bf16.gmra.mxu0 %v1228
      %v2487 = vpop.f32.mrf.mxu0
      %v2488 = vadd.f32 %v2311, %v2487
      %v2489 = vpop.f32.mrf.mxu0
      %v2490 = vpop.f32.mrf.mxu0
      %v2491 = vadd.f32 %v2314, %v2490
      %v2492 = vpop.f32.mrf.mxu0
      %2493 = vmatprep.mubr.bf16.mxu0 %v1283
      %2494 = vmatmul.mubr.bf16.gmra.mxu0 %v1229
      %v2495 = vpop.f32.mrf.mxu0
      %v2496 = vadd.f32 %v2319, %v2495
      %v2497 = vpop.f32.mrf.mxu0
      %v2498 = vpop.f32.mrf.mxu0
      %v2499 = vadd.f32 %v2322, %v2498
      %v2500 = vpop.f32.mrf.mxu0
      %2501 = vdwg.mxu0
      %2502 = vmatprep.subr.bf16.mxu0 0
      %2503 = vmatpush1.bf16.msra.mxu0 %v1882
      %2504 = vmatprep.subr.bf16.mxu0 0
      %2505 = vmatpush1.bf16.msra.mxu0 %v1881
      %2506 = vmatprep.subr.bf16.mxu0 0
      %2507 = vmatpush1.bf16.msra.mxu0 %v1880
      %2508 = vmatprep.subr.bf16.mxu0 0
      %2509 = vmatpush1.bf16.msra.mxu0 %v1879
      %2510 = vmatprep.subr.bf16.mxu0 0
      %2511 = vmatpush1.bf16.msra.mxu0 %v1878
      %2512 = vmatprep.subr.bf16.mxu0 0
      %2513 = vmatpush1.bf16.msra.mxu0 %v1877
      %2514 = vmatprep.subr.bf16.mxu0 0
      %2515 = vmatpush1.bf16.msra.mxu0 %v1876
      %2516 = vmatprep.subr.bf16.mxu0 0
      %2517 = vmatpush1.bf16.msra.mxu0 %v1875
      %2518 = vmatprep.subr.bf16.mxu0 0
      %2519 = vmatpush2.bf16.msra.mxu0 %v1890
      %2520 = vmatprep.subr.bf16.mxu0 0
      %2521 = vmatpush2.bf16.msra.mxu0 %v1889
      %2522 = vmatprep.subr.bf16.mxu0 0
      %2523 = vmatpush2.bf16.msra.mxu0 %v1888
      %2524 = vmatprep.subr.bf16.mxu0 0
      %2525 = vmatpush2.bf16.msra.mxu0 %v1887
      %2526 = vmatprep.subr.bf16.mxu0 0
      %2527 = vmatpush2.bf16.msra.mxu0 %v1886
      %2528 = vmatprep.subr.bf16.mxu0 0
      %2529 = vmatpush2.bf16.msra.mxu0 %v1885
      %2530 = vmatprep.subr.bf16.mxu0 0
      %2531 = vmatpush2.bf16.msra.mxu0 %v1884
      %2532 = vmatprep.subr.bf16.mxu0 0
      %2533 = vmatpush2.bf16.msra.mxu0 %v1883
      %2534 = vmatprep.mubr.bf16.mxu0 %v1323
      %2535 = vmatmul.mubr.bf16.gmra.mxu0 %v1267
      %v2536 = vpop.f32.mrf.mxu0
      %v2537 = vadd.f32 %v2360, %v2536
      %v2538 = vpop.f32.mrf.mxu0
      %v2539 = vpop.f32.mrf.mxu0
      %v2540 = vadd.f32 %v2363, %v2539
      %v2541 = vpop.f32.mrf.mxu0
      %2542 = vmatprep.mubr.bf16.mxu0 %v1324
      %2543 = vmatmul.mubr.bf16.gmra.mxu0 %v1268
      %v2544 = vpop.f32.mrf.mxu0
      %v2545 = vadd.f32 %v2368, %v2544
      %v2546 = vpop.f32.mrf.mxu0
      %v2547 = vpop.f32.mrf.mxu0
      %v2548 = vadd.f32 %v2371, %v2547
      %v2549 = vpop.f32.mrf.mxu0
      %2550 = vmatprep.mubr.bf16.mxu0 %v1325
      %2551 = vmatmul.mubr.bf16.gmra.mxu0 %v1269
      %v2552 = vpop.f32.mrf.mxu0
      %v2553 = vadd.f32 %v2376, %v2552
      %v2554 = vpop.f32.mrf.mxu0
      %v2555 = vpop.f32.mrf.mxu0
      %v2556 = vadd.f32 %v2379, %v2555
      %v2557 = vpop.f32.mrf.mxu0
      %2558 = vmatprep.mubr.bf16.mxu0 %v1326
      %2559 = vmatmul.mubr.bf16.gmra.mxu0 %v1270
      %v2560 = vpop.f32.mrf.mxu0
      %v2561 = vadd.f32 %v2384, %v2560
      %v2562 = vpop.f32.mrf.mxu0
      %v2563 = vpop.f32.mrf.mxu0
      %v2564 = vadd.f32 %v2387, %v2563
      %v2565 = vpop.f32.mrf.mxu0
      %2566 = vmatprep.mubr.bf16.mxu0 %v1327
      %2567 = vmatmul.mubr.bf16.gmra.mxu0 %v1271
      %v2568 = vpop.f32.mrf.mxu0
      %v2569 = vadd.f32 %v2392, %v2568
      %v2570 = vpop.f32.mrf.mxu0
      %v2571 = vpop.f32.mrf.mxu0
      %v2572 = vadd.f32 %v2395, %v2571
      %v2573 = vpop.f32.mrf.mxu0
      %2574 = vmatprep.mubr.bf16.mxu0 %v1328
      %2575 = vmatmul.mubr.bf16.gmra.mxu0 %v1272
      %v2576 = vpop.f32.mrf.mxu0
      %v2577 = vadd.f32 %v2400, %v2576
      %v2578 = vpop.f32.mrf.mxu0
      %v2579 = vpop.f32.mrf.mxu0
      %v2580 = vadd.f32 %v2403, %v2579
      %v2581 = vpop.f32.mrf.mxu0
      %2582 = vmatprep.mubr.bf16.mxu0 %v1329
      %2583 = vmatmul.mubr.bf16.gmra.mxu0 %v1273
      %v2584 = vpop.f32.mrf.mxu0
      %v2585 = vadd.f32 %v2408, %v2584
      %v2586 = vpop.f32.mrf.mxu0
      %v2587 = vpop.f32.mrf.mxu0
      %v2588 = vadd.f32 %v2411, %v2587
      %v2589 = vpop.f32.mrf.mxu0
      %2590 = vmatprep.mubr.bf16.mxu0 %v1330
      %2591 = vmatmul.mubr.bf16.gmra.mxu0 %v1274
      %v2592 = vpop.f32.mrf.mxu0
      %v2593 = vadd.f32 %v2416, %v2592
      %v2594 = vpop.f32.mrf.mxu0
      %v2595 = vpop.f32.mrf.mxu0
      %v2596 = vadd.f32 %v2419, %v2595
      %v2597 = vpop.f32.mrf.mxu0
      %2598 = vmatprep.mubr.bf16.mxu0 %v1331
      %2599 = vmatmul.mubr.bf16.gmra.mxu0 %v1275
      %v2600 = vpop.f32.mrf.mxu0
      %v2601 = vadd.f32 %v2424, %v2600
      %v2602 = vpop.f32.mrf.mxu0
      %v2603 = vpop.f32.mrf.mxu0
      %v2604 = vadd.f32 %v2427, %v2603
      %v2605 = vpop.f32.mrf.mxu0
      %2606 = vmatprep.mubr.bf16.mxu0 %v1332
      %2607 = vmatmul.mubr.bf16.gmra.mxu0 %v1276
      %v2608 = vpop.f32.mrf.mxu0
      %v2609 = vadd.f32 %v2432, %v2608
      %v2610 = vpop.f32.mrf.mxu0
      %v2611 = vpop.f32.mrf.mxu0
      %v2612 = vadd.f32 %v2435, %v2611
      %v2613 = vpop.f32.mrf.mxu0
      %2614 = vmatprep.mubr.bf16.mxu0 %v1333
      %2615 = vmatmul.mubr.bf16.gmra.mxu0 %v1277
      %v2616 = vpop.f32.mrf.mxu0
      %v2617 = vadd.f32 %v2440, %v2616
      %v2618 = vpop.f32.mrf.mxu0
      %v2619 = vpop.f32.mrf.mxu0
      %v2620 = vadd.f32 %v2443, %v2619
      %v2621 = vpop.f32.mrf.mxu0
      %2622 = vmatprep.mubr.bf16.mxu0 %v1334
      %2623 = vmatmul.mubr.bf16.gmra.mxu0 %v1278
      %v2624 = vpop.f32.mrf.mxu0
      %v2625 = vadd.f32 %v2448, %v2624
      %v2626 = vpop.f32.mrf.mxu0
      %v2627 = vpop.f32.mrf.mxu0
      %v2628 = vadd.f32 %v2451, %v2627
      %v2629 = vpop.f32.mrf.mxu0
      %2630 = vmatprep.mubr.bf16.mxu0 %v1335
      %2631 = vmatmul.mubr.bf16.gmra.mxu0 %v1279
      %v2632 = vpop.f32.mrf.mxu0
      %v2633 = vadd.f32 %v2456, %v2632
      %v2634 = vpop.f32.mrf.mxu0
      %v2635 = vpop.f32.mrf.mxu0
      %v2636 = vadd.f32 %v2459, %v2635
      %v2637 = vpop.f32.mrf.mxu0
      %2638 = vmatprep.mubr.bf16.mxu0 %v1336
      %2639 = vmatmul.mubr.bf16.gmra.mxu0 %v1280
      %v2640 = vpop.f32.mrf.mxu0
      %v2641 = vadd.f32 %v2464, %v2640
      %v2642 = vpop.f32.mrf.mxu0
      %v2643 = vpop.f32.mrf.mxu0
      %v2644 = vadd.f32 %v2467, %v2643
      %v2645 = vpop.f32.mrf.mxu0
      %2646 = vmatprep.mubr.bf16.mxu0 %v1337
      %2647 = vmatmul.mubr.bf16.gmra.mxu0 %v1281
      %v2648 = vpop.f32.mrf.mxu0
      %v2649 = vadd.f32 %v2472, %v2648
      %v2650 = vpop.f32.mrf.mxu0
      %v2651 = vpop.f32.mrf.mxu0
      %v2652 = vadd.f32 %v2475, %v2651
      %v2653 = vpop.f32.mrf.mxu0
      %2654 = vmatprep.mubr.bf16.mxu0 %v1338
      %2655 = vmatmul.mubr.bf16.gmra.mxu0 %v1282
      %v2656 = vpop.f32.mrf.mxu0
      %v2657 = vadd.f32 %v2480, %v2656
      %v2658 = vpop.f32.mrf.mxu0
      %v2659 = vpop.f32.mrf.mxu0
      %v2660 = vadd.f32 %v2483, %v2659
      %v2661 = vpop.f32.mrf.mxu0
      %2662 = vmatprep.mubr.bf16.mxu0 %v1339
      %2663 = vmatmul.mubr.bf16.gmra.mxu0 %v1283
      %v2664 = vpop.f32.mrf.mxu0
      %v2665 = vadd.f32 %v2488, %v2664
      %v2666 = vpop.f32.mrf.mxu0
      %v2667 = vpop.f32.mrf.mxu0
      %v2668 = vadd.f32 %v2491, %v2667
      %v2669 = vpop.f32.mrf.mxu0
      %2670 = vmatprep.mubr.bf16.mxu0 %v1340
      %2671 = vmatmul.mubr.bf16.gmra.mxu0 %v1286
      %v2672 = vpop.f32.mrf.mxu0
      %v2673 = vadd.f32 %v2496, %v2672
      %v2674 = vpop.f32.mrf.mxu0
      %v2675 = vpop.f32.mrf.mxu0
      %v2676 = vadd.f32 %v2499, %v2675
      %v2677 = vpop.f32.mrf.mxu0
      %2678 = vdwg.mxu0
      %2679 = vmatprep.subr.bf16.mxu0 0
      %2680 = vmatpush1.bf16.msra.mxu0 %v1898
      %2681 = vmatprep.subr.bf16.mxu0 0
      %2682 = vmatpush1.bf16.msra.mxu0 %v1897
      %2683 = vmatprep.subr.bf16.mxu0 0
      %2684 = vmatpush1.bf16.msra.mxu0 %v1896
      %2685 = vmatprep.subr.bf16.mxu0 0
      %2686 = vmatpush1.bf16.msra.mxu0 %v1895
      %2687 = vmatprep.subr.bf16.mxu0 0
      %2688 = vmatpush1.bf16.msra.mxu0 %v1894
      %2689 = vmatprep.subr.bf16.mxu0 0
      %2690 = vmatpush1.bf16.msra.mxu0 %v1893
      %2691 = vmatprep.subr.bf16.mxu0 0
      %2692 = vmatpush1.bf16.msra.mxu0 %v1892
      %2693 = vmatprep.subr.bf16.mxu0 0
      %2694 = vmatpush1.bf16.msra.mxu0 %v1891
      %2695 = vmatprep.subr.bf16.mxu0 0
      %2696 = vmatpush2.bf16.msra.mxu0 0
      %2697 = vmatprep.subr.bf16.mxu0 0
      %2698 = vmatpush2.bf16.msra.mxu0 0
      %2699 = vmatprep.subr.bf16.mxu0 0
      %2700 = vmatpush2.bf16.msra.mxu0 0
      %2701 = vmatprep.subr.bf16.mxu0 0
      %2702 = vmatpush2.bf16.msra.mxu0 0
      %2703 = vmatprep.subr.bf16.mxu0 0
      %2704 = vmatpush2.bf16.msra.mxu0 0
      %2705 = vmatprep.subr.bf16.mxu0 0
      %2706 = vmatpush2.bf16.msra.mxu0 0
      %2707 = vmatprep.subr.bf16.mxu0 0
      %2708 = vmatpush2.bf16.msra.mxu0 0
      %2709 = vmatprep.subr.bf16.mxu0 0
      %2710 = vmatpush2.bf16.msra.mxu0 0
      %2711 = vmatprep.mubr.bf16.mxu0 0
      %2712 = vmatmul.mubr.bf16.gmra.mxu0 %v1377
      %v2713 = vpop.f32.mrf.mxu0
      %v2714 = vadd.f32 %v2537, %v2713
      %v2715 = vpop.f32.mrf.mxu0
      %v2716 = vpop.f32.mrf.mxu0
      %v2717 = vadd.f32 %v2540, %v2716
      %v2718 = vpop.f32.mrf.mxu0
      %2719 = vmatprep.mubr.bf16.mxu0 0
      %2720 = vmatmul.mubr.bf16.gmra.mxu0 %v1378
      %v2721 = vpop.f32.mrf.mxu0
      %v2722 = vadd.f32 %v2545, %v2721
      %v2723 = vpop.f32.mrf.mxu0
      %v2724 = vpop.f32.mrf.mxu0
      %v2725 = vadd.f32 %v2548, %v2724
      %v2726 = vpop.f32.mrf.mxu0
      %2727 = vmatprep.mubr.bf16.mxu0 0
      %2728 = vmatmul.mubr.bf16.gmra.mxu0 %v1379
      %v2729 = vpop.f32.mrf.mxu0
      %v2730 = vadd.f32 %v2553, %v2729
      %v2731 = vpop.f32.mrf.mxu0
      %v2732 = vpop.f32.mrf.mxu0
      %v2733 = vadd.f32 %v2556, %v2732
      %v2734 = vpop.f32.mrf.mxu0
      %2735 = vmatprep.mubr.bf16.mxu0 0
      %2736 = vmatmul.mubr.bf16.gmra.mxu0 %v1380
      %v2737 = vpop.f32.mrf.mxu0
      %v2738 = vadd.f32 %v2561, %v2737
      %v2739 = vpop.f32.mrf.mxu0
      %v2740 = vpop.f32.mrf.mxu0
      %v2741 = vadd.f32 %v2564, %v2740
      %v2742 = vpop.f32.mrf.mxu0
      %2743 = vmatprep.mubr.bf16.mxu0 0
      %2744 = vmatmul.mubr.bf16.gmra.mxu0 %v1381
      %v2745 = vpop.f32.mrf.mxu0
      %v2746 = vadd.f32 %v2569, %v2745
      %v2747 = vpop.f32.mrf.mxu0
      %v2748 = vpop.f32.mrf.mxu0
      %v2749 = vadd.f32 %v2572, %v2748
      %v2750 = vpop.f32.mrf.mxu0
      %2751 = vmatprep.mubr.bf16.mxu0 0
      %2752 = vmatmul.mubr.bf16.gmra.mxu0 %v1382
      %v2753 = vpop.f32.mrf.mxu0
      %v2754 = vadd.f32 %v2577, %v2753
      %v2755 = vpop.f32.mrf.mxu0
      %v2756 = vpop.f32.mrf.mxu0
      %v2757 = vadd.f32 %v2580, %v2756
      %v2758 = vpop.f32.mrf.mxu0
      %2759 = vmatprep.mubr.bf16.mxu0 0
      %2760 = vmatmul.mubr.bf16.gmra.mxu0 %v1383
      %v2761 = vpop.f32.mrf.mxu0
      %v2762 = vadd.f32 %v2585, %v2761
      %v2763 = vpop.f32.mrf.mxu0
      %v2764 = vpop.f32.mrf.mxu0
      %v2765 = vadd.f32 %v2588, %v2764
      %v2766 = vpop.f32.mrf.mxu0
      %2767 = vmatprep.mubr.bf16.mxu0 0
      %2768 = vmatmul.mubr.bf16.gmra.mxu0 %v1384
      %v2769 = vpop.f32.mrf.mxu0
      %v2770 = vadd.f32 %v2593, %v2769
      %v2771 = vpop.f32.mrf.mxu0
      %v2772 = vpop.f32.mrf.mxu0
      %v2773 = vadd.f32 %v2596, %v2772
      %v2774 = vpop.f32.mrf.mxu0
      %2775 = vmatprep.mubr.bf16.mxu0 0
      %2776 = vmatmul.mubr.bf16.gmra.mxu0 %v1385
      %v2777 = vpop.f32.mrf.mxu0
      %v2778 = vadd.f32 %v2601, %v2777
      %v2779 = vpop.f32.mrf.mxu0
      %v2780 = vpop.f32.mrf.mxu0
      %v2781 = vadd.f32 %v2604, %v2780
      %v2782 = vpop.f32.mrf.mxu0
      %2783 = vmatprep.mubr.bf16.mxu0 0
      %2784 = vmatmul.mubr.bf16.gmra.mxu0 %v1386
      %v2785 = vpop.f32.mrf.mxu0
      %v2786 = vadd.f32 %v2609, %v2785
      %v2787 = vpop.f32.mrf.mxu0
      %v2788 = vpop.f32.mrf.mxu0
      %v2789 = vadd.f32 %v2612, %v2788
      %v2790 = vpop.f32.mrf.mxu0
      %2791 = vmatprep.mubr.bf16.mxu0 0
      %2792 = vmatmul.mubr.bf16.gmra.mxu0 %v1387
      %v2793 = vpop.f32.mrf.mxu0
      %v2794 = vadd.f32 %v2617, %v2793
      %v2795 = vpop.f32.mrf.mxu0
      %v2796 = vpop.f32.mrf.mxu0
      %v2797 = vadd.f32 %v2620, %v2796
      %v2798 = vpop.f32.mrf.mxu0
      %2799 = vmatprep.mubr.bf16.mxu0 0
      %2800 = vmatmul.mubr.bf16.gmra.mxu0 %v1388
      %v2801 = vpop.f32.mrf.mxu0
      %v2802 = vadd.f32 %v2625, %v2801
      %v2803 = vpop.f32.mrf.mxu0
      %v2804 = vpop.f32.mrf.mxu0
      %v2805 = vadd.f32 %v2628, %v2804
      %v2806 = vpop.f32.mrf.mxu0
      %2807 = vmatprep.mubr.bf16.mxu0 0
      %2808 = vmatmul.mubr.bf16.gmra.mxu0 %v1389
      %v2809 = vpop.f32.mrf.mxu0
      %v2810 = vadd.f32 %v2633, %v2809
      %v2811 = vpop.f32.mrf.mxu0
      %v2812 = vpop.f32.mrf.mxu0
      %v2813 = vadd.f32 %v2636, %v2812
      %v2814 = vpop.f32.mrf.mxu0
      %2815 = vmatprep.mubr.bf16.mxu0 0
      %2816 = vmatmul.mubr.bf16.gmra.mxu0 %v1390
      %v2817 = vpop.f32.mrf.mxu0
      %v2818 = vadd.f32 %v2641, %v2817
      %v2819 = vpop.f32.mrf.mxu0
      %v2820 = vpop.f32.mrf.mxu0
      %v2821 = vadd.f32 %v2644, %v2820
      %v2822 = vpop.f32.mrf.mxu0
      %2823 = vmatprep.mubr.bf16.mxu0 0
      %2824 = vmatmul.mubr.bf16.gmra.mxu0 %v1391
      %v2825 = vpop.f32.mrf.mxu0
      %v2826 = vadd.f32 %v2649, %v2825
      %v2827 = vpop.f32.mrf.mxu0
      %v2828 = vpop.f32.mrf.mxu0
      %v2829 = vadd.f32 %v2652, %v2828
      %v2830 = vpop.f32.mrf.mxu0
      %2831 = vmatprep.mubr.bf16.mxu0 0
      %2832 = vmatmul.mubr.bf16.gmra.mxu0 %v1392
      %v2833 = vpop.f32.mrf.mxu0
      %v2834 = vadd.f32 %v2657, %v2833
      %v2835 = vpop.f32.mrf.mxu0
      %v2836 = vpop.f32.mrf.mxu0
      %v2837 = vadd.f32 %v2660, %v2836
      %v2838 = vpop.f32.mrf.mxu0
      %2839 = vmatprep.mubr.bf16.mxu0 0
      %2840 = vmatmul.mubr.bf16.gmra.mxu0 %v1393
      %v2841 = vpop.f32.mrf.mxu0
      %v2842 = vadd.f32 %v2665, %v2841
      %v2843 = vpop.f32.mrf.mxu0
      %v2844 = vpop.f32.mrf.mxu0
      %v2845 = vadd.f32 %v2668, %v2844
      %v2846 = vpop.f32.mrf.mxu0
      %2847 = vmatprep.mubr.bf16.mxu0 0
      %2848 = vmatmul.mubr.bf16.gmra.mxu0 %v1394
      %v2849 = vpop.f32.mrf.mxu0
      %v2850 = vadd.f32 %v2673, %v2849
      %v2851 = vpop.f32.mrf.mxu0
      %v2852 = vpop.f32.mrf.mxu0
      %v2853 = vadd.f32 %v2676, %v2852
      %v2854 = vpop.f32.mrf.mxu0
      %2855 = vdwg.mxu0
      %v2856 = vld [vmem:[%s5] sm:$0x1]
      %v2858 = vlaneseq
      %v2859 = vshrl.u32 %v2858, 7
      %v2860 = vsub.s32 0, %v2859
      %v2861 = vrot.slane %v2856, %v2860
      %v2863 = vmul.f32 %v2714, %v2861
      %v2864 = vmul.f32 %v2717, %v2861
      %v2865 = vmul.f32 %v2722, %v2861
      %v2866 = vmul.f32 %v2725, %v2861
      %v2867 = vmul.f32 %v2730, %v2861
      %v2868 = vmul.f32 %v2733, %v2861
      %v2869 = vmul.f32 %v2738, %v2861
      %v2870 = vmul.f32 %v2741, %v2861
      %v2871 = vmul.f32 %v2746, %v2861
      %v2872 = vmul.f32 %v2749, %v2861
      %v2873 = vmul.f32 %v2754, %v2861
      %v2874 = vmul.f32 %v2757, %v2861
      %v2875 = vmul.f32 %v2762, %v2861
      %v2876 = vmul.f32 %v2765, %v2861
      %v2877 = vmul.f32 %v2770, %v2861
      %v2878 = vmul.f32 %v2773, %v2861
      %v2879 = vmul.f32 %v2778, %v2861
      %v2880 = vmul.f32 %v2781, %v2861
      %v2881 = vmul.f32 %v2786, %v2861
      %v2882 = vmul.f32 %v2789, %v2861
      %v2883 = vmul.f32 %v2794, %v2861
      %v2884 = vmul.f32 %v2797, %v2861
      %v2885 = vmul.f32 %v2802, %v2861
      %v2886 = vmul.f32 %v2805, %v2861
      %v2887 = vmul.f32 %v2810, %v2861
      %v2888 = vmul.f32 %v2813, %v2861
      %v2889 = vmul.f32 %v2818, %v2861
      %v2890 = vmul.f32 %v2821, %v2861
      %v2891 = vmul.f32 %v2826, %v2861
      %v2892 = vmul.f32 %v2829, %v2861
      %v2893 = vmul.f32 %v2834, %v2861
      %v2894 = vmul.f32 %v2837, %v2861
      %v2895 = vmul.f32 %v2842, %v2861
      %v2896 = vmul.f32 %v2845, %v2861
      %v2897 = vmul.f32 %v2850, %v2861
      %v2898 = vmul.f32 %v2853, %v2861
      %v2899 = vld [vmem:[%s6] sm:$0x1]
      %v2901 = vlaneseq
      %v2902 = vshrl.u32 %v2901, 7
      %v2903 = vsub.s32 0, %v2902
      %v2904 = vrot.slane %v2899, %v2903
      %v2906 = vadd.f32 %v2863, %v2904
      %v2907 = vadd.f32 %v2864, %v2904
      %v2908 = vadd.f32 %v2865, %v2904
      %v2909 = vadd.f32 %v2866, %v2904
      %v2910 = vadd.f32 %v2867, %v2904
      %v2911 = vadd.f32 %v2868, %v2904
      %v2912 = vadd.f32 %v2869, %v2904
      %v2913 = vadd.f32 %v2870, %v2904
      %v2914 = vadd.f32 %v2871, %v2904
      %v2915 = vadd.f32 %v2872, %v2904
      %v2916 = vadd.f32 %v2873, %v2904
      %v2917 = vadd.f32 %v2874, %v2904
      %v2918 = vadd.f32 %v2875, %v2904
      %v2919 = vadd.f32 %v2876, %v2904
      %v2920 = vadd.f32 %v2877, %v2904
      %v2921 = vadd.f32 %v2878, %v2904
      %v2922 = vadd.f32 %v2879, %v2904
      %v2923 = vadd.f32 %v2880, %v2904
      %v2924 = vadd.f32 %v2881, %v2904
      %v2925 = vadd.f32 %v2882, %v2904
      %v2926 = vadd.f32 %v2883, %v2904
      %v2927 = vadd.f32 %v2884, %v2904
      %v2928 = vadd.f32 %v2885, %v2904
      %v2929 = vadd.f32 %v2886, %v2904
      %v2930 = vadd.f32 %v2887, %v2904
      %v2931 = vadd.f32 %v2888, %v2904
      %v2932 = vadd.f32 %v2889, %v2904
      %v2933 = vadd.f32 %v2890, %v2904
      %v2934 = vadd.f32 %v2891, %v2904
      %v2935 = vadd.f32 %v2892, %v2904
      %v2936 = vadd.f32 %v2893, %v2904
      %v2937 = vadd.f32 %v2894, %v2904
      %v2938 = vadd.f32 %v2895, %v2904
      %v2939 = vadd.f32 %v2896, %v2904
      %v2940 = vadd.f32 %v2897, %v2904
      %v2941 = vadd.f32 %v2898, %v2904
      %v2942 = vmax.f32 %v2906, 0.0
      %v2943 = vmax.f32 %v2907, 0.0
      %v2944 = vmax.f32 %v2908, 0.0
      %v2945 = vmax.f32 %v2909, 0.0
      %v2946 = vmax.f32 %v2910, 0.0
      %v2947 = vmax.f32 %v2911, 0.0
      %v2948 = vmax.f32 %v2912, 0.0
      %v2949 = vmax.f32 %v2913, 0.0
      %v2950 = vmax.f32 %v2914, 0.0
      %v2951 = vmax.f32 %v2915, 0.0
      %v2952 = vmax.f32 %v2916, 0.0
      %v2953 = vmax.f32 %v2917, 0.0
      %v2954 = vmax.f32 %v2918, 0.0
      %v2955 = vmax.f32 %v2919, 0.0
      %v2956 = vmax.f32 %v2920, 0.0
      %v2957 = vmax.f32 %v2921, 0.0
      %v2958 = vmax.f32 %v2922, 0.0
      %v2959 = vmax.f32 %v2923, 0.0
      %v2960 = vmax.f32 %v2924, 0.0
      %v2961 = vmax.f32 %v2925, 0.0
      %v2962 = vmax.f32 %v2926, 0.0
      %v2963 = vmax.f32 %v2927, 0.0
      %v2964 = vmax.f32 %v2928, 0.0
      %v2965 = vmax.f32 %v2929, 0.0
      %v2966 = vmax.f32 %v2930, 0.0
      %v2967 = vmax.f32 %v2931, 0.0
      %v2968 = vmax.f32 %v2932, 0.0
      %v2969 = vmax.f32 %v2933, 0.0
      %v2970 = vmax.f32 %v2934, 0.0
      %v2971 = vmax.f32 %v2935, 0.0
      %v2972 = vmax.f32 %v2936, 0.0
      %v2973 = vmax.f32 %v2937, 0.0
      %v2974 = vmax.f32 %v2938, 0.0
      %v2975 = vmax.f32 %v2939, 0.0
      %v2976 = vmax.f32 %v2940, 0.0
      %v2977 = vmax.f32 %v2941, 0.0
      %v2978 = vmul.f32 %v2942, %v762
      %v2979 = vmul.f32 %v2943, %v767
      %v2980 = vmul.f32 %v2944, %v772
      %v2981 = vmul.f32 %v2945, %v777
      %v2982 = vmul.f32 %v2946, %v782
      %v2983 = vmul.f32 %v2947, %v787
      %v2984 = vmul.f32 %v2948, %v792
      %v2985 = vmul.f32 %v2949, %v797
      %v2986 = vmul.f32 %v2950, %v802
      %v2987 = vmul.f32 %v2951, %v807
      %v2988 = vmul.f32 %v2952, %v812
      %v2989 = vmul.f32 %v2953, %v817
      %v2990 = vmul.f32 %v2954, %v822
      %v2991 = vmul.f32 %v2955, %v827
      %v2992 = vmul.f32 %v2956, %v832
      %v2993 = vmul.f32 %v2957, %v837
      %v2994 = vmul.f32 %v2958, %v842
      %v2995 = vmul.f32 %v2959, %v847
      %v2996 = vmul.f32 %v2960, %v852
      %v2997 = vmul.f32 %v2961, %v857
      %v2998 = vmul.f32 %v2962, %v862
      %v2999 = vmul.f32 %v2963, %v867
      %v3000 = vmul.f32 %v2964, %v872
      %v3001 = vmul.f32 %v2965, %v877
      %v3002 = vmul.f32 %v2966, %v882
      %v3003 = vmul.f32 %v2967, %v887
      %v3004 = vmul.f32 %v2968, %v892
      %v3005 = vmul.f32 %v2969, %v897
      %v3006 = vmul.f32 %v2970, %v902
      %v3007 = vmul.f32 %v2971, %v907
      %v3008 = vmul.f32 %v2972, %v912
      %v3009 = vmul.f32 %v2973, %v917
      %v3010 = vmul.f32 %v2974, %v922
      %v3011 = vmul.f32 %v2975, %v927
      %v3012 = vmul.f32 %v2976, %v932
      %v3013 = vmul.f32 %v2977, %v937
      %vm3017 = vcmask 1046528
      %v3018 = vrot.slane %v2978, 1
      %v3019 = vrot.slane %v2979, 1
      %v3020 = vsel %vm3017, %v3018, %v3019
      %v3021 = vrot.slane %v2980, 1
      %v3022 = vsel %vm3017, %v3019, %v3021
      %vm3027 = vcmask 1044480
      %v3028 = vrot.slane %v2980, 3
      %v3029 = vrot.slane %v2981, 3
      %v3030 = vsel %vm3027, %v3028, %v3029
      %v3031 = vrot.slane %v2982, 3
      %v3032 = vsel %vm3027, %v3029, %v3031
      %vm3037 = vcmask 1042432
      %v3038 = vrot.slane %v2982, 5
      %v3039 = vrot.slane %v2983, 5
      %v3040 = vsel %vm3037, %v3038, %v3039
      %v3041 = vrot.slane %v2984, 5
      %v3042 = vsel %vm3037, %v3039, %v3041
      %vm3047 = vcmask 1040384
      %v3048 = vrot.slane %v2984, 7
      %v3049 = vrot.slane %v2985, 7
      %v3050 = vsel %vm3047, %v3048, %v3049
      %v3051 = vrot.slane %v2986, 7
      %v3052 = vsel %vm3047, %v3049, %v3051
      %v3058 = vrot.slane %v2987, 1
      %v3059 = vrot.slane %v2988, 1
      %v3060 = vsel %vm3017, %v3058, %v3059
      %v3061 = vrot.slane %v2989, 1
      %v3062 = vsel %vm3017, %v3059, %v3061
      %v3067 = vrot.slane %v2989, 3
      %v3068 = vrot.slane %v2990, 3
      %v3069 = vsel %vm3027, %v3067, %v3068
      %v3070 = vrot.slane %v2991, 3
      %v3071 = vsel %vm3027, %v3068, %v3070
      %v3076 = vrot.slane %v2991, 5
      %v3077 = vrot.slane %v2992, 5
      %v3078 = vsel %vm3037, %v3076, %v3077
      %v3079 = vrot.slane %v2993, 5
      %v3080 = vsel %vm3037, %v3077, %v3079
      %v3085 = vrot.slane %v2993, 7
      %v3086 = vrot.slane %v2994, 7
      %v3087 = vsel %vm3047, %v3085, %v3086
      %v3088 = vrot.slane %v2995, 7
      %v3089 = vsel %vm3047, %v3086, %v3088
      %v3095 = vrot.slane %v2996, 1
      %v3096 = vrot.slane %v2997, 1
      %v3097 = vsel %vm3017, %v3095, %v3096
      %v3098 = vrot.slane %v2998, 1
      %v3099 = vsel %vm3017, %v3096, %v3098
      %v3104 = vrot.slane %v2998, 3
      %v3105 = vrot.slane %v2999, 3
      %v3106 = vsel %vm3027, %v3104, %v3105
      %v3107 = vrot.slane %v3000, 3
      %v3108 = vsel %vm3027, %v3105, %v3107
      %v3113 = vrot.slane %v3000, 5
      %v3114 = vrot.slane %v3001, 5
      %v3115 = vsel %vm3037, %v3113, %v3114
      %v3116 = vrot.slane %v3002, 5
      %v3117 = vsel %vm3037, %v3114, %v3116
      %v3122 = vrot.slane %v3002, 7
      %v3123 = vrot.slane %v3003, 7
      %v3124 = vsel %vm3047, %v3122, %v3123
      %v3125 = vrot.slane %v3004, 7
      %v3126 = vsel %vm3047, %v3123, %v3125
      %v3132 = vrot.slane %v3005, 1
      %v3133 = vrot.slane %v3006, 1
      %v3134 = vsel %vm3017, %v3132, %v3133
      %v3135 = vrot.slane %v3007, 1
      %v3136 = vsel %vm3017, %v3133, %v3135
      %v3141 = vrot.slane %v3007, 3
      %v3142 = vrot.slane %v3008, 3
      %v3143 = vsel %vm3027, %v3141, %v3142
      %v3144 = vrot.slane %v3009, 3
      %v3145 = vsel %vm3027, %v3142, %v3144
      %v3150 = vrot.slane %v3009, 5
      %v3151 = vrot.slane %v3010, 5
      %v3152 = vsel %vm3037, %v3150, %v3151
      %v3153 = vrot.slane %v3011, 5
      %v3154 = vsel %vm3037, %v3151, %v3153
      %v3159 = vrot.slane %v3011, 7
      %v3160 = vrot.slane %v3012, 7
      %v3161 = vsel %vm3047, %v3159, %v3160
      %v3162 = vrot.slane %v3013, 7
      %v3163 = vsel %vm3047, %v3160, %v3162
      %3166 = vst [vmem:[%s313] sm:$0xff] %v3020
      %3167 = vst [vmem:[%s313 + $0x8] sm:$0xff] %v3022
      %3168 = vst [vmem:[%s313 + $0x10] sm:$0xff] %v3030
      %3169 = vst [vmem:[%s313 + $0x18] sm:$0xff] %v3032
      %3170 = vst [vmem:[%s313 + $0x20] sm:$0xff] %v3040
      %3171 = vst [vmem:[%s313 + $0x28] sm:$0xff] %v3042
      %3172 = vst [vmem:[%s313 + $0x30] sm:$0xff] %v3050
      %3173 = vst [vmem:[%s313 + $0x38] sm:$0xff] %v3052
      %3174 = vst [vmem:[%s313 + $0x40] sm:$0xff] %v3060
      %3175 = vst [vmem:[%s313 + $0x48] sm:$0xff] %v3062
      %3176 = vst [vmem:[%s313 + $0x50] sm:$0xff] %v3069
      %3177 = vst [vmem:[%s313 + $0x58] sm:$0xff] %v3071
      %3178 = vst [vmem:[%s313 + $0x60] sm:$0xff] %v3078
      %3179 = vst [vmem:[%s313 + $0x68] sm:$0xff] %v3080
      %3180 = vst [vmem:[%s313 + $0x70] sm:$0xff] %v3087
      %3181 = vst [vmem:[%s313 + $0x78] sm:$0xff] %v3089
      %3182 = vst [vmem:[%s313 + $0x80] sm:$0xff] %v3097
      %3183 = vst [vmem:[%s313 + $0x88] sm:$0xff] %v3099
      %3184 = vst [vmem:[%s313 + $0x90] sm:$0xff] %v3106
      %3185 = vst [vmem:[%s313 + $0x98] sm:$0xff] %v3108
      %3186 = vst [vmem:[%s313 + $0xa0] sm:$0xff] %v3115
      %3187 = vst [vmem:[%s313 + $0xa8] sm:$0xff] %v3117
      %3188 = vst [vmem:[%s313 + $0xb0] sm:$0xff] %v3124
      %3189 = vst [vmem:[%s313 + $0xb8] sm:$0xff] %v3126
      %3190 = vst [vmem:[%s313 + $0xc0] sm:$0xff] %v3134
      %3191 = vst [vmem:[%s313 + $0xc8] sm:$0xff] %v3136
      %3192 = vst [vmem:[%s313 + $0xd0] sm:$0xff] %v3143
      %3193 = vst [vmem:[%s313 + $0xd8] sm:$0xff] %v3145
      %3194 = vst [vmem:[%s313 + $0xe0] sm:$0xff] %v3152
      %3195 = vst [vmem:[%s313 + $0xe8] sm:$0xff] %v3154
      %3196 = vst [vmem:[%s313 + $0xf0] sm:$0xff] %v3161
      %3197 = vst [vmem:[%s313 + $0xf8] sm:$0xff] %v3163
      %3198 = vxpose.xlu0.b32.start [1/16] %v3020, 128
      %3199 = vxpose.xlu0.b32.cont [2/16] %v3022, 128
      %3200 = vxpose.xlu0.b32.cont [3/16] %v3030, 128
      %3201 = vxpose.xlu0.b32.cont [4/16] %v3032, 128
      %3202 = vxpose.xlu0.b32.cont [5/16] %v3040, 128
      %3203 = vxpose.xlu0.b32.cont [6/16] %v3042, 128
      %3204 = vxpose.xlu0.b32.cont [7/16] %v3050, 128
      %3205 = vxpose.xlu0.b32.cont [8/16] %v3052, 128
      %3206 = vxpose.xlu0.b32.cont [9/16] %v3060, 128
      %3207 = vxpose.xlu0.b32.cont [10/16] %v3062, 128
      %3208 = vxpose.xlu0.b32.cont [11/16] %v3069, 128
      %3209 = vxpose.xlu0.b32.cont [12/16] %v3071, 128
      %3210 = vxpose.xlu0.b32.cont [13/16] %v3078, 128
      %3211 = vxpose.xlu0.b32.cont [14/16] %v3080, 128
      %3212 = vxpose.xlu0.b32.cont [15/16] %v3087, 128
      %3213 = vxpose.xlu0.b32.end [16/16] %v3089, 128
      %v3214 = vpop.trf.xlu0
      %v3215 = vpop.trf.xlu0
      %v3216 = vpop.trf.xlu0
      %v3217 = vpop.trf.xlu0
      %v3218 = vpop.trf.xlu0
      %v3219 = vpop.trf.xlu0
      %v3220 = vpop.trf.xlu0
      %v3221 = vpop.trf.xlu0
      %v3222 = vpop.trf.xlu0
      %v3223 = vpop.trf.xlu0
      %v3224 = vpop.trf.xlu0
      %v3225 = vpop.trf.xlu0
      %v3226 = vpop.trf.xlu0
      %v3227 = vpop.trf.xlu0
      %v3228 = vpop.trf.xlu0
      %v3229 = vpop.trf.xlu0
      %3230 = vxpose.xlu0.b32.start [1/16] %v3097, 128
      %3231 = vxpose.xlu0.b32.cont [2/16] %v3099, 128
      %3232 = vxpose.xlu0.b32.cont [3/16] %v3106, 128
      %3233 = vxpose.xlu0.b32.cont [4/16] %v3108, 128
      %3234 = vxpose.xlu0.b32.cont [5/16] %v3115, 128
      %3235 = vxpose.xlu0.b32.cont [6/16] %v3117, 128
      %3236 = vxpose.xlu0.b32.cont [7/16] %v3124, 128
      %3237 = vxpose.xlu0.b32.cont [8/16] %v3126, 128
      %3238 = vxpose.xlu0.b32.cont [9/16] %v3134, 128
      %3239 = vxpose.xlu0.b32.cont [10/16] %v3136, 128
      %3240 = vxpose.xlu0.b32.cont [11/16] %v3143, 128
      %3241 = vxpose.xlu0.b32.cont [12/16] %v3145, 128
      %3242 = vxpose.xlu0.b32.cont [13/16] %v3152, 128
      %3243 = vxpose.xlu0.b32.cont [14/16] %v3154, 128
      %3244 = vxpose.xlu0.b32.cont [15/16] %v3161, 128
      %3245 = vxpose.xlu0.b32.end [16/16] %v3163, 128
      %v3246 = vpop.trf.xlu0
      %v3247 = vpop.trf.xlu0
      %v3248 = vpop.trf.xlu0
      %v3249 = vpop.trf.xlu0
      %v3250 = vpop.trf.xlu0
      %v3251 = vpop.trf.xlu0
      %v3252 = vpop.trf.xlu0
      %v3253 = vpop.trf.xlu0
      %v3254 = vpop.trf.xlu0
      %v3255 = vpop.trf.xlu0
      %v3256 = vpop.trf.xlu0
      %v3257 = vpop.trf.xlu0
      %v3258 = vpop.trf.xlu0
      %v3259 = vpop.trf.xlu0
      %v3260 = vpop.trf.xlu0
      %v3261 = vpop.trf.xlu0
      %3262 = vst [vmem:[%s318] sm:$0xff] %v3214
      %3263 = vst [vmem:[%s318 + $0x8] sm:$0xff] %v3246
      %3264 = vst [vmem:[%s318 + $0x10] sm:$0xff] %v3215
      %3265 = vst [vmem:[%s318 + $0x18] sm:$0xff] %v3247
      %3266 = vst [vmem:[%s318 + $0x20] sm:$0xff] %v3216
      %3267 = vst [vmem:[%s318 + $0x28] sm:$0xff] %v3248
      %3268 = vst [vmem:[%s318 + $0x30] sm:$0xff] %v3217
      %3269 = vst [vmem:[%s318 + $0x38] sm:$0xff] %v3249
      %3270 = vst [vmem:[%s318 + $0x40] sm:$0xff] %v3218
      %3271 = vst [vmem:[%s318 + $0x48] sm:$0xff] %v3250
      %3272 = vst [vmem:[%s318 + $0x50] sm:$0xff] %v3219
      %3273 = vst [vmem:[%s318 + $0x58] sm:$0xff] %v3251
      %3274 = vst [vmem:[%s318 + $0x60] sm:$0xff] %v3220
      %3275 = vst [vmem:[%s318 + $0x68] sm:$0xff] %v3252
      %3276 = vst [vmem:[%s318 + $0x70] sm:$0xff] %v3221
      %3277 = vst [vmem:[%s318 + $0x78] sm:$0xff] %v3253
      %3278 = vst [vmem:[%s318 + $0x80] sm:$0xff] %v3222
      %3279 = vst [vmem:[%s318 + $0x88] sm:$0xff] %v3254
      %3280 = vst [vmem:[%s318 + $0x90] sm:$0xff] %v3223
      %3281 = vst [vmem:[%s318 + $0x98] sm:$0xff] %v3255
      %3282 = vst [vmem:[%s318 + $0xa0] sm:$0xff] %v3224
      %3283 = vst [vmem:[%s318 + $0xa8] sm:$0xff] %v3256
      %3284 = vst [vmem:[%s318 + $0xb0] sm:$0xff] %v3225
      %3285 = vst [vmem:[%s318 + $0xb8] sm:$0xff] %v3257
      %3286 = vst [vmem:[%s318 + $0xc0] sm:$0xff] %v3226
      %3287 = vst [vmem:[%s318 + $0xc8] sm:$0xff] %v3258
      %3288 = vst [vmem:[%s318 + $0xd0] sm:$0xff] %v3227
      %3289 = vst [vmem:[%s318 + $0xd8] sm:$0xff] %v3259
      %3290 = vst [vmem:[%s318 + $0xe0] sm:$0xff] %v3228
      %3291 = vst [vmem:[%s318 + $0xe8] sm:$0xff] %v3260
      %3292 = vst [vmem:[%s318 + $0xf0] sm:$0xff] %v3229
      %3293 = vst [vmem:[%s318 + $0xf8] sm:$0xff] %v3261
      %p3294 = scmp.lt.s32.totalorder %s20, 1
      %s3295 = scalar_select %p3294, %s20, 1
      %s3296 = smul.addr %s3295, 32
      %s3297 = smul.addr %s3296, 8
      %s3298 = scalar_lea.vmem %s7, %s3297
      %p3299 = scmp.lt.s32.totalorder %s20, 1
      %s3300 = scalar_select %p3299, %s20, 1
      %s3301 = smul.addr %s3300, 32
      %s3302 = smul.addr %s3301, 8
      %s3303 = scalar_lea.vmem %s8, %s3302
      // Predicated region
      $region49: #{stereo_track_head_forward.2} parent=47 // pred_check
        %p3304 = pneg %p190
      $region50: #{stereo_track_head_forward.2} parent=47 // pred_check_branch
        %3306 = sbr.rel (%p3304) target = $region52
      $region51: #{stereo_track_head_forward.2} parent=47 // pred_region
        _
      $region52: #{stereo_track_head_forward.2} parent=47 // pred_fallthru
        _
      // Predicated region
      $region53: #{stereo_track_head_forward.2} parent=47 // pred_check
        %p3307 = pneg %p216
      $region54: #{stereo_track_head_forward.2} parent=47 // pred_check_branch
        %3309 = sbr.rel (%p3307) target = $region56
      $region55: #{stereo_track_head_forward.2} parent=47 // pred_region
        _
      $region56: #{stereo_track_head_forward.2} parent=47 // pred_fallthru
        _
    $region48: #{stereo_track_head_forward.2} parent=5 // pred_fallthru
      _
    %p3310 = scmp.le.s32.totalorder 2, %s15
    // Predicated region
    $region57: #{stereo_track_head_forward.2} parent=5 // pred_check
      %p3311 = pneg %p3310
    $region58: #{stereo_track_head_forward.2} parent=5 // pred_check_branch
      %3313 = sbr.rel (%p3311) target = $region60
    $region59: #{stereo_track_head_forward.2} parent=5 // pred_region
      %s3314 = ssub.s32 %s15, 2
      // Predicated region
      $region61: #{stereo_track_head_forward.2} parent=59 // pred_check
        %p3315 = pneg %p196
      $region62: #{stereo_track_head_forward.2} parent=59 // pred_check_branch
        %3317 = sbr.rel (%p3315) target = $region64
      $region63: #{stereo_track_head_forward.2} parent=59 // pred_region
        %p3318 = scmp.lt.s32.totalorder %s21, 1
        %s3319 = scalar_select %p3318, %s21, 1
        %s3320 = smul.addr %s3319, 32
        %s3321 = smul.addr %s3320, 8
        %s3322 = scalar_lea.vmem %s7, %s3321
      $region64: #{stereo_track_head_forward.2} parent=59 // pred_fallthru
        _
      // Predicated region
      $region65: #{stereo_track_head_forward.2} parent=59 // pred_check
        %p3323 = pneg %p222
      $region66: #{stereo_track_head_forward.2} parent=59 // pred_check_branch
        %3325 = sbr.rel (%p3323) target = $region68
      $region67: #{stereo_track_head_forward.2} parent=59 // pred_region
        %p3326 = scmp.lt.s32.totalorder %s21, 1
        %s3327 = scalar_select %p3326, %s21, 1
        %s3328 = smul.addr %s3327, 32
        %s3329 = smul.addr %s3328, 8
        %s3330 = scalar_lea.vmem %s8, %s3329
      $region68: #{stereo_track_head_forward.2} parent=59 // pred_fallthru
        _
    $region60: #{stereo_track_head_forward.2} parent=5 // pred_fallthru
      _
  $region6: #{stereo_track_head_forward.2} parent=0 // loop_footer
    %s19 = sadd.s32 1, %s15
  $region7: #{stereo_track_head_forward.2} parent=0 // loop_footer_branch
    %14 = sbr.rel target = $region3
  $region8: #{stereo_track_head_forward.2} parent=0 // loop_exit
    _

</llo_original>
